<compile_context>
chip_gen: v7x
topology: tpu7x:2x2x1
jax: 0.10.0
libtpu: 0.0.40
codegen_flags: <defaults>
</compile_context>

<pallas_src>
import functools

import jax
import jax.numpy as jnp
import numpy as np
from jax import lax
from jax.experimental import pallas as pl
from jax.experimental.pallas import tpu as pltpu


# --------------------------------- kernel ------------------------------------

def decoder_layer_kernel(
        tgt_ref, enc_ref, tmask_ref, smask_ref,
        wq1, bq1, wkv1, bkv1, wo1, bo1,
        wq2, bq2, wkv2, bkv2, wo2, bo2,
        wf1, bf1, wf2, bf2,
        out_ref,
        k1_s, v1_s, k2_s, v2_s, qh_s, ctx_s,
        *, n_heads, dk, q_tile, scale, n_ff_chunks, ff_unroll, exp_bf16):
    H, TQ = n_heads, q_tile
    D = H * dk
    qi = pl.program_id(1)

    # ---- once per batch row: fused lane-dense K/V projections -> VMEM cache ----
    @pl.when(qi == 0)
    def _():
        x_full = tgt_ref[0]                                        # (St, D) bf16
        enc = enc_ref[0]                                           # (Ss, D) bf16
        kv1 = (jnp.dot(x_full, wkv1[...], preferred_element_type=jnp.float32)
               + bkv1[...]).astype(jnp.bfloat16)                   # (St, 2D)
        kv2 = (jnp.dot(enc, wkv2[...], preferred_element_type=jnp.float32)
               + bkv2[...]).astype(jnp.bfloat16)                   # (Ss, 2D)
        for h in range(H):                                         # static: head-major cache
            k1_s[h] = kv1[:, h * dk:(h + 1) * dk]
            v1_s[h] = kv1[:, D + h * dk:D + (h + 1) * dk]
            k2_s[h] = kv2[:, h * dk:(h + 1) * dk]
            v2_s[h] = kv2[:, D + h * dk:D + (h + 1) * dk]

    # ---- query tile, sliced from the resident full-tgt block (no duplicate input) ----
    q0 = pl.multiple_of(qi * TQ, TQ)
    x_q = tgt_ref[0, pl.ds(q0, TQ), :]                             # (TQ, D) bf16

    def attention(x_bf, k_s, v_s, mask, wq, bq, wo, bo):
        # Lane-dense Q projection; 1/sqrt(dk) folded into q (O(TQ*D)).
        q = jnp.dot(x_bf, wq[...], preferred_element_type=jnp.float32) + bq[...]
        q = (q * scale).astype(jnp.bfloat16)                       # (TQ, D)
        for h in range(H):                                         # flat -> head-major staging
            qh_s[h] = q[:, h * dk:(h + 1) * dk]
        s = jnp.einsum("hqd,hkd->hqk", qh_s[...], k_s[...],
                       preferred_element_type=jnp.float32)         # (H, TQ, Sk) f32
        s = jnp.where(mask[None] != 0, s, jnp.float32(-1e9))
        m = jnp.max(s, axis=-1, keepdims=True)
        sh = s - m
        if exp_bf16:                                               # bf16 EUP on v6e/v7x
            e = jnp.exp(sh.astype(jnp.bfloat16)).astype(jnp.float32)
        else:
            e = jnp.exp(sh)
        p = (e * pl.reciprocal(jnp.sum(e, axis=-1, keepdims=True), approx=True)
             ).astype(jnp.bfloat16)
        ctx = jnp.einsum("hqk,hkd->hqd", p, v_s[...],
                         preferred_element_type=jnp.float32).astype(jnp.bfloat16)
        for h in range(H):                                         # head-major -> flat (TQ, D)
            ctx_s[:, h * dk:(h + 1) * dk] = ctx[h]
        # Single lane-dense output projection (replaces per-head matmul + sum over H).
        return jnp.dot(ctx_s[...], wo[...],
                       preferred_element_type=jnp.float32) + bo[...]

    tmask = tmask_ref[0]                                           # (TQ, St) int8
    smask = smask_ref[0]                                           # (TQ, Ss) int8

    # residual 0: self-attention (K/V come from the layer *input* tgt, so the
    # query-tile decomposition is exact).
    x = x_q.astype(jnp.float32) + attention(x_q, k1_s, v1_s, tmask,
                                            wq1, bq1, wo1, bo1)
    # residual 1: cross-attention (K/V from encoder output, cached).
    x = x + attention(x.astype(jnp.bfloat16), k2_s, v2_s, smask,
                      wq2, bq2, wo2, bo2)

    # residual 2: position-wise FF, chunked over d_ff so the (TQ, d_ff) hidden is
    # never fully resident.  Chunked weights are indexed on their leading axis.
    x_bf = x.astype(jnp.bfloat16)

    def ff_body(c, acc):
        hdn = jnp.dot(x_bf, wf1[c], preferred_element_type=jnp.float32) + bf1[c]
        hdn = jnp.maximum(hdn, 0.0).astype(jnp.bfloat16)
        return acc + jnp.dot(hdn, wf2[c], preferred_element_type=jnp.float32)

    ff = lax.fori_loop(0, n_ff_chunks, ff_body,
                       jnp.zeros((TQ, D), jnp.float32), unroll=ff_unroll)
    x = x + ff + bf2[...]

    out_ref[0] = x.astype(out_ref.dtype)


# --------------------------------- wrapper -----------------------------------

def decoder_layer(tgt, encoder_out, tgt_mask, src_tgt_mask, params, n_heads,
                  *, q_tile=None, ff_chunk=None, out_dtype=jnp.bfloat16):
    (wq1, bq1, wk1, bk1, wv1, bv1, wo1, bo1,
     wq2, bq2, wk2, bk2, wv2, bv2, wo2, bo2,
     wf1, bf1, wf2, bf2) = params

    B, St, D = tgt.shape
    Ss = encoder_out.shape[1]
    d_ff = wf1.shape[1]
    assert D % n_heads == 0
    dk = D // n_heads

    # ---- chip-dependent defaults --------------------------------------------
    try:
        kind = jax.devices()[0].device_kind.lower()
    except Exception:
        kind = ""
    is_v7 = "v7" in kind
    has_bf16_eup = ("v6" in kind) or is_v7
    vmem_cap = (64 if is_v7 else 128) * 2**20

    # Query-sequence tile: large tiles amortize per-step overhead on v5e/v6e
    # (128 MiB VMEM); keep <= 128 on v7x (64 MiB/TC) unless overridden.
    if q_tile is None:
        cap_tq = 128 if is_v7 else 256
        q_tile = St
        for cand in (cap_tq, 128, 64, 32):
            if St % cand == 0:
                q_tile = cand
                break
    TQ = q_tile
    assert St % TQ == 0 and (TQ % 32 == 0 or TQ == St)
    NQ = St // TQ

    # d_ff chunk: 256 fills the 256x256 MXU on v6e/v7x; 128 matches v5e's MXU.
    if ff_chunk is None:
        ff_chunk = 256 if has_bf16_eup else 128
    CH = ff_chunk if (d_ff >= ff_chunk and d_ff % ff_chunk == 0) else d_ff
    NCH = d_ff // CH
    ff_unroll = True if NCH <= 4 else 2

    BF16, F32 = jnp.bfloat16, jnp.float32

    kparams = [
        # self-attention: Wq, bq, [Wk|Wv], [bk|bv], Wo, bo   (all lane-dense)
        wq1.astype(BF16), bq1.astype(F32),
        jnp.concatenate([wk1, wv1], axis=1).astype(BF16),     # (D, 2D)
        jnp.concatenate([bk1, bv1], axis=1).astype(F32),      # (1, 2D)
        wo1.astype(BF16), bo1.astype(F32),
        # cross-attention
        wq2.astype(BF16), bq2.astype(F32),
        jnp.concatenate([wk2, wv2], axis=1).astype(BF16),
        jnp.concatenate([bk2, bv2], axis=1).astype(F32),
        wo2.astype(BF16), bo2.astype(F32),
        # position-wise FF, chunked over d_ff on the leading axis
        jnp.transpose(wf1.reshape(D, NCH, CH), (1, 0, 2)).astype(BF16),  # (NCH, D, CH)
        bf1.reshape(NCH, 1, CH).astype(F32),                             # (NCH, 1, CH)
        wf2.reshape(NCH, CH, D).astype(BF16),                            # (NCH, CH, D)
        bf2.astype(F32),                                                 # (1, D)
    ]

    tgt_bf = tgt.astype(BF16)
    enc_bf = encoder_out.astype(BF16)
    tmask_i8 = (tgt_mask > 0).astype(jnp.int8)
    smask_i8 = (src_tgt_mask > 0).astype(jnp.int8)

    in_specs = [
        pl.BlockSpec((1, St, D), lambda b, q: (b, 0, 0)),    # full tgt (Q tile sliced in-kernel; K/V source)
        pl.BlockSpec((1, Ss, D), lambda b, q: (b, 0, 0)),    # encoder_out
        pl.BlockSpec((1, TQ, St), lambda b, q: (b, q, 0)),   # tgt_mask tile (int8)
        pl.BlockSpec((1, TQ, Ss), lambda b, q: (b, q, 0)),   # src_tgt_mask tile (int8)
    ] + [
        # Weights: constant index maps -> fetched once, stay resident across the grid.
        # TODO(synk): verify in the lowered MLIR that these stay single-buffered;
        # if not, add pipeline_mode=pl.Buffered(1) on these BlockSpecs.
        pl.BlockSpec(p.shape, lambda b, q, _n=p.ndim: (0,) * _n)
        for p in kparams
    ]

    scratch_shapes = [
        pltpu.VMEM((n_heads, St, dk), BF16),   # self-attn K cache (per batch row)
        pltpu.VMEM((n_heads, St, dk), BF16),   # self-attn V cache
        pltpu.VMEM((n_heads, Ss, dk), BF16),   # cross-attn K cache
        pltpu.VMEM((n_heads, Ss, dk), BF16),   # cross-attn V cache
        pltpu.VMEM((n_heads, TQ, dk), BF16),   # per-tile Q head-major staging
        pltpu.VMEM((TQ, D), BF16),             # per-tile flattened context staging
    ]

    # VMEM budget: DMA'd blocks (double-buffer worst case) + resident weights +
    # K/V scratch (dk lane-padded) + live f32 score intermediates (s / e / p).
    out_isize = jnp.dtype(out_dtype).itemsize
    lane = max(dk, 128)
    need = (
        2 * (St * D + Ss * D) * 2
        + 2 * (TQ * St + TQ * Ss)
        + 2 * TQ * D * out_isize
        + 2 * sum(int(np.prod(p.shape)) * p.dtype.itemsize for p in kparams)
        + 2 * (St + Ss) * n_heads * lane * 2
        + n_heads * TQ * lane * 2 + TQ * D * 2
        + 3 * n_heads * TQ * max(St, Ss) * 4
    )
    vmem_limit = int(min(int(0.7 * vmem_cap), max(32 * 2**20, 2 * need)))

    kernel = functools.partial(
        decoder_layer_kernel,
        n_heads=n_heads, dk=dk, q_tile=TQ, scale=float(dk) ** -0.5,
        n_ff_chunks=NCH, ff_unroll=ff_unroll, exp_bf16=has_bf16_eup)

    # TODO(synk): for key sequences in the thousands add a flash-style K/V tiling
    # level (online softmax over Sk chunks) so the full-length K/V blocks and the
    # f32 score tensor are never fully resident (needed on v7x's 64 MiB VMEM).
    return pl.pallas_call(
        kernel,
        out_shape=jax.ShapeDtypeStruct((B, St, D), out_dtype),
        grid=(B, NQ),
        in_specs=in_specs,
        out_specs=pl.BlockSpec((1, TQ, D), lambda b, q: (b, q, 0)),
        scratch_shapes=scratch_shapes,
        compiler_params=pltpu.CompilerParams(
            dimension_semantics=("parallel", "arbitrary"),
            vmem_limit_bytes=vmem_limit),
    )(tgt_bf, enc_bf, tmask_i8, smask_i8, *kparams)


# ------------------------------ pure-JAX reference ----------------------------

def _ref_mha(q_in, kv_in, mask, wq, bq, wk, bk, wv, bv, wo, bo, n_heads):
    D = q_in.shape[-1]
    dk = D // n_heads
    q = q_in @ wq + bq
    k = kv_in @ wk + bk
    v = kv_in @ wv + bv
    outs = []
    for h in range(n_heads):
        qh, kh, vh = (a[:, :, h * dk:(h + 1) * dk] for a in (q, k, v))
        s = jnp.einsum("bqd,bkd->bqk", qh, kh) / jnp.sqrt(jnp.float32(dk))
        s = jnp.where(mask > 0.0, s, -1e9)
        p = jax.nn.softmax(s, axis=-1)
        outs.append(jnp.einsum("bqk,bkd->bqd", p, vh))
    return jnp.concatenate(outs, axis=-1) @ wo + bo


def decoder_layer_ref(tgt, enc, tmask, smask, params, n_heads):
    (wq1, bq1, wk1, bk1, wv1, bv1, wo1, bo1,
     wq2, bq2, wk2, bk2, wv2, bv2, wo2, bo2,
     wf1, bf1, wf2, bf2) = params
    x = tgt
    x = x + _ref_mha(x, x, tmask, wq1, bq1, wk1, bk1, wv1, bv1, wo1, bo1, n_heads)
    x = x + _ref_mha(x, enc, smask, wq2, bq2, wk2, bk2, wv2, bv2, wo2, bo2, n_heads)
    x = x + (jnp.maximum(x @ wf1 + bf1, 0.0) @ wf2 + bf2)
    return x


# ----------------------------------- main -------------------------------------

if __name__ == "__main__":
    # Small but lane-dense shapes: D multiple of 128, sequences multiples of 32.
    B, S_TGT, S_SRC, D, H, D_FF = 2, 128, 128, 128, 4, 256

    key = jax.random.PRNGKey(0)
    keys = jax.random.split(key, 32)
    ki = iter(keys)

    def w(shape, k):
        return jax.random.normal(k, shape, dtype=jnp.float32) * 0.02

    params = [
        # self-attention (Wq, bq, Wk, bk, Wv, bv, Wo, bo)
        w((D, D), next(ki)), w((1, D), next(ki)),
        w((D, D), next(ki)), w((1, D), next(ki)),
        w((D, D), next(ki)), w((1, D), next(ki)),
        w((D, D), next(ki)), w((1, D), next(ki)),
        # cross-attention
        w((D, D), next(ki)), w((1, D), next(ki)),
        w((D, D), next(ki)), w((1, D), next(ki)),
        w((D, D), next(ki)), w((1, D), next(ki)),
        w((D, D), next(ki)), w((1, D), next(ki)),
        # position-wise feed-forward
        w((D, D_FF), next(ki)), w((1, D_FF), next(ki)),
        w((D_FF, D), next(ki)), w((1, D), next(ki)),
    ]

    tgt = jax.random.normal(next(ki), (B, S_TGT, D), dtype=jnp.float32)
    enc = jax.random.normal(next(ki), (B, S_SRC, D), dtype=jnp.float32)

    # causal target mask, full source-target mask (1 = attend, 0 = masked)
    causal = jnp.tril(jnp.ones((S_TGT, S_TGT), dtype=jnp.float32))
    tgt_mask = jnp.broadcast_to(causal, (B, S_TGT, S_TGT))
    src_tgt_mask = jnp.ones((B, S_TGT, S_SRC), dtype=jnp.float32)

    # q_tile=64 -> 2 query tiles per row (exercises the K/V cache reuse path);
    # ff_chunk=128 -> 2 d_ff chunks (exercises the chunked FF loop).
    out = decoder_layer(tgt, enc, tgt_mask, src_tgt_mask, params, H,
                        q_tile=64, ff_chunk=128)
    out = jax.block_until_ready(out)

    ref = decoder_layer_ref(tgt, enc, tgt_mask, src_tgt_mask, params, H)
    # bf16 operands / bf16 output with f32 accumulation vs. a full-f32 reference.
    np.testing.assert_allclose(np.asarray(out.astype(jnp.float32)),
                               np.asarray(ref), rtol=2e-2, atol=2e-2)

    print("KERNEL_OK")
</pallas_src>

<mosaic_0001>
module attributes {stable_mosaic.version = 11 : i64} {
  func.func @decoder_layer_kernel(%arg0: i32, %arg1: i32, %arg2: memref<1x128x128xbf16, #tpu.memory_space<vmem>>, %arg3: memref<1x128x128xbf16, #tpu.memory_space<vmem>>, %arg4: memref<1x64x128xi8, #tpu.memory_space<vmem>>, %arg5: memref<1x64x128xi8, #tpu.memory_space<vmem>>, %arg6: memref<128x128xbf16, #tpu.memory_space<vmem>>, %arg7: memref<1x128xf32, #tpu.memory_space<vmem>>, %arg8: memref<128x256xbf16, #tpu.memory_space<vmem>>, %arg9: memref<1x256xf32, #tpu.memory_space<vmem>>, %arg10: memref<128x128xbf16, #tpu.memory_space<vmem>>, %arg11: memref<1x128xf32, #tpu.memory_space<vmem>>, %arg12: memref<128x128xbf16, #tpu.memory_space<vmem>>, %arg13: memref<1x128xf32, #tpu.memory_space<vmem>>, %arg14: memref<128x256xbf16, #tpu.memory_space<vmem>>, %arg15: memref<1x256xf32, #tpu.memory_space<vmem>>, %arg16: memref<128x128xbf16, #tpu.memory_space<vmem>>, %arg17: memref<1x128xf32, #tpu.memory_space<vmem>>, %arg18: memref<2x128x128xbf16, #tpu.memory_space<vmem>>, %arg19: memref<2x1x128xf32, #tpu.memory_space<vmem>>, %arg20: memref<2x128x128xbf16, #tpu.memory_space<vmem>>, %arg21: memref<1x128xf32, #tpu.memory_space<vmem>>, %arg22: memref<1x64x128xbf16, #tpu.memory_space<vmem>>, %arg23: memref<4x128x32xbf16, #tpu.memory_space<vmem>>, %arg24: memref<4x128x32xbf16, #tpu.memory_space<vmem>>, %arg25: memref<4x128x32xbf16, #tpu.memory_space<vmem>>, %arg26: memref<4x128x32xbf16, #tpu.memory_space<vmem>>, %arg27: memref<4x64x32xbf16, #tpu.memory_space<vmem>>, %arg28: memref<64x128xbf16, #tpu.memory_space<vmem>>) attributes {dimension_semantics = [#tpu.dimension_semantics<parallel>, #tpu.dimension_semantics<arbitrary>], iteration_bounds = array<i64: 2, 2>, scalar_prefetch = 0 : i64, scratch_operands = 6 : i64, tpu.core_type = #tpu.core_type<tc>, window_params = [{transform_indices = @transform_0, window_bounds = array<i64: 1, 128, 128>}, {transform_indices = @transform_1, window_bounds = array<i64: 1, 128, 128>}, {transform_indices = @transform_2, window_bounds = array<i64: 1, 64, 128>}, {transform_indices = @transform_3, window_bounds = array<i64: 1, 64, 128>}, {pipeline_mode = #tpu.pipeline_mode<synchronous>, transform_indices = @transform_4, window_bounds = array<i64: 128, 128>}, {pipeline_mode = #tpu.pipeline_mode<synchronous>, transform_indices = @transform_5, window_bounds = array<i64: 1, 128>}, {pipeline_mode = #tpu.pipeline_mode<synchronous>, transform_indices = @transform_6, window_bounds = array<i64: 128, 256>}, {pipeline_mode = #tpu.pipeline_mode<synchronous>, transform_indices = @transform_7, window_bounds = array<i64: 1, 256>}, {pipeline_mode = #tpu.pipeline_mode<synchronous>, transform_indices = @transform_8, window_bounds = array<i64: 128, 128>}, {pipeline_mode = #tpu.pipeline_mode<synchronous>, transform_indices = @transform_9, window_bounds = array<i64: 1, 128>}, {pipeline_mode = #tpu.pipeline_mode<synchronous>, transform_indices = @transform_10, window_bounds = array<i64: 128, 128>}, {pipeline_mode = #tpu.pipeline_mode<synchronous>, transform_indices = @transform_11, window_bounds = array<i64: 1, 128>}, {pipeline_mode = #tpu.pipeline_mode<synchronous>, transform_indices = @transform_12, window_bounds = array<i64: 128, 256>}, {pipeline_mode = #tpu.pipeline_mode<synchronous>, transform_indices = @transform_13, window_bounds = array<i64: 1, 256>}, {pipeline_mode = #tpu.pipeline_mode<synchronous>, transform_indices = @transform_14, window_bounds = array<i64: 128, 128>}, {pipeline_mode = #tpu.pipeline_mode<synchronous>, transform_indices = @transform_15, window_bounds = array<i64: 1, 128>}, {pipeline_mode = #tpu.pipeline_mode<synchronous>, transform_indices = @transform_16, window_bounds = array<i64: 2, 128, 128>}, {pipeline_mode = #tpu.pipeline_mode<synchronous>, transform_indices = @transform_17, window_bounds = array<i64: 2, 1, 128>}, {pipeline_mode = #tpu.pipeline_mode<synchronous>, transform_indices = @transform_18, window_bounds = array<i64: 2, 128, 128>}, {pipeline_mode = #tpu.pipeline_mode<synchronous>, transform_indices = @transform_19, window_bounds = array<i64: 1, 128>}, {transform_indices = @transform_20, window_bounds = array<i64: 1, 64, 128>}]} {
    %c0_i32 = arith.constant 0 : i32
    %0 = arith.cmpi eq, %arg1, %c0_i32 : i32
    %1 = arith.extui %0 : i1 to i32
    %c0_i32_0 = arith.constant 0 : i32
    %2 = arith.cmpi ne, %1, %c0_i32_0 : i32
    scf.if %2 {
      %c0_121 = arith.constant 0 : index
      %c0_122 = arith.constant 0 : index
      %c0_123 = arith.constant 0 : index
      %192 = vector.load %arg2[%c0_121, %c0_122, %c0_123] : memref<1x128x128xbf16, #tpu.memory_space<vmem>>, vector<1x128x128xbf16>
      %193 = vector.shape_cast %192 : vector<1x128x128xbf16> to vector<128x128xbf16>
      %c0_124 = arith.constant 0 : index
      %c0_125 = arith.constant 0 : index
      %c0_126 = arith.constant 0 : index
      %194 = vector.load %arg3[%c0_124, %c0_125, %c0_126] : memref<1x128x128xbf16, #tpu.memory_space<vmem>>, vector<1x128x128xbf16>
      %195 = vector.shape_cast %194 : vector<1x128x128xbf16> to vector<128x128xbf16>
      %c0_127 = arith.constant 0 : index
      %c0_128 = arith.constant 0 : index
      %196 = vector.load %arg8[%c0_127, %c0_128] : memref<128x256xbf16, #tpu.memory_space<vmem>>, vector<128x256xbf16>
      %cst_129 = arith.constant dense<0.000000e+00> : vector<128x256xf32>
      %197 = tpu.matmul %193, %196, %cst_129 {dimension_numbers = #tpu.dot_dimension_numbers<[1], [0], [0], [1], [0, 0, 1, 1], [], []>} : vector<128x128xbf16>, vector<128x256xbf16>, vector<128x256xf32> -> vector<128x256xf32>
      %c0_130 = arith.constant 0 : index
      %c0_131 = arith.constant 0 : index
      %198 = vector.load %arg9[%c0_130, %c0_131] : memref<1x256xf32, #tpu.memory_space<vmem>>, vector<1x256xf32>
      %199 = vector.broadcast %198 : vector<1x256xf32> to vector<128x256xf32>
      %200 = arith.addf %197, %199 : vector<128x256xf32>
      %201 = arith.truncf %200 : vector<128x256xf32> to vector<128x256xbf16>
      %c0_132 = arith.constant 0 : index
      %c0_133 = arith.constant 0 : index
      %202 = vector.load %arg14[%c0_132, %c0_133] : memref<128x256xbf16, #tpu.memory_space<vmem>>, vector<128x256xbf16>
      %cst_134 = arith.constant dense<0.000000e+00> : vector<128x256xf32>
      %203 = tpu.matmul %195, %202, %cst_134 {dimension_numbers = #tpu.dot_dimension_numbers<[1], [0], [0], [1], [0, 0, 1, 1], [], []>} : vector<128x128xbf16>, vector<128x256xbf16>, vector<128x256xf32> -> vector<128x256xf32>
      %c0_135 = arith.constant 0 : index
      %c0_136 = arith.constant 0 : index
      %204 = vector.load %arg15[%c0_135, %c0_136] : memref<1x256xf32, #tpu.memory_space<vmem>>, vector<1x256xf32>
      %205 = vector.broadcast %204 : vector<1x256xf32> to vector<128x256xf32>
      %206 = arith.addf %203, %205 : vector<128x256xf32>
      %207 = arith.truncf %206 : vector<128x256xf32> to vector<128x256xbf16>
      %208 = vector.extract_strided_slice %201 {offsets = [0, 0], sizes = [128, 32], strides = [1, 1]} : vector<128x256xbf16> to vector<128x32xbf16>
      %c0_137 = arith.constant 0 : index
      %c0_138 = arith.constant 0 : index
      %c0_139 = arith.constant 0 : index
      %209 = vector.load %arg23[%c0_137, %c0_138, %c0_139] : memref<4x128x32xbf16, #tpu.memory_space<vmem>>, vector<1x128x32xbf16>
      %210 = vector.shape_cast %209 : vector<1x128x32xbf16> to vector<128x32xbf16>
      %211 = vector.shape_cast %208 : vector<128x32xbf16> to vector<1x128x32xbf16>
      tpu.vector_store %arg23[%c0_137, %c0_138, %c0_139], %211 {strides = array<i32>} : memref<4x128x32xbf16, #tpu.memory_space<vmem>>, vector<1x128x32xbf16>,
      %212 = vector.extract_strided_slice %201 {offsets = [0, 128], sizes = [128, 32], strides = [1, 1]} : vector<128x256xbf16> to vector<128x32xbf16>
      %c0_140 = arith.constant 0 : index
      %c0_141 = arith.constant 0 : index
      %c0_142 = arith.constant 0 : index
      %213 = vector.load %arg24[%c0_140, %c0_141, %c0_142] : memref<4x128x32xbf16, #tpu.memory_space<vmem>>, vector<1x128x32xbf16>
      %214 = vector.shape_cast %213 : vector<1x128x32xbf16> to vector<128x32xbf16>
      %215 = vector.shape_cast %212 : vector<128x32xbf16> to vector<1x128x32xbf16>
      tpu.vector_store %arg24[%c0_140, %c0_141, %c0_142], %215 {strides = array<i32>} : memref<4x128x32xbf16, #tpu.memory_space<vmem>>, vector<1x128x32xbf16>,
      %216 = vector.extract_strided_slice %207 {offsets = [0, 0], sizes = [128, 32], strides = [1, 1]} : vector<128x256xbf16> to vector<128x32xbf16>
      %c0_143 = arith.constant 0 : index
      %c0_144 = arith.constant 0 : index
      %c0_145 = arith.constant 0 : index
      %217 = vector.load %arg25[%c0_143, %c0_144, %c0_145] : memref<4x128x32xbf16, #tpu.memory_space<vmem>>, vector<1x128x32xbf16>
      %218 = vector.shape_cast %217 : vector<1x128x32xbf16> to vector<128x32xbf16>
      %219 = vector.shape_cast %216 : vector<128x32xbf16> to vector<1x128x32xbf16>
      tpu.vector_store %arg25[%c0_143, %c0_144, %c0_145], %219 {strides = array<i32>} : memref<4x128x32xbf16, #tpu.memory_space<vmem>>, vector<1x128x32xbf16>,
      %220 = vector.extract_strided_slice %207 {offsets = [0, 128], sizes = [128, 32], strides = [1, 1]} : vector<128x256xbf16> to vector<128x32xbf16>
      %c0_146 = arith.constant 0 : index
      %c0_147 = arith.constant 0 : index
      %c0_148 = arith.constant 0 : index
      %221 = vector.load %arg26[%c0_146, %c0_147, %c0_148] : memref<4x128x32xbf16, #tpu.memory_space<vmem>>, vector<1x128x32xbf16>
      %222 = vector.shape_cast %221 : vector<1x128x32xbf16> to vector<128x32xbf16>
      %223 = vector.shape_cast %220 : vector<128x32xbf16> to vector<1x128x32xbf16>
      tpu.vector_store %arg26[%c0_146, %c0_147, %c0_148], %223 {strides = array<i32>} : memref<4x128x32xbf16, #tpu.memory_space<vmem>>, vector<1x128x32xbf16>,
      %224 = vector.extract_strided_slice %201 {offsets = [0, 32], sizes = [128, 32], strides = [1, 1]} : vector<128x256xbf16> to vector<128x32xbf16>
      %c1_149 = arith.constant 1 : index
      %c0_150 = arith.constant 0 : index
      %c0_151 = arith.constant 0 : index
      %225 = vector.load %arg23[%c1_149, %c0_150, %c0_151] : memref<4x128x32xbf16, #tpu.memory_space<vmem>>, vector<1x128x32xbf16>
      %226 = vector.shape_cast %225 : vector<1x128x32xbf16> to vector<128x32xbf16>
      %227 = vector.shape_cast %224 : vector<128x32xbf16> to vector<1x128x32xbf16>
      tpu.vector_store %arg23[%c1_149, %c0_150, %c0_151], %227 {strides = array<i32>} : memref<4x128x32xbf16, #tpu.memory_space<vmem>>, vector<1x128x32xbf16>,
      %228 = vector.extract_strided_slice %201 {offsets = [0, 160], sizes = [128, 32], strides = [1, 1]} : vector<128x256xbf16> to vector<128x32xbf16>
      %c1_152 = arith.constant 1 : index
      %c0_153 = arith.constant 0 : index
      %c0_154 = arith.constant 0 : index
      %229 = vector.load %arg24[%c1_152, %c0_153, %c0_154] : memref<4x128x32xbf16, #tpu.memory_space<vmem>>, vector<1x128x32xbf16>
      %230 = vector.shape_cast %229 : vector<1x128x32xbf16> to vector<128x32xbf16>
      %231 = vector.shape_cast %228 : vector<128x32xbf16> to vector<1x128x32xbf16>
      tpu.vector_store %arg24[%c1_152, %c0_153, %c0_154], %231 {strides = array<i32>} : memref<4x128x32xbf16, #tpu.memory_space<vmem>>, vector<1x128x32xbf16>,
      %232 = vector.extract_strided_slice %207 {offsets = [0, 32], sizes = [128, 32], strides = [1, 1]} : vector<128x256xbf16> to vector<128x32xbf16>
      %c1_155 = arith.constant 1 : index
      %c0_156 = arith.constant 0 : index
      %c0_157 = arith.constant 0 : index
      %233 = vector.load %arg25[%c1_155, %c0_156, %c0_157] : memref<4x128x32xbf16, #tpu.memory_space<vmem>>, vector<1x128x32xbf16>
      %234 = vector.shape_cast %233 : vector<1x128x32xbf16> to vector<128x32xbf16>
      %235 = vector.shape_cast %232 : vector<128x32xbf16> to vector<1x128x32xbf16>
      tpu.vector_store %arg25[%c1_155, %c0_156, %c0_157], %235 {strides = array<i32>} : memref<4x128x32xbf16, #tpu.memory_space<vmem>>, vector<1x128x32xbf16>,
      %236 = vector.extract_strided_slice %207 {offsets = [0, 160], sizes = [128, 32], strides = [1, 1]} : vector<128x256xbf16> to vector<128x32xbf16>
      %c1_158 = arith.constant 1 : index
      %c0_159 = arith.constant 0 : index
      %c0_160 = arith.constant 0 : index
      %237 = vector.load %arg26[%c1_158, %c0_159, %c0_160] : memref<4x128x32xbf16, #tpu.memory_space<vmem>>, vector<1x128x32xbf16>
      %238 = vector.shape_cast %237 : vector<1x128x32xbf16> to vector<128x32xbf16>
      %239 = vector.shape_cast %236 : vector<128x32xbf16> to vector<1x128x32xbf16>
      tpu.vector_store %arg26[%c1_158, %c0_159, %c0_160], %239 {strides = array<i32>} : memref<4x128x32xbf16, #tpu.memory_space<vmem>>, vector<1x128x32xbf16>,
      %240 = vector.extract_strided_slice %201 {offsets = [0, 64], sizes = [128, 32], strides = [1, 1]} : vector<128x256xbf16> to vector<128x32xbf16>
      %c2_161 = arith.constant 2 : index
      %c0_162 = arith.constant 0 : index
      %c0_163 = arith.constant 0 : index
      %241 = vector.load %arg23[%c2_161, %c0_162, %c0_163] : memref<4x128x32xbf16, #tpu.memory_space<vmem>>, vector<1x128x32xbf16>
      %242 = vector.shape_cast %241 : vector<1x128x32xbf16> to vector<128x32xbf16>
      %243 = vector.shape_cast %240 : vector<128x32xbf16> to vector<1x128x32xbf16>
      tpu.vector_store %arg23[%c2_161, %c0_162, %c0_163], %243 {strides = array<i32>} : memref<4x128x32xbf16, #tpu.memory_space<vmem>>, vector<1x128x32xbf16>,
      %244 = vector.extract_strided_slice %201 {offsets = [0, 192], sizes = [128, 32], strides = [1, 1]} : vector<128x256xbf16> to vector<128x32xbf16>
      %c2_164 = arith.constant 2 : index
      %c0_165 = arith.constant 0 : index
      %c0_166 = arith.constant 0 : index
      %245 = vector.load %arg24[%c2_164, %c0_165, %c0_166] : memref<4x128x32xbf16, #tpu.memory_space<vmem>>, vector<1x128x32xbf16>
      %246 = vector.shape_cast %245 : vector<1x128x32xbf16> to vector<128x32xbf16>
      %247 = vector.shape_cast %244 : vector<128x32xbf16> to vector<1x128x32xbf16>
      tpu.vector_store %arg24[%c2_164, %c0_165, %c0_166], %247 {strides = array<i32>} : memref<4x128x32xbf16, #tpu.memory_space<vmem>>, vector<1x128x32xbf16>,
      %248 = vector.extract_strided_slice %207 {offsets = [0, 64], sizes = [128, 32], strides = [1, 1]} : vector<128x256xbf16> to vector<128x32xbf16>
      %c2_167 = arith.constant 2 : index
      %c0_168 = arith.constant 0 : index
      %c0_169 = arith.constant 0 : index
      %249 = vector.load %arg25[%c2_167, %c0_168, %c0_169] : memref<4x128x32xbf16, #tpu.memory_space<vmem>>, vector<1x128x32xbf16>
      %250 = vector.shape_cast %249 : vector<1x128x32xbf16> to vector<128x32xbf16>
      %251 = vector.shape_cast %248 : vector<128x32xbf16> to vector<1x128x32xbf16>
      tpu.vector_store %arg25[%c2_167, %c0_168, %c0_169], %251 {strides = array<i32>} : memref<4x128x32xbf16, #tpu.memory_space<vmem>>, vector<1x128x32xbf16>,
      %252 = vector.extract_strided_slice %207 {offsets = [0, 192], sizes = [128, 32], strides = [1, 1]} : vector<128x256xbf16> to vector<128x32xbf16>
      %c2_170 = arith.constant 2 : index
      %c0_171 = arith.constant 0 : index
      %c0_172 = arith.constant 0 : index
      %253 = vector.load %arg26[%c2_170, %c0_171, %c0_172] : memref<4x128x32xbf16, #tpu.memory_space<vmem>>, vector<1x128x32xbf16>
      %254 = vector.shape_cast %253 : vector<1x128x32xbf16> to vector<128x32xbf16>
      %255 = vector.shape_cast %252 : vector<128x32xbf16> to vector<1x128x32xbf16>
      tpu.vector_store %arg26[%c2_170, %c0_171, %c0_172], %255 {strides = array<i32>} : memref<4x128x32xbf16, #tpu.memory_space<vmem>>, vector<1x128x32xbf16>,
      %256 = vector.extract_strided_slice %201 {offsets = [0, 96], sizes = [128, 32], strides = [1, 1]} : vector<128x256xbf16> to vector<128x32xbf16>
      %c3_173 = arith.constant 3 : index
      %c0_174 = arith.constant 0 : index
      %c0_175 = arith.constant 0 : index
      %257 = vector.load %arg23[%c3_173, %c0_174, %c0_175] : memref<4x128x32xbf16, #tpu.memory_space<vmem>>, vector<1x128x32xbf16>
      %258 = vector.shape_cast %257 : vector<1x128x32xbf16> to vector<128x32xbf16>
      %259 = vector.shape_cast %256 : vector<128x32xbf16> to vector<1x128x32xbf16>
      tpu.vector_store %arg23[%c3_173, %c0_174, %c0_175], %259 {strides = array<i32>} : memref<4x128x32xbf16, #tpu.memory_space<vmem>>, vector<1x128x32xbf16>,
      %260 = vector.extract_strided_slice %201 {offsets = [0, 224], sizes = [128, 32], strides = [1, 1]} : vector<128x256xbf16> to vector<128x32xbf16>
      %c3_176 = arith.constant 3 : index
      %c0_177 = arith.constant 0 : index
      %c0_178 = arith.constant 0 : index
      %261 = vector.load %arg24[%c3_176, %c0_177, %c0_178] : memref<4x128x32xbf16, #tpu.memory_space<vmem>>, vector<1x128x32xbf16>
      %262 = vector.shape_cast %261 : vector<1x128x32xbf16> to vector<128x32xbf16>
      %263 = vector.shape_cast %260 : vector<128x32xbf16> to vector<1x128x32xbf16>
      tpu.vector_store %arg24[%c3_176, %c0_177, %c0_178], %263 {strides = array<i32>} : memref<4x128x32xbf16, #tpu.memory_space<vmem>>, vector<1x128x32xbf16>,
      %264 = vector.extract_strided_slice %207 {offsets = [0, 96], sizes = [128, 32], strides = [1, 1]} : vector<128x256xbf16> to vector<128x32xbf16>
      %c3_179 = arith.constant 3 : index
      %c0_180 = arith.constant 0 : index
      %c0_181 = arith.constant 0 : index
      %265 = vector.load %arg25[%c3_179, %c0_180, %c0_181] : memref<4x128x32xbf16, #tpu.memory_space<vmem>>, vector<1x128x32xbf16>
      %266 = vector.shape_cast %265 : vector<1x128x32xbf16> to vector<128x32xbf16>
      %267 = vector.shape_cast %264 : vector<128x32xbf16> to vector<1x128x32xbf16>
      tpu.vector_store %arg25[%c3_179, %c0_180, %c0_181], %267 {strides = array<i32>} : memref<4x128x32xbf16, #tpu.memory_space<vmem>>, vector<1x128x32xbf16>,
      %268 = vector.extract_strided_slice %207 {offsets = [0, 224], sizes = [128, 32], strides = [1, 1]} : vector<128x256xbf16> to vector<128x32xbf16>
      %c3_182 = arith.constant 3 : index
      %c0_183 = arith.constant 0 : index
      %c0_184 = arith.constant 0 : index
      %269 = vector.load %arg26[%c3_182, %c0_183, %c0_184] : memref<4x128x32xbf16, #tpu.memory_space<vmem>>, vector<1x128x32xbf16>
      %270 = vector.shape_cast %269 : vector<1x128x32xbf16> to vector<128x32xbf16>
      %271 = vector.shape_cast %268 : vector<128x32xbf16> to vector<1x128x32xbf16>
      tpu.vector_store %arg26[%c3_182, %c0_183, %c0_184], %271 {strides = array<i32>} : memref<4x128x32xbf16, #tpu.memory_space<vmem>>, vector<1x128x32xbf16>,
    } else {
    }
    %c64_i32 = arith.constant 64 : i32
    %3 = arith.muli %arg1, %c64_i32 : i32
    %4 = tpu.assume_multiple %3, 64 : i32
    %c0 = arith.constant 0 : index
    %5 = arith.index_cast %4 : i32 to index
    %c0_1 = arith.constant 0 : index
    %6 = vector.load %arg2[%c0, %5, %c0_1] : memref<1x128x128xbf16, #tpu.memory_space<vmem>>, vector<1x64x128xbf16>
    %7 = vector.shape_cast %6 : vector<1x64x128xbf16> to vector<64x128xbf16>
    %c0_2 = arith.constant 0 : index
    %c0_3 = arith.constant 0 : index
    %c0_4 = arith.constant 0 : index
    %8 = vector.load %arg4[%c0_2, %c0_3, %c0_4] : memref<1x64x128xi8, #tpu.memory_space<vmem>>, vector<1x64x128xi8>
    %9 = vector.shape_cast %8 : vector<1x64x128xi8> to vector<64x128xi8>
    %c0_5 = arith.constant 0 : index
    %c0_6 = arith.constant 0 : index
    %c0_7 = arith.constant 0 : index
    %10 = vector.load %arg5[%c0_5, %c0_6, %c0_7] : memref<1x64x128xi8, #tpu.memory_space<vmem>>, vector<1x64x128xi8>
    %11 = vector.shape_cast %10 : vector<1x64x128xi8> to vector<64x128xi8>
    %12 = arith.extf %7 : vector<64x128xbf16> to vector<64x128xf32>
    %c0_8 = arith.constant 0 : index
    %c0_9 = arith.constant 0 : index
    %13 = vector.load %arg6[%c0_8, %c0_9] : memref<128x128xbf16, #tpu.memory_space<vmem>>, vector<128x128xbf16>
    %cst = arith.constant dense<0.000000e+00> : vector<64x128xf32>
    %14 = tpu.matmul %7, %13, %cst {dimension_numbers = #tpu.dot_dimension_numbers<[1], [0], [0], [1], [0, 0, 1, 1], [], []>} : vector<64x128xbf16>, vector<128x128xbf16>, vector<64x128xf32> -> vector<64x128xf32>
    %c0_10 = arith.constant 0 : index
    %c0_11 = arith.constant 0 : index
    %15 = vector.load %arg7[%c0_10, %c0_11] : memref<1x128xf32, #tpu.memory_space<vmem>>, vector<1x128xf32>
    %16 = vector.broadcast %15 : vector<1x128xf32> to vector<64x128xf32>
    %17 = arith.addf %14, %16 : vector<64x128xf32>
    %cst_12 = arith.constant 0.176776692 : f32
    %18 = vector.broadcast %cst_12 : f32 to vector<64x128xf32>
    %19 = arith.mulf %17, %18 : vector<64x128xf32>
    %20 = arith.truncf %19 : vector<64x128xf32> to vector<64x128xbf16>
    %21 = vector.extract_strided_slice %20 {offsets = [0, 0], sizes = [64, 32], strides = [1, 1]} : vector<64x128xbf16> to vector<64x32xbf16>
    %c0_13 = arith.constant 0 : index
    %c0_14 = arith.constant 0 : index
    %c0_15 = arith.constant 0 : index
    %22 = vector.load %arg27[%c0_13, %c0_14, %c0_15] : memref<4x64x32xbf16, #tpu.memory_space<vmem>>, vector<1x64x32xbf16>
    %23 = vector.shape_cast %22 : vector<1x64x32xbf16> to vector<64x32xbf16>
    %24 = vector.shape_cast %21 : vector<64x32xbf16> to vector<1x64x32xbf16>
    tpu.vector_store %arg27[%c0_13, %c0_14, %c0_15], %24 {strides = array<i32>} : memref<4x64x32xbf16, #tpu.memory_space<vmem>>, vector<1x64x32xbf16>,
    %25 = vector.extract_strided_slice %20 {offsets = [0, 32], sizes = [64, 32], strides = [1, 1]} : vector<64x128xbf16> to vector<64x32xbf16>
    %c1 = arith.constant 1 : index
    %c0_16 = arith.constant 0 : index
    %c0_17 = arith.constant 0 : index
    %26 = vector.load %arg27[%c1, %c0_16, %c0_17] : memref<4x64x32xbf16, #tpu.memory_space<vmem>>, vector<1x64x32xbf16>
    %27 = vector.shape_cast %26 : vector<1x64x32xbf16> to vector<64x32xbf16>
    %28 = vector.shape_cast %25 : vector<64x32xbf16> to vector<1x64x32xbf16>
    tpu.vector_store %arg27[%c1, %c0_16, %c0_17], %28 {strides = array<i32>} : memref<4x64x32xbf16, #tpu.memory_space<vmem>>, vector<1x64x32xbf16>,
    %29 = vector.extract_strided_slice %20 {offsets = [0, 64], sizes = [64, 32], strides = [1, 1]} : vector<64x128xbf16> to vector<64x32xbf16>
    %c2 = arith.constant 2 : index
    %c0_18 = arith.constant 0 : index
    %c0_19 = arith.constant 0 : index
    %30 = vector.load %arg27[%c2, %c0_18, %c0_19] : memref<4x64x32xbf16, #tpu.memory_space<vmem>>, vector<1x64x32xbf16>
    %31 = vector.shape_cast %30 : vector<1x64x32xbf16> to vector<64x32xbf16>
    %32 = vector.shape_cast %29 : vector<64x32xbf16> to vector<1x64x32xbf16>
    tpu.vector_store %arg27[%c2, %c0_18, %c0_19], %32 {strides = array<i32>} : memref<4x64x32xbf16, #tpu.memory_space<vmem>>, vector<1x64x32xbf16>,
    %33 = vector.extract_strided_slice %20 {offsets = [0, 96], sizes = [64, 32], strides = [1, 1]} : vector<64x128xbf16> to vector<64x32xbf16>
    %c3 = arith.constant 3 : index
    %c0_20 = arith.constant 0 : index
    %c0_21 = arith.constant 0 : index
    %34 = vector.load %arg27[%c3, %c0_20, %c0_21] : memref<4x64x32xbf16, #tpu.memory_space<vmem>>, vector<1x64x32xbf16>
    %35 = vector.shape_cast %34 : vector<1x64x32xbf16> to vector<64x32xbf16>
    %36 = vector.shape_cast %33 : vector<64x32xbf16> to vector<1x64x32xbf16>
    tpu.vector_store %arg27[%c3, %c0_20, %c0_21], %36 {strides = array<i32>} : memref<4x64x32xbf16, #tpu.memory_space<vmem>>, vector<1x64x32xbf16>,
    %c0_22 = arith.constant 0 : index
    %c0_23 = arith.constant 0 : index
    %c0_24 = arith.constant 0 : index
    %37 = vector.load %arg27[%c0_22, %c0_23, %c0_24] : memref<4x64x32xbf16, #tpu.memory_space<vmem>>, vector<4x64x32xbf16>
    %c0_25 = arith.constant 0 : index
    %c0_26 = arith.constant 0 : index
    %c0_27 = arith.constant 0 : index
    %38 = vector.load %arg23[%c0_25, %c0_26, %c0_27] : memref<4x128x32xbf16, #tpu.memory_space<vmem>>, vector<4x128x32xbf16>
    "tpu.trace_start"() <{level = 10 : i32, message = "hqd,hkd->hqk"}> : () -> ()
    %cst_28 = arith.constant dense<0.000000e+00> : vector<4x64x128xf32>
    %39 = tpu.matmul %37, %38, %cst_28 {dimension_numbers = #tpu.dot_dimension_numbers<[2], [2], [1], [1], [0, 0, 0, 1, 1, 1], [0], [0]>} : vector<4x64x32xbf16>, vector<4x128x32xbf16>, vector<4x64x128xf32> -> vector<4x64x128xf32>
    "tpu.trace_stop"() : () -> ()
    %40 = vector.shape_cast %9 : vector<64x128xi8> to vector<1x64x128xi8>
    %c0_i8 = arith.constant 0 : i8
    %41 = vector.broadcast %c0_i8 : i8 to vector<1x64x128xi8>
    %42 = arith.cmpi ne, %40, %41 : vector<1x64x128xi8>
    %cst_29 = arith.constant -1.000000e+09 : f32
    %43 = vector.shape_cast %42 : vector<1x64x128xi1> to vector<1x64x128xi1>
    %44 = vector.broadcast %43 : vector<1x64x128xi1> to vector<4x64x128xi1>
    %45 = vector.broadcast %cst_29 : f32 to vector<4x64x128xf32>
    %46 = arith.select %44, %39, %45 : vector<4x64x128xi1>, vector<4x64x128xf32>
    %cst_30 = arith.constant dense<0xFF800000> : vector<4x64xf32>
    %47 = vector.multi_reduction <maximumf>, %46, %cst_30 [2] : vector<4x64x128xf32> to vector<4x64xf32>
    %48 = vector.shape_cast %47 : vector<4x64xf32> to vector<4x64x1xf32>
    %49 = vector.broadcast %48 : vector<4x64x1xf32> to vector<4x64x128xf32>
    %50 = arith.subf %46, %49 : vector<4x64x128xf32>
    %51 = math.exp %50 : vector<4x64x128xf32>
    %cst_31 = arith.constant dense<0.000000e+00> : vector<4x64xf32>
    %52 = vector.multi_reduction <add>, %51, %cst_31 [2] : vector<4x64x128xf32> to vector<4x64xf32>
    %53 = vector.shape_cast %52 : vector<4x64xf32> to vector<4x64x1xf32>
    %54 = tpu.reciprocal %53 {approx = true} : vector<4x64x1xf32> -> vector<4x64x1xf32>
    %55 = vector.broadcast %54 : vector<4x64x1xf32> to vector<4x64x128xf32>
    %56 = arith.mulf %51, %55 : vector<4x64x128xf32>
    %57 = arith.truncf %56 : vector<4x64x128xf32> to vector<4x64x128xbf16>
    %c0_32 = arith.constant 0 : index
    %c0_33 = arith.constant 0 : index
    %c0_34 = arith.constant 0 : index
    %58 = vector.load %arg24[%c0_32, %c0_33, %c0_34] : memref<4x128x32xbf16, #tpu.memory_space<vmem>>, vector<4x128x32xbf16>
    "tpu.trace_start"() <{level = 10 : i32, message = "hqk,hkd->hqd"}> : () -> ()
    %cst_35 = arith.constant dense<0.000000e+00> : vector<4x64x32xf32>
    %59 = tpu.matmul %57, %58, %cst_35 {dimension_numbers = #tpu.dot_dimension_numbers<[2], [1], [1], [2], [0, 0, 0, 1, 1, 2], [0], [0]>} : vector<4x64x128xbf16>, vector<4x128x32xbf16>, vector<4x64x32xf32> -> vector<4x64x32xf32>
    "tpu.trace_stop"() : () -> ()
    %60 = arith.truncf %59 : vector<4x64x32xf32> to vector<4x64x32xbf16>
    %61 = vector.extract_strided_slice %60 {offsets = [0, 0, 0], sizes = [1, 64, 32], strides = [1, 1, 1]} : vector<4x64x32xbf16> to vector<1x64x32xbf16>
    %62 = vector.shape_cast %61 : vector<1x64x32xbf16> to vector<64x32xbf16>
    %c0_36 = arith.constant 0 : index
    %c0_37 = arith.constant 0 : index
    %63 = vector.load %arg28[%c0_36, %c0_37] : memref<64x128xbf16, #tpu.memory_space<vmem>>, vector<64x32xbf16>
    tpu.vector_store %arg28[%c0_36, %c0_37], %62 {strides = array<i32>} : memref<64x128xbf16, #tpu.memory_space<vmem>>, vector<64x32xbf16>,
    %64 = vector.extract_strided_slice %60 {offsets = [1, 0, 0], sizes = [1, 64, 32], strides = [1, 1, 1]} : vector<4x64x32xbf16> to vector<1x64x32xbf16>
    %65 = vector.shape_cast %64 : vector<1x64x32xbf16> to vector<64x32xbf16>
    %c0_38 = arith.constant 0 : index
    %c32 = arith.constant 32 : index
    %66 = vector.load %arg28[%c0_38, %c32] : memref<64x128xbf16, #tpu.memory_space<vmem>>, vector<64x32xbf16>
    tpu.vector_store %arg28[%c0_38, %c32], %65 {strides = array<i32>} : memref<64x128xbf16, #tpu.memory_space<vmem>>, vector<64x32xbf16>,
    %67 = vector.extract_strided_slice %60 {offsets = [2, 0, 0], sizes = [1, 64, 32], strides = [1, 1, 1]} : vector<4x64x32xbf16> to vector<1x64x32xbf16>
    %68 = vector.shape_cast %67 : vector<1x64x32xbf16> to vector<64x32xbf16>
    %c0_39 = arith.constant 0 : index
    %c64 = arith.constant 64 : index
    %69 = vector.load %arg28[%c0_39, %c64] : memref<64x128xbf16, #tpu.memory_space<vmem>>, vector<64x32xbf16>
    tpu.vector_store %arg28[%c0_39, %c64], %68 {strides = array<i32>} : memref<64x128xbf16, #tpu.memory_space<vmem>>, vector<64x32xbf16>,
    %70 = vector.extract_strided_slice %60 {offsets = [3, 0, 0], sizes = [1, 64, 32], strides = [1, 1, 1]} : vector<4x64x32xbf16> to vector<1x64x32xbf16>
    %71 = vector.shape_cast %70 : vector<1x64x32xbf16> to vector<64x32xbf16>
    %c0_40 = arith.constant 0 : index
    %c96 = arith.constant 96 : index
    %72 = vector.load %arg28[%c0_40, %c96] : memref<64x128xbf16, #tpu.memory_space<vmem>>, vector<64x32xbf16>
    tpu.vector_store %arg28[%c0_40, %c96], %71 {strides = array<i32>} : memref<64x128xbf16, #tpu.memory_space<vmem>>, vector<64x32xbf16>,
    %c0_41 = arith.constant 0 : index
    %c0_42 = arith.constant 0 : index
    %73 = vector.load %arg28[%c0_41, %c0_42] : memref<64x128xbf16, #tpu.memory_space<vmem>>, vector<64x128xbf16>
    %c0_43 = arith.constant 0 : index
    %c0_44 = arith.constant 0 : index
    %74 = vector.load %arg10[%c0_43, %c0_44] : memref<128x128xbf16, #tpu.memory_space<vmem>>, vector<128x128xbf16>
    %cst_45 = arith.constant dense<0.000000e+00> : vector<64x128xf32>
    %75 = tpu.matmul %73, %74, %cst_45 {dimension_numbers = #tpu.dot_dimension_numbers<[1], [0], [0], [1], [0, 0, 1, 1], [], []>} : vector<64x128xbf16>, vector<128x128xbf16>, vector<64x128xf32> -> vector<64x128xf32>
    %c0_46 = arith.constant 0 : index
    %c0_47 = arith.constant 0 : index
    %76 = vector.load %arg11[%c0_46, %c0_47] : memref<1x128xf32, #tpu.memory_space<vmem>>, vector<1x128xf32>
    %77 = vector.broadcast %76 : vector<1x128xf32> to vector<64x128xf32>
    %78 = arith.addf %75, %77 : vector<64x128xf32>
    %79 = arith.addf %12, %78 : vector<64x128xf32>
    %80 = arith.truncf %79 : vector<64x128xf32> to vector<64x128xbf16>
    %c0_48 = arith.constant 0 : index
    %c0_49 = arith.constant 0 : index
    %81 = vector.load %arg12[%c0_48, %c0_49] : memref<128x128xbf16, #tpu.memory_space<vmem>>, vector<128x128xbf16>
    %cst_50 = arith.constant dense<0.000000e+00> : vector<64x128xf32>
    %82 = tpu.matmul %80, %81, %cst_50 {dimension_numbers = #tpu.dot_dimension_numbers<[1], [0], [0], [1], [0, 0, 1, 1], [], []>} : vector<64x128xbf16>, vector<128x128xbf16>, vector<64x128xf32> -> vector<64x128xf32>
    %c0_51 = arith.constant 0 : index
    %c0_52 = arith.constant 0 : index
    %83 = vector.load %arg13[%c0_51, %c0_52] : memref<1x128xf32, #tpu.memory_space<vmem>>, vector<1x128xf32>
    %84 = vector.broadcast %83 : vector<1x128xf32> to vector<64x128xf32>
    %85 = arith.addf %82, %84 : vector<64x128xf32>
    %cst_53 = arith.constant 0.176776692 : f32
    %86 = vector.broadcast %cst_53 : f32 to vector<64x128xf32>
    %87 = arith.mulf %85, %86 : vector<64x128xf32>
    %88 = arith.truncf %87 : vector<64x128xf32> to vector<64x128xbf16>
    %89 = vector.extract_strided_slice %88 {offsets = [0, 0], sizes = [64, 32], strides = [1, 1]} : vector<64x128xbf16> to vector<64x32xbf16>
    %c0_54 = arith.constant 0 : index
    %c0_55 = arith.constant 0 : index
    %c0_56 = arith.constant 0 : index
    %90 = vector.load %arg27[%c0_54, %c0_55, %c0_56] : memref<4x64x32xbf16, #tpu.memory_space<vmem>>, vector<1x64x32xbf16>
    %91 = vector.shape_cast %90 : vector<1x64x32xbf16> to vector<64x32xbf16>
    %92 = vector.shape_cast %89 : vector<64x32xbf16> to vector<1x64x32xbf16>
    tpu.vector_store %arg27[%c0_54, %c0_55, %c0_56], %92 {strides = array<i32>} : memref<4x64x32xbf16, #tpu.memory_space<vmem>>, vector<1x64x32xbf16>,
    %93 = vector.extract_strided_slice %88 {offsets = [0, 32], sizes = [64, 32], strides = [1, 1]} : vector<64x128xbf16> to vector<64x32xbf16>
    %c1_57 = arith.constant 1 : index
    %c0_58 = arith.constant 0 : index
    %c0_59 = arith.constant 0 : index
    %94 = vector.load %arg27[%c1_57, %c0_58, %c0_59] : memref<4x64x32xbf16, #tpu.memory_space<vmem>>, vector<1x64x32xbf16>
    %95 = vector.shape_cast %94 : vector<1x64x32xbf16> to vector<64x32xbf16>
    %96 = vector.shape_cast %93 : vector<64x32xbf16> to vector<1x64x32xbf16>
    tpu.vector_store %arg27[%c1_57, %c0_58, %c0_59], %96 {strides = array<i32>} : memref<4x64x32xbf16, #tpu.memory_space<vmem>>, vector<1x64x32xbf16>,
    %97 = vector.extract_strided_slice %88 {offsets = [0, 64], sizes = [64, 32], strides = [1, 1]} : vector<64x128xbf16> to vector<64x32xbf16>
    %c2_60 = arith.constant 2 : index
    %c0_61 = arith.constant 0 : index
    %c0_62 = arith.constant 0 : index
    %98 = vector.load %arg27[%c2_60, %c0_61, %c0_62] : memref<4x64x32xbf16, #tpu.memory_space<vmem>>, vector<1x64x32xbf16>
    %99 = vector.shape_cast %98 : vector<1x64x32xbf16> to vector<64x32xbf16>
    %100 = vector.shape_cast %97 : vector<64x32xbf16> to vector<1x64x32xbf16>
    tpu.vector_store %arg27[%c2_60, %c0_61, %c0_62], %100 {strides = array<i32>} : memref<4x64x32xbf16, #tpu.memory_space<vmem>>, vector<1x64x32xbf16>,
    %101 = vector.extract_strided_slice %88 {offsets = [0, 96], sizes = [64, 32], strides = [1, 1]} : vector<64x128xbf16> to vector<64x32xbf16>
    %c3_63 = arith.constant 3 : index
    %c0_64 = arith.constant 0 : index
    %c0_65 = arith.constant 0 : index
    %102 = vector.load %arg27[%c3_63, %c0_64, %c0_65] : memref<4x64x32xbf16, #tpu.memory_space<vmem>>, vector<1x64x32xbf16>
    %103 = vector.shape_cast %102 : vector<1x64x32xbf16> to vector<64x32xbf16>
    %104 = vector.shape_cast %101 : vector<64x32xbf16> to vector<1x64x32xbf16>
    tpu.vector_store %arg27[%c3_63, %c0_64, %c0_65], %104 {strides = array<i32>} : memref<4x64x32xbf16, #tpu.memory_space<vmem>>, vector<1x64x32xbf16>,
    %c0_66 = arith.constant 0 : index
    %c0_67 = arith.constant 0 : index
    %c0_68 = arith.constant 0 : index
    %105 = vector.load %arg27[%c0_66, %c0_67, %c0_68] : memref<4x64x32xbf16, #tpu.memory_space<vmem>>, vector<4x64x32xbf16>
    %c0_69 = arith.constant 0 : index
    %c0_70 = arith.constant 0 : index
    %c0_71 = arith.constant 0 : index
    %106 = vector.load %arg25[%c0_69, %c0_70, %c0_71] : memref<4x128x32xbf16, #tpu.memory_space<vmem>>, vector<4x128x32xbf16>
    "tpu.trace_start"() <{level = 10 : i32, message = "hqd,hkd->hqk"}> : () -> ()
    %cst_72 = arith.constant dense<0.000000e+00> : vector<4x64x128xf32>
    %107 = tpu.matmul %105, %106, %cst_72 {dimension_numbers = #tpu.dot_dimension_numbers<[2], [2], [1], [1], [0, 0, 0, 1, 1, 1], [0], [0]>} : vector<4x64x32xbf16>, vector<4x128x32xbf16>, vector<4x64x128xf32> -> vector<4x64x128xf32>
    "tpu.trace_stop"() : () -> ()
    %108 = vector.shape_cast %11 : vector<64x128xi8> to vector<1x64x128xi8>
    %c0_i8_73 = arith.constant 0 : i8
    %109 = vector.broadcast %c0_i8_73 : i8 to vector<1x64x128xi8>
    %110 = arith.cmpi ne, %108, %109 : vector<1x64x128xi8>
    %cst_74 = arith.constant -1.000000e+09 : f32
    %111 = vector.shape_cast %110 : vector<1x64x128xi1> to vector<1x64x128xi1>
    %112 = vector.broadcast %111 : vector<1x64x128xi1> to vector<4x64x128xi1>
    %113 = vector.broadcast %cst_74 : f32 to vector<4x64x128xf32>
    %114 = arith.select %112, %107, %113 : vector<4x64x128xi1>, vector<4x64x128xf32>
    %cst_75 = arith.constant dense<0xFF800000> : vector<4x64xf32>
    %115 = vector.multi_reduction <maximumf>, %114, %cst_75 [2] : vector<4x64x128xf32> to vector<4x64xf32>
    %116 = vector.shape_cast %115 : vector<4x64xf32> to vector<4x64x1xf32>
    %117 = vector.broadcast %116 : vector<4x64x1xf32> to vector<4x64x128xf32>
    %118 = arith.subf %114, %117 : vector<4x64x128xf32>
    %119 = math.exp %118 : vector<4x64x128xf32>
    %cst_76 = arith.constant dense<0.000000e+00> : vector<4x64xf32>
    %120 = vector.multi_reduction <add>, %119, %cst_76 [2] : vector<4x64x128xf32> to vector<4x64xf32>
    %121 = vector.shape_cast %120 : vector<4x64xf32> to vector<4x64x1xf32>
    %122 = tpu.reciprocal %121 {approx = true} : vector<4x64x1xf32> -> vector<4x64x1xf32>
    %123 = vector.broadcast %122 : vector<4x64x1xf32> to vector<4x64x128xf32>
    %124 = arith.mulf %119, %123 : vector<4x64x128xf32>
    %125 = arith.truncf %124 : vector<4x64x128xf32> to vector<4x64x128xbf16>
    %c0_77 = arith.constant 0 : index
    %c0_78 = arith.constant 0 : index
    %c0_79 = arith.constant 0 : index
    %126 = vector.load %arg26[%c0_77, %c0_78, %c0_79] : memref<4x128x32xbf16, #tpu.memory_space<vmem>>, vector<4x128x32xbf16>
    "tpu.trace_start"() <{level = 10 : i32, message = "hqk,hkd->hqd"}> : () -> ()
    %cst_80 = arith.constant dense<0.000000e+00> : vector<4x64x32xf32>
    %127 = tpu.matmul %125, %126, %cst_80 {dimension_numbers = #tpu.dot_dimension_numbers<[2], [1], [1], [2], [0, 0, 0, 1, 1, 2], [0], [0]>} : vector<4x64x128xbf16>, vector<4x128x32xbf16>, vector<4x64x32xf32> -> vector<4x64x32xf32>
    "tpu.trace_stop"() : () -> ()
    %128 = arith.truncf %127 : vector<4x64x32xf32> to vector<4x64x32xbf16>
    %129 = vector.extract_strided_slice %128 {offsets = [0, 0, 0], sizes = [1, 64, 32], strides = [1, 1, 1]} : vector<4x64x32xbf16> to vector<1x64x32xbf16>
    %130 = vector.shape_cast %129 : vector<1x64x32xbf16> to vector<64x32xbf16>
    %c0_81 = arith.constant 0 : index
    %c0_82 = arith.constant 0 : index
    %131 = vector.load %arg28[%c0_81, %c0_82] : memref<64x128xbf16, #tpu.memory_space<vmem>>, vector<64x32xbf16>
    tpu.vector_store %arg28[%c0_81, %c0_82], %130 {strides = array<i32>} : memref<64x128xbf16, #tpu.memory_space<vmem>>, vector<64x32xbf16>,
    %132 = vector.extract_strided_slice %128 {offsets = [1, 0, 0], sizes = [1, 64, 32], strides = [1, 1, 1]} : vector<4x64x32xbf16> to vector<1x64x32xbf16>
    %133 = vector.shape_cast %132 : vector<1x64x32xbf16> to vector<64x32xbf16>
    %c0_83 = arith.constant 0 : index
    %c32_84 = arith.constant 32 : index
    %134 = vector.load %arg28[%c0_83, %c32_84] : memref<64x128xbf16, #tpu.memory_space<vmem>>, vector<64x32xbf16>
    tpu.vector_store %arg28[%c0_83, %c32_84], %133 {strides = array<i32>} : memref<64x128xbf16, #tpu.memory_space<vmem>>, vector<64x32xbf16>,
    %135 = vector.extract_strided_slice %128 {offsets = [2, 0, 0], sizes = [1, 64, 32], strides = [1, 1, 1]} : vector<4x64x32xbf16> to vector<1x64x32xbf16>
    %136 = vector.shape_cast %135 : vector<1x64x32xbf16> to vector<64x32xbf16>
    %c0_85 = arith.constant 0 : index
    %c64_86 = arith.constant 64 : index
    %137 = vector.load %arg28[%c0_85, %c64_86] : memref<64x128xbf16, #tpu.memory_space<vmem>>, vector<64x32xbf16>
    tpu.vector_store %arg28[%c0_85, %c64_86], %136 {strides = array<i32>} : memref<64x128xbf16, #tpu.memory_space<vmem>>, vector<64x32xbf16>,
    %138 = vector.extract_strided_slice %128 {offsets = [3, 0, 0], sizes = [1, 64, 32], strides = [1, 1, 1]} : vector<4x64x32xbf16> to vector<1x64x32xbf16>
    %139 = vector.shape_cast %138 : vector<1x64x32xbf16> to vector<64x32xbf16>
    %c0_87 = arith.constant 0 : index
    %c96_88 = arith.constant 96 : index
    %140 = vector.load %arg28[%c0_87, %c96_88] : memref<64x128xbf16, #tpu.memory_space<vmem>>, vector<64x32xbf16>
    tpu.vector_store %arg28[%c0_87, %c96_88], %139 {strides = array<i32>} : memref<64x128xbf16, #tpu.memory_space<vmem>>, vector<64x32xbf16>,
    %c0_89 = arith.constant 0 : index
    %c0_90 = arith.constant 0 : index
    %141 = vector.load %arg28[%c0_89, %c0_90] : memref<64x128xbf16, #tpu.memory_space<vmem>>, vector<64x128xbf16>
    %c0_91 = arith.constant 0 : index
    %c0_92 = arith.constant 0 : index
    %142 = vector.load %arg16[%c0_91, %c0_92] : memref<128x128xbf16, #tpu.memory_space<vmem>>, vector<128x128xbf16>
    %cst_93 = arith.constant dense<0.000000e+00> : vector<64x128xf32>
    %143 = tpu.matmul %141, %142, %cst_93 {dimension_numbers = #tpu.dot_dimension_numbers<[1], [0], [0], [1], [0, 0, 1, 1], [], []>} : vector<64x128xbf16>, vector<128x128xbf16>, vector<64x128xf32> -> vector<64x128xf32>
    %c0_94 = arith.constant 0 : index
    %c0_95 = arith.constant 0 : index
    %144 = vector.load %arg17[%c0_94, %c0_95] : memref<1x128xf32, #tpu.memory_space<vmem>>, vector<1x128xf32>
    %145 = vector.broadcast %144 : vector<1x128xf32> to vector<64x128xf32>
    %146 = arith.addf %143, %145 : vector<64x128xf32>
    %147 = arith.addf %79, %146 : vector<64x128xf32>
    %148 = arith.truncf %147 : vector<64x128xf32> to vector<64x128xbf16>
    %cst_96 = arith.constant 0.000000e+00 : f32
    %149 = vector.broadcast %cst_96 : f32 to vector<64x128xf32>
    %c0_i32_97 = arith.constant 0 : i32
    %150 = arith.index_cast %c0_i32_97 : i32 to index
    %c0_98 = arith.constant 0 : index
    %c0_99 = arith.constant 0 : index
    %151 = vector.load %arg18[%150, %c0_98, %c0_99] : memref<2x128x128xbf16, #tpu.memory_space<vmem>>, vector<1x128x128xbf16>
    %152 = vector.shape_cast %151 : vector<1x128x128xbf16> to vector<128x128xbf16>
    %cst_100 = arith.constant dense<0.000000e+00> : vector<64x128xf32>
    %153 = tpu.matmul %148, %152, %cst_100 {dimension_numbers = #tpu.dot_dimension_numbers<[1], [0], [0], [1], [0, 0, 1, 1], [], []>} : vector<64x128xbf16>, vector<128x128xbf16>, vector<64x128xf32> -> vector<64x128xf32>
    %154 = arith.index_cast %c0_i32_97 : i32 to index
    %c0_101 = arith.constant 0 : index
    %c0_102 = arith.constant 0 : index
    %155 = vector.load %arg19[%154, %c0_101, %c0_102] : memref<2x1x128xf32, #tpu.memory_space<vmem>>, vector<1x1x128xf32>
    %156 = vector.shape_cast %155 : vector<1x1x128xf32> to vector<1x128xf32>
    %157 = vector.broadcast %156 : vector<1x128xf32> to vector<64x128xf32>
    %158 = arith.addf %153, %157 : vector<64x128xf32>
    %cst_103 = arith.constant 0.000000e+00 : f32
    %159 = vector.broadcast %cst_103 : f32 to vector<64x128xf32>
    %160 = arith.maximumf %158, %159 : vector<64x128xf32>
    %161 = arith.truncf %160 : vector<64x128xf32> to vector<64x128xbf16>
    %162 = arith.index_cast %c0_i32_97 : i32 to index
    %c0_104 = arith.constant 0 : index
    %c0_105 = arith.constant 0 : index
    %163 = vector.load %arg20[%162, %c0_104, %c0_105] : memref<2x128x128xbf16, #tpu.memory_space<vmem>>, vector<1x128x128xbf16>
    %164 = vector.shape_cast %163 : vector<1x128x128xbf16> to vector<128x128xbf16>
    %cst_106 = arith.constant dense<0.000000e+00> : vector<64x128xf32>
    %165 = tpu.matmul %161, %164, %cst_106 {dimension_numbers = #tpu.dot_dimension_numbers<[1], [0], [0], [1], [0, 0, 1, 1], [], []>} : vector<64x128xbf16>, vector<128x128xbf16>, vector<64x128xf32> -> vector<64x128xf32>
    %166 = arith.addf %149, %165 : vector<64x128xf32>
    %c1_i32 = arith.constant 1 : i32
    %167 = arith.index_cast %c1_i32 : i32 to index
    %c0_107 = arith.constant 0 : index
    %c0_108 = arith.constant 0 : index
    %168 = vector.load %arg18[%167, %c0_107, %c0_108] : memref<2x128x128xbf16, #tpu.memory_space<vmem>>, vector<1x128x128xbf16>
    %169 = vector.shape_cast %168 : vector<1x128x128xbf16> to vector<128x128xbf16>
    %cst_109 = arith.constant dense<0.000000e+00> : vector<64x128xf32>
    %170 = tpu.matmul %148, %169, %cst_109 {dimension_numbers = #tpu.dot_dimension_numbers<[1], [0], [0], [1], [0, 0, 1, 1], [], []>} : vector<64x128xbf16>, vector<128x128xbf16>, vector<64x128xf32> -> vector<64x128xf32>
    %171 = arith.index_cast %c1_i32 : i32 to index
    %c0_110 = arith.constant 0 : index
    %c0_111 = arith.constant 0 : index
    %172 = vector.load %arg19[%171, %c0_110, %c0_111] : memref<2x1x128xf32, #tpu.memory_space<vmem>>, vector<1x1x128xf32>
    %173 = vector.shape_cast %172 : vector<1x1x128xf32> to vector<1x128xf32>
    %174 = vector.broadcast %173 : vector<1x128xf32> to vector<64x128xf32>
    %175 = arith.addf %170, %174 : vector<64x128xf32>
    %cst_112 = arith.constant 0.000000e+00 : f32
    %176 = vector.broadcast %cst_112 : f32 to vector<64x128xf32>
    %177 = arith.maximumf %175, %176 : vector<64x128xf32>
    %178 = arith.truncf %177 : vector<64x128xf32> to vector<64x128xbf16>
    %179 = arith.index_cast %c1_i32 : i32 to index
    %c0_113 = arith.constant 0 : index
    %c0_114 = arith.constant 0 : index
    %180 = vector.load %arg20[%179, %c0_113, %c0_114] : memref<2x128x128xbf16, #tpu.memory_space<vmem>>, vector<1x128x128xbf16>
    %181 = vector.shape_cast %180 : vector<1x128x128xbf16> to vector<128x128xbf16>
    %cst_115 = arith.constant dense<0.000000e+00> : vector<64x128xf32>
    %182 = tpu.matmul %178, %181, %cst_115 {dimension_numbers = #tpu.dot_dimension_numbers<[1], [0], [0], [1], [0, 0, 1, 1], [], []>} : vector<64x128xbf16>, vector<128x128xbf16>, vector<64x128xf32> -> vector<64x128xf32>
    %183 = arith.addf %166, %182 : vector<64x128xf32>
    %c2_i32 = arith.constant 2 : i32
    %184 = arith.addf %147, %183 : vector<64x128xf32>
    %c0_116 = arith.constant 0 : index
    %c0_117 = arith.constant 0 : index
    %185 = vector.load %arg21[%c0_116, %c0_117] : memref<1x128xf32, #tpu.memory_space<vmem>>, vector<1x128xf32>
    %186 = vector.broadcast %185 : vector<1x128xf32> to vector<64x128xf32>
    %187 = arith.addf %184, %186 : vector<64x128xf32>
    %188 = arith.truncf %187 : vector<64x128xf32> to vector<64x128xbf16>
    %c0_118 = arith.constant 0 : index
    %c0_119 = arith.constant 0 : index
    %c0_120 = arith.constant 0 : index
    %189 = vector.load %arg22[%c0_118, %c0_119, %c0_120] : memref<1x64x128xbf16, #tpu.memory_space<vmem>>, vector<1x64x128xbf16>
    %190 = vector.shape_cast %189 : vector<1x64x128xbf16> to vector<64x128xbf16>
    %191 = vector.shape_cast %188 : vector<64x128xbf16> to vector<1x64x128xbf16>
    tpu.vector_store %arg22[%c0_118, %c0_119, %c0_120], %191 {strides = array<i32>} : memref<1x64x128xbf16, #tpu.memory_space<vmem>>, vector<1x64x128xbf16>,
    return
  }
  func.func @transform_0(%arg0: i32, %arg1: i32) -> (i32, i32, i32) {
    %c0_i32 = arith.constant 0 : i32
    %c0_i32_0 = arith.constant 0 : i32
    %c0_i32_1 = arith.constant 0 : i32
    return %arg0, %c0_i32, %c0_i32_0 : i32, i32, i32
  }
  func.func @transform_1(%arg0: i32, %arg1: i32) -> (i32, i32, i32) {
    %c0_i32 = arith.constant 0 : i32
    %c0_i32_0 = arith.constant 0 : i32
    %c0_i32_1 = arith.constant 0 : i32
    return %arg0, %c0_i32, %c0_i32_0 : i32, i32, i32
  }
  func.func @transform_2(%arg0: i32, %arg1: i32) -> (i32, i32, i32) {
    %c0_i32 = arith.constant 0 : i32
    %c0_i32_0 = arith.constant 0 : i32
    return %arg0, %arg1, %c0_i32 : i32, i32, i32
  }
  func.func @transform_3(%arg0: i32, %arg1: i32) -> (i32, i32, i32) {
    %c0_i32 = arith.constant 0 : i32
    %c0_i32_0 = arith.constant 0 : i32
    return %arg0, %arg1, %c0_i32 : i32, i32, i32
  }
  func.func @transform_4(%arg0: i32, %arg1: i32) -> (i32, i32) {
    %c0_i32 = arith.constant 0 : i32
    %c0_i32_0 = arith.constant 0 : i32
    %c0_i32_1 = arith.constant 0 : i32
    return %c0_i32, %c0_i32_0 : i32, i32
  }
  func.func @transform_5(%arg0: i32, %arg1: i32) -> (i32, i32) {
    %c0_i32 = arith.constant 0 : i32
    %c0_i32_0 = arith.constant 0 : i32
    %c0_i32_1 = arith.constant 0 : i32
    return %c0_i32, %c0_i32_0 : i32, i32
  }
  func.func @transform_6(%arg0: i32, %arg1: i32) -> (i32, i32) {
    %c0_i32 = arith.constant 0 : i32
    %c0_i32_0 = arith.constant 0 : i32
    %c0_i32_1 = arith.constant 0 : i32
    return %c0_i32, %c0_i32_0 : i32, i32
  }
  func.func @transform_7(%arg0: i32, %arg1: i32) -> (i32, i32) {
    %c0_i32 = arith.constant 0 : i32
    %c0_i32_0 = arith.constant 0 : i32
    %c0_i32_1 = arith.constant 0 : i32
    return %c0_i32, %c0_i32_0 : i32, i32
  }
  func.func @transform_8(%arg0: i32, %arg1: i32) -> (i32, i32) {
    %c0_i32 = arith.constant 0 : i32
    %c0_i32_0 = arith.constant 0 : i32
    %c0_i32_1 = arith.constant 0 : i32
    return %c0_i32, %c0_i32_0 : i32, i32
  }
  func.func @transform_9(%arg0: i32, %arg1: i32) -> (i32, i32) {
    %c0_i32 = arith.constant 0 : i32
    %c0_i32_0 = arith.constant 0 : i32
    %c0_i32_1 = arith.constant 0 : i32
    return %c0_i32, %c0_i32_0 : i32, i32
  }
  func.func @transform_10(%arg0: i32, %arg1: i32) -> (i32, i32) {
    %c0_i32 = arith.constant 0 : i32
    %c0_i32_0 = arith.constant 0 : i32
    %c0_i32_1 = arith.constant 0 : i32
    return %c0_i32, %c0_i32_0 : i32, i32
  }
  func.func @transform_11(%arg0: i32, %arg1: i32) -> (i32, i32) {
    %c0_i32 = arith.constant 0 : i32
    %c0_i32_0 = arith.constant 0 : i32
    %c0_i32_1 = arith.constant 0 : i32
    return %c0_i32, %c0_i32_0 : i32, i32
  }
  func.func @transform_12(%arg0: i32, %arg1: i32) -> (i32, i32) {
    %c0_i32 = arith.constant 0 : i32
    %c0_i32_0 = arith.constant 0 : i32
    %c0_i32_1 = arith.constant 0 : i32
    return %c0_i32, %c0_i32_0 : i32, i32
  }
  func.func @transform_13(%arg0: i32, %arg1: i32) -> (i32, i32) {
    %c0_i32 = arith.constant 0 : i32
    %c0_i32_0 = arith.constant 0 : i32
    %c0_i32_1 = arith.constant 0 : i32
    return %c0_i32, %c0_i32_0 : i32, i32
  }
  func.func @transform_14(%arg0: i32, %arg1: i32) -> (i32, i32) {
    %c0_i32 = arith.constant 0 : i32
    %c0_i32_0 = arith.constant 0 : i32
    %c0_i32_1 = arith.constant 0 : i32
    return %c0_i32, %c0_i32_0 : i32, i32
  }
  func.func @transform_15(%arg0: i32, %arg1: i32) -> (i32, i32) {
    %c0_i32 = arith.constant 0 : i32
    %c0_i32_0 = arith.constant 0 : i32
    %c0_i32_1 = arith.constant 0 : i32
    return %c0_i32, %c0_i32_0 : i32, i32
  }
  func.func @transform_16(%arg0: i32, %arg1: i32) -> (i32, i32, i32) {
    %c0_i32 = arith.constant 0 : i32
    %c0_i32_0 = arith.constant 0 : i32
    %c0_i32_1 = arith.constant 0 : i32
    %c0_i32_2 = arith.constant 0 : i32
    return %c0_i32, %c0_i32_0, %c0_i32_1 : i32, i32, i32
  }
  func.func @transform_17(%arg0: i32, %arg1: i32) -> (i32, i32, i32) {
    %c0_i32 = arith.constant 0 : i32
    %c0_i32_0 = arith.constant 0 : i32
    %c0_i32_1 = arith.constant 0 : i32
    %c0_i32_2 = arith.constant 0 : i32
    return %c0_i32, %c0_i32_0, %c0_i32_1 : i32, i32, i32
  }
  func.func @transform_18(%arg0: i32, %arg1: i32) -> (i32, i32, i32) {
    %c0_i32 = arith.constant 0 : i32
    %c0_i32_0 = arith.constant 0 : i32
    %c0_i32_1 = arith.constant 0 : i32
    %c0_i32_2 = arith.constant 0 : i32
    return %c0_i32, %c0_i32_0, %c0_i32_1 : i32, i32, i32
  }
  func.func @transform_19(%arg0: i32, %arg1: i32) -> (i32, i32) {
    %c0_i32 = arith.constant 0 : i32
    %c0_i32_0 = arith.constant 0 : i32
    %c0_i32_1 = arith.constant 0 : i32
    return %c0_i32, %c0_i32_0 : i32, i32
  }
  func.func @transform_20(%arg0: i32, %arg1: i32) -> (i32, i32, i32) {
    %c0_i32 = arith.constant 0 : i32
    %c0_i32_0 = arith.constant 0 : i32
    return %arg0, %arg1, %c0_i32 : i32, i32, i32
  }
}

</mosaic_0001>

<llo_original>
// kernel: tpu_custom_call.1
$region0: #{tpu_custom_call.1}
  #allocation0 [shape = 'u32[]', space=smem, size = 0x4, offset = 0x4, fixed_abs, tag = 'smem constant byte address 0x4 - core index']
  #allocation1 [shape = 'u32[144,128]{1,0:T(1,128)}', space=vmem, size = 0x12000, scoped, tag = 'internal scratch']
  #allocation2 [shape = 'bf16[4,128,32]{2,1,0:T(16,128)(2,1)}', space=vmem, size = 0x20000, scoped, tag = 'scratch operand']
  #allocation3 [shape = 'bf16[4,128,32]{2,1,0:T(16,128)(2,1)}', space=vmem, size = 0x20000, scoped, tag = 'scratch operand']
  #allocation4 [shape = 'bf16[4,128,32]{2,1,0:T(16,128)(2,1)}', space=vmem, size = 0x20000, scoped, tag = 'scratch operand']
  #allocation5 [shape = 'bf16[4,128,32]{2,1,0:T(16,128)(2,1)}', space=vmem, size = 0x20000, scoped, tag = 'scratch operand']
  #allocation6 [shape = 'bf16[4,64,32]{2,1,0:T(16,128)(2,1)}', space=vmem, size = 0x10000, scoped, tag = 'scratch operand']
  #allocation7 [shape = 'bf16[64,128]{1,0:T(16,128)(2,1)}', space=vmem, size = 0x4000, scoped, tag = 'scratch operand']
  %s0 = inlined_call_operand.hbm [shape: bf16[2,128,128], index: 0, kind: input, shape index: {}]
  %s1 = inlined_call_operand.hbm [shape: bf16[2,128,128], index: 1, kind: input, shape index: {}]
  %s2 = inlined_call_operand.hbm [shape: s8[2,128,128], index: 2, kind: input, shape index: {}]
  %s3 = inlined_call_operand.hbm [shape: s8[2,128,128], index: 3, kind: input, shape index: {}]
  %s4 = inlined_call_operand.hbm [shape: bf16[128,128], index: 4, kind: input, shape index: {}]
  %s5 = inlined_call_operand.vmem [shape: f32[1,128], index: 5, kind: input, shape index: {}]
  %s6 = inlined_call_operand.hbm [shape: bf16[128,256], index: 6, kind: input, shape index: {}]
  %s7 = inlined_call_operand.vmem [shape: f32[1,256], index: 7, kind: input, shape index: {}]
  %s8 = inlined_call_operand.hbm [shape: bf16[128,128], index: 8, kind: input, shape index: {}]
  %s9 = inlined_call_operand.vmem [shape: f32[1,128], index: 9, kind: input, shape index: {}]
  %s10 = inlined_call_operand.hbm [shape: bf16[128,128], index: 10, kind: input, shape index: {}]
  %s11 = inlined_call_operand.vmem [shape: f32[1,128], index: 11, kind: input, shape index: {}]
  %s12 = inlined_call_operand.hbm [shape: bf16[128,256], index: 12, kind: input, shape index: {}]
  %s13 = inlined_call_operand.vmem [shape: f32[1,256], index: 13, kind: input, shape index: {}]
  %s14 = inlined_call_operand.hbm [shape: bf16[128,128], index: 14, kind: input, shape index: {}]
  %s15 = inlined_call_operand.vmem [shape: f32[1,128], index: 15, kind: input, shape index: {}]
  %s16 = inlined_call_operand.hbm [shape: bf16[2,128,128], index: 16, kind: input, shape index: {}]
  %s17 = inlined_call_operand.vmem [shape: f32[2,1,128], index: 17, kind: input, shape index: {}]
  %s18 = inlined_call_operand.hbm [shape: bf16[2,128,128], index: 18, kind: input, shape index: {}]
  %s19 = inlined_call_operand.vmem [shape: f32[1,128], index: 19, kind: input, shape index: {}]
  %s20 = inlined_call_operand.hbm [shape: bf16[2,128,128], index: 20, kind: output, shape index: {}]
  %s21 = sld [smem:[#allocation0]]
  $region165: #{tpu_custom_call.1} parent=0
    _
  %s23 = ssub.s32 1, %s21
  %s24 = scalar_select 0, %s23, %s21
  $region1: #{tpu_custom_call.1} parent=0
    #allocation8 [shape = 'u8[65536]{0}', space=vmem, size = 0x10000, scoped, tag = 'input window, operand 0']
    #allocation9 [shape = 's32[2]{0}', space=sflag, size = 0x8, scoped, tag = 'scoped memory for tpu_custom_call.1']
    #allocation10 [shape = 's32[2]{0}', space=sflag, size = 0x8, scoped, tag = 'scoped memory for tpu_custom_call.1']
    #allocation11 [shape = 'u8[65536]{0}', space=vmem, size = 0x10000, scoped, tag = 'input window, operand 1']
    #allocation12 [shape = 's32[2]{0}', space=sflag, size = 0x8, scoped, tag = 'scoped memory for tpu_custom_call.1']
    #allocation13 [shape = 'u8[16384]{0}', space=vmem, size = 0x4000, scoped, tag = 'input window, operand 2']
    #allocation14 [shape = 'u8[16384]{0}', space=vmem, size = 0x4000, scoped, tag = 'input window, operand 3']
    #allocation15 [shape = 's32[2]{0}', space=sflag, size = 0x8, scoped, tag = 'scoped memory for tpu_custom_call.1']
    #allocation16 [shape = 'u8[32768]{0}', space=vmem, size = 0x8000, scoped, tag = 'input window, operand 4, single buffered']
    #allocation17 [shape = 'u8[65536]{0}', space=vmem, size = 0x10000, scoped, tag = 'input window, operand 6, single buffered']
    #allocation18 [shape = 's32[1]{0}', space=sflag, size = 0x4, scoped, tag = 'scoped memory for tpu_custom_call.1']
    #allocation19 [shape = 'u8[32768]{0}', space=vmem, size = 0x8000, scoped, tag = 'input window, operand 8, single buffered']
    #allocation20 [shape = 'u8[32768]{0}', space=vmem, size = 0x8000, scoped, tag = 'input window, operand 10, single buffered']
    #allocation21 [shape = 's32[1]{0}', space=sflag, size = 0x4, scoped, tag = 'scoped memory for tpu_custom_call.1']
    #allocation22 [shape = 'u8[65536]{0}', space=vmem, size = 0x10000, scoped, tag = 'input window, operand 12, single buffered']
    #allocation23 [shape = 'u8[32768]{0}', space=vmem, size = 0x8000, scoped, tag = 'input window, operand 14, single buffered']
    #allocation24 [shape = 's32[1]{0}', space=sflag, size = 0x4, scoped, tag = 'scoped memory for tpu_custom_call.1']
    #allocation25 [shape = 'u8[65536]{0}', space=vmem, size = 0x10000, scoped, tag = 'input window, operand 16, single buffered']
    #allocation26 [shape = 'u8[65536]{0}', space=vmem, size = 0x10000, scoped, tag = 'input window, operand 18, single buffered']
    #allocation27 [shape = 's32[1]{0}', space=sflag, size = 0x4, scoped, tag = 'scoped memory for tpu_custom_call.1']
    #allocation28 [shape = 'u8[32768]{0}', space=vmem, size = 0x8000, scoped, tag = 'output window, operand 0']
    %25 = vsyncpa [#allocation9], 0
    %s26 = scalar_lea.sflag [#allocation9], 1
    %27 = vsyncpa %s26, 0
    %28 = vsyncpa [#allocation12], 0
    %s29 = scalar_lea.sflag [#allocation12], 1
    %30 = vsyncpa %s29, 0
    %31 = vsyncpa [#allocation15], 0
    %s32 = scalar_lea.sflag [#allocation15], 1
    %33 = vsyncpa %s32, 0
    %34 = vsyncpa [#allocation18], 0
    %35 = vsyncpa [#allocation21], 0
    %36 = vsyncpa [#allocation24], 0
    %37 = vsyncpa [#allocation27], 0
    %38 = vsyncpa [#allocation10], 0
    %s39 = scalar_lea.sflag [#allocation10], 1
    %40 = vsyncpa %s39, 0
    loop: start=0, step=1, limit=6
    $region2: #{tpu_custom_call.1} parent=1 // loop_pre_header
      _
    $region3: #{tpu_custom_call.1} parent=1 // loop_header
      %s42 = sphi 0, %s46
      %p43 = scmp.ge.s32.totalorder %s42, 6
      %s49 = sphi 0, %s61
      %s50 = sphi 0, %s57
      %s51 = sphi 0, %s49
      %s52 = sphi 0, %s50
      %s53 = sphi 0, %s51
      %s54 = sphi 0, %s52
      %s64 = sphi 0, %s66
      %s67 = sphi 0, %s64
      %s68 = sphi 0, %s67
      %s84 = sphi 0, %s68
      %s90 = sphi 0, %s92
      %s93 = sphi 0, %s90
      %s94 = sphi 0, %s93
      %s110 = sphi 0, %s94
      %s118 = sphi 0, %s120
      %s121 = sphi 0, %s118
      %s122 = sphi 0, %s121
      %s138 = sphi 0, %s122
      %s146 = sphi 0, %s148
      %s149 = sphi 0, %s146
      %s150 = sphi 0, %s149
      %s166 = sphi 0, %s150
      %s170 = sphi 0, %s170
      %s172 = sphi 0, %s170
      %s173 = sphi 0, %s172
      %s187 = sphi 0, %s173
      %s191 = sphi 0, %s191
      %s193 = sphi 0, %s191
      %s194 = sphi 0, %s193
      %s208 = sphi 0, %s194
      %s212 = sphi 0, %s212
      %s214 = sphi 0, %s212
      %s215 = sphi 0, %s214
      %s229 = sphi 0, %s215
      %s233 = sphi 0, %s233
      %s235 = sphi 0, %s233
      %s236 = sphi 0, %s235
      %s250 = sphi 0, %s236
      %s254 = sphi 0, %s254
      %s256 = sphi 0, %s254
      %s257 = sphi 0, %s256
      %s271 = sphi 0, %s257
      %s275 = sphi 0, %s275
      %s277 = sphi 0, %s275
      %s278 = sphi 0, %s277
      %s292 = sphi 0, %s278
      %s296 = sphi 0, %s296
      %s298 = sphi 0, %s296
      %s299 = sphi 0, %s298
      %s313 = sphi 0, %s299
      %s317 = sphi 0, %s317
      %s319 = sphi 0, %s317
      %s320 = sphi 0, %s319
      %s334 = sphi 0, %s320
      %s338 = sphi 0, %s338
      %s340 = sphi 0, %s338
      %s341 = sphi 0, %s340
      %s355 = sphi 0, %s341
      %s359 = sphi 0, %s359
      %s361 = sphi 0, %s359
      %s362 = sphi 0, %s361
      %s376 = sphi 0, %s362
      %s380 = sphi 0, %s380
      %s382 = sphi 0, %s380
      %s383 = sphi 0, %s382
      %s397 = sphi 0, %s383
      %s401 = sphi 0, %s401
      %s403 = sphi 0, %s401
      %s404 = sphi 0, %s403
      %s418 = sphi 0, %s404
      %s422 = sphi 0, %s422
      %s424 = sphi 0, %s422
      %s425 = sphi 0, %s424
      %s439 = sphi 0, %s425
      %s443 = sphi 0, %s443
      %s445 = sphi 0, %s443
      %s446 = sphi 0, %s445
      %s460 = sphi 0, %s446
      %s464 = sphi 0, %s464
      %s466 = sphi 0, %s464
      %s467 = sphi 0, %s466
      %s481 = sphi 0, %s467
      %s485 = sphi 0, %s485
      %s487 = sphi 0, %s485
      %s488 = sphi 0, %s487
      %s502 = sphi 0, %s488
      %s510 = sphi 0, %s512
      %s513 = sphi 0, %s510
      %s514 = sphi 0, %s513
      %s530 = sphi 0, %s514
    $region4: #{tpu_custom_call.1} parent=1 // loop_header_branch
      %45 = sbr.rel (%p43) target = $region8
    $region5: #{tpu_custom_call.1} parent=1 // loop_body
      %s47 = ssub.s32 %s42, 1
      %s48 = ssub.s32 %s42, 2
      %s55 = sadd.s32 1, %s50
      %p56 = scmp.ge.s32.totalorder %s55, 2
      %s57 = scalar_select %p56, 0, %s55
      %s58 = sadd.s32 1, %s49
      %s59 = scalar_select %p56, %s58, %s49
      %p60 = scmp.ge.s32.totalorder %s59, 2
      %s61 = scalar_select %p60, 0, %s59
      %s62 = ssub.s32 %s49, %s61
      %p63 = scmp.eq.s32.totalorder %s62, 0
      %s65 = sadd.s32 %s64, 1
      %s66 = scalar_select %p63, %s64, %s65
      %p69 = pneg %p63
      %p70 = scmp.eq.s32.totalorder %s42, 3
      %p71 = por %p69, %p70
      %p72 = scmp.ne.s32.totalorder %s64, %s67
      %p73 = scmp.eq.s32.totalorder %s42, 0
      %p74 = por %p72, %p73
      %p75 = scmp.ne.s32.totalorder %s64, %s67
      %p76 = scmp.eq.s32.totalorder %s47, 3
      %p77 = por %p75, %p76
      %p78 = scmp.ne.s32.totalorder %s67, %s68
      %p79 = scmp.eq.s32.totalorder %s47, 0
      %p80 = por %p78, %p79
      %p81 = scmp.ne.s32.totalorder %s67, %s68
      %p82 = scmp.eq.s32.totalorder %s48, 3
      %p83 = por %p81, %p82
      %p85 = scmp.ne.s32.totalorder %s68, %s84
      %p86 = scmp.eq.s32.totalorder %s48, 0
      %p87 = por %p85, %p86
      %s88 = ssub.s32 %s49, %s61
      %p89 = scmp.eq.s32.totalorder %s88, 0
      %s91 = sadd.s32 %s90, 1
      %s92 = scalar_select %p89, %s90, %s91
      %p95 = pneg %p89
      %p96 = scmp.eq.s32.totalorder %s42, 3
      %p97 = por %p95, %p96
      %p98 = scmp.ne.s32.totalorder %s90, %s93
      %p99 = scmp.eq.s32.totalorder %s42, 0
      %p100 = por %p98, %p99
      %p101 = scmp.ne.s32.totalorder %s90, %s93
      %p102 = scmp.eq.s32.totalorder %s47, 3
      %p103 = por %p101, %p102
      %p104 = scmp.ne.s32.totalorder %s93, %s94
      %p105 = scmp.eq.s32.totalorder %s47, 0
      %p106 = por %p104, %p105
      %p107 = scmp.ne.s32.totalorder %s93, %s94
      %p108 = scmp.eq.s32.totalorder %s48, 3
      %p109 = por %p107, %p108
      %p111 = scmp.ne.s32.totalorder %s94, %s110
      %p112 = scmp.eq.s32.totalorder %s48, 0
      %p113 = por %p111, %p112
      %s114 = ssub.s32 %s49, %s61
      %s115 = ssub.s32 %s50, %s57
      %s116 = sor.u32 %s114, %s115
      %p117 = scmp.eq.s32.totalorder %s116, 0
      %s119 = sadd.s32 %s118, 1
      %s120 = scalar_select %p117, %s118, %s119
      %p123 = pneg %p117
      %p124 = scmp.eq.s32.totalorder %s42, 3
      %p125 = por %p123, %p124
      %p126 = scmp.ne.s32.totalorder %s118, %s121
      %p127 = scmp.eq.s32.totalorder %s42, 0
      %p128 = por %p126, %p127
      %p129 = scmp.ne.s32.totalorder %s118, %s121
      %p130 = scmp.eq.s32.totalorder %s47, 3
      %p131 = por %p129, %p130
      %p132 = scmp.ne.s32.totalorder %s121, %s122
      %p133 = scmp.eq.s32.totalorder %s47, 0
      %p134 = por %p132, %p133
      %p135 = scmp.ne.s32.totalorder %s121, %s122
      %p136 = scmp.eq.s32.totalorder %s48, 3
      %p137 = por %p135, %p136
      %p139 = scmp.ne.s32.totalorder %s122, %s138
      %p140 = scmp.eq.s32.totalorder %s48, 0
      %p141 = por %p139, %p140
      %s142 = ssub.s32 %s49, %s61
      %s143 = ssub.s32 %s50, %s57
      %s144 = sor.u32 %s142, %s143
      %p145 = scmp.eq.s32.totalorder %s144, 0
      %s147 = sadd.s32 %s146, 1
      %s148 = scalar_select %p145, %s146, %s147
      %p151 = pneg %p145
      %p152 = scmp.eq.s32.totalorder %s42, 3
      %p153 = por %p151, %p152
      %p154 = scmp.ne.s32.totalorder %s146, %s149
      %p155 = scmp.eq.s32.totalorder %s42, 0
      %p156 = por %p154, %p155
      %p157 = scmp.ne.s32.totalorder %s146, %s149
      %p158 = scmp.eq.s32.totalorder %s47, 3
      %p159 = por %p157, %p158
      %p160 = scmp.ne.s32.totalorder %s149, %s150
      %p161 = scmp.eq.s32.totalorder %s47, 0
      %p162 = por %p160, %p161
      %p163 = scmp.ne.s32.totalorder %s149, %s150
      %p164 = scmp.eq.s32.totalorder %s48, 3
      %p165 = por %p163, %p164
      %p167 = scmp.ne.s32.totalorder %s150, %s166
      %p168 = scmp.eq.s32.totalorder %s48, 0
      %p169 = por %p167, %p168
      %s171 = sadd.s32 %s170, 1
      %p174 = scmp.eq.s32.totalorder %s42, 3
      %p175 = scmp.ne.s32.totalorder %s170, %s172
      %p176 = scmp.eq.s32.totalorder %s42, 0
      %p177 = por %p175, %p176
      %p178 = scmp.ne.s32.totalorder %s170, %s172
      %p179 = scmp.eq.s32.totalorder %s47, 3
      %p180 = por %p178, %p179
      %p181 = scmp.ne.s32.totalorder %s172, %s173
      %p182 = scmp.eq.s32.totalorder %s47, 0
      %p183 = por %p181, %p182
      %p184 = scmp.ne.s32.totalorder %s172, %s173
      %p185 = scmp.eq.s32.totalorder %s48, 3
      %p186 = por %p184, %p185
      %p188 = scmp.ne.s32.totalorder %s173, %s187
      %p189 = scmp.eq.s32.totalorder %s48, 0
      %p190 = por %p188, %p189
      %s192 = sadd.s32 %s191, 1
      %p195 = scmp.eq.s32.totalorder %s42, 3
      %p196 = scmp.ne.s32.totalorder %s191, %s193
      %p197 = scmp.eq.s32.totalorder %s42, 0
      %p198 = por %p196, %p197
      %p199 = scmp.ne.s32.totalorder %s191, %s193
      %p200 = scmp.eq.s32.totalorder %s47, 3
      %p201 = por %p199, %p200
      %p202 = scmp.ne.s32.totalorder %s193, %s194
      %p203 = scmp.eq.s32.totalorder %s47, 0
      %p204 = por %p202, %p203
      %p205 = scmp.ne.s32.totalorder %s193, %s194
      %p206 = scmp.eq.s32.totalorder %s48, 3
      %p207 = por %p205, %p206
      %p209 = scmp.ne.s32.totalorder %s194, %s208
      %p210 = scmp.eq.s32.totalorder %s48, 0
      %p211 = por %p209, %p210
      %s213 = sadd.s32 %s212, 1
      %p216 = scmp.eq.s32.totalorder %s42, 3
      %p217 = scmp.ne.s32.totalorder %s212, %s214
      %p218 = scmp.eq.s32.totalorder %s42, 0
      %p219 = por %p217, %p218
      %p220 = scmp.ne.s32.totalorder %s212, %s214
      %p221 = scmp.eq.s32.totalorder %s47, 3
      %p222 = por %p220, %p221
      %p223 = scmp.ne.s32.totalorder %s214, %s215
      %p224 = scmp.eq.s32.totalorder %s47, 0
      %p225 = por %p223, %p224
      %p226 = scmp.ne.s32.totalorder %s214, %s215
      %p227 = scmp.eq.s32.totalorder %s48, 3
      %p228 = por %p226, %p227
      %p230 = scmp.ne.s32.totalorder %s215, %s229
      %p231 = scmp.eq.s32.totalorder %s48, 0
      %p232 = por %p230, %p231
      %s234 = sadd.s32 %s233, 1
      %p237 = scmp.eq.s32.totalorder %s42, 3
      %p238 = scmp.ne.s32.totalorder %s233, %s235
      %p239 = scmp.eq.s32.totalorder %s42, 0
      %p240 = por %p238, %p239
      %p241 = scmp.ne.s32.totalorder %s233, %s235
      %p242 = scmp.eq.s32.totalorder %s47, 3
      %p243 = por %p241, %p242
      %p244 = scmp.ne.s32.totalorder %s235, %s236
      %p245 = scmp.eq.s32.totalorder %s47, 0
      %p246 = por %p244, %p245
      %p247 = scmp.ne.s32.totalorder %s235, %s236
      %p248 = scmp.eq.s32.totalorder %s48, 3
      %p249 = por %p247, %p248
      %p251 = scmp.ne.s32.totalorder %s236, %s250
      %p252 = scmp.eq.s32.totalorder %s48, 0
      %p253 = por %p251, %p252
      %s255 = sadd.s32 %s254, 1
      %p258 = scmp.eq.s32.totalorder %s42, 3
      %p259 = scmp.ne.s32.totalorder %s254, %s256
      %p260 = scmp.eq.s32.totalorder %s42, 0
      %p261 = por %p259, %p260
      %p262 = scmp.ne.s32.totalorder %s254, %s256
      %p263 = scmp.eq.s32.totalorder %s47, 3
      %p264 = por %p262, %p263
      %p265 = scmp.ne.s32.totalorder %s256, %s257
      %p266 = scmp.eq.s32.totalorder %s47, 0
      %p267 = por %p265, %p266
      %p268 = scmp.ne.s32.totalorder %s256, %s257
      %p269 = scmp.eq.s32.totalorder %s48, 3
      %p270 = por %p268, %p269
      %p272 = scmp.ne.s32.totalorder %s257, %s271
      %p273 = scmp.eq.s32.totalorder %s48, 0
      %p274 = por %p272, %p273
      %s276 = sadd.s32 %s275, 1
      %p279 = scmp.eq.s32.totalorder %s42, 3
      %p280 = scmp.ne.s32.totalorder %s275, %s277
      %p281 = scmp.eq.s32.totalorder %s42, 0
      %p282 = por %p280, %p281
      %p283 = scmp.ne.s32.totalorder %s275, %s277
      %p284 = scmp.eq.s32.totalorder %s47, 3
      %p285 = por %p283, %p284
      %p286 = scmp.ne.s32.totalorder %s277, %s278
      %p287 = scmp.eq.s32.totalorder %s47, 0
      %p288 = por %p286, %p287
      %p289 = scmp.ne.s32.totalorder %s277, %s278
      %p290 = scmp.eq.s32.totalorder %s48, 3
      %p291 = por %p289, %p290
      %p293 = scmp.ne.s32.totalorder %s278, %s292
      %p294 = scmp.eq.s32.totalorder %s48, 0
      %p295 = por %p293, %p294
      %s297 = sadd.s32 %s296, 1
      %p300 = scmp.eq.s32.totalorder %s42, 3
      %p301 = scmp.ne.s32.totalorder %s296, %s298
      %p302 = scmp.eq.s32.totalorder %s42, 0
      %p303 = por %p301, %p302
      %p304 = scmp.ne.s32.totalorder %s296, %s298
      %p305 = scmp.eq.s32.totalorder %s47, 3
      %p306 = por %p304, %p305
      %p307 = scmp.ne.s32.totalorder %s298, %s299
      %p308 = scmp.eq.s32.totalorder %s47, 0
      %p309 = por %p307, %p308
      %p310 = scmp.ne.s32.totalorder %s298, %s299
      %p311 = scmp.eq.s32.totalorder %s48, 3
      %p312 = por %p310, %p311
      %p314 = scmp.ne.s32.totalorder %s299, %s313
      %p315 = scmp.eq.s32.totalorder %s48, 0
      %p316 = por %p314, %p315
      %s318 = sadd.s32 %s317, 1
      %p321 = scmp.eq.s32.totalorder %s42, 3
      %p322 = scmp.ne.s32.totalorder %s317, %s319
      %p323 = scmp.eq.s32.totalorder %s42, 0
      %p324 = por %p322, %p323
      %p325 = scmp.ne.s32.totalorder %s317, %s319
      %p326 = scmp.eq.s32.totalorder %s47, 3
      %p327 = por %p325, %p326
      %p328 = scmp.ne.s32.totalorder %s319, %s320
      %p329 = scmp.eq.s32.totalorder %s47, 0
      %p330 = por %p328, %p329
      %p331 = scmp.ne.s32.totalorder %s319, %s320
      %p332 = scmp.eq.s32.totalorder %s48, 3
      %p333 = por %p331, %p332
      %p335 = scmp.ne.s32.totalorder %s320, %s334
      %p336 = scmp.eq.s32.totalorder %s48, 0
      %p337 = por %p335, %p336
      %s339 = sadd.s32 %s338, 1
      %p342 = scmp.eq.s32.totalorder %s42, 3
      %p343 = scmp.ne.s32.totalorder %s338, %s340
      %p344 = scmp.eq.s32.totalorder %s42, 0
      %p345 = por %p343, %p344
      %p346 = scmp.ne.s32.totalorder %s338, %s340
      %p347 = scmp.eq.s32.totalorder %s47, 3
      %p348 = por %p346, %p347
      %p349 = scmp.ne.s32.totalorder %s340, %s341
      %p350 = scmp.eq.s32.totalorder %s47, 0
      %p351 = por %p349, %p350
      %p352 = scmp.ne.s32.totalorder %s340, %s341
      %p353 = scmp.eq.s32.totalorder %s48, 3
      %p354 = por %p352, %p353
      %p356 = scmp.ne.s32.totalorder %s341, %s355
      %p357 = scmp.eq.s32.totalorder %s48, 0
      %p358 = por %p356, %p357
      %s360 = sadd.s32 %s359, 1
      %p363 = scmp.eq.s32.totalorder %s42, 3
      %p364 = scmp.ne.s32.totalorder %s359, %s361
      %p365 = scmp.eq.s32.totalorder %s42, 0
      %p366 = por %p364, %p365
      %p367 = scmp.ne.s32.totalorder %s359, %s361
      %p368 = scmp.eq.s32.totalorder %s47, 3
      %p369 = por %p367, %p368
      %p370 = scmp.ne.s32.totalorder %s361, %s362
      %p371 = scmp.eq.s32.totalorder %s47, 0
      %p372 = por %p370, %p371
      %p373 = scmp.ne.s32.totalorder %s361, %s362
      %p374 = scmp.eq.s32.totalorder %s48, 3
      %p375 = por %p373, %p374
      %p377 = scmp.ne.s32.totalorder %s362, %s376
      %p378 = scmp.eq.s32.totalorder %s48, 0
      %p379 = por %p377, %p378
      %s381 = sadd.s32 %s380, 1
      %p384 = scmp.eq.s32.totalorder %s42, 3
      %p385 = scmp.ne.s32.totalorder %s380, %s382
      %p386 = scmp.eq.s32.totalorder %s42, 0
      %p387 = por %p385, %p386
      %p388 = scmp.ne.s32.totalorder %s380, %s382
      %p389 = scmp.eq.s32.totalorder %s47, 3
      %p390 = por %p388, %p389
      %p391 = scmp.ne.s32.totalorder %s382, %s383
      %p392 = scmp.eq.s32.totalorder %s47, 0
      %p393 = por %p391, %p392
      %p394 = scmp.ne.s32.totalorder %s382, %s383
      %p395 = scmp.eq.s32.totalorder %s48, 3
      %p396 = por %p394, %p395
      %p398 = scmp.ne.s32.totalorder %s383, %s397
      %p399 = scmp.eq.s32.totalorder %s48, 0
      %p400 = por %p398, %p399
      %s402 = sadd.s32 %s401, 1
      %p405 = scmp.eq.s32.totalorder %s42, 3
      %p406 = scmp.ne.s32.totalorder %s401, %s403
      %p407 = scmp.eq.s32.totalorder %s42, 0
      %p408 = por %p406, %p407
      %p409 = scmp.ne.s32.totalorder %s401, %s403
      %p410 = scmp.eq.s32.totalorder %s47, 3
      %p411 = por %p409, %p410
      %p412 = scmp.ne.s32.totalorder %s403, %s404
      %p413 = scmp.eq.s32.totalorder %s47, 0
      %p414 = por %p412, %p413
      %p415 = scmp.ne.s32.totalorder %s403, %s404
      %p416 = scmp.eq.s32.totalorder %s48, 3
      %p417 = por %p415, %p416
      %p419 = scmp.ne.s32.totalorder %s404, %s418
      %p420 = scmp.eq.s32.totalorder %s48, 0
      %p421 = por %p419, %p420
      %s423 = sadd.s32 %s422, 1
      %p426 = scmp.eq.s32.totalorder %s42, 3
      %p427 = scmp.ne.s32.totalorder %s422, %s424
      %p428 = scmp.eq.s32.totalorder %s42, 0
      %p429 = por %p427, %p428
      %p430 = scmp.ne.s32.totalorder %s422, %s424
      %p431 = scmp.eq.s32.totalorder %s47, 3
      %p432 = por %p430, %p431
      %p433 = scmp.ne.s32.totalorder %s424, %s425
      %p434 = scmp.eq.s32.totalorder %s47, 0
      %p435 = por %p433, %p434
      %p436 = scmp.ne.s32.totalorder %s424, %s425
      %p437 = scmp.eq.s32.totalorder %s48, 3
      %p438 = por %p436, %p437
      %p440 = scmp.ne.s32.totalorder %s425, %s439
      %p441 = scmp.eq.s32.totalorder %s48, 0
      %p442 = por %p440, %p441
      %s444 = sadd.s32 %s443, 1
      %p447 = scmp.eq.s32.totalorder %s42, 3
      %p448 = scmp.ne.s32.totalorder %s443, %s445
      %p449 = scmp.eq.s32.totalorder %s42, 0
      %p450 = por %p448, %p449
      %p451 = scmp.ne.s32.totalorder %s443, %s445
      %p452 = scmp.eq.s32.totalorder %s47, 3
      %p453 = por %p451, %p452
      %p454 = scmp.ne.s32.totalorder %s445, %s446
      %p455 = scmp.eq.s32.totalorder %s47, 0
      %p456 = por %p454, %p455
      %p457 = scmp.ne.s32.totalorder %s445, %s446
      %p458 = scmp.eq.s32.totalorder %s48, 3
      %p459 = por %p457, %p458
      %p461 = scmp.ne.s32.totalorder %s446, %s460
      %p462 = scmp.eq.s32.totalorder %s48, 0
      %p463 = por %p461, %p462
      %s465 = sadd.s32 %s464, 1
      %p468 = scmp.eq.s32.totalorder %s42, 3
      %p469 = scmp.ne.s32.totalorder %s464, %s466
      %p470 = scmp.eq.s32.totalorder %s42, 0
      %p471 = por %p469, %p470
      %p472 = scmp.ne.s32.totalorder %s464, %s466
      %p473 = scmp.eq.s32.totalorder %s47, 3
      %p474 = por %p472, %p473
      %p475 = scmp.ne.s32.totalorder %s466, %s467
      %p476 = scmp.eq.s32.totalorder %s47, 0
      %p477 = por %p475, %p476
      %p478 = scmp.ne.s32.totalorder %s466, %s467
      %p479 = scmp.eq.s32.totalorder %s48, 3
      %p480 = por %p478, %p479
      %p482 = scmp.ne.s32.totalorder %s467, %s481
      %p483 = scmp.eq.s32.totalorder %s48, 0
      %p484 = por %p482, %p483
      %s486 = sadd.s32 %s485, 1
      %p489 = scmp.eq.s32.totalorder %s42, 3
      %p490 = scmp.ne.s32.totalorder %s485, %s487
      %p491 = scmp.eq.s32.totalorder %s42, 0
      %p492 = por %p490, %p491
      %p493 = scmp.ne.s32.totalorder %s485, %s487
      %p494 = scmp.eq.s32.totalorder %s47, 3
      %p495 = por %p493, %p494
      %p496 = scmp.ne.s32.totalorder %s487, %s488
      %p497 = scmp.eq.s32.totalorder %s47, 0
      %p498 = por %p496, %p497
      %p499 = scmp.ne.s32.totalorder %s487, %s488
      %p500 = scmp.eq.s32.totalorder %s48, 3
      %p501 = por %p499, %p500
      %p503 = scmp.ne.s32.totalorder %s488, %s502
      %p504 = scmp.eq.s32.totalorder %s48, 0
      %p505 = por %p503, %p504
      %s506 = ssub.s32 %s49, %s61
      %s507 = ssub.s32 %s50, %s57
      %s508 = sor.u32 %s506, %s507
      %p509 = scmp.eq.s32.totalorder %s508, 0
      %s511 = sadd.s32 %s510, 1
      %s512 = scalar_select %p509, %s510, %s511
      %p515 = pneg %p509
      %p516 = scmp.eq.s32.totalorder %s42, 3
      %p517 = por %p515, %p516
      %p518 = scmp.ne.s32.totalorder %s510, %s513
      %p519 = scmp.eq.s32.totalorder %s42, 0
      %p520 = por %p518, %p519
      %p521 = scmp.ne.s32.totalorder %s510, %s513
      %p522 = scmp.eq.s32.totalorder %s47, 3
      %p523 = por %p521, %p522
      %p524 = scmp.ne.s32.totalorder %s513, %s514
      %p525 = scmp.eq.s32.totalorder %s47, 0
      %p526 = por %p524, %p525
      %p527 = scmp.ne.s32.totalorder %s513, %s514
      %p528 = scmp.eq.s32.totalorder %s48, 3
      %p529 = por %p527, %p528
      %p531 = scmp.ne.s32.totalorder %s514, %s530
      %p532 = scmp.eq.s32.totalorder %s48, 0
      %p533 = por %p531, %p532
      %p534 = scmp.le.s32.totalorder 1, %s42
      %p535 = scmp.lt.s32.totalorder %s42, 5
      %p536 = pnand %p534, %p535
      %p537 = pneg %p536
      // Predicated region
      $region9: #{tpu_custom_call.1} parent=5 // pred_check
        _
      $region10: #{tpu_custom_call.1} parent=5 // pred_check_branch
        %539 = sbr.rel (%p536) target = $region12
      $region11: #{tpu_custom_call.1} parent=5 // pred_region
        %s540 = ssub.s32 %s42, 1
        // Predicated region
        $region13: #{tpu_custom_call.1} parent=11 // pred_check
          %p541 = pneg %p183
        $region14: #{tpu_custom_call.1} parent=11 // pred_check_branch
          %543 = sbr.rel (%p541) target = $region16
        $region15: #{tpu_custom_call.1} parent=11 // pred_region
          %s545 = ssub.s32 1024, 1024
          %546 = vsyncadd [#allocation15], %s545
          %s547 = sshll.u32 [#allocation16], 4
          %s548 = int_to_ptr.vmem [resolvable:$true] %s547
          %553 = dma.hbm_to_vmem [thread:$0]  %s4, 1024, %s548, [#allocation15], 64, 64, 4
        $region16: #{tpu_custom_call.1} parent=11 // pred_fallthru
          _
        // Predicated region
        $region17: #{tpu_custom_call.1} parent=11 // pred_check
          %p554 = pneg %p204
        $region18: #{tpu_custom_call.1} parent=11 // pred_check_branch
          %556 = sbr.rel (%p554) target = $region20
        $region19: #{tpu_custom_call.1} parent=11 // pred_region
          _
        $region20: #{tpu_custom_call.1} parent=11 // pred_fallthru
          _
        // Predicated region
        $region21: #{tpu_custom_call.1} parent=11 // pred_check
          %p557 = pneg %p225
        $region22: #{tpu_custom_call.1} parent=11 // pred_check_branch
          %559 = sbr.rel (%p557) target = $region24
        $region23: #{tpu_custom_call.1} parent=11 // pred_region
          %s561 = ssub.s32 2048, 2048
          %562 = vsyncadd [#allocation18], %s561
          %s563 = sshll.u32 [#allocation17], 4
          %s564 = int_to_ptr.vmem [resolvable:$true] %s563
          %569 = dma.hbm_to_vmem [thread:$0]  %s6, 2048, %s564, [#allocation18], 128, 128, 8
        $region24: #{tpu_custom_call.1} parent=11 // pred_fallthru
          _
        // Predicated region
        $region25: #{tpu_custom_call.1} parent=11 // pred_check
          %p570 = pneg %p246
        $region26: #{tpu_custom_call.1} parent=11 // pred_check_branch
          %572 = sbr.rel (%p570) target = $region28
        $region27: #{tpu_custom_call.1} parent=11 // pred_region
          _
        $region28: #{tpu_custom_call.1} parent=11 // pred_fallthru
          _
        // Predicated region
        $region29: #{tpu_custom_call.1} parent=11 // pred_check
          %p573 = pneg %p267
        $region30: #{tpu_custom_call.1} parent=11 // pred_check_branch
          %575 = sbr.rel (%p573) target = $region32
        $region31: #{tpu_custom_call.1} parent=11 // pred_region
          %s577 = ssub.s32 1024, 1024
          %578 = vsyncadd [#allocation18], %s577
          %s579 = sshll.u32 [#allocation19], 4
          %s580 = int_to_ptr.vmem [resolvable:$true] %s579
          %585 = dma.hbm_to_vmem [thread:$0]  %s8, 1024, %s580, [#allocation18], 64, 64, 4
        $region32: #{tpu_custom_call.1} parent=11 // pred_fallthru
          _
        // Predicated region
        $region33: #{tpu_custom_call.1} parent=11 // pred_check
          %p586 = pneg %p288
        $region34: #{tpu_custom_call.1} parent=11 // pred_check_branch
          %588 = sbr.rel (%p586) target = $region36
        $region35: #{tpu_custom_call.1} parent=11 // pred_region
          _
        $region36: #{tpu_custom_call.1} parent=11 // pred_fallthru
          _
        // Predicated region
        $region37: #{tpu_custom_call.1} parent=11 // pred_check
          %p589 = pneg %p309
        $region38: #{tpu_custom_call.1} parent=11 // pred_check_branch
          %591 = sbr.rel (%p589) target = $region40
        $region39: #{tpu_custom_call.1} parent=11 // pred_region
          %s593 = ssub.s32 1024, 1024
          %594 = vsyncadd [#allocation21], %s593
          %s595 = sshll.u32 [#allocation20], 4
          %s596 = int_to_ptr.vmem [resolvable:$true] %s595
          %601 = dma.hbm_to_vmem [thread:$0]  %s10, 1024, %s596, [#allocation21], 64, 64, 4
        $region40: #{tpu_custom_call.1} parent=11 // pred_fallthru
          _
        // Predicated region
        $region41: #{tpu_custom_call.1} parent=11 // pred_check
          %p602 = pneg %p330
        $region42: #{tpu_custom_call.1} parent=11 // pred_check_branch
          %604 = sbr.rel (%p602) target = $region44
        $region43: #{tpu_custom_call.1} parent=11 // pred_region
          _
        $region44: #{tpu_custom_call.1} parent=11 // pred_fallthru
          _
        // Predicated region
        $region45: #{tpu_custom_call.1} parent=11 // pred_check
          %p605 = pneg %p351
        $region46: #{tpu_custom_call.1} parent=11 // pred_check_branch
          %607 = sbr.rel (%p605) target = $region48
        $region47: #{tpu_custom_call.1} parent=11 // pred_region
          %s609 = ssub.s32 2048, 2048
          %610 = vsyncadd [#allocation21], %s609
          %s611 = sshll.u32 [#allocation22], 4
          %s612 = int_to_ptr.vmem [resolvable:$true] %s611
          %617 = dma.hbm_to_vmem [thread:$0]  %s12, 2048, %s612, [#allocation21], 128, 128, 8
        $region48: #{tpu_custom_call.1} parent=11 // pred_fallthru
          _
        // Predicated region
        $region49: #{tpu_custom_call.1} parent=11 // pred_check
          %p618 = pneg %p372
        $region50: #{tpu_custom_call.1} parent=11 // pred_check_branch
          %620 = sbr.rel (%p618) target = $region52
        $region51: #{tpu_custom_call.1} parent=11 // pred_region
          _
        $region52: #{tpu_custom_call.1} parent=11 // pred_fallthru
          _
        // Predicated region
        $region53: #{tpu_custom_call.1} parent=11 // pred_check
          %p621 = pneg %p393
        $region54: #{tpu_custom_call.1} parent=11 // pred_check_branch
          %623 = sbr.rel (%p621) target = $region56
        $region55: #{tpu_custom_call.1} parent=11 // pred_region
          %s625 = ssub.s32 1024, 1024
          %626 = vsyncadd [#allocation24], %s625
          %s627 = sshll.u32 [#allocation23], 4
          %s628 = int_to_ptr.vmem [resolvable:$true] %s627
          %633 = dma.hbm_to_vmem [thread:$0]  %s14, 1024, %s628, [#allocation24], 64, 64, 4
        $region56: #{tpu_custom_call.1} parent=11 // pred_fallthru
          _
        // Predicated region
        $region57: #{tpu_custom_call.1} parent=11 // pred_check
          %p634 = pneg %p414
        $region58: #{tpu_custom_call.1} parent=11 // pred_check_branch
          %636 = sbr.rel (%p634) target = $region60
        $region59: #{tpu_custom_call.1} parent=11 // pred_region
          _
        $region60: #{tpu_custom_call.1} parent=11 // pred_fallthru
          _
        // Predicated region
        $region61: #{tpu_custom_call.1} parent=11 // pred_check
          %p637 = pneg %p435
        $region62: #{tpu_custom_call.1} parent=11 // pred_check_branch
          %639 = sbr.rel (%p637) target = $region64
        $region63: #{tpu_custom_call.1} parent=11 // pred_region
          %s641 = ssub.s32 2048, 2048
          %642 = vsyncadd [#allocation24], %s641
          %s643 = sshll.u32 [#allocation25], 4
          %s644 = int_to_ptr.vmem [resolvable:$true] %s643
          %649 = dma.hbm_to_vmem [thread:$0]  %s16, 2048, %s644, [#allocation24], 64, 64, 4
        $region64: #{tpu_custom_call.1} parent=11 // pred_fallthru
          _
        // Predicated region
        $region65: #{tpu_custom_call.1} parent=11 // pred_check
          %p650 = pneg %p456
        $region66: #{tpu_custom_call.1} parent=11 // pred_check_branch
          %652 = sbr.rel (%p650) target = $region68
        $region67: #{tpu_custom_call.1} parent=11 // pred_region
          _
        $region68: #{tpu_custom_call.1} parent=11 // pred_fallthru
          _
        // Predicated region
        $region69: #{tpu_custom_call.1} parent=11 // pred_check
          %p653 = pneg %p477
        $region70: #{tpu_custom_call.1} parent=11 // pred_check_branch
          %655 = sbr.rel (%p653) target = $region72
        $region71: #{tpu_custom_call.1} parent=11 // pred_region
          %s657 = ssub.s32 2048, 2048
          %658 = vsyncadd [#allocation27], %s657
          %s659 = sshll.u32 [#allocation26], 4
          %s660 = int_to_ptr.vmem [resolvable:$true] %s659
          %665 = dma.hbm_to_vmem [thread:$0]  %s18, 2048, %s660, [#allocation27], 64, 64, 4
        $region72: #{tpu_custom_call.1} parent=11 // pred_fallthru
          _
        // Predicated region
        $region73: #{tpu_custom_call.1} parent=11 // pred_check
          %p666 = pneg %p498
        $region74: #{tpu_custom_call.1} parent=11 // pred_check_branch
          %668 = sbr.rel (%p666) target = $region76
        $region75: #{tpu_custom_call.1} parent=11 // pred_region
          _
        $region76: #{tpu_custom_call.1} parent=11 // pred_fallthru
          _
      $region12: #{tpu_custom_call.1} parent=5 // pred_fallthru
        _
      %p669 = scmp.lt.s32.totalorder %s42, 4
      // Predicated region
      $region77: #{tpu_custom_call.1} parent=5 // pred_check
        %p670 = pneg %p669
      $region78: #{tpu_custom_call.1} parent=5 // pred_check_branch
        %672 = sbr.rel (%p670) target = $region80
      $region79: #{tpu_custom_call.1} parent=5 // pred_region
        // Predicated region
        $region81: #{tpu_custom_call.1} parent=79 // pred_check
          %p673 = pneg %p74
        $region82: #{tpu_custom_call.1} parent=79 // pred_check_branch
          %675 = sbr.rel (%p673) target = $region84
        $region83: #{tpu_custom_call.1} parent=79 // pred_region
          %s676 = sand.u32 %s64, 1
          %s677 = scalar_lea.sflag [#allocation9], %s676
          %s678 = sand.u32 %s64, 1
          %s679 = smul.addr %s678, 64
          %s680 = scalar_lea.vmem [#allocation8], %s679
          %s682 = ssub.s32 1024, 1024
          %683 = vsyncadd %s677, %s682
          %s684 = smul.addr %s49, 16
          %s685 = smul.addr %s684, 64
          %s686 = scalar_lea.hbm %s0, %s685
          %s687 = sshll.u32 %s680, 4
          %s688 = int_to_ptr.vmem [resolvable:$true] %s687
          %693 = dma.hbm_to_vmem [thread:$0]  %s686, 1024, %s688, %s677, 64, 64, 4
        $region84: #{tpu_custom_call.1} parent=79 // pred_fallthru
          _
        // Predicated region
        $region85: #{tpu_custom_call.1} parent=79 // pred_check
          %p694 = pneg %p100
        $region86: #{tpu_custom_call.1} parent=79 // pred_check_branch
          %696 = sbr.rel (%p694) target = $region88
        $region87: #{tpu_custom_call.1} parent=79 // pred_region
          %s697 = sand.u32 %s42, 1
          %s698 = scalar_lea.sflag [#allocation12], %s697
          %s699 = sand.u32 %s90, 1
          %s700 = smul.addr %s699, 64
          %s701 = scalar_lea.vmem [#allocation11], %s700
          %s703 = ssub.s32 1024, 1024
          %704 = vsyncadd %s698, %s703
          %s705 = smul.addr %s49, 16
          %s706 = smul.addr %s705, 64
          %s707 = scalar_lea.hbm %s1, %s706
          %s708 = sshll.u32 %s701, 4
          %s709 = int_to_ptr.vmem [resolvable:$true] %s708
          %714 = dma.hbm_to_vmem [thread:$0]  %s707, 1024, %s709, %s698, 64, 64, 4
        $region88: #{tpu_custom_call.1} parent=79 // pred_fallthru
          _
        // Predicated region
        $region89: #{tpu_custom_call.1} parent=79 // pred_check
          %p715 = pneg %p128
        $region90: #{tpu_custom_call.1} parent=79 // pred_check_branch
          %717 = sbr.rel (%p715) target = $region92
        $region91: #{tpu_custom_call.1} parent=79 // pred_region
          %s718 = sand.u32 %s42, 1
          %s719 = scalar_lea.sflag [#allocation12], %s718
          %s720 = sand.u32 %s118, 1
          %s721 = smul.addr %s720, 16
          %s722 = scalar_lea.vmem [#allocation13], %s721
          %s723 = smul.u32 2, %s50
          %s725 = ssub.s32 256, 256
          %726 = vsyncadd %s719, %s725
          %s727 = smul.addr %s49, 4
          %s728 = sadd.s32 %s723, %s727
          %s729 = smul.addr %s728, 128
          %s730 = scalar_lea.hbm %s2, %s729
          %s731 = sshll.u32 %s722, 4
          %s732 = int_to_ptr.vmem [resolvable:$true] %s731
          %737 = dma.hbm_to_vmem [thread:$0]  %s730, 256, %s732, %s719, 128, 128, 8
        $region92: #{tpu_custom_call.1} parent=79 // pred_fallthru
          _
        // Predicated region
        $region93: #{tpu_custom_call.1} parent=79 // pred_check
          %p738 = pneg %p156
        $region94: #{tpu_custom_call.1} parent=79 // pred_check_branch
          %740 = sbr.rel (%p738) target = $region96
        $region95: #{tpu_custom_call.1} parent=79 // pred_region
          %s741 = sand.u32 %s42, 1
          %s742 = scalar_lea.sflag [#allocation15], %s741
          %s743 = sand.u32 %s146, 1
          %s744 = smul.addr %s743, 16
          %s745 = scalar_lea.vmem [#allocation14], %s744
          %s746 = smul.u32 2, %s50
          %s748 = ssub.s32 256, 256
          %749 = vsyncadd %s742, %s748
          %s750 = smul.addr %s49, 4
          %s751 = sadd.s32 %s746, %s750
          %s752 = smul.addr %s751, 128
          %s753 = scalar_lea.hbm %s3, %s752
          %s754 = sshll.u32 %s745, 4
          %s755 = int_to_ptr.vmem [resolvable:$true] %s754
          %760 = dma.hbm_to_vmem [thread:$0]  %s753, 256, %s755, %s742, 128, 128, 8
        $region96: #{tpu_custom_call.1} parent=79 // pred_fallthru
          _
      $region80: #{tpu_custom_call.1} parent=5 // pred_fallthru
        _
      %p761 = scmp.le.s32.totalorder 1, %s42
      %p762 = scmp.lt.s32.totalorder %s42, 5
      %p763 = pnand %p761, %p762
      %p764 = pneg %p763
      // Predicated region
      $region97: #{tpu_custom_call.1} parent=5 // pred_check
        _
      $region98: #{tpu_custom_call.1} parent=5 // pred_check_branch
        %766 = sbr.rel (%p763) target = $region100
      $region99: #{tpu_custom_call.1} parent=5 // pred_region
        %s767 = ssub.s32 %s42, 1
        %s768 = sand.u32 %s67, 1
        %s769 = scalar_lea.sflag [#allocation9], %s768
        %s770 = sand.u32 %s67, 1
        %s771 = smul.addr %s770, 64
        %s772 = scalar_lea.vmem [#allocation8], %s771
        // Predicated region
        $region101: #{tpu_custom_call.1} parent=99 // pred_check
          %p773 = pneg %p80
        $region102: #{tpu_custom_call.1} parent=99 // pred_check_branch
          %775 = sbr.rel (%p773) target = $region104
        $region103: #{tpu_custom_call.1} parent=99 // pred_region
          %776 = dma.done %s769, 1024
        $region104: #{tpu_custom_call.1} parent=99 // pred_fallthru
          _
        %s777 = sand.u32 %s47, 1
        %s778 = scalar_lea.sflag [#allocation12], %s777
        %s779 = sand.u32 %s93, 1
        %s780 = smul.addr %s779, 64
        %s781 = scalar_lea.vmem [#allocation11], %s780
        // Predicated region
        $region105: #{tpu_custom_call.1} parent=99 // pred_check
          %p782 = pneg %p106
        $region106: #{tpu_custom_call.1} parent=99 // pred_check_branch
          %784 = sbr.rel (%p782) target = $region108
        $region107: #{tpu_custom_call.1} parent=99 // pred_region
          %785 = dma.done %s778, 1024
        $region108: #{tpu_custom_call.1} parent=99 // pred_fallthru
          _
        %s786 = sand.u32 %s47, 1
        %s787 = scalar_lea.sflag [#allocation12], %s786
        %s788 = sand.u32 %s121, 1
        %s789 = smul.addr %s788, 16
        %s790 = scalar_lea.vmem [#allocation13], %s789
        // Predicated region
        $region109: #{tpu_custom_call.1} parent=99 // pred_check
          %p791 = pneg %p134
        $region110: #{tpu_custom_call.1} parent=99 // pred_check_branch
          %793 = sbr.rel (%p791) target = $region112
        $region111: #{tpu_custom_call.1} parent=99 // pred_region
          %794 = dma.done %s787, 256
        $region112: #{tpu_custom_call.1} parent=99 // pred_fallthru
          _
        %s795 = sand.u32 %s47, 1
        %s796 = scalar_lea.sflag [#allocation15], %s795
        %s797 = sand.u32 %s149, 1
        %s798 = smul.addr %s797, 16
        %s799 = scalar_lea.vmem [#allocation14], %s798
        // Predicated region
        $region113: #{tpu_custom_call.1} parent=99 // pred_check
          %p800 = pneg %p162
        $region114: #{tpu_custom_call.1} parent=99 // pred_check_branch
          %802 = sbr.rel (%p800) target = $region116
        $region115: #{tpu_custom_call.1} parent=99 // pred_region
          %803 = dma.done %s796, 256
        $region116: #{tpu_custom_call.1} parent=99 // pred_fallthru
          _
        // Predicated region
        $region117: #{tpu_custom_call.1} parent=99 // pred_check
          %p804 = pneg %p183
        $region118: #{tpu_custom_call.1} parent=99 // pred_check_branch
          %806 = sbr.rel (%p804) target = $region120
        $region119: #{tpu_custom_call.1} parent=99 // pred_region
          %807 = dma.done [#allocation15], 1024
        $region120: #{tpu_custom_call.1} parent=99 // pred_fallthru
          _
        // Predicated region
        $region121: #{tpu_custom_call.1} parent=99 // pred_check
          %p808 = pneg %p225
        $region122: #{tpu_custom_call.1} parent=99 // pred_check_branch
          %810 = sbr.rel (%p808) target = $region124
        $region123: #{tpu_custom_call.1} parent=99 // pred_region
          %811 = dma.done [#allocation18], 2048
        $region124: #{tpu_custom_call.1} parent=99 // pred_fallthru
          _
        // Predicated region
        $region125: #{tpu_custom_call.1} parent=99 // pred_check
          %p812 = pneg %p267
        $region126: #{tpu_custom_call.1} parent=99 // pred_check_branch
          %814 = sbr.rel (%p812) target = $region128
        $region127: #{tpu_custom_call.1} parent=99 // pred_region
          %815 = dma.done [#allocation18], 1024
        $region128: #{tpu_custom_call.1} parent=99 // pred_fallthru
          _
        // Predicated region
        $region129: #{tpu_custom_call.1} parent=99 // pred_check
          %p816 = pneg %p309
        $region130: #{tpu_custom_call.1} parent=99 // pred_check_branch
          %818 = sbr.rel (%p816) target = $region132
        $region131: #{tpu_custom_call.1} parent=99 // pred_region
          %819 = dma.done [#allocation21], 1024
        $region132: #{tpu_custom_call.1} parent=99 // pred_fallthru
          _
        // Predicated region
        $region133: #{tpu_custom_call.1} parent=99 // pred_check
          %p820 = pneg %p351
        $region134: #{tpu_custom_call.1} parent=99 // pred_check_branch
          %822 = sbr.rel (%p820) target = $region136
        $region135: #{tpu_custom_call.1} parent=99 // pred_region
          %823 = dma.done [#allocation21], 2048
        $region136: #{tpu_custom_call.1} parent=99 // pred_fallthru
          _
        // Predicated region
        $region137: #{tpu_custom_call.1} parent=99 // pred_check
          %p824 = pneg %p393
        $region138: #{tpu_custom_call.1} parent=99 // pred_check_branch
          %826 = sbr.rel (%p824) target = $region140
        $region139: #{tpu_custom_call.1} parent=99 // pred_region
          %827 = dma.done [#allocation24], 1024
        $region140: #{tpu_custom_call.1} parent=99 // pred_fallthru
          _
        // Predicated region
        $region141: #{tpu_custom_call.1} parent=99 // pred_check
          %p828 = pneg %p435
        $region142: #{tpu_custom_call.1} parent=99 // pred_check_branch
          %830 = sbr.rel (%p828) target = $region144
        $region143: #{tpu_custom_call.1} parent=99 // pred_region
          %831 = dma.done [#allocation24], 2048
        $region144: #{tpu_custom_call.1} parent=99 // pred_fallthru
          _
        // Predicated region
        $region145: #{tpu_custom_call.1} parent=99 // pred_check
          %p832 = pneg %p477
        $region146: #{tpu_custom_call.1} parent=99 // pred_check_branch
          %834 = sbr.rel (%p832) target = $region148
        $region147: #{tpu_custom_call.1} parent=99 // pred_region
          %835 = dma.done [#allocation27], 2048
        $region148: #{tpu_custom_call.1} parent=99 // pred_fallthru
          _
        %s836 = sand.u32 %s67, 1
        %s837 = scalar_lea.sflag [#allocation9], %s836
        %s838 = sand.u32 %s67, 1
        %s839 = smul.addr %s838, 64
        %s840 = scalar_lea.vmem [#allocation8], %s839
        %p841 = pneg %p80
        %p842 = pneg %p77
        %s843 = sand.u32 %s47, 1
        %s844 = scalar_lea.sflag [#allocation12], %s843
        %s845 = sand.u32 %s93, 1
        %s846 = smul.addr %s845, 64
        %s847 = scalar_lea.vmem [#allocation11], %s846
        %p848 = pneg %p106
        %p849 = pneg %p103
        %s850 = sand.u32 %s47, 1
        %s851 = scalar_lea.sflag [#allocation12], %s850
        %s852 = sand.u32 %s121, 1
        %s853 = smul.addr %s852, 16
        %s854 = scalar_lea.vmem [#allocation13], %s853
        %p855 = pneg %p134
        %p856 = pneg %p131
        %s857 = sand.u32 %s47, 1
        %s858 = scalar_lea.sflag [#allocation15], %s857
        %s859 = sand.u32 %s149, 1
        %s860 = smul.addr %s859, 16
        %s861 = scalar_lea.vmem [#allocation14], %s860
        %p862 = pneg %p162
        %p863 = pneg %p159
        %p864 = pneg %p183
        %p865 = pneg %p180
        %p866 = pneg %p204
        %p867 = pneg %p201
        %p868 = pneg %p225
        %p869 = pneg %p222
        %p870 = pneg %p246
        %p871 = pneg %p243
        %p872 = pneg %p267
        %p873 = pneg %p264
        %p874 = pneg %p288
        %p875 = pneg %p285
        %p876 = pneg %p309
        %p877 = pneg %p306
        %p878 = pneg %p330
        %p879 = pneg %p327
        %p880 = pneg %p351
        %p881 = pneg %p348
        %p882 = pneg %p372
        %p883 = pneg %p369
        %p884 = pneg %p393
        %p885 = pneg %p390
        %p886 = pneg %p414
        %p887 = pneg %p411
        %p888 = pneg %p435
        %p889 = pneg %p432
        %p890 = pneg %p456
        %p891 = pneg %p453
        %p892 = pneg %p477
        %p893 = pneg %p474
        %p894 = pneg %p498
        %p895 = pneg %p495
        %p896 = pneg %p526
        %p897 = pneg %p523
        %s898 = sand.u32 %s513, 1
        %s899 = scalar_lea.sflag [#allocation10], %s898
        %s900 = sand.u32 %s513, 1
        %s901 = smul.addr %s900, 32
        %s902 = scalar_lea.vmem [#allocation28], %s901
        %s903 = smul.u32 2, %s52
        %s904 = smul.u32 2, %s52
        %s905 = smul.u32 8, %s52
        %p909 = scmp.eq.s32.totalorder %s52, 0
        // Predicated region
        $region149: #{tpu_custom_call.1} parent=99 // pred_check
          %p910 = pneg %p909
        $region150: #{tpu_custom_call.1} parent=99 // pred_check_branch
          %912 = sbr.rel (%p910) target = $region152
        $region151: #{tpu_custom_call.1} parent=99 // pred_region
          %v913 = vld [vmem:[%s772] sm:$0xf]
          %v914 = vld [vmem:[%s772 + $0x4] sm:$0xf]
          %v915 = vld [vmem:[%s772 + $0x8] sm:$0xf]
          %v916 = vld [vmem:[%s772 + $0xc] sm:$0xf]
          %v917 = vld [vmem:[%s772 + $0x10] sm:$0xf]
          %v918 = vld [vmem:[%s772 + $0x14] sm:$0xf]
          %v919 = vld [vmem:[%s772 + $0x18] sm:$0xf]
          %v920 = vld [vmem:[%s772 + $0x1c] sm:$0xf]
          %v921 = vld [vmem:[%s772 + $0x20] sm:$0xf]
          %v922 = vld [vmem:[%s772 + $0x24] sm:$0xf]
          %v923 = vld [vmem:[%s772 + $0x28] sm:$0xf]
          %v924 = vld [vmem:[%s772 + $0x2c] sm:$0xf]
          %v925 = vld [vmem:[%s772 + $0x30] sm:$0xf]
          %v926 = vld [vmem:[%s772 + $0x34] sm:$0xf]
          %v927 = vld [vmem:[%s772 + $0x38] sm:$0xf]
          %v928 = vld [vmem:[%s772 + $0x3c] sm:$0xf]
          %v929 = vld [vmem:[%s781] sm:$0xf]
          %v930 = vld [vmem:[%s781 + $0x4] sm:$0xf]
          %v931 = vld [vmem:[%s781 + $0x8] sm:$0xf]
          %v932 = vld [vmem:[%s781 + $0xc] sm:$0xf]
          %v933 = vld [vmem:[%s781 + $0x10] sm:$0xf]
          %v934 = vld [vmem:[%s781 + $0x14] sm:$0xf]
          %v935 = vld [vmem:[%s781 + $0x18] sm:$0xf]
          %v936 = vld [vmem:[%s781 + $0x1c] sm:$0xf]
          %v937 = vld [vmem:[%s781 + $0x20] sm:$0xf]
          %v938 = vld [vmem:[%s781 + $0x24] sm:$0xf]
          %v939 = vld [vmem:[%s781 + $0x28] sm:$0xf]
          %v940 = vld [vmem:[%s781 + $0x2c] sm:$0xf]
          %v941 = vld [vmem:[%s781 + $0x30] sm:$0xf]
          %v942 = vld [vmem:[%s781 + $0x34] sm:$0xf]
          %v943 = vld [vmem:[%s781 + $0x38] sm:$0xf]
          %v944 = vld [vmem:[%s781 + $0x3c] sm:$0xf]
          %v945 = vld [vmem:[#allocation17] sm:$0xff]
          %v946 = vld [vmem:[#allocation17 + $0x8] sm:$0xff]
          %v947 = vld [vmem:[#allocation17 + $0x10] sm:$0xff]
          %v948 = vld [vmem:[#allocation17 + $0x18] sm:$0xff]
          %v949 = vld [vmem:[#allocation17 + $0x20] sm:$0xff]
          %v950 = vld [vmem:[#allocation17 + $0x28] sm:$0xff]
          %v951 = vld [vmem:[#allocation17 + $0x30] sm:$0xff]
          %v952 = vld [vmem:[#allocation17 + $0x38] sm:$0xff]
          %v953 = vld [vmem:[#allocation17 + $0x40] sm:$0xff]
          %v954 = vld [vmem:[#allocation17 + $0x48] sm:$0xff]
          %v955 = vld [vmem:[#allocation17 + $0x50] sm:$0xff]
          %v956 = vld [vmem:[#allocation17 + $0x58] sm:$0xff]
          %v957 = vld [vmem:[#allocation17 + $0x60] sm:$0xff]
          %v958 = vld [vmem:[#allocation17 + $0x68] sm:$0xff]
          %v959 = vld [vmem:[#allocation17 + $0x70] sm:$0xff]
          %v960 = vld [vmem:[#allocation17 + $0x78] sm:$0xff]
          %v961 = vld [vmem:[%s7] sm:$0x3]
          %v963 = vlaneseq
          %v964 = vshrl.u32 %v963, 7
          %v965 = vsub.s32 0, %v964
          %v966 = vrot.slane %v961, %v965
          %v967 = vlaneseq
          %v968 = vshrl.u32 %v967, 7
          %v969 = vsub.s32 1, %v968
          %v970 = vrot.slane %v961, %v969
          %v989 = vunpack.c.l.b16 %v913
          %v990 = vunpack.c.l.b16 %v914
          %v991 = vunpack.c.l.b16 %v915
          %v992 = vunpack.c.l.b16 %v916
          %v993 = vunpack.c.l.b16 %v917
          %v994 = vunpack.c.l.b16 %v918
          %v995 = vunpack.c.l.b16 %v919
          %v996 = vunpack.c.l.b16 %v920
          %v997 = vunpack.c.l.b16 %v921
          %v998 = vunpack.c.l.b16 %v922
          %v999 = vunpack.c.l.b16 %v923
          %v1000 = vunpack.c.l.b16 %v924
          %v1001 = vunpack.c.l.b16 %v925
          %v1002 = vunpack.c.l.b16 %v926
          %v1003 = vunpack.c.l.b16 %v927
          %v1004 = vunpack.c.l.b16 %v928
          %v1005 = vpack.c.b16 %v990, %v989
          %v1006 = vpack.c.b16 %v992, %v991
          %v1007 = vpack.c.b16 %v994, %v993
          %v1008 = vpack.c.b16 %v996, %v995
          %v1009 = vpack.c.b16 %v998, %v997
          %v1010 = vpack.c.b16 %v1000, %v999
          %v1011 = vpack.c.b16 %v1002, %v1001
          %v1012 = vpack.c.b16 %v1004, %v1003
          %v1037 = vunpack.c.l.b16 %v945
          %v1038 = vunpack.c.h.b16 %v945
          %v1039 = vunpack.c.l.b16 %v946
          %v1040 = vunpack.c.h.b16 %v946
          %v1041 = vunpack.c.l.b16 %v947
          %v1042 = vunpack.c.h.b16 %v947
          %v1043 = vunpack.c.l.b16 %v948
          %v1044 = vunpack.c.h.b16 %v948
          %v1045 = vunpack.c.l.b16 %v949
          %v1046 = vunpack.c.h.b16 %v949
          %v1047 = vunpack.c.l.b16 %v950
          %v1048 = vunpack.c.h.b16 %v950
          %v1049 = vunpack.c.l.b16 %v951
          %v1050 = vunpack.c.h.b16 %v951
          %v1051 = vunpack.c.l.b16 %v952
          %v1052 = vunpack.c.h.b16 %v952
          %v1053 = vunpack.c.l.b16 %v953
          %v1054 = vunpack.c.h.b16 %v953
          %v1055 = vunpack.c.l.b16 %v954
          %v1056 = vunpack.c.h.b16 %v954
          %v1057 = vunpack.c.l.b16 %v955
          %v1058 = vunpack.c.h.b16 %v955
          %v1059 = vunpack.c.l.b16 %v956
          %v1060 = vunpack.c.h.b16 %v956
          %v1061 = vunpack.c.l.b16 %v957
          %v1062 = vunpack.c.h.b16 %v957
          %v1063 = vunpack.c.l.b16 %v958
          %v1064 = vunpack.c.h.b16 %v958
          %v1065 = vunpack.c.l.b16 %v959
          %v1066 = vunpack.c.h.b16 %v959
          %v1067 = vunpack.c.l.b16 %v960
          %v1068 = vunpack.c.h.b16 %v960
          %v1069 = vpack.c.b16 %v1039, %v1037
          %v1070 = vpack.c.b16 %v1040, %v1038
          %v1071 = vpack.c.b16 %v1043, %v1041
          %v1072 = vpack.c.b16 %v1044, %v1042
          %v1073 = vpack.c.b16 %v1047, %v1045
          %v1074 = vpack.c.b16 %v1048, %v1046
          %v1075 = vpack.c.b16 %v1051, %v1049
          %v1076 = vpack.c.b16 %v1052, %v1050
          %v1077 = vpack.c.b16 %v1055, %v1053
          %v1078 = vpack.c.b16 %v1056, %v1054
          %v1079 = vpack.c.b16 %v1059, %v1057
          %v1080 = vpack.c.b16 %v1060, %v1058
          %v1081 = vpack.c.b16 %v1063, %v1061
          %v1082 = vpack.c.b16 %v1064, %v1062
          %v1083 = vpack.c.b16 %v1067, %v1065
          %v1084 = vpack.c.b16 %v1068, %v1066
          %1101 = vmatprep.subr.bf16.mxu0 %v1070
          %1102 = vmatpush1.bf16.msra.mxu0 %v1069
          %1103 = vmatprep.subr.bf16.mxu0 %v1072
          %1104 = vmatpush1.bf16.msra.mxu0 %v1071
          %1105 = vmatprep.subr.bf16.mxu0 %v1074
          %1106 = vmatpush1.bf16.msra.mxu0 %v1073
          %1107 = vmatprep.subr.bf16.mxu0 %v1076
          %1108 = vmatpush1.bf16.msra.mxu0 %v1075
          %1109 = vmatprep.subr.bf16.mxu0 %v1078
          %1110 = vmatpush1.bf16.msra.mxu0 %v1077
          %1111 = vmatprep.subr.bf16.mxu0 %v1080
          %1112 = vmatpush1.bf16.msra.mxu0 %v1079
          %1113 = vmatprep.subr.bf16.mxu0 %v1082
          %1114 = vmatpush1.bf16.msra.mxu0 %v1081
          %1115 = vmatprep.subr.bf16.mxu0 %v1084
          %1116 = vmatpush1.bf16.msra.mxu0 %v1083
          %1117 = vmatprep.subr.bf16.mxu0 0
          %1118 = vmatpush1.bf16.msra.mxu0 0
          %1119 = vmatprep.subr.bf16.mxu0 0
          %1120 = vmatpush1.bf16.msra.mxu0 0
          %1121 = vmatprep.subr.bf16.mxu0 0
          %1122 = vmatpush1.bf16.msra.mxu0 0
          %1123 = vmatprep.subr.bf16.mxu0 0
          %1124 = vmatpush1.bf16.msra.mxu0 0
          %1125 = vmatprep.subr.bf16.mxu0 0
          %1126 = vmatpush1.bf16.msra.mxu0 0
          %1127 = vmatprep.subr.bf16.mxu0 0
          %1128 = vmatpush1.bf16.msra.mxu0 0
          %1129 = vmatprep.subr.bf16.mxu0 0
          %1130 = vmatpush1.bf16.msra.mxu0 0
          %1131 = vmatprep.subr.bf16.mxu0 0
          %1132 = vmatpush1.bf16.msra.mxu0 0
          %1133 = vmatprep.mubr.bf16.mxu0 0
          %1134 = vmatmul.mubr.bf16.gmra.mrb[0].mxu0 %v1005
          %v1135 = vpop.f32.mrb[0].mxu0
          %v1136 = vadd.f32 %v966, %v1135
          %v1137 = vpop.f32.mrb[0].mxu0
          %v1138 = vadd.f32 %v970, %v1137
          %v1139 = vpop.f32.mrb[0].mxu0
          %v1140 = vadd.f32 %v966, %v1139
          %v1141 = vpop.f32.mrb[0].mxu0
          %v1142 = vadd.f32 %v970, %v1141
          %1143 = vmatprep.mubr.bf16.mxu0 0
          %1144 = vmatmul.mubr.bf16.gmra.mrb[0].mxu0 %v1006
          %v1145 = vpop.f32.mrb[0].mxu0
          %v1146 = vadd.f32 %v966, %v1145
          %v1147 = vpop.f32.mrb[0].mxu0
          %v1148 = vadd.f32 %v970, %v1147
          %v1149 = vpop.f32.mrb[0].mxu0
          %v1150 = vadd.f32 %v966, %v1149
          %v1151 = vpop.f32.mrb[0].mxu0
          %v1152 = vadd.f32 %v970, %v1151
          %1153 = vmatprep.mubr.bf16.mxu0 0
          %1154 = vmatmul.mubr.bf16.gmra.mrb[0].mxu0 %v1007
          %v1155 = vpop.f32.mrb[0].mxu0
          %v1156 = vadd.f32 %v966, %v1155
          %v1157 = vpop.f32.mrb[0].mxu0
          %v1158 = vadd.f32 %v970, %v1157
          %v1159 = vpop.f32.mrb[0].mxu0
          %v1160 = vadd.f32 %v966, %v1159
          %v1161 = vpop.f32.mrb[0].mxu0
          %v1162 = vadd.f32 %v970, %v1161
          %1163 = vmatprep.mubr.bf16.mxu0 0
          %1164 = vmatmul.mubr.bf16.gmra.mrb[0].mxu0 %v1008
          %v1165 = vpop.f32.mrb[0].mxu0
          %v1166 = vadd.f32 %v966, %v1165
          %v1167 = vpop.f32.mrb[0].mxu0
          %v1168 = vadd.f32 %v970, %v1167
          %v1169 = vpop.f32.mrb[0].mxu0
          %v1170 = vadd.f32 %v966, %v1169
          %v1171 = vpop.f32.mrb[0].mxu0
          %v1172 = vadd.f32 %v970, %v1171
          %1173 = vmatprep.mubr.bf16.mxu0 0
          %1174 = vmatmul.mubr.bf16.gmra.mrb[0].mxu0 %v1009
          %v1175 = vpop.f32.mrb[0].mxu0
          %v1176 = vadd.f32 %v966, %v1175
          %v1177 = vpop.f32.mrb[0].mxu0
          %v1178 = vadd.f32 %v970, %v1177
          %v1179 = vpop.f32.mrb[0].mxu0
          %v1180 = vadd.f32 %v966, %v1179
          %v1181 = vpop.f32.mrb[0].mxu0
          %v1182 = vadd.f32 %v970, %v1181
          %1183 = vmatprep.mubr.bf16.mxu0 0
          %1184 = vmatmul.mubr.bf16.gmra.mrb[0].mxu0 %v1010
          %v1185 = vpop.f32.mrb[0].mxu0
          %v1186 = vadd.f32 %v966, %v1185
          %v1187 = vpop.f32.mrb[0].mxu0
          %v1188 = vadd.f32 %v970, %v1187
          %v1189 = vpop.f32.mrb[0].mxu0
          %v1190 = vadd.f32 %v966, %v1189
          %v1191 = vpop.f32.mrb[0].mxu0
          %v1192 = vadd.f32 %v970, %v1191
          %1193 = vmatprep.mubr.bf16.mxu0 0
          %1194 = vmatmul.mubr.bf16.gmra.mrb[0].mxu0 %v1011
          %v1195 = vpop.f32.mrb[0].mxu0
          %v1196 = vadd.f32 %v966, %v1195
          %v1197 = vpop.f32.mrb[0].mxu0
          %v1198 = vadd.f32 %v970, %v1197
          %v1199 = vpop.f32.mrb[0].mxu0
          %v1200 = vadd.f32 %v966, %v1199
          %v1201 = vpop.f32.mrb[0].mxu0
          %v1202 = vadd.f32 %v970, %v1201
          %1203 = vmatprep.mubr.bf16.mxu0 0
          %1204 = vmatmul.mubr.bf16.gmra.mrb[0].mxu0 %v1012
          %v1205 = vpop.f32.mrb[0].mxu0
          %v1206 = vadd.f32 %v966, %v1205
          %v1207 = vpop.f32.mrb[0].mxu0
          %v1208 = vadd.f32 %v970, %v1207
          %v1209 = vpop.f32.mrb[0].mxu0
          %v1210 = vadd.f32 %v966, %v1209
          %v1211 = vpop.f32.mrb[0].mxu0
          %v1212 = vadd.f32 %v970, %v1211
          %1213 = vdwg.mxu0
          %v1214 = vpack.c.bf16 %v1140, %v1136
          %v1215 = vpack.c.bf16 %v1142, %v1138
          %v1216 = vpack.c.bf16 %v1150, %v1146
          %v1217 = vpack.c.bf16 %v1152, %v1148
          %v1218 = vpack.c.bf16 %v1160, %v1156
          %v1219 = vpack.c.bf16 %v1162, %v1158
          %v1220 = vpack.c.bf16 %v1170, %v1166
          %v1221 = vpack.c.bf16 %v1172, %v1168
          %v1222 = vpack.c.bf16 %v1180, %v1176
          %v1223 = vpack.c.bf16 %v1182, %v1178
          %v1224 = vpack.c.bf16 %v1190, %v1186
          %v1225 = vpack.c.bf16 %v1192, %v1188
          %v1226 = vpack.c.bf16 %v1200, %v1196
          %v1227 = vpack.c.bf16 %v1202, %v1198
          %v1228 = vpack.c.bf16 %v1210, %v1206
          %v1229 = vpack.c.bf16 %v1212, %v1208
          %v1230 = vld [vmem:[#allocation22] sm:$0xff]
          %v1231 = vld [vmem:[#allocation22 + $0x8] sm:$0xff]
          %v1232 = vld [vmem:[#allocation22 + $0x10] sm:$0xff]
          %v1233 = vld [vmem:[#allocation22 + $0x18] sm:$0xff]
          %v1234 = vld [vmem:[#allocation22 + $0x20] sm:$0xff]
          %v1235 = vld [vmem:[#allocation22 + $0x28] sm:$0xff]
          %v1236 = vld [vmem:[#allocation22 + $0x30] sm:$0xff]
          %v1237 = vld [vmem:[#allocation22 + $0x38] sm:$0xff]
          %v1238 = vld [vmem:[#allocation22 + $0x40] sm:$0xff]
          %v1239 = vld [vmem:[#allocation22 + $0x48] sm:$0xff]
          %v1240 = vld [vmem:[#allocation22 + $0x50] sm:$0xff]
          %v1241 = vld [vmem:[#allocation22 + $0x58] sm:$0xff]
          %v1242 = vld [vmem:[#allocation22 + $0x60] sm:$0xff]
          %v1243 = vld [vmem:[#allocation22 + $0x68] sm:$0xff]
          %v1244 = vld [vmem:[#allocation22 + $0x70] sm:$0xff]
          %v1245 = vld [vmem:[#allocation22 + $0x78] sm:$0xff]
          %v1246 = vld [vmem:[%s13] sm:$0x3]
          %v1248 = vlaneseq
          %v1249 = vshrl.u32 %v1248, 7
          %v1250 = vsub.s32 0, %v1249
          %v1251 = vrot.slane %v1246, %v1250
          %v1252 = vlaneseq
          %v1253 = vshrl.u32 %v1252, 7
          %v1254 = vsub.s32 1, %v1253
          %v1255 = vrot.slane %v1246, %v1254
          %v1274 = vunpack.c.l.b16 %v929
          %v1275 = vunpack.c.l.b16 %v930
          %v1276 = vunpack.c.l.b16 %v931
          %v1277 = vunpack.c.l.b16 %v932
          %v1278 = vunpack.c.l.b16 %v933
          %v1279 = vunpack.c.l.b16 %v934
          %v1280 = vunpack.c.l.b16 %v935
          %v1281 = vunpack.c.l.b16 %v936
          %v1282 = vunpack.c.l.b16 %v937
          %v1283 = vunpack.c.l.b16 %v938
          %v1284 = vunpack.c.l.b16 %v939
          %v1285 = vunpack.c.l.b16 %v940
          %v1286 = vunpack.c.l.b16 %v941
          %v1287 = vunpack.c.l.b16 %v942
          %v1288 = vunpack.c.l.b16 %v943
          %v1289 = vunpack.c.l.b16 %v944
          %v1290 = vpack.c.b16 %v1275, %v1274
          %v1291 = vpack.c.b16 %v1277, %v1276
          %v1292 = vpack.c.b16 %v1279, %v1278
          %v1293 = vpack.c.b16 %v1281, %v1280
          %v1294 = vpack.c.b16 %v1283, %v1282
          %v1295 = vpack.c.b16 %v1285, %v1284
          %v1296 = vpack.c.b16 %v1287, %v1286
          %v1297 = vpack.c.b16 %v1289, %v1288
          %v1322 = vunpack.c.l.b16 %v1230
          %v1323 = vunpack.c.h.b16 %v1230
          %v1324 = vunpack.c.l.b16 %v1231
          %v1325 = vunpack.c.h.b16 %v1231
          %v1326 = vunpack.c.l.b16 %v1232
          %v1327 = vunpack.c.h.b16 %v1232
          %v1328 = vunpack.c.l.b16 %v1233
          %v1329 = vunpack.c.h.b16 %v1233
          %v1330 = vunpack.c.l.b16 %v1234
          %v1331 = vunpack.c.h.b16 %v1234
          %v1332 = vunpack.c.l.b16 %v1235
          %v1333 = vunpack.c.h.b16 %v1235
          %v1334 = vunpack.c.l.b16 %v1236
          %v1335 = vunpack.c.h.b16 %v1236
          %v1336 = vunpack.c.l.b16 %v1237
          %v1337 = vunpack.c.h.b16 %v1237
          %v1338 = vunpack.c.l.b16 %v1238
          %v1339 = vunpack.c.h.b16 %v1238
          %v1340 = vunpack.c.l.b16 %v1239
          %v1341 = vunpack.c.h.b16 %v1239
          %v1342 = vunpack.c.l.b16 %v1240
          %v1343 = vunpack.c.h.b16 %v1240
          %v1344 = vunpack.c.l.b16 %v1241
          %v1345 = vunpack.c.h.b16 %v1241
          %v1346 = vunpack.c.l.b16 %v1242
          %v1347 = vunpack.c.h.b16 %v1242
          %v1348 = vunpack.c.l.b16 %v1243
          %v1349 = vunpack.c.h.b16 %v1243
          %v1350 = vunpack.c.l.b16 %v1244
          %v1351 = vunpack.c.h.b16 %v1244
          %v1352 = vunpack.c.l.b16 %v1245
          %v1353 = vunpack.c.h.b16 %v1245
          %v1354 = vpack.c.b16 %v1324, %v1322
          %v1355 = vpack.c.b16 %v1325, %v1323
          %v1356 = vpack.c.b16 %v1328, %v1326
          %v1357 = vpack.c.b16 %v1329, %v1327
          %v1358 = vpack.c.b16 %v1332, %v1330
          %v1359 = vpack.c.b16 %v1333, %v1331
          %v1360 = vpack.c.b16 %v1336, %v1334
          %v1361 = vpack.c.b16 %v1337, %v1335
          %v1362 = vpack.c.b16 %v1340, %v1338
          %v1363 = vpack.c.b16 %v1341, %v1339
          %v1364 = vpack.c.b16 %v1344, %v1342
          %v1365 = vpack.c.b16 %v1345, %v1343
          %v1366 = vpack.c.b16 %v1348, %v1346
          %v1367 = vpack.c.b16 %v1349, %v1347
          %v1368 = vpack.c.b16 %v1352, %v1350
          %v1369 = vpack.c.b16 %v1353, %v1351
          %1386 = vmatprep.subr.bf16.mxu0 %v1355
          %1387 = vmatpush1.bf16.msra.mxu0 %v1354
          %1388 = vmatprep.subr.bf16.mxu0 %v1357
          %1389 = vmatpush1.bf16.msra.mxu0 %v1356
          %1390 = vmatprep.subr.bf16.mxu0 %v1359
          %1391 = vmatpush1.bf16.msra.mxu0 %v1358
          %1392 = vmatprep.subr.bf16.mxu0 %v1361
          %1393 = vmatpush1.bf16.msra.mxu0 %v1360
          %1394 = vmatprep.subr.bf16.mxu0 %v1363
          %1395 = vmatpush1.bf16.msra.mxu0 %v1362
          %1396 = vmatprep.subr.bf16.mxu0 %v1365
          %1397 = vmatpush1.bf16.msra.mxu0 %v1364
          %1398 = vmatprep.subr.bf16.mxu0 %v1367
          %1399 = vmatpush1.bf16.msra.mxu0 %v1366
          %1400 = vmatprep.subr.bf16.mxu0 %v1369
          %1401 = vmatpush1.bf16.msra.mxu0 %v1368
          %1402 = vmatprep.subr.bf16.mxu0 0
          %1403 = vmatpush1.bf16.msra.mxu0 0
          %1404 = vmatprep.subr.bf16.mxu0 0
          %1405 = vmatpush1.bf16.msra.mxu0 0
          %1406 = vmatprep.subr.bf16.mxu0 0
          %1407 = vmatpush1.bf16.msra.mxu0 0
          %1408 = vmatprep.subr.bf16.mxu0 0
          %1409 = vmatpush1.bf16.msra.mxu0 0
          %1410 = vmatprep.subr.bf16.mxu0 0
          %1411 = vmatpush1.bf16.msra.mxu0 0
          %1412 = vmatprep.subr.bf16.mxu0 0
          %1413 = vmatpush1.bf16.msra.mxu0 0
          %1414 = vmatprep.subr.bf16.mxu0 0
          %1415 = vmatpush1.bf16.msra.mxu0 0
          %1416 = vmatprep.subr.bf16.mxu0 0
          %1417 = vmatpush1.bf16.msra.mxu0 0
          %1418 = vmatprep.mubr.bf16.mxu0 0
          %1419 = vmatmul.mubr.bf16.gmra.mrb[0].mxu0 %v1290
          %v1420 = vpop.f32.mrb[0].mxu0
          %v1421 = vadd.f32 %v1251, %v1420
          %v1422 = vpop.f32.mrb[0].mxu0
          %v1423 = vadd.f32 %v1255, %v1422
          %v1424 = vpop.f32.mrb[0].mxu0
          %v1425 = vadd.f32 %v1251, %v1424
          %v1426 = vpop.f32.mrb[0].mxu0
          %v1427 = vadd.f32 %v1255, %v1426
          %1428 = vmatprep.mubr.bf16.mxu0 0
          %1429 = vmatmul.mubr.bf16.gmra.mrb[0].mxu0 %v1291
          %v1430 = vpop.f32.mrb[0].mxu0
          %v1431 = vadd.f32 %v1251, %v1430
          %v1432 = vpop.f32.mrb[0].mxu0
          %v1433 = vadd.f32 %v1255, %v1432
          %v1434 = vpop.f32.mrb[0].mxu0
          %v1435 = vadd.f32 %v1251, %v1434
          %v1436 = vpop.f32.mrb[0].mxu0
          %v1437 = vadd.f32 %v1255, %v1436
          %1438 = vmatprep.mubr.bf16.mxu0 0
          %1439 = vmatmul.mubr.bf16.gmra.mrb[0].mxu0 %v1292
          %v1440 = vpop.f32.mrb[0].mxu0
          %v1441 = vadd.f32 %v1251, %v1440
          %v1442 = vpop.f32.mrb[0].mxu0
          %v1443 = vadd.f32 %v1255, %v1442
          %v1444 = vpop.f32.mrb[0].mxu0
          %v1445 = vadd.f32 %v1251, %v1444
          %v1446 = vpop.f32.mrb[0].mxu0
          %v1447 = vadd.f32 %v1255, %v1446
          %1448 = vmatprep.mubr.bf16.mxu0 0
          %1449 = vmatmul.mubr.bf16.gmra.mrb[0].mxu0 %v1293
          %v1450 = vpop.f32.mrb[0].mxu0
          %v1451 = vadd.f32 %v1251, %v1450
          %v1452 = vpop.f32.mrb[0].mxu0
          %v1453 = vadd.f32 %v1255, %v1452
          %v1454 = vpop.f32.mrb[0].mxu0
          %v1455 = vadd.f32 %v1251, %v1454
          %v1456 = vpop.f32.mrb[0].mxu0
          %v1457 = vadd.f32 %v1255, %v1456
          %1458 = vmatprep.mubr.bf16.mxu0 0
          %1459 = vmatmul.mubr.bf16.gmra.mrb[0].mxu0 %v1294
          %v1460 = vpop.f32.mrb[0].mxu0
          %v1461 = vadd.f32 %v1251, %v1460
          %v1462 = vpop.f32.mrb[0].mxu0
          %v1463 = vadd.f32 %v1255, %v1462
          %v1464 = vpop.f32.mrb[0].mxu0
          %v1465 = vadd.f32 %v1251, %v1464
          %v1466 = vpop.f32.mrb[0].mxu0
          %v1467 = vadd.f32 %v1255, %v1466
          %1468 = vmatprep.mubr.bf16.mxu0 0
          %1469 = vmatmul.mubr.bf16.gmra.mrb[0].mxu0 %v1295
          %v1470 = vpop.f32.mrb[0].mxu0
          %v1471 = vadd.f32 %v1251, %v1470
          %v1472 = vpop.f32.mrb[0].mxu0
          %v1473 = vadd.f32 %v1255, %v1472
          %v1474 = vpop.f32.mrb[0].mxu0
          %v1475 = vadd.f32 %v1251, %v1474
          %v1476 = vpop.f32.mrb[0].mxu0
          %v1477 = vadd.f32 %v1255, %v1476
          %1478 = vmatprep.mubr.bf16.mxu0 0
          %1479 = vmatmul.mubr.bf16.gmra.mrb[0].mxu0 %v1296
          %v1480 = vpop.f32.mrb[0].mxu0
          %v1481 = vadd.f32 %v1251, %v1480
          %v1482 = vpop.f32.mrb[0].mxu0
          %v1483 = vadd.f32 %v1255, %v1482
          %v1484 = vpop.f32.mrb[0].mxu0
          %v1485 = vadd.f32 %v1251, %v1484
          %v1486 = vpop.f32.mrb[0].mxu0
          %v1487 = vadd.f32 %v1255, %v1486
          %1488 = vmatprep.mubr.bf16.mxu0 0
          %1489 = vmatmul.mubr.bf16.gmra.mrb[0].mxu0 %v1297
          %v1490 = vpop.f32.mrb[0].mxu0
          %v1491 = vadd.f32 %v1251, %v1490
          %v1492 = vpop.f32.mrb[0].mxu0
          %v1493 = vadd.f32 %v1255, %v1492
          %v1494 = vpop.f32.mrb[0].mxu0
          %v1495 = vadd.f32 %v1251, %v1494
          %v1496 = vpop.f32.mrb[0].mxu0
          %v1497 = vadd.f32 %v1255, %v1496
          %1498 = vdwg.mxu0
          %v1499 = vpack.c.bf16 %v1425, %v1421
          %v1500 = vpack.c.bf16 %v1427, %v1423
          %v1501 = vpack.c.bf16 %v1435, %v1431
          %v1502 = vpack.c.bf16 %v1437, %v1433
          %v1503 = vpack.c.bf16 %v1445, %v1441
          %v1504 = vpack.c.bf16 %v1447, %v1443
          %v1505 = vpack.c.bf16 %v1455, %v1451
          %v1506 = vpack.c.bf16 %v1457, %v1453
          %v1507 = vpack.c.bf16 %v1465, %v1461
          %v1508 = vpack.c.bf16 %v1467, %v1463
          %v1509 = vpack.c.bf16 %v1475, %v1471
          %v1510 = vpack.c.bf16 %v1477, %v1473
          %v1511 = vpack.c.bf16 %v1485, %v1481
          %v1512 = vpack.c.bf16 %v1487, %v1483
          %v1513 = vpack.c.bf16 %v1495, %v1491
          %v1514 = vpack.c.bf16 %v1497, %v1493
          %vm1515 = vcmask 261120
          %1516 = vst.msk [vmem:[#allocation2] sm:$0xff] %vm1515, %v1214
          %1517 = vst.msk [vmem:[#allocation2 + $0x8] sm:$0xff] %vm1515, %v1216
          %1518 = vst.msk [vmem:[#allocation2 + $0x10] sm:$0xff] %vm1515, %v1218
          %1519 = vst.msk [vmem:[#allocation2 + $0x18] sm:$0xff] %vm1515, %v1220
          %1520 = vst.msk [vmem:[#allocation2 + $0x20] sm:$0xff] %vm1515, %v1222
          %1521 = vst.msk [vmem:[#allocation2 + $0x28] sm:$0xff] %vm1515, %v1224
          %1522 = vst.msk [vmem:[#allocation2 + $0x30] sm:$0xff] %vm1515, %v1226
          %1523 = vst.msk [vmem:[#allocation2 + $0x38] sm:$0xff] %vm1515, %v1228
          %1524 = vst.msk [vmem:[#allocation3] sm:$0xff] %vm1515, %v1215
          %1525 = vst.msk [vmem:[#allocation3 + $0x8] sm:$0xff] %vm1515, %v1217
          %1526 = vst.msk [vmem:[#allocation3 + $0x10] sm:$0xff] %vm1515, %v1219
          %1527 = vst.msk [vmem:[#allocation3 + $0x18] sm:$0xff] %vm1515, %v1221
          %1528 = vst.msk [vmem:[#allocation3 + $0x20] sm:$0xff] %vm1515, %v1223
          %1529 = vst.msk [vmem:[#allocation3 + $0x28] sm:$0xff] %vm1515, %v1225
          %1530 = vst.msk [vmem:[#allocation3 + $0x30] sm:$0xff] %vm1515, %v1227
          %1531 = vst.msk [vmem:[#allocation3 + $0x38] sm:$0xff] %vm1515, %v1229
          %1532 = vst.msk [vmem:[#allocation4] sm:$0xff] %vm1515, %v1499
          %1533 = vst.msk [vmem:[#allocation4 + $0x8] sm:$0xff] %vm1515, %v1501
          %1534 = vst.msk [vmem:[#allocation4 + $0x10] sm:$0xff] %vm1515, %v1503
          %1535 = vst.msk [vmem:[#allocation4 + $0x18] sm:$0xff] %vm1515, %v1505
          %1536 = vst.msk [vmem:[#allocation4 + $0x20] sm:$0xff] %vm1515, %v1507
          %1537 = vst.msk [vmem:[#allocation4 + $0x28] sm:$0xff] %vm1515, %v1509
          %1538 = vst.msk [vmem:[#allocation4 + $0x30] sm:$0xff] %vm1515, %v1511
          %1539 = vst.msk [vmem:[#allocation4 + $0x38] sm:$0xff] %vm1515, %v1513
          %1540 = vst.msk [vmem:[#allocation5] sm:$0xff] %vm1515, %v1500
          %1541 = vst.msk [vmem:[#allocation5 + $0x8] sm:$0xff] %vm1515, %v1502
          %1542 = vst.msk [vmem:[#allocation5 + $0x10] sm:$0xff] %vm1515, %v1504
          %1543 = vst.msk [vmem:[#allocation5 + $0x18] sm:$0xff] %vm1515, %v1506
          %1544 = vst.msk [vmem:[#allocation5 + $0x20] sm:$0xff] %vm1515, %v1508
          %1545 = vst.msk [vmem:[#allocation5 + $0x28] sm:$0xff] %vm1515, %v1510
          %1546 = vst.msk [vmem:[#allocation5 + $0x30] sm:$0xff] %vm1515, %v1512
          %1547 = vst.msk [vmem:[#allocation5 + $0x38] sm:$0xff] %vm1515, %v1514
          %1556 = vrot.lane.b32.xlu0 %v1214, 96
          %v1557 = vpop.permute.xlu0 %1556
          %1558 = vrot.lane.b32.xlu0 %v1216, 96
          %v1559 = vpop.permute.xlu0 %1558
          %1560 = vrot.lane.b32.xlu0 %v1218, 96
          %v1561 = vpop.permute.xlu0 %1560
          %1562 = vrot.lane.b32.xlu0 %v1220, 96
          %v1563 = vpop.permute.xlu0 %1562
          %1564 = vrot.lane.b32.xlu0 %v1222, 96
          %v1565 = vpop.permute.xlu0 %1564
          %1566 = vrot.lane.b32.xlu0 %v1224, 96
          %v1567 = vpop.permute.xlu0 %1566
          %1568 = vrot.lane.b32.xlu0 %v1226, 96
          %v1569 = vpop.permute.xlu0 %1568
          %1570 = vrot.lane.b32.xlu0 %v1228, 96
          %v1571 = vpop.permute.xlu0 %1570
          %s1580 = scalar_lea.vmem [#allocation2], 64
          %1581 = vst.msk [vmem:[%s1580] sm:$0xff] %vm1515, %v1557
          %1582 = vst.msk [vmem:[%s1580 + $0x8] sm:$0xff] %vm1515, %v1559
          %1583 = vst.msk [vmem:[%s1580 + $0x10] sm:$0xff] %vm1515, %v1561
          %1584 = vst.msk [vmem:[%s1580 + $0x18] sm:$0xff] %vm1515, %v1563
          %1585 = vst.msk [vmem:[%s1580 + $0x20] sm:$0xff] %vm1515, %v1565
          %1586 = vst.msk [vmem:[%s1580 + $0x28] sm:$0xff] %vm1515, %v1567
          %1587 = vst.msk [vmem:[%s1580 + $0x30] sm:$0xff] %vm1515, %v1569
          %1588 = vst.msk [vmem:[%s1580 + $0x38] sm:$0xff] %vm1515, %v1571
          %1597 = vrot.lane.b32.xlu0 %v1215, 96
          %v1598 = vpop.permute.xlu0 %1597
          %1599 = vrot.lane.b32.xlu0 %v1217, 96
          %v1600 = vpop.permute.xlu0 %1599
          %1601 = vrot.lane.b32.xlu0 %v1219, 96
          %v1602 = vpop.permute.xlu0 %1601
          %1603 = vrot.lane.b32.xlu0 %v1221, 96
          %v1604 = vpop.permute.xlu0 %1603
          %1605 = vrot.lane.b32.xlu0 %v1223, 96
          %v1606 = vpop.permute.xlu0 %1605
          %1607 = vrot.lane.b32.xlu0 %v1225, 96
          %v1608 = vpop.permute.xlu0 %1607
          %1609 = vrot.lane.b32.xlu0 %v1227, 96
          %v1610 = vpop.permute.xlu0 %1609
          %1611 = vrot.lane.b32.xlu0 %v1229, 96
          %v1612 = vpop.permute.xlu0 %1611
          %s1621 = scalar_lea.vmem [#allocation3], 64
          %1622 = vst.msk [vmem:[%s1621] sm:$0xff] %vm1515, %v1598
          %1623 = vst.msk [vmem:[%s1621 + $0x8] sm:$0xff] %vm1515, %v1600
          %1624 = vst.msk [vmem:[%s1621 + $0x10] sm:$0xff] %vm1515, %v1602
          %1625 = vst.msk [vmem:[%s1621 + $0x18] sm:$0xff] %vm1515, %v1604
          %1626 = vst.msk [vmem:[%s1621 + $0x20] sm:$0xff] %vm1515, %v1606
          %1627 = vst.msk [vmem:[%s1621 + $0x28] sm:$0xff] %vm1515, %v1608
          %1628 = vst.msk [vmem:[%s1621 + $0x30] sm:$0xff] %vm1515, %v1610
          %1629 = vst.msk [vmem:[%s1621 + $0x38] sm:$0xff] %vm1515, %v1612
          %1638 = vrot.lane.b32.xlu0 %v1499, 96
          %v1639 = vpop.permute.xlu0 %1638
          %1640 = vrot.lane.b32.xlu0 %v1501, 96
          %v1641 = vpop.permute.xlu0 %1640
          %1642 = vrot.lane.b32.xlu0 %v1503, 96
          %v1643 = vpop.permute.xlu0 %1642
          %1644 = vrot.lane.b32.xlu0 %v1505, 96
          %v1645 = vpop.permute.xlu0 %1644
          %1646 = vrot.lane.b32.xlu0 %v1507, 96
          %v1647 = vpop.permute.xlu0 %1646
          %1648 = vrot.lane.b32.xlu0 %v1509, 96
          %v1649 = vpop.permute.xlu0 %1648
          %1650 = vrot.lane.b32.xlu0 %v1511, 96
          %v1651 = vpop.permute.xlu0 %1650
          %1652 = vrot.lane.b32.xlu0 %v1513, 96
          %v1653 = vpop.permute.xlu0 %1652
          %s1662 = scalar_lea.vmem [#allocation4], 64
          %1663 = vst.msk [vmem:[%s1662] sm:$0xff] %vm1515, %v1639
          %1664 = vst.msk [vmem:[%s1662 + $0x8] sm:$0xff] %vm1515, %v1641
          %1665 = vst.msk [vmem:[%s1662 + $0x10] sm:$0xff] %vm1515, %v1643
          %1666 = vst.msk [vmem:[%s1662 + $0x18] sm:$0xff] %vm1515, %v1645
          %1667 = vst.msk [vmem:[%s1662 + $0x20] sm:$0xff] %vm1515, %v1647
          %1668 = vst.msk [vmem:[%s1662 + $0x28] sm:$0xff] %vm1515, %v1649
          %1669 = vst.msk [vmem:[%s1662 + $0x30] sm:$0xff] %vm1515, %v1651
          %1670 = vst.msk [vmem:[%s1662 + $0x38] sm:$0xff] %vm1515, %v1653
          %1679 = vrot.lane.b32.xlu0 %v1500, 96
          %v1680 = vpop.permute.xlu0 %1679
          %1681 = vrot.lane.b32.xlu0 %v1502, 96
          %v1682 = vpop.permute.xlu0 %1681
          %1683 = vrot.lane.b32.xlu0 %v1504, 96
          %v1684 = vpop.permute.xlu0 %1683
          %1685 = vrot.lane.b32.xlu0 %v1506, 96
          %v1686 = vpop.permute.xlu0 %1685
          %1687 = vrot.lane.b32.xlu0 %v1508, 96
          %v1688 = vpop.permute.xlu0 %1687
          %1689 = vrot.lane.b32.xlu0 %v1510, 96
          %v1690 = vpop.permute.xlu0 %1689
          %1691 = vrot.lane.b32.xlu0 %v1512, 96
          %v1692 = vpop.permute.xlu0 %1691
          %1693 = vrot.lane.b32.xlu0 %v1514, 96
          %v1694 = vpop.permute.xlu0 %1693
          %s1703 = scalar_lea.vmem [#allocation5], 64
          %1704 = vst.msk [vmem:[%s1703] sm:$0xff] %vm1515, %v1680
          %1705 = vst.msk [vmem:[%s1703 + $0x8] sm:$0xff] %vm1515, %v1682
          %1706 = vst.msk [vmem:[%s1703 + $0x10] sm:$0xff] %vm1515, %v1684
          %1707 = vst.msk [vmem:[%s1703 + $0x18] sm:$0xff] %vm1515, %v1686
          %1708 = vst.msk [vmem:[%s1703 + $0x20] sm:$0xff] %vm1515, %v1688
          %1709 = vst.msk [vmem:[%s1703 + $0x28] sm:$0xff] %vm1515, %v1690
          %1710 = vst.msk [vmem:[%s1703 + $0x30] sm:$0xff] %vm1515, %v1692
          %1711 = vst.msk [vmem:[%s1703 + $0x38] sm:$0xff] %vm1515, %v1694
          %1712 = vrot.lane.b32.xlu0 %v1214, 64
          %v1713 = vpop.permute.xlu0 %1712
          %1714 = vrot.lane.b32.xlu0 %v1216, 64
          %v1715 = vpop.permute.xlu0 %1714
          %1716 = vrot.lane.b32.xlu0 %v1218, 64
          %v1717 = vpop.permute.xlu0 %1716
          %1718 = vrot.lane.b32.xlu0 %v1220, 64
          %v1719 = vpop.permute.xlu0 %1718
          %1720 = vrot.lane.b32.xlu0 %v1222, 64
          %v1721 = vpop.permute.xlu0 %1720
          %1722 = vrot.lane.b32.xlu0 %v1224, 64
          %v1723 = vpop.permute.xlu0 %1722
          %1724 = vrot.lane.b32.xlu0 %v1226, 64
          %v1725 = vpop.permute.xlu0 %1724
          %1726 = vrot.lane.b32.xlu0 %v1228, 64
          %v1727 = vpop.permute.xlu0 %1726
          %s1736 = scalar_lea.vmem [#allocation2], 128
          %1737 = vst.msk [vmem:[%s1736] sm:$0xff] %vm1515, %v1713
          %1738 = vst.msk [vmem:[%s1736 + $0x8] sm:$0xff] %vm1515, %v1715
          %1739 = vst.msk [vmem:[%s1736 + $0x10] sm:$0xff] %vm1515, %v1717
          %1740 = vst.msk [vmem:[%s1736 + $0x18] sm:$0xff] %vm1515, %v1719
          %1741 = vst.msk [vmem:[%s1736 + $0x20] sm:$0xff] %vm1515, %v1721
          %1742 = vst.msk [vmem:[%s1736 + $0x28] sm:$0xff] %vm1515, %v1723
          %1743 = vst.msk [vmem:[%s1736 + $0x30] sm:$0xff] %vm1515, %v1725
          %1744 = vst.msk [vmem:[%s1736 + $0x38] sm:$0xff] %vm1515, %v1727
          %1745 = vrot.lane.b32.xlu0 %v1215, 64
          %v1746 = vpop.permute.xlu0 %1745
          %1747 = vrot.lane.b32.xlu0 %v1217, 64
          %v1748 = vpop.permute.xlu0 %1747
          %1749 = vrot.lane.b32.xlu0 %v1219, 64
          %v1750 = vpop.permute.xlu0 %1749
          %1751 = vrot.lane.b32.xlu0 %v1221, 64
          %v1752 = vpop.permute.xlu0 %1751
          %1753 = vrot.lane.b32.xlu0 %v1223, 64
          %v1754 = vpop.permute.xlu0 %1753
          %1755 = vrot.lane.b32.xlu0 %v1225, 64
          %v1756 = vpop.permute.xlu0 %1755
          %1757 = vrot.lane.b32.xlu0 %v1227, 64
          %v1758 = vpop.permute.xlu0 %1757
          %1759 = vrot.lane.b32.xlu0 %v1229, 64
          %v1760 = vpop.permute.xlu0 %1759
          %s1769 = scalar_lea.vmem [#allocation3], 128
          %1770 = vst.msk [vmem:[%s1769] sm:$0xff] %vm1515, %v1746
          %1771 = vst.msk [vmem:[%s1769 + $0x8] sm:$0xff] %vm1515, %v1748
          %1772 = vst.msk [vmem:[%s1769 + $0x10] sm:$0xff] %vm1515, %v1750
          %1773 = vst.msk [vmem:[%s1769 + $0x18] sm:$0xff] %vm1515, %v1752
          %1774 = vst.msk [vmem:[%s1769 + $0x20] sm:$0xff] %vm1515, %v1754
          %1775 = vst.msk [vmem:[%s1769 + $0x28] sm:$0xff] %vm1515, %v1756
          %1776 = vst.msk [vmem:[%s1769 + $0x30] sm:$0xff] %vm1515, %v1758
          %1777 = vst.msk [vmem:[%s1769 + $0x38] sm:$0xff] %vm1515, %v1760
          %1778 = vrot.lane.b32.xlu0 %v1499, 64
          %v1779 = vpop.permute.xlu0 %1778
          %1780 = vrot.lane.b32.xlu0 %v1501, 64
          %v1781 = vpop.permute.xlu0 %1780
          %1782 = vrot.lane.b32.xlu0 %v1503, 64
          %v1783 = vpop.permute.xlu0 %1782
          %1784 = vrot.lane.b32.xlu0 %v1505, 64
          %v1785 = vpop.permute.xlu0 %1784
          %1786 = vrot.lane.b32.xlu0 %v1507, 64
          %v1787 = vpop.permute.xlu0 %1786
          %1788 = vrot.lane.b32.xlu0 %v1509, 64
          %v1789 = vpop.permute.xlu0 %1788
          %1790 = vrot.lane.b32.xlu0 %v1511, 64
          %v1791 = vpop.permute.xlu0 %1790
          %1792 = vrot.lane.b32.xlu0 %v1513, 64
          %v1793 = vpop.permute.xlu0 %1792
          %s1802 = scalar_lea.vmem [#allocation4], 128
          %1803 = vst.msk [vmem:[%s1802] sm:$0xff] %vm1515, %v1779
          %1804 = vst.msk [vmem:[%s1802 + $0x8] sm:$0xff] %vm1515, %v1781
          %1805 = vst.msk [vmem:[%s1802 + $0x10] sm:$0xff] %vm1515, %v1783
          %1806 = vst.msk [vmem:[%s1802 + $0x18] sm:$0xff] %vm1515, %v1785
          %1807 = vst.msk [vmem:[%s1802 + $0x20] sm:$0xff] %vm1515, %v1787
          %1808 = vst.msk [vmem:[%s1802 + $0x28] sm:$0xff] %vm1515, %v1789
          %1809 = vst.msk [vmem:[%s1802 + $0x30] sm:$0xff] %vm1515, %v1791
          %1810 = vst.msk [vmem:[%s1802 + $0x38] sm:$0xff] %vm1515, %v1793
          %1811 = vrot.lane.b32.xlu0 %v1500, 64
          %v1812 = vpop.permute.xlu0 %1811
          %1813 = vrot.lane.b32.xlu0 %v1502, 64
          %v1814 = vpop.permute.xlu0 %1813
          %1815 = vrot.lane.b32.xlu0 %v1504, 64
          %v1816 = vpop.permute.xlu0 %1815
          %1817 = vrot.lane.b32.xlu0 %v1506, 64
          %v1818 = vpop.permute.xlu0 %1817
          %1819 = vrot.lane.b32.xlu0 %v1508, 64
          %v1820 = vpop.permute.xlu0 %1819
          %1821 = vrot.lane.b32.xlu0 %v1510, 64
          %v1822 = vpop.permute.xlu0 %1821
          %1823 = vrot.lane.b32.xlu0 %v1512, 64
          %v1824 = vpop.permute.xlu0 %1823
          %1825 = vrot.lane.b32.xlu0 %v1514, 64
          %v1826 = vpop.permute.xlu0 %1825
          %s1835 = scalar_lea.vmem [#allocation5], 128
          %1836 = vst.msk [vmem:[%s1835] sm:$0xff] %vm1515, %v1812
          %1837 = vst.msk [vmem:[%s1835 + $0x8] sm:$0xff] %vm1515, %v1814
          %1838 = vst.msk [vmem:[%s1835 + $0x10] sm:$0xff] %vm1515, %v1816
          %1839 = vst.msk [vmem:[%s1835 + $0x18] sm:$0xff] %vm1515, %v1818
          %1840 = vst.msk [vmem:[%s1835 + $0x20] sm:$0xff] %vm1515, %v1820
          %1841 = vst.msk [vmem:[%s1835 + $0x28] sm:$0xff] %vm1515, %v1822
          %1842 = vst.msk [vmem:[%s1835 + $0x30] sm:$0xff] %vm1515, %v1824
          %1843 = vst.msk [vmem:[%s1835 + $0x38] sm:$0xff] %vm1515, %v1826
          %1844 = vrot.lane.b32.xlu0 %v1214, 32
          %v1845 = vpop.permute.xlu0 %1844
          %1846 = vrot.lane.b32.xlu0 %v1216, 32
          %v1847 = vpop.permute.xlu0 %1846
          %1848 = vrot.lane.b32.xlu0 %v1218, 32
          %v1849 = vpop.permute.xlu0 %1848
          %1850 = vrot.lane.b32.xlu0 %v1220, 32
          %v1851 = vpop.permute.xlu0 %1850
          %1852 = vrot.lane.b32.xlu0 %v1222, 32
          %v1853 = vpop.permute.xlu0 %1852
          %1854 = vrot.lane.b32.xlu0 %v1224, 32
          %v1855 = vpop.permute.xlu0 %1854
          %1856 = vrot.lane.b32.xlu0 %v1226, 32
          %v1857 = vpop.permute.xlu0 %1856
          %1858 = vrot.lane.b32.xlu0 %v1228, 32
          %v1859 = vpop.permute.xlu0 %1858
          %s1868 = scalar_lea.vmem [#allocation2], 192
          %1869 = vst.msk [vmem:[%s1868] sm:$0xff] %vm1515, %v1845
          %1870 = vst.msk [vmem:[%s1868 + $0x8] sm:$0xff] %vm1515, %v1847
          %1871 = vst.msk [vmem:[%s1868 + $0x10] sm:$0xff] %vm1515, %v1849
          %1872 = vst.msk [vmem:[%s1868 + $0x18] sm:$0xff] %vm1515, %v1851
          %1873 = vst.msk [vmem:[%s1868 + $0x20] sm:$0xff] %vm1515, %v1853
          %1874 = vst.msk [vmem:[%s1868 + $0x28] sm:$0xff] %vm1515, %v1855
          %1875 = vst.msk [vmem:[%s1868 + $0x30] sm:$0xff] %vm1515, %v1857
          %1876 = vst.msk [vmem:[%s1868 + $0x38] sm:$0xff] %vm1515, %v1859
          %1877 = vrot.lane.b32.xlu0 %v1215, 32
          %v1878 = vpop.permute.xlu0 %1877
          %1879 = vrot.lane.b32.xlu0 %v1217, 32
          %v1880 = vpop.permute.xlu0 %1879
          %1881 = vrot.lane.b32.xlu0 %v1219, 32
          %v1882 = vpop.permute.xlu0 %1881
          %1883 = vrot.lane.b32.xlu0 %v1221, 32
          %v1884 = vpop.permute.xlu0 %1883
          %1885 = vrot.lane.b32.xlu0 %v1223, 32
          %v1886 = vpop.permute.xlu0 %1885
          %1887 = vrot.lane.b32.xlu0 %v1225, 32
          %v1888 = vpop.permute.xlu0 %1887
          %1889 = vrot.lane.b32.xlu0 %v1227, 32
          %v1890 = vpop.permute.xlu0 %1889
          %1891 = vrot.lane.b32.xlu0 %v1229, 32
          %v1892 = vpop.permute.xlu0 %1891
          %s1901 = scalar_lea.vmem [#allocation3], 192
          %1902 = vst.msk [vmem:[%s1901] sm:$0xff] %vm1515, %v1878
          %1903 = vst.msk [vmem:[%s1901 + $0x8] sm:$0xff] %vm1515, %v1880
          %1904 = vst.msk [vmem:[%s1901 + $0x10] sm:$0xff] %vm1515, %v1882
          %1905 = vst.msk [vmem:[%s1901 + $0x18] sm:$0xff] %vm1515, %v1884
          %1906 = vst.msk [vmem:[%s1901 + $0x20] sm:$0xff] %vm1515, %v1886
          %1907 = vst.msk [vmem:[%s1901 + $0x28] sm:$0xff] %vm1515, %v1888
          %1908 = vst.msk [vmem:[%s1901 + $0x30] sm:$0xff] %vm1515, %v1890
          %1909 = vst.msk [vmem:[%s1901 + $0x38] sm:$0xff] %vm1515, %v1892
          %1910 = vrot.lane.b32.xlu0 %v1499, 32
          %v1911 = vpop.permute.xlu0 %1910
          %1912 = vrot.lane.b32.xlu0 %v1501, 32
          %v1913 = vpop.permute.xlu0 %1912
          %1914 = vrot.lane.b32.xlu0 %v1503, 32
          %v1915 = vpop.permute.xlu0 %1914
          %1916 = vrot.lane.b32.xlu0 %v1505, 32
          %v1917 = vpop.permute.xlu0 %1916
          %1918 = vrot.lane.b32.xlu0 %v1507, 32
          %v1919 = vpop.permute.xlu0 %1918
          %1920 = vrot.lane.b32.xlu0 %v1509, 32
          %v1921 = vpop.permute.xlu0 %1920
          %1922 = vrot.lane.b32.xlu0 %v1511, 32
          %v1923 = vpop.permute.xlu0 %1922
          %1924 = vrot.lane.b32.xlu0 %v1513, 32
          %v1925 = vpop.permute.xlu0 %1924
          %s1934 = scalar_lea.vmem [#allocation4], 192
          %1935 = vst.msk [vmem:[%s1934] sm:$0xff] %vm1515, %v1911
          %1936 = vst.msk [vmem:[%s1934 + $0x8] sm:$0xff] %vm1515, %v1913
          %1937 = vst.msk [vmem:[%s1934 + $0x10] sm:$0xff] %vm1515, %v1915
          %1938 = vst.msk [vmem:[%s1934 + $0x18] sm:$0xff] %vm1515, %v1917
          %1939 = vst.msk [vmem:[%s1934 + $0x20] sm:$0xff] %vm1515, %v1919
          %1940 = vst.msk [vmem:[%s1934 + $0x28] sm:$0xff] %vm1515, %v1921
          %1941 = vst.msk [vmem:[%s1934 + $0x30] sm:$0xff] %vm1515, %v1923
          %1942 = vst.msk [vmem:[%s1934 + $0x38] sm:$0xff] %vm1515, %v1925
          %1943 = vrot.lane.b32.xlu0 %v1500, 32
          %v1944 = vpop.permute.xlu0 %1943
          %1945 = vrot.lane.b32.xlu0 %v1502, 32
          %v1946 = vpop.permute.xlu0 %1945
          %1947 = vrot.lane.b32.xlu0 %v1504, 32
          %v1948 = vpop.permute.xlu0 %1947
          %1949 = vrot.lane.b32.xlu0 %v1506, 32
          %v1950 = vpop.permute.xlu0 %1949
          %1951 = vrot.lane.b32.xlu0 %v1508, 32
          %v1952 = vpop.permute.xlu0 %1951
          %1953 = vrot.lane.b32.xlu0 %v1510, 32
          %v1954 = vpop.permute.xlu0 %1953
          %1955 = vrot.lane.b32.xlu0 %v1512, 32
          %v1956 = vpop.permute.xlu0 %1955
          %1957 = vrot.lane.b32.xlu0 %v1514, 32
          %v1958 = vpop.permute.xlu0 %1957
          %s1967 = scalar_lea.vmem [#allocation5], 192
          %1968 = vst.msk [vmem:[%s1967] sm:$0xff] %vm1515, %v1944
          %1969 = vst.msk [vmem:[%s1967 + $0x8] sm:$0xff] %vm1515, %v1946
          %1970 = vst.msk [vmem:[%s1967 + $0x10] sm:$0xff] %vm1515, %v1948
          %1971 = vst.msk [vmem:[%s1967 + $0x18] sm:$0xff] %vm1515, %v1950
          %1972 = vst.msk [vmem:[%s1967 + $0x20] sm:$0xff] %vm1515, %v1952
          %1973 = vst.msk [vmem:[%s1967 + $0x28] sm:$0xff] %vm1515, %v1954
          %1974 = vst.msk [vmem:[%s1967 + $0x30] sm:$0xff] %vm1515, %v1956
          %1975 = vst.msk [vmem:[%s1967 + $0x38] sm:$0xff] %vm1515, %v1958
        $region152: #{tpu_custom_call.1} parent=99 // pred_fallthru
          _
        %s1976 = smul.u32 %s52, 64
        %s1977 = sshra.s32 %s1976, 3
        %s1978 = sand.u32 %s1976, 7
        %s1979 = smul.addr %s1977, 4
        %s1980 = scalar_lea.vmem %s772, %s1979 [#allocation8]
        %v1981 = vld [vmem:[%s1980] sm:$0xf]
        %v1982 = vld [vmem:[%s1980 + $0x4] sm:$0xf]
        %v1983 = vld [vmem:[%s1980 + $0x8] sm:$0xf]
        %v1984 = vld [vmem:[%s1980 + $0xc] sm:$0xf]
        %v1985 = vld [vmem:[%s1980 + $0x10] sm:$0xf]
        %v1986 = vld [vmem:[%s1980 + $0x14] sm:$0xf]
        %v1987 = vld [vmem:[%s1980 + $0x18] sm:$0xf]
        %v1988 = vld [vmem:[%s1980 + $0x1c] sm:$0xf]
        %v1989 = vld [vmem:[%s790] sm:$0xff]
        %v1990 = vld [vmem:[%s790 + $0x8] sm:$0xff]
        %v1991 = vld [vmem:[%s799] sm:$0xff]
        %v1992 = vld [vmem:[%s799 + $0x8] sm:$0xff]
        %v1993 = vunpack.c.l.bf16 %v1981
        %v1994 = vunpack.c.l.bf16 %v1982
        %v1995 = vunpack.c.l.bf16 %v1983
        %v1996 = vunpack.c.l.bf16 %v1984
        %v1997 = vunpack.c.l.bf16 %v1985
        %v1998 = vunpack.c.l.bf16 %v1986
        %v1999 = vunpack.c.l.bf16 %v1987
        %v2000 = vunpack.c.l.bf16 %v1988
        %v2001 = vld [vmem:[#allocation16] sm:$0xf]
        %v2002 = vld [vmem:[#allocation16 + $0x4] sm:$0xf]
        %v2003 = vld [vmem:[#allocation16 + $0x8] sm:$0xf]
        %v2004 = vld [vmem:[#allocation16 + $0xc] sm:$0xf]
        %v2005 = vld [vmem:[#allocation16 + $0x10] sm:$0xf]
        %v2006 = vld [vmem:[#allocation16 + $0x14] sm:$0xf]
        %v2007 = vld [vmem:[#allocation16 + $0x18] sm:$0xf]
        %v2008 = vld [vmem:[#allocation16 + $0x1c] sm:$0xf]
        %v2009 = vld [vmem:[#allocation16 + $0x20] sm:$0xf]
        %v2010 = vld [vmem:[#allocation16 + $0x24] sm:$0xf]
        %v2011 = vld [vmem:[#allocation16 + $0x28] sm:$0xf]
        %v2012 = vld [vmem:[#allocation16 + $0x2c] sm:$0xf]
        %v2013 = vld [vmem:[#allocation16 + $0x30] sm:$0xf]
        %v2014 = vld [vmem:[#allocation16 + $0x34] sm:$0xf]
        %v2015 = vld [vmem:[#allocation16 + $0x38] sm:$0xf]
        %v2016 = vld [vmem:[#allocation16 + $0x3c] sm:$0xf]
        %v2017 = vld [vmem:[%s5] sm:$0x1]
        %v2019 = vlaneseq
        %v2020 = vshrl.u32 %v2019, 7
        %v2021 = vsub.s32 0, %v2020
        %v2022 = vrot.slane %v2017, %v2021
        %v2032 = vunpack.c.l.b16 %v1981
        %v2033 = vunpack.c.l.b16 %v1982
        %v2034 = vunpack.c.l.b16 %v1983
        %v2035 = vunpack.c.l.b16 %v1984
        %v2036 = vunpack.c.l.b16 %v1985
        %v2037 = vunpack.c.l.b16 %v1986
        %v2038 = vunpack.c.l.b16 %v1987
        %v2039 = vunpack.c.l.b16 %v1988
        %v2040 = vpack.c.b16 %v2033, %v2032
        %v2041 = vpack.c.b16 %v2035, %v2034
        %v2042 = vpack.c.b16 %v2037, %v2036
        %v2043 = vpack.c.b16 %v2039, %v2038
        %v2064 = vunpack.c.l.b16 %v2001
        %v2065 = vunpack.c.l.b16 %v2002
        %v2066 = vunpack.c.l.b16 %v2003
        %v2067 = vunpack.c.l.b16 %v2004
        %v2068 = vunpack.c.l.b16 %v2005
        %v2069 = vunpack.c.l.b16 %v2006
        %v2070 = vunpack.c.l.b16 %v2007
        %v2071 = vunpack.c.l.b16 %v2008
        %v2072 = vunpack.c.l.b16 %v2009
        %v2073 = vunpack.c.l.b16 %v2010
        %v2074 = vunpack.c.l.b16 %v2011
        %v2075 = vunpack.c.l.b16 %v2012
        %v2076 = vunpack.c.l.b16 %v2013
        %v2077 = vunpack.c.l.b16 %v2014
        %v2078 = vunpack.c.l.b16 %v2015
        %v2079 = vunpack.c.l.b16 %v2016
        %v2080 = vpack.c.b16 %v2065, %v2064
        %v2081 = vpack.c.b16 %v2067, %v2066
        %v2082 = vpack.c.b16 %v2069, %v2068
        %v2083 = vpack.c.b16 %v2071, %v2070
        %v2084 = vpack.c.b16 %v2073, %v2072
        %v2085 = vpack.c.b16 %v2075, %v2074
        %v2086 = vpack.c.b16 %v2077, %v2076
        %v2087 = vpack.c.b16 %v2079, %v2078
        %2096 = vmatprep.subr.bf16.mxu0 0
        %2097 = vmatpush1.bf16.msra.mxu0 %v2080
        %2098 = vmatprep.subr.bf16.mxu0 0
        %2099 = vmatpush1.bf16.msra.mxu0 %v2081
        %2100 = vmatprep.subr.bf16.mxu0 0
        %2101 = vmatpush1.bf16.msra.mxu0 %v2082
        %2102 = vmatprep.subr.bf16.mxu0 0
        %2103 = vmatpush1.bf16.msra.mxu0 %v2083
        %2104 = vmatprep.subr.bf16.mxu0 0
        %2105 = vmatpush1.bf16.msra.mxu0 %v2084
        %2106 = vmatprep.subr.bf16.mxu0 0
        %2107 = vmatpush1.bf16.msra.mxu0 %v2085
        %2108 = vmatprep.subr.bf16.mxu0 0
        %2109 = vmatpush1.bf16.msra.mxu0 %v2086
        %2110 = vmatprep.subr.bf16.mxu0 0
        %2111 = vmatpush1.bf16.msra.mxu0 %v2087
        %2112 = vmatprep.subr.bf16.mxu0 0
        %2113 = vmatpush1.bf16.msra.mxu0 0
        %2114 = vmatprep.subr.bf16.mxu0 0
        %2115 = vmatpush1.bf16.msra.mxu0 0
        %2116 = vmatprep.subr.bf16.mxu0 0
        %2117 = vmatpush1.bf16.msra.mxu0 0
        %2118 = vmatprep.subr.bf16.mxu0 0
        %2119 = vmatpush1.bf16.msra.mxu0 0
        %2120 = vmatprep.subr.bf16.mxu0 0
        %2121 = vmatpush1.bf16.msra.mxu0 0
        %2122 = vmatprep.subr.bf16.mxu0 0
        %2123 = vmatpush1.bf16.msra.mxu0 0
        %2124 = vmatprep.subr.bf16.mxu0 0
        %2125 = vmatpush1.bf16.msra.mxu0 0
        %2126 = vmatprep.subr.bf16.mxu0 0
        %2127 = vmatpush1.bf16.msra.mxu0 0
        %2128 = vmatprep.mubr.bf16.mxu0 0
        %2129 = vmatmul.mubr.bf16.gmra.mrb[0].mxu0 %v2040
        %v2130 = vpop.f32.mrb[0].mxu0
        %v2131 = vadd.f32 %v2022, %v2130
        %v2132 = vpop.f32.mrb[0].mxu0
        %v2133 = vpop.f32.mrb[0].mxu0
        %v2134 = vadd.f32 %v2022, %v2133
        %v2135 = vpop.f32.mrb[0].mxu0
        %2136 = vmatprep.mubr.bf16.mxu0 0
        %2137 = vmatmul.mubr.bf16.gmra.mrb[0].mxu0 %v2041
        %v2138 = vpop.f32.mrb[0].mxu0
        %v2139 = vadd.f32 %v2022, %v2138
        %v2140 = vpop.f32.mrb[0].mxu0
        %v2141 = vpop.f32.mrb[0].mxu0
        %v2142 = vadd.f32 %v2022, %v2141
        %v2143 = vpop.f32.mrb[0].mxu0
        %2144 = vmatprep.mubr.bf16.mxu0 0
        %2145 = vmatmul.mubr.bf16.gmra.mrb[0].mxu0 %v2042
        %v2146 = vpop.f32.mrb[0].mxu0
        %v2147 = vadd.f32 %v2022, %v2146
        %v2148 = vpop.f32.mrb[0].mxu0
        %v2149 = vpop.f32.mrb[0].mxu0
        %v2150 = vadd.f32 %v2022, %v2149
        %v2151 = vpop.f32.mrb[0].mxu0
        %2152 = vmatprep.mubr.bf16.mxu0 0
        %2153 = vmatmul.mubr.bf16.gmra.mrb[0].mxu0 %v2043
        %v2154 = vpop.f32.mrb[0].mxu0
        %v2155 = vadd.f32 %v2022, %v2154
        %v2156 = vpop.f32.mrb[0].mxu0
        %v2157 = vpop.f32.mrb[0].mxu0
        %v2158 = vadd.f32 %v2022, %v2157
        %v2159 = vpop.f32.mrb[0].mxu0
        %2160 = vdwg.mxu0
        %v2161 = vmul.f32 %v2131, 0.17677669
        %v2162 = vmul.f32 %v2134, 0.17677669
        %v2163 = vmul.f32 %v2139, 0.17677669
        %v2164 = vmul.f32 %v2142, 0.17677669
        %v2165 = vmul.f32 %v2147, 0.17677669
        %v2166 = vmul.f32 %v2150, 0.17677669
        %v2167 = vmul.f32 %v2155, 0.17677669
        %v2168 = vmul.f32 %v2158, 0.17677669
        %v2169 = vpack.c.bf16 %v2162, %v2161
        %v2170 = vpack.c.bf16 %v2164, %v2163
        %v2171 = vpack.c.bf16 %v2166, %v2165
        %v2172 = vpack.c.bf16 %v2168, %v2167
        %vm2173 = vcmask 261120
        %2174 = vst.msk [vmem:[#allocation6] sm:$0xff] %vm2173, %v2169
        %2175 = vst.msk [vmem:[#allocation6 + $0x8] sm:$0xff] %vm2173, %v2170
        %2176 = vst.msk [vmem:[#allocation6 + $0x10] sm:$0xff] %vm2173, %v2171
        %2177 = vst.msk [vmem:[#allocation6 + $0x18] sm:$0xff] %vm2173, %v2172
        %2182 = vrot.lane.b32.xlu0 %v2169, 96
        %v2183 = vpop.permute.xlu0 %2182
        %2184 = vrot.lane.b32.xlu0 %v2170, 96
        %v2185 = vpop.permute.xlu0 %2184
        %2186 = vrot.lane.b32.xlu0 %v2171, 96
        %v2187 = vpop.permute.xlu0 %2186
        %2188 = vrot.lane.b32.xlu0 %v2172, 96
        %v2189 = vpop.permute.xlu0 %2188
        %s2194 = scalar_lea.vmem [#allocation6], 32
        %2195 = vst.msk [vmem:[%s2194] sm:$0xff] %vm2173, %v2183
        %2196 = vst.msk [vmem:[%s2194 + $0x8] sm:$0xff] %vm2173, %v2185
        %2197 = vst.msk [vmem:[%s2194 + $0x10] sm:$0xff] %vm2173, %v2187
        %2198 = vst.msk [vmem:[%s2194 + $0x18] sm:$0xff] %vm2173, %v2189
        %2199 = vrot.lane.b32.xlu0 %v2169, 64
        %v2200 = vpop.permute.xlu0 %2199
        %2201 = vrot.lane.b32.xlu0 %v2170, 64
        %v2202 = vpop.permute.xlu0 %2201
        %2203 = vrot.lane.b32.xlu0 %v2171, 64
        %v2204 = vpop.permute.xlu0 %2203
        %2205 = vrot.lane.b32.xlu0 %v2172, 64
        %v2206 = vpop.permute.xlu0 %2205
        %s2211 = scalar_lea.vmem [#allocation6], 64
        %2212 = vst.msk [vmem:[%s2211] sm:$0xff] %vm2173, %v2200
        %2213 = vst.msk [vmem:[%s2211 + $0x8] sm:$0xff] %vm2173, %v2202
        %2214 = vst.msk [vmem:[%s2211 + $0x10] sm:$0xff] %vm2173, %v2204
        %2215 = vst.msk [vmem:[%s2211 + $0x18] sm:$0xff] %vm2173, %v2206
        %2216 = vrot.lane.b32.xlu0 %v2169, 32
        %v2217 = vpop.permute.xlu0 %2216
        %2218 = vrot.lane.b32.xlu0 %v2170, 32
        %v2219 = vpop.permute.xlu0 %2218
        %2220 = vrot.lane.b32.xlu0 %v2171, 32
        %v2221 = vpop.permute.xlu0 %2220
        %2222 = vrot.lane.b32.xlu0 %v2172, 32
        %v2223 = vpop.permute.xlu0 %2222
        %s2228 = scalar_lea.vmem [#allocation6], 96
        %2229 = vst.msk [vmem:[%s2228] sm:$0xff] %vm2173, %v2217
        %2230 = vst.msk [vmem:[%s2228 + $0x8] sm:$0xff] %vm2173, %v2219
        %2231 = vst.msk [vmem:[%s2228 + $0x10] sm:$0xff] %vm2173, %v2221
        %2232 = vst.msk [vmem:[%s2228 + $0x18] sm:$0xff] %vm2173, %v2223
        %v2233 = vld [vmem:[#allocation6] sm:$0xff]
        %v2234 = vld [vmem:[#allocation6 + $0x8] sm:$0xff]
        %v2235 = vld [vmem:[#allocation6 + $0x10] sm:$0xff]
        %v2236 = vld [vmem:[#allocation6 + $0x18] sm:$0xff]
        %v2237 = vld [vmem:[#allocation6 + $0x20] sm:$0xff]
        %v2238 = vld [vmem:[#allocation6 + $0x28] sm:$0xff]
        %v2239 = vld [vmem:[#allocation6 + $0x30] sm:$0xff]
        %v2240 = vld [vmem:[#allocation6 + $0x38] sm:$0xff]
        %v2241 = vld [vmem:[#allocation6 + $0x40] sm:$0xff]
        %v2242 = vld [vmem:[#allocation6 + $0x48] sm:$0xff]
        %v2243 = vld [vmem:[#allocation6 + $0x50] sm:$0xff]
        %v2244 = vld [vmem:[#allocation6 + $0x58] sm:$0xff]
        %v2245 = vld [vmem:[#allocation6 + $0x60] sm:$0xff]
        %v2246 = vld [vmem:[#allocation6 + $0x68] sm:$0xff]
        %v2247 = vld [vmem:[#allocation6 + $0x70] sm:$0xff]
        %v2248 = vld [vmem:[#allocation6 + $0x78] sm:$0xff]
        %v2249 = vld [vmem:[#allocation2] sm:$0xff]
        %v2250 = vld [vmem:[#allocation2 + $0x8] sm:$0xff]
        %v2251 = vld [vmem:[#allocation2 + $0x10] sm:$0xff]
        %v2252 = vld [vmem:[#allocation2 + $0x18] sm:$0xff]
        %v2253 = vld [vmem:[#allocation2 + $0x20] sm:$0xff]
        %v2254 = vld [vmem:[#allocation2 + $0x28] sm:$0xff]
        %v2255 = vld [vmem:[#allocation2 + $0x30] sm:$0xff]
        %v2256 = vld [vmem:[#allocation2 + $0x38] sm:$0xff]
        %v2257 = vld [vmem:[#allocation2 + $0x40] sm:$0xff]
        %v2258 = vld [vmem:[#allocation2 + $0x48] sm:$0xff]
        %v2259 = vld [vmem:[#allocation2 + $0x50] sm:$0xff]
        %v2260 = vld [vmem:[#allocation2 + $0x58] sm:$0xff]
        %v2261 = vld [vmem:[#allocation2 + $0x60] sm:$0xff]
        %v2262 = vld [vmem:[#allocation2 + $0x68] sm:$0xff]
        %v2263 = vld [vmem:[#allocation2 + $0x70] sm:$0xff]
        %v2264 = vld [vmem:[#allocation2 + $0x78] sm:$0xff]
        %v2265 = vld [vmem:[#allocation2 + $0x80] sm:$0xff]
        %v2266 = vld [vmem:[#allocation2 + $0x88] sm:$0xff]
        %v2267 = vld [vmem:[#allocation2 + $0x90] sm:$0xff]
        %v2268 = vld [vmem:[#allocation2 + $0x98] sm:$0xff]
        %v2269 = vld [vmem:[#allocation2 + $0xa0] sm:$0xff]
        %v2270 = vld [vmem:[#allocation2 + $0xa8] sm:$0xff]
        %v2271 = vld [vmem:[#allocation2 + $0xb0] sm:$0xff]
        %v2272 = vld [vmem:[#allocation2 + $0xb8] sm:$0xff]
        %v2273 = vld [vmem:[#allocation2 + $0xc0] sm:$0xff]
        %v2274 = vld [vmem:[#allocation2 + $0xc8] sm:$0xff]
        %v2275 = vld [vmem:[#allocation2 + $0xd0] sm:$0xff]
        %v2276 = vld [vmem:[#allocation2 + $0xd8] sm:$0xff]
        %v2277 = vld [vmem:[#allocation2 + $0xe0] sm:$0xff]
        %v2278 = vld [vmem:[#allocation2 + $0xe8] sm:$0xff]
        %v2279 = vld [vmem:[#allocation2 + $0xf0] sm:$0xff]
        %v2280 = vld [vmem:[#allocation2 + $0xf8] sm:$0xff]
        %v2282 = vsel %vm2173, %v2233, 0
        %v2285 = vsel %vm2173, %v2234, 0
        %v2288 = vsel %vm2173, %v2235, 0
        %v2291 = vsel %vm2173, %v2236, 0
        %v2294 = vsel %vm2173, %v2249, 0
        %v2297 = vsel %vm2173, %v2250, 0
        %v2300 = vsel %vm2173, %v2251, 0
        %v2303 = vsel %vm2173, %v2252, 0
        %v2306 = vsel %vm2173, %v2253, 0
        %v2309 = vsel %vm2173, %v2254, 0
        %v2312 = vsel %vm2173, %v2255, 0
        %v2315 = vsel %vm2173, %v2256, 0
        %2317 = vmatprep.subr.bf16.mxu0 0
        %2318 = vmatpush1.bf16.xpose.msra.mxu0 %v2294
        %2319 = vmatprep.subr.bf16.mxu0 0
        %2320 = vmatpush1.bf16.xpose.msra.mxu0 %v2297
        %2321 = vmatprep.subr.bf16.mxu0 0
        %2322 = vmatpush1.bf16.xpose.msra.mxu0 %v2300
        %2323 = vmatprep.subr.bf16.mxu0 0
        %2324 = vmatpush1.bf16.xpose.msra.mxu0 %v2303
        %2325 = vmatprep.subr.bf16.mxu0 0
        %2326 = vmatpush1.bf16.xpose.msra.mxu0 %v2306
        %2327 = vmatprep.subr.bf16.mxu0 0
        %2328 = vmatpush1.bf16.xpose.msra.mxu0 %v2309
        %2329 = vmatprep.subr.bf16.mxu0 0
        %2330 = vmatpush1.bf16.xpose.msra.mxu0 %v2312
        %2331 = vmatprep.subr.bf16.mxu0 0
        %2332 = vmatpush1.bf16.xpose.msra.mxu0 %v2315
        %2333 = vmatprep.subr.bf16.mxu0 0
        %2334 = vmatpush1.bf16.xpose.msra.mxu0 0
        %2335 = vmatprep.subr.bf16.mxu0 0
        %2336 = vmatpush1.bf16.xpose.msra.mxu0 0
        %2337 = vmatprep.subr.bf16.mxu0 0
        %2338 = vmatpush1.bf16.xpose.msra.mxu0 0
        %2339 = vmatprep.subr.bf16.mxu0 0
        %2340 = vmatpush1.bf16.xpose.msra.mxu0 0
        %2341 = vmatprep.subr.bf16.mxu0 0
        %2342 = vmatpush1.bf16.xpose.msra.mxu0 0
        %2343 = vmatprep.subr.bf16.mxu0 0
        %2344 = vmatpush1.bf16.xpose.msra.mxu0 0
        %2345 = vmatprep.subr.bf16.mxu0 0
        %2346 = vmatpush1.bf16.xpose.msra.mxu0 0
        %2347 = vmatprep.subr.bf16.mxu0 0
        %2348 = vmatpush1.bf16.xpose.msra.mxu0 0
        %2349 = vmatprep.mubr.bf16.mxu0 0
        %2350 = vmatmul.mubr.bf16.gmra.mrb[0].mxu0 %v2282
        %v2351 = vpop.f32.mrb[0].mxu0
        %v2352 = vadd.f32 0.0, %v2351
        %v2353 = vpop.f32.mrb[0].mxu0
        %v2354 = vpop.f32.mrb[0].mxu0
        %v2355 = vadd.f32 0.0, %v2354
        %v2356 = vpop.f32.mrb[0].mxu0
        %2357 = vmatprep.mubr.bf16.mxu0 0
        %2358 = vmatmul.mubr.bf16.gmra.mrb[0].mxu0 %v2285
        %v2359 = vpop.f32.mrb[0].mxu0
        %v2360 = vadd.f32 0.0, %v2359
        %v2361 = vpop.f32.mrb[0].mxu0
        %v2362 = vpop.f32.mrb[0].mxu0
        %v2363 = vadd.f32 0.0, %v2362
        %v2364 = vpop.f32.mrb[0].mxu0
        %2365 = vmatprep.mubr.bf16.mxu0 0
        %2366 = vmatmul.mubr.bf16.gmra.mrb[0].mxu0 %v2288
        %v2367 = vpop.f32.mrb[0].mxu0
        %v2368 = vadd.f32 0.0, %v2367
        %v2369 = vpop.f32.mrb[0].mxu0
        %v2370 = vpop.f32.mrb[0].mxu0
        %v2371 = vadd.f32 0.0, %v2370
        %v2372 = vpop.f32.mrb[0].mxu0
        %2373 = vmatprep.mubr.bf16.mxu0 0
        %2374 = vmatmul.mubr.bf16.gmra.mrb[0].mxu0 %v2291
        %v2375 = vpop.f32.mrb[0].mxu0
        %v2376 = vadd.f32 0.0, %v2375
        %v2377 = vpop.f32.mrb[0].mxu0
        %v2378 = vpop.f32.mrb[0].mxu0
        %v2379 = vadd.f32 0.0, %v2378
        %v2380 = vpop.f32.mrb[0].mxu0
        %2381 = vdwg.mxu0
        %v2383 = vsel %vm2173, %v2237, 0
        %v2386 = vsel %vm2173, %v2238, 0
        %v2389 = vsel %vm2173, %v2239, 0
        %v2392 = vsel %vm2173, %v2240, 0
        %v2395 = vsel %vm2173, %v2257, 0
        %v2398 = vsel %vm2173, %v2258, 0
        %v2401 = vsel %vm2173, %v2259, 0
        %v2404 = vsel %vm2173, %v2260, 0
        %v2407 = vsel %vm2173, %v2261, 0
        %v2410 = vsel %vm2173, %v2262, 0
        %v2413 = vsel %vm2173, %v2263, 0
        %v2416 = vsel %vm2173, %v2264, 0
        %2418 = vmatprep.subr.bf16.mxu0 0
        %2419 = vmatpush1.bf16.xpose.msra.mxu0 %v2395
        %2420 = vmatprep.subr.bf16.mxu0 0
        %2421 = vmatpush1.bf16.xpose.msra.mxu0 %v2398
        %2422 = vmatprep.subr.bf16.mxu0 0
        %2423 = vmatpush1.bf16.xpose.msra.mxu0 %v2401
        %2424 = vmatprep.subr.bf16.mxu0 0
        %2425 = vmatpush1.bf16.xpose.msra.mxu0 %v2404
        %2426 = vmatprep.subr.bf16.mxu0 0
        %2427 = vmatpush1.bf16.xpose.msra.mxu0 %v2407
        %2428 = vmatprep.subr.bf16.mxu0 0
        %2429 = vmatpush1.bf16.xpose.msra.mxu0 %v2410
        %2430 = vmatprep.subr.bf16.mxu0 0
        %2431 = vmatpush1.bf16.xpose.msra.mxu0 %v2413
        %2432 = vmatprep.subr.bf16.mxu0 0
        %2433 = vmatpush1.bf16.xpose.msra.mxu0 %v2416
        %2434 = vmatprep.subr.bf16.mxu0 0
        %2435 = vmatpush1.bf16.xpose.msra.mxu0 0
        %2436 = vmatprep.subr.bf16.mxu0 0
        %2437 = vmatpush1.bf16.xpose.msra.mxu0 0
        %2438 = vmatprep.subr.bf16.mxu0 0
        %2439 = vmatpush1.bf16.xpose.msra.mxu0 0
        %2440 = vmatprep.subr.bf16.mxu0 0
        %2441 = vmatpush1.bf16.xpose.msra.mxu0 0
        %2442 = vmatprep.subr.bf16.mxu0 0
        %2443 = vmatpush1.bf16.xpose.msra.mxu0 0
        %2444 = vmatprep.subr.bf16.mxu0 0
        %2445 = vmatpush1.bf16.xpose.msra.mxu0 0
        %2446 = vmatprep.subr.bf16.mxu0 0
        %2447 = vmatpush1.bf16.xpose.msra.mxu0 0
        %2448 = vmatprep.subr.bf16.mxu0 0
        %2449 = vmatpush1.bf16.xpose.msra.mxu0 0
        %2450 = vmatprep.mubr.bf16.mxu0 0
        %2451 = vmatmul.mubr.bf16.gmra.mrb[0].mxu0 %v2383
        %v2452 = vpop.f32.mrb[0].mxu0
        %v2453 = vadd.f32 0.0, %v2452
        %v2454 = vpop.f32.mrb[0].mxu0
        %v2455 = vpop.f32.mrb[0].mxu0
        %v2456 = vadd.f32 0.0, %v2455
        %v2457 = vpop.f32.mrb[0].mxu0
        %2458 = vmatprep.mubr.bf16.mxu0 0
        %2459 = vmatmul.mubr.bf16.gmra.mrb[0].mxu0 %v2386
        %v2460 = vpop.f32.mrb[0].mxu0
        %v2461 = vadd.f32 0.0, %v2460
        %v2462 = vpop.f32.mrb[0].mxu0
        %v2463 = vpop.f32.mrb[0].mxu0
        %v2464 = vadd.f32 0.0, %v2463
        %v2465 = vpop.f32.mrb[0].mxu0
        %2466 = vmatprep.mubr.bf16.mxu0 0
        %2467 = vmatmul.mubr.bf16.gmra.mrb[0].mxu0 %v2389
        %v2468 = vpop.f32.mrb[0].mxu0
        %v2469 = vadd.f32 0.0, %v2468
        %v2470 = vpop.f32.mrb[0].mxu0
        %v2471 = vpop.f32.mrb[0].mxu0
        %v2472 = vadd.f32 0.0, %v2471
        %v2473 = vpop.f32.mrb[0].mxu0
        %2474 = vmatprep.mubr.bf16.mxu0 0
        %2475 = vmatmul.mubr.bf16.gmra.mrb[0].mxu0 %v2392
        %v2476 = vpop.f32.mrb[0].mxu0
        %v2477 = vadd.f32 0.0, %v2476
        %v2478 = vpop.f32.mrb[0].mxu0
        %v2479 = vpop.f32.mrb[0].mxu0
        %v2480 = vadd.f32 0.0, %v2479
        %v2481 = vpop.f32.mrb[0].mxu0
        %2482 = vdwg.mxu0
        %v2484 = vsel %vm2173, %v2241, 0
        %v2487 = vsel %vm2173, %v2242, 0
        %v2490 = vsel %vm2173, %v2243, 0
        %v2493 = vsel %vm2173, %v2244, 0
        %v2496 = vsel %vm2173, %v2265, 0
        %v2499 = vsel %vm2173, %v2266, 0
        %v2502 = vsel %vm2173, %v2267, 0
        %v2505 = vsel %vm2173, %v2268, 0
        %v2508 = vsel %vm2173, %v2269, 0
        %v2511 = vsel %vm2173, %v2270, 0
        %v2514 = vsel %vm2173, %v2271, 0
        %v2517 = vsel %vm2173, %v2272, 0
        %2519 = vmatprep.subr.bf16.mxu0 0
        %2520 = vmatpush1.bf16.xpose.msra.mxu0 %v2496
        %2521 = vmatprep.subr.bf16.mxu0 0
        %2522 = vmatpush1.bf16.xpose.msra.mxu0 %v2499
        %2523 = vmatprep.subr.bf16.mxu0 0
        %2524 = vmatpush1.bf16.xpose.msra.mxu0 %v2502
        %2525 = vmatprep.subr.bf16.mxu0 0
        %2526 = vmatpush1.bf16.xpose.msra.mxu0 %v2505
        %2527 = vmatprep.subr.bf16.mxu0 0
        %2528 = vmatpush1.bf16.xpose.msra.mxu0 %v2508
        %2529 = vmatprep.subr.bf16.mxu0 0
        %2530 = vmatpush1.bf16.xpose.msra.mxu0 %v2511
        %2531 = vmatprep.subr.bf16.mxu0 0
        %2532 = vmatpush1.bf16.xpose.msra.mxu0 %v2514
        %2533 = vmatprep.subr.bf16.mxu0 0
        %2534 = vmatpush1.bf16.xpose.msra.mxu0 %v2517
        %2535 = vmatprep.subr.bf16.mxu0 0
        %2536 = vmatpush1.bf16.xpose.msra.mxu0 0
        %2537 = vmatprep.subr.bf16.mxu0 0
        %2538 = vmatpush1.bf16.xpose.msra.mxu0 0
        %2539 = vmatprep.subr.bf16.mxu0 0
        %2540 = vmatpush1.bf16.xpose.msra.mxu0 0
        %2541 = vmatprep.subr.bf16.mxu0 0
        %2542 = vmatpush1.bf16.xpose.msra.mxu0 0
        %2543 = vmatprep.subr.bf16.mxu0 0
        %2544 = vmatpush1.bf16.xpose.msra.mxu0 0
        %2545 = vmatprep.subr.bf16.mxu0 0
        %2546 = vmatpush1.bf16.xpose.msra.mxu0 0
        %2547 = vmatprep.subr.bf16.mxu0 0
        %2548 = vmatpush1.bf16.xpose.msra.mxu0 0
        %2549 = vmatprep.subr.bf16.mxu0 0
        %2550 = vmatpush1.bf16.xpose.msra.mxu0 0
        %2551 = vmatprep.mubr.bf16.mxu0 0
        %2552 = vmatmul.mubr.bf16.gmra.mrb[0].mxu0 %v2484
        %v2553 = vpop.f32.mrb[0].mxu0
        %v2554 = vadd.f32 0.0, %v2553
        %v2555 = vpop.f32.mrb[0].mxu0
        %v2556 = vpop.f32.mrb[0].mxu0
        %v2557 = vadd.f32 0.0, %v2556
        %v2558 = vpop.f32.mrb[0].mxu0
        %2559 = vmatprep.mubr.bf16.mxu0 0
        %2560 = vmatmul.mubr.bf16.gmra.mrb[0].mxu0 %v2487
        %v2561 = vpop.f32.mrb[0].mxu0
        %v2562 = vadd.f32 0.0, %v2561
        %v2563 = vpop.f32.mrb[0].mxu0
        %v2564 = vpop.f32.mrb[0].mxu0
        %v2565 = vadd.f32 0.0, %v2564
        %v2566 = vpop.f32.mrb[0].mxu0
        %2567 = vmatprep.mubr.bf16.mxu0 0
        %2568 = vmatmul.mubr.bf16.gmra.mrb[0].mxu0 %v2490
        %v2569 = vpop.f32.mrb[0].mxu0
        %v2570 = vadd.f32 0.0, %v2569
        %v2571 = vpop.f32.mrb[0].mxu0
        %v2572 = vpop.f32.mrb[0].mxu0
        %v2573 = vadd.f32 0.0, %v2572
        %v2574 = vpop.f32.mrb[0].mxu0
        %2575 = vmatprep.mubr.bf16.mxu0 0
        %2576 = vmatmul.mubr.bf16.gmra.mrb[0].mxu0 %v2493
        %v2577 = vpop.f32.mrb[0].mxu0
        %v2578 = vadd.f32 0.0, %v2577
        %v2579 = vpop.f32.mrb[0].mxu0
        %v2580 = vpop.f32.mrb[0].mxu0
        %v2581 = vadd.f32 0.0, %v2580
        %v2582 = vpop.f32.mrb[0].mxu0
        %2583 = vdwg.mxu0
        %v2585 = vsel %vm2173, %v2245, 0
        %v2588 = vsel %vm2173, %v2246, 0
        %v2591 = vsel %vm2173, %v2247, 0
        %v2594 = vsel %vm2173, %v2248, 0
        %v2597 = vsel %vm2173, %v2273, 0
        %v2600 = vsel %vm2173, %v2274, 0
        %v2603 = vsel %vm2173, %v2275, 0
        %v2606 = vsel %vm2173, %v2276, 0
        %v2609 = vsel %vm2173, %v2277, 0
        %v2612 = vsel %vm2173, %v2278, 0
        %v2615 = vsel %vm2173, %v2279, 0
        %v2618 = vsel %vm2173, %v2280, 0
        %2620 = vmatprep.subr.bf16.mxu0 0
        %2621 = vmatpush1.bf16.xpose.msra.mxu0 %v2597
        %2622 = vmatprep.subr.bf16.mxu0 0
        %2623 = vmatpush1.bf16.xpose.msra.mxu0 %v2600
        %2624 = vmatprep.subr.bf16.mxu0 0
        %2625 = vmatpush1.bf16.xpose.msra.mxu0 %v2603
        %2626 = vmatprep.subr.bf16.mxu0 0
        %2627 = vmatpush1.bf16.xpose.msra.mxu0 %v2606
        %2628 = vmatprep.subr.bf16.mxu0 0
        %2629 = vmatpush1.bf16.xpose.msra.mxu0 %v2609
        %2630 = vmatprep.subr.bf16.mxu0 0
        %2631 = vmatpush1.bf16.xpose.msra.mxu0 %v2612
        %2632 = vmatprep.subr.bf16.mxu0 0
        %2633 = vmatpush1.bf16.xpose.msra.mxu0 %v2615
        %2634 = vmatprep.subr.bf16.mxu0 0
        %2635 = vmatpush1.bf16.xpose.msra.mxu0 %v2618
        %2636 = vmatprep.subr.bf16.mxu0 0
        %2637 = vmatpush1.bf16.xpose.msra.mxu0 0
        %2638 = vmatprep.subr.bf16.mxu0 0
        %2639 = vmatpush1.bf16.xpose.msra.mxu0 0
        %2640 = vmatprep.subr.bf16.mxu0 0
        %2641 = vmatpush1.bf16.xpose.msra.mxu0 0
        %2642 = vmatprep.subr.bf16.mxu0 0
        %2643 = vmatpush1.bf16.xpose.msra.mxu0 0
        %2644 = vmatprep.subr.bf16.mxu0 0
        %2645 = vmatpush1.bf16.xpose.msra.mxu0 0
        %2646 = vmatprep.subr.bf16.mxu0 0
        %2647 = vmatpush1.bf16.xpose.msra.mxu0 0
        %2648 = vmatprep.subr.bf16.mxu0 0
        %2649 = vmatpush1.bf16.xpose.msra.mxu0 0
        %2650 = vmatprep.subr.bf16.mxu0 0
        %2651 = vmatpush1.bf16.xpose.msra.mxu0 0
        %2652 = vmatprep.mubr.bf16.mxu0 0
        %2653 = vmatmul.mubr.bf16.gmra.mrb[0].mxu0 %v2585
        %v2654 = vpop.f32.mrb[0].mxu0
        %v2655 = vadd.f32 0.0, %v2654
        %v2656 = vpop.f32.mrb[0].mxu0
        %v2657 = vpop.f32.mrb[0].mxu0
        %v2658 = vadd.f32 0.0, %v2657
        %v2659 = vpop.f32.mrb[0].mxu0
        %2660 = vmatprep.mubr.bf16.mxu0 0
        %2661 = vmatmul.mubr.bf16.gmra.mrb[0].mxu0 %v2588
        %v2662 = vpop.f32.mrb[0].mxu0
        %v2663 = vadd.f32 0.0, %v2662
        %v2664 = vpop.f32.mrb[0].mxu0
        %v2665 = vpop.f32.mrb[0].mxu0
        %v2666 = vadd.f32 0.0, %v2665
        %v2667 = vpop.f32.mrb[0].mxu0
        %2668 = vmatprep.mubr.bf16.mxu0 0
        %2669 = vmatmul.mubr.bf16.gmra.mrb[0].mxu0 %v2591
        %v2670 = vpop.f32.mrb[0].mxu0
        %v2671 = vadd.f32 0.0, %v2670
        %v2672 = vpop.f32.mrb[0].mxu0
        %v2673 = vpop.f32.mrb[0].mxu0
        %v2674 = vadd.f32 0.0, %v2673
        %v2675 = vpop.f32.mrb[0].mxu0
        %2676 = vmatprep.mubr.bf16.mxu0 0
        %2677 = vmatmul.mubr.bf16.gmra.mrb[0].mxu0 %v2594
        %v2678 = vpop.f32.mrb[0].mxu0
        %v2679 = vadd.f32 0.0, %v2678
        %v2680 = vpop.f32.mrb[0].mxu0
        %v2681 = vpop.f32.mrb[0].mxu0
        %v2682 = vadd.f32 0.0, %v2681
        %v2683 = vpop.f32.mrb[0].mxu0
        %2684 = vdwg.mxu0
        %vm2685 = vnez %v1989
        %vm2686 = vnez %v1990
        %v2687 = vsel %vm2685, 16843009, 0
        %v2688 = vsel %vm2686, 16843009, 0
        %v2689 = vunpack.c.0.s8 %v2687
        %v2690 = vunpack.c.1.s8 %v2687
        %v2691 = vunpack.c.2.s8 %v2687
        %v2692 = vunpack.c.3.s8 %v2687
        %v2693 = vunpack.c.0.s8 %v2688
        %v2694 = vunpack.c.1.s8 %v2688
        %v2695 = vunpack.c.2.s8 %v2688
        %v2696 = vunpack.c.3.s8 %v2688
        %v2697 = vpack.c.b16 %v2689, %v2689
        %v2698 = vpack.c.b8 %v2697, %v2697
        %v2699 = vpack.c.b16 %v2690, %v2690
        %v2700 = vpack.c.b8 %v2699, %v2699
        %v2701 = vpack.c.b16 %v2691, %v2691
        %v2702 = vpack.c.b8 %v2701, %v2701
        %v2703 = vpack.c.b16 %v2692, %v2692
        %v2704 = vpack.c.b8 %v2703, %v2703
        %v2705 = vpack.c.b16 %v2693, %v2693
        %v2706 = vpack.c.b8 %v2705, %v2705
        %v2707 = vpack.c.b16 %v2694, %v2694
        %v2708 = vpack.c.b8 %v2707, %v2707
        %v2709 = vpack.c.b16 %v2695, %v2695
        %v2710 = vpack.c.b8 %v2709, %v2709
        %v2711 = vpack.c.b16 %v2696, %v2696
        %v2712 = vpack.c.b8 %v2711, %v2711
        %vm2713 = vnez %v2698
        %vm2714 = vnez %v2700
        %vm2715 = vnez %v2702
        %vm2716 = vnez %v2704
        %vm2717 = vnez %v2706
        %vm2718 = vnez %v2708
        %vm2719 = vnez %v2710
        %vm2720 = vnez %v2712
        %v2721 = vsel %vm2713, 16843009, 0
        %v2722 = vsel %vm2714, 16843009, 0
        %v2723 = vsel %vm2715, 16843009, 0
        %v2724 = vsel %vm2716, 16843009, 0
        %v2725 = vsel %vm2717, 16843009, 0
        %v2726 = vsel %vm2718, 16843009, 0
        %v2727 = vsel %vm2719, 16843009, 0
        %v2728 = vsel %vm2720, 16843009, 0
        %v2729 = vunpack.c.0.s8 %v2721
        %v2730 = vunpack.c.0.s8 %v2722
        %v2731 = vunpack.c.0.s8 %v2723
        %v2732 = vunpack.c.0.s8 %v2724
        %v2733 = vunpack.c.0.s8 %v2725
        %v2734 = vunpack.c.0.s8 %v2726
        %v2735 = vunpack.c.0.s8 %v2727
        %v2736 = vunpack.c.0.s8 %v2728
        %vm2737 = vcmp.ne.s32.totalorder %v2729, 0
        %vm2738 = vcmp.ne.s32.totalorder %v2730, 0
        %vm2739 = vcmp.ne.s32.totalorder %v2731, 0
        %vm2740 = vcmp.ne.s32.totalorder %v2732, 0
        %vm2741 = vcmp.ne.s32.totalorder %v2733, 0
        %vm2742 = vcmp.ne.s32.totalorder %v2734, 0
        %vm2743 = vcmp.ne.s32.totalorder %v2735, 0
        %vm2744 = vcmp.ne.s32.totalorder %v2736, 0
        %v2745 = vsel %vm2737, 1, 0
        %v2746 = vsel %vm2738, 1, 0
        %v2747 = vsel %vm2739, 1, 0
        %v2748 = vsel %vm2740, 1, 0
        %v2749 = vsel %vm2741, 1, 0
        %v2750 = vsel %vm2742, 1, 0
        %v2751 = vsel %vm2743, 1, 0
        %v2752 = vsel %vm2744, 1, 0
        %vm2753 = vcmp.eq.s32.totalorder %v2745, 1
        %vm2754 = vcmp.eq.s32.totalorder %v2746, 1
        %vm2755 = vcmp.eq.s32.totalorder %v2747, 1
        %vm2756 = vcmp.eq.s32.totalorder %v2748, 1
        %vm2757 = vcmp.eq.s32.totalorder %v2749, 1
        %vm2758 = vcmp.eq.s32.totalorder %v2750, 1
        %vm2759 = vcmp.eq.s32.totalorder %v2751, 1
        %vm2760 = vcmp.eq.s32.totalorder %v2752, 1
        %v2761 = vsel %vm2753, %v2352, -1e+09
        %v2762 = vsel %vm2754, %v2355, -1e+09
        %v2763 = vsel %vm2755, %v2360, -1e+09
        %v2764 = vsel %vm2756, %v2363, -1e+09
        %v2765 = vsel %vm2757, %v2368, -1e+09
        %v2766 = vsel %vm2758, %v2371, -1e+09
        %v2767 = vsel %vm2759, %v2376, -1e+09
        %v2768 = vsel %vm2760, %v2379, -1e+09
        %v2769 = vsel %vm2753, %v2453, -1e+09
        %v2770 = vsel %vm2754, %v2456, -1e+09
        %v2771 = vsel %vm2755, %v2461, -1e+09
        %v2772 = vsel %vm2756, %v2464, -1e+09
        %v2773 = vsel %vm2757, %v2469, -1e+09
        %v2774 = vsel %vm2758, %v2472, -1e+09
        %v2775 = vsel %vm2759, %v2477, -1e+09
        %v2776 = vsel %vm2760, %v2480, -1e+09
        %v2777 = vsel %vm2753, %v2554, -1e+09
        %v2778 = vsel %vm2754, %v2557, -1e+09
        %v2779 = vsel %vm2755, %v2562, -1e+09
        %v2780 = vsel %vm2756, %v2565, -1e+09
        %v2781 = vsel %vm2757, %v2570, -1e+09
        %v2782 = vsel %vm2758, %v2573, -1e+09
        %v2783 = vsel %vm2759, %v2578, -1e+09
        %v2784 = vsel %vm2760, %v2581, -1e+09
        %v2785 = vsel %vm2753, %v2655, -1e+09
        %v2786 = vsel %vm2754, %v2658, -1e+09
        %v2787 = vsel %vm2755, %v2663, -1e+09
        %v2788 = vsel %vm2756, %v2666, -1e+09
        %v2789 = vsel %vm2757, %v2671, -1e+09
        %v2790 = vsel %vm2758, %v2674, -1e+09
        %v2791 = vsel %vm2759, %v2679, -1e+09
        %v2792 = vsel %vm2760, %v2682, -1e+09
        %2793 = vmax.xlane.f32.xlu0 %v2761
        %v2794 = vpop.xlane.xlu0 %2793
        %2795 = vmax.xlane.f32.xlu0 %v2762
        %v2796 = vpop.xlane.xlu0 %2795
        %2797 = vmax.xlane.f32.xlu0 %v2763
        %v2798 = vpop.xlane.xlu0 %2797
        %2799 = vmax.xlane.f32.xlu0 %v2764
        %v2800 = vpop.xlane.xlu0 %2799
        %2801 = vmax.xlane.f32.xlu0 %v2765
        %v2802 = vpop.xlane.xlu0 %2801
        %2803 = vmax.xlane.f32.xlu0 %v2766
        %v2804 = vpop.xlane.xlu0 %2803
        %2805 = vmax.xlane.f32.xlu0 %v2767
        %v2806 = vpop.xlane.xlu0 %2805
        %2807 = vmax.xlane.f32.xlu0 %v2768
        %v2808 = vpop.xlane.xlu0 %2807
        %2809 = vmax.xlane.f32.xlu0 %v2769
        %v2810 = vpop.xlane.xlu0 %2809
        %2811 = vmax.xlane.f32.xlu0 %v2770
        %v2812 = vpop.xlane.xlu0 %2811
        %2813 = vmax.xlane.f32.xlu0 %v2771
        %v2814 = vpop.xlane.xlu0 %2813
        %2815 = vmax.xlane.f32.xlu0 %v2772
        %v2816 = vpop.xlane.xlu0 %2815
        %2817 = vmax.xlane.f32.xlu0 %v2773
        %v2818 = vpop.xlane.xlu0 %2817
        %2819 = vmax.xlane.f32.xlu0 %v2774
        %v2820 = vpop.xlane.xlu0 %2819
        %2821 = vmax.xlane.f32.xlu0 %v2775
        %v2822 = vpop.xlane.xlu0 %2821
        %2823 = vmax.xlane.f32.xlu0 %v2776
        %v2824 = vpop.xlane.xlu0 %2823
        %2825 = vmax.xlane.f32.xlu0 %v2777
        %v2826 = vpop.xlane.xlu0 %2825
        %2827 = vmax.xlane.f32.xlu0 %v2778
        %v2828 = vpop.xlane.xlu0 %2827
        %2829 = vmax.xlane.f32.xlu0 %v2779
        %v2830 = vpop.xlane.xlu0 %2829
        %2831 = vmax.xlane.f32.xlu0 %v2780
        %v2832 = vpop.xlane.xlu0 %2831
        %2833 = vmax.xlane.f32.xlu0 %v2781
        %v2834 = vpop.xlane.xlu0 %2833
        %2835 = vmax.xlane.f32.xlu0 %v2782
        %v2836 = vpop.xlane.xlu0 %2835
        %2837 = vmax.xlane.f32.xlu0 %v2783
        %v2838 = vpop.xlane.xlu0 %2837
        %2839 = vmax.xlane.f32.xlu0 %v2784
        %v2840 = vpop.xlane.xlu0 %2839
        %2841 = vmax.xlane.f32.xlu0 %v2785
        %v2842 = vpop.xlane.xlu0 %2841
        %2843 = vmax.xlane.f32.xlu0 %v2786
        %v2844 = vpop.xlane.xlu0 %2843
        %2845 = vmax.xlane.f32.xlu0 %v2787
        %v2846 = vpop.xlane.xlu0 %2845
        %2847 = vmax.xlane.f32.xlu0 %v2788
        %v2848 = vpop.xlane.xlu0 %2847
        %2849 = vmax.xlane.f32.xlu0 %v2789
        %v2850 = vpop.xlane.xlu0 %2849
        %2851 = vmax.xlane.f32.xlu0 %v2790
        %v2852 = vpop.xlane.xlu0 %2851
        %2853 = vmax.xlane.f32.xlu0 %v2791
        %v2854 = vpop.xlane.xlu0 %2853
        %2855 = vmax.xlane.f32.xlu0 %v2792
        %v2856 = vpop.xlane.xlu0 %2855
        %v2857 = vsub.f32 %v2761, %v2794
        %v2858 = vsub.f32 %v2762, %v2796
        %v2859 = vsub.f32 %v2763, %v2798
        %v2860 = vsub.f32 %v2764, %v2800
        %v2861 = vsub.f32 %v2765, %v2802
        %v2862 = vsub.f32 %v2766, %v2804
        %v2863 = vsub.f32 %v2767, %v2806
        %v2864 = vsub.f32 %v2768, %v2808
        %v2865 = vsub.f32 %v2769, %v2810
        %v2866 = vsub.f32 %v2770, %v2812
        %v2867 = vsub.f32 %v2771, %v2814
        %v2868 = vsub.f32 %v2772, %v2816
        %v2869 = vsub.f32 %v2773, %v2818
        %v2870 = vsub.f32 %v2774, %v2820
        %v2871 = vsub.f32 %v2775, %v2822
        %v2872 = vsub.f32 %v2776, %v2824
        %v2873 = vsub.f32 %v2777, %v2826
        %v2874 = vsub.f32 %v2778, %v2828
        %v2875 = vsub.f32 %v2779, %v2830
        %v2876 = vsub.f32 %v2780, %v2832
        %v2877 = vsub.f32 %v2781, %v2834
        %v2878 = vsub.f32 %v2782, %v2836
        %v2879 = vsub.f32 %v2783, %v2838
        %v2880 = vsub.f32 %v2784, %v2840
        %v2881 = vsub.f32 %v2785, %v2842
        %v2882 = vsub.f32 %v2786, %v2844
        %v2883 = vsub.f32 %v2787, %v2846
        %v2884 = vsub.f32 %v2788, %v2848
        %v2885 = vsub.f32 %v2789, %v2850
        %v2886 = vsub.f32 %v2790, %v2852
        %v2887 = vsub.f32 %v2791, %v2854
        %v2888 = vsub.f32 %v2792, %v2856
        %v2889 = vmul.f32 %v2857, 1.442695
        %v2890 = vpow.pop %v2889
        %v2891 = vmul.f32 %v2858, 1.442695
        %v2892 = vpow.pop %v2891
        %v2893 = vmul.f32 %v2859, 1.442695
        %v2894 = vpow.pop %v2893
        %v2895 = vmul.f32 %v2860, 1.442695
        %v2896 = vpow.pop %v2895
        %v2897 = vmul.f32 %v2861, 1.442695
        %v2898 = vpow.pop %v2897
        %v2899 = vmul.f32 %v2862, 1.442695
        %v2900 = vpow.pop %v2899
        %v2901 = vmul.f32 %v2863, 1.442695
        %v2902 = vpow.pop %v2901
        %v2903 = vmul.f32 %v2864, 1.442695
        %v2904 = vpow.pop %v2903
        %v2905 = vmul.f32 %v2865, 1.442695
        %v2906 = vpow.pop %v2905
        %v2907 = vmul.f32 %v2866, 1.442695
        %v2908 = vpow.pop %v2907
        %v2909 = vmul.f32 %v2867, 1.442695
        %v2910 = vpow.pop %v2909
        %v2911 = vmul.f32 %v2868, 1.442695
        %v2912 = vpow.pop %v2911
        %v2913 = vmul.f32 %v2869, 1.442695
        %v2914 = vpow.pop %v2913
        %v2915 = vmul.f32 %v2870, 1.442695
        %v2916 = vpow.pop %v2915
        %v2917 = vmul.f32 %v2871, 1.442695
        %v2918 = vpow.pop %v2917
        %v2919 = vmul.f32 %v2872, 1.442695
        %v2920 = vpow.pop %v2919
        %v2921 = vmul.f32 %v2873, 1.442695
        %v2922 = vpow.pop %v2921
        %v2923 = vmul.f32 %v2874, 1.442695
        %v2924 = vpow.pop %v2923
        %v2925 = vmul.f32 %v2875, 1.442695
        %v2926 = vpow.pop %v2925
        %v2927 = vmul.f32 %v2876, 1.442695
        %v2928 = vpow.pop %v2927
        %v2929 = vmul.f32 %v2877, 1.442695
        %v2930 = vpow.pop %v2929
        %v2931 = vmul.f32 %v2878, 1.442695
        %v2932 = vpow.pop %v2931
        %v2933 = vmul.f32 %v2879, 1.442695
        %v2934 = vpow.pop %v2933
        %v2935 = vmul.f32 %v2880, 1.442695
        %v2936 = vpow.pop %v2935
        %v2937 = vmul.f32 %v2881, 1.442695
        %v2938 = vpow.pop %v2937
        %v2939 = vmul.f32 %v2882, 1.442695
        %v2940 = vpow.pop %v2939
        %v2941 = vmul.f32 %v2883, 1.442695
        %v2942 = vpow.pop %v2941
        %v2943 = vmul.f32 %v2884, 1.442695
        %v2944 = vpow.pop %v2943
        %v2945 = vmul.f32 %v2885, 1.442695
        %v2946 = vpow.pop %v2945
        %v2947 = vmul.f32 %v2886, 1.442695
        %v2948 = vpow.pop %v2947
        %v2949 = vmul.f32 %v2887, 1.442695
        %v2950 = vpow.pop %v2949
        %v2951 = vmul.f32 %v2888, 1.442695
        %v2952 = vpow.pop %v2951
        %2953 = vadd.xlane.f32.xlu0 %v2890
        %v2954 = vpop.xlane.xlu0 %2953
        %2955 = vadd.xlane.f32.xlu0 %v2892
        %v2956 = vpop.xlane.xlu0 %2955
        %2957 = vadd.xlane.f32.xlu0 %v2894
        %v2958 = vpop.xlane.xlu0 %2957
        %2959 = vadd.xlane.f32.xlu0 %v2896
        %v2960 = vpop.xlane.xlu0 %2959
        %2961 = vadd.xlane.f32.xlu0 %v2898
        %v2962 = vpop.xlane.xlu0 %2961
        %2963 = vadd.xlane.f32.xlu0 %v2900
        %v2964 = vpop.xlane.xlu0 %2963
        %2965 = vadd.xlane.f32.xlu0 %v2902
        %v2966 = vpop.xlane.xlu0 %2965
        %2967 = vadd.xlane.f32.xlu0 %v2904
        %v2968 = vpop.xlane.xlu0 %2967
        %2969 = vadd.xlane.f32.xlu0 %v2906
        %v2970 = vpop.xlane.xlu0 %2969
        %2971 = vadd.xlane.f32.xlu0 %v2908
        %v2972 = vpop.xlane.xlu0 %2971
        %2973 = vadd.xlane.f32.xlu0 %v2910
        %v2974 = vpop.xlane.xlu0 %2973
        %2975 = vadd.xlane.f32.xlu0 %v2912
        %v2976 = vpop.xlane.xlu0 %2975
        %2977 = vadd.xlane.f32.xlu0 %v2914
        %v2978 = vpop.xlane.xlu0 %2977
        %2979 = vadd.xlane.f32.xlu0 %v2916
        %v2980 = vpop.xlane.xlu0 %2979
        %2981 = vadd.xlane.f32.xlu0 %v2918
        %v2982 = vpop.xlane.xlu0 %2981
        %2983 = vadd.xlane.f32.xlu0 %v2920
        %v2984 = vpop.xlane.xlu0 %2983
        %2985 = vadd.xlane.f32.xlu0 %v2922
        %v2986 = vpop.xlane.xlu0 %2985
        %2987 = vadd.xlane.f32.xlu0 %v2924
        %v2988 = vpop.xlane.xlu0 %2987
        %2989 = vadd.xlane.f32.xlu0 %v2926
        %v2990 = vpop.xlane.xlu0 %2989
        %2991 = vadd.xlane.f32.xlu0 %v2928
        %v2992 = vpop.xlane.xlu0 %2991
        %2993 = vadd.xlane.f32.xlu0 %v2930
        %v2994 = vpop.xlane.xlu0 %2993
        %2995 = vadd.xlane.f32.xlu0 %v2932
        %v2996 = vpop.xlane.xlu0 %2995
        %2997 = vadd.xlane.f32.xlu0 %v2934
        %v2998 = vpop.xlane.xlu0 %2997
        %2999 = vadd.xlane.f32.xlu0 %v2936
        %v3000 = vpop.xlane.xlu0 %2999
        %3001 = vadd.xlane.f32.xlu0 %v2938
        %v3002 = vpop.xlane.xlu0 %3001
        %3003 = vadd.xlane.f32.xlu0 %v2940
        %v3004 = vpop.xlane.xlu0 %3003
        %3005 = vadd.xlane.f32.xlu0 %v2942
        %v3006 = vpop.xlane.xlu0 %3005
        %3007 = vadd.xlane.f32.xlu0 %v2944
        %v3008 = vpop.xlane.xlu0 %3007
        %3009 = vadd.xlane.f32.xlu0 %v2946
        %v3010 = vpop.xlane.xlu0 %3009
        %3011 = vadd.xlane.f32.xlu0 %v2948
        %v3012 = vpop.xlane.xlu0 %3011
        %3013 = vadd.xlane.f32.xlu0 %v2950
        %v3014 = vpop.xlane.xlu0 %3013
        %3015 = vadd.xlane.f32.xlu0 %v2952
        %v3016 = vpop.xlane.xlu0 %3015
        %v3017 = vrcp.pop %v2954
        %v3018 = vrcp.pop %v2956
        %v3019 = vrcp.pop %v2958
        %v3020 = vrcp.pop %v2960
        %v3021 = vrcp.pop %v2962
        %v3022 = vrcp.pop %v2964
        %v3023 = vrcp.pop %v2966
        %v3024 = vrcp.pop %v2968
        %v3025 = vrcp.pop %v2970
        %v3026 = vrcp.pop %v2972
        %v3027 = vrcp.pop %v2974
        %v3028 = vrcp.pop %v2976
        %v3029 = vrcp.pop %v2978
        %v3030 = vrcp.pop %v2980
        %v3031 = vrcp.pop %v2982
        %v3032 = vrcp.pop %v2984
        %v3033 = vrcp.pop %v2986
        %v3034 = vrcp.pop %v2988
        %v3035 = vrcp.pop %v2990
        %v3036 = vrcp.pop %v2992
        %v3037 = vrcp.pop %v2994
        %v3038 = vrcp.pop %v2996
        %v3039 = vrcp.pop %v2998
        %v3040 = vrcp.pop %v3000
        %v3041 = vrcp.pop %v3002
        %v3042 = vrcp.pop %v3004
        %v3043 = vrcp.pop %v3006
        %v3044 = vrcp.pop %v3008
        %v3045 = vrcp.pop %v3010
        %v3046 = vrcp.pop %v3012
        %v3047 = vrcp.pop %v3014
        %v3048 = vrcp.pop %v3016
        %v3049 = vmul.f32 %v2890, %v3017
        %v3050 = vmul.f32 %v2892, %v3018
        %v3051 = vmul.f32 %v2894, %v3019
        %v3052 = vmul.f32 %v2896, %v3020
        %v3053 = vmul.f32 %v2898, %v3021
        %v3054 = vmul.f32 %v2900, %v3022
        %v3055 = vmul.f32 %v2902, %v3023
        %v3056 = vmul.f32 %v2904, %v3024
        %v3057 = vmul.f32 %v2906, %v3025
        %v3058 = vmul.f32 %v2908, %v3026
        %v3059 = vmul.f32 %v2910, %v3027
        %v3060 = vmul.f32 %v2912, %v3028
        %v3061 = vmul.f32 %v2914, %v3029
        %v3062 = vmul.f32 %v2916, %v3030
        %v3063 = vmul.f32 %v2918, %v3031
        %v3064 = vmul.f32 %v2920, %v3032
        %v3065 = vmul.f32 %v2922, %v3033
        %v3066 = vmul.f32 %v2924, %v3034
        %v3067 = vmul.f32 %v2926, %v3035
        %v3068 = vmul.f32 %v2928, %v3036
        %v3069 = vmul.f32 %v2930, %v3037
        %v3070 = vmul.f32 %v2932, %v3038
        %v3071 = vmul.f32 %v2934, %v3039
        %v3072 = vmul.f32 %v2936, %v3040
        %v3073 = vmul.f32 %v2938, %v3041
        %v3074 = vmul.f32 %v2940, %v3042
        %v3075 = vmul.f32 %v2942, %v3043
        %v3076 = vmul.f32 %v2944, %v3044
        %v3077 = vmul.f32 %v2946, %v3045
        %v3078 = vmul.f32 %v2948, %v3046
        %v3079 = vmul.f32 %v2950, %v3047
        %v3080 = vmul.f32 %v2952, %v3048
        %v3081 = vpack.c.bf16 %v3050, %v3049
        %v3082 = vpack.c.bf16 %v3052, %v3051
        %v3083 = vpack.c.bf16 %v3054, %v3053
        %v3084 = vpack.c.bf16 %v3056, %v3055
        %v3085 = vpack.c.bf16 %v3058, %v3057
        %v3086 = vpack.c.bf16 %v3060, %v3059
        %v3087 = vpack.c.bf16 %v3062, %v3061
        %v3088 = vpack.c.bf16 %v3064, %v3063
        %v3089 = vpack.c.bf16 %v3066, %v3065
        %v3090 = vpack.c.bf16 %v3068, %v3067
        %v3091 = vpack.c.bf16 %v3070, %v3069
        %v3092 = vpack.c.bf16 %v3072, %v3071
        %v3093 = vpack.c.bf16 %v3074, %v3073
        %v3094 = vpack.c.bf16 %v3076, %v3075
        %v3095 = vpack.c.bf16 %v3078, %v3077
        %v3096 = vpack.c.bf16 %v3080, %v3079
        %v3097 = vld [vmem:[#allocation3] sm:$0xff]
        %v3098 = vld [vmem:[#allocation3 + $0x8] sm:$0xff]
        %v3099 = vld [vmem:[#allocation3 + $0x10] sm:$0xff]
        %v3100 = vld [vmem:[#allocation3 + $0x18] sm:$0xff]
        %v3101 = vld [vmem:[#allocation3 + $0x20] sm:$0xff]
        %v3102 = vld [vmem:[#allocation3 + $0x28] sm:$0xff]
        %v3103 = vld [vmem:[#allocation3 + $0x30] sm:$0xff]
        %v3104 = vld [vmem:[#allocation3 + $0x38] sm:$0xff]
        %v3105 = vld [vmem:[#allocation3 + $0x40] sm:$0xff]
        %v3106 = vld [vmem:[#allocation3 + $0x48] sm:$0xff]
        %v3107 = vld [vmem:[#allocation3 + $0x50] sm:$0xff]
        %v3108 = vld [vmem:[#allocation3 + $0x58] sm:$0xff]
        %v3109 = vld [vmem:[#allocation3 + $0x60] sm:$0xff]
        %v3110 = vld [vmem:[#allocation3 + $0x68] sm:$0xff]
        %v3111 = vld [vmem:[#allocation3 + $0x70] sm:$0xff]
        %v3112 = vld [vmem:[#allocation3 + $0x78] sm:$0xff]
        %v3113 = vld [vmem:[#allocation3 + $0x80] sm:$0xff]
        %v3114 = vld [vmem:[#allocation3 + $0x88] sm:$0xff]
        %v3115 = vld [vmem:[#allocation3 + $0x90] sm:$0xff]
        %v3116 = vld [vmem:[#allocation3 + $0x98] sm:$0xff]
        %v3117 = vld [vmem:[#allocation3 + $0xa0] sm:$0xff]
        %v3118 = vld [vmem:[#allocation3 + $0xa8] sm:$0xff]
        %v3119 = vld [vmem:[#allocation3 + $0xb0] sm:$0xff]
        %v3120 = vld [vmem:[#allocation3 + $0xb8] sm:$0xff]
        %v3121 = vld [vmem:[#allocation3 + $0xc0] sm:$0xff]
        %v3122 = vld [vmem:[#allocation3 + $0xc8] sm:$0xff]
        %v3123 = vld [vmem:[#allocation3 + $0xd0] sm:$0xff]
        %v3124 = vld [vmem:[#allocation3 + $0xd8] sm:$0xff]
        %v3125 = vld [vmem:[#allocation3 + $0xe0] sm:$0xff]
        %v3126 = vld [vmem:[#allocation3 + $0xe8] sm:$0xff]
        %v3127 = vld [vmem:[#allocation3 + $0xf0] sm:$0xff]
        %v3128 = vld [vmem:[#allocation3 + $0xf8] sm:$0xff]
        %3129 = vmatprep.subr.bf16.mxu0 0
        %3130 = vmatpush1.bf16.msra.mxu0 %v3097
        %3131 = vmatprep.subr.bf16.mxu0 0
        %3132 = vmatpush1.bf16.msra.mxu0 %v3098
        %3133 = vmatprep.subr.bf16.mxu0 0
        %3134 = vmatpush1.bf16.msra.mxu0 %v3099
        %3135 = vmatprep.subr.bf16.mxu0 0
        %3136 = vmatpush1.bf16.msra.mxu0 %v3100
        %3137 = vmatprep.subr.bf16.mxu0 0
        %3138 = vmatpush1.bf16.msra.mxu0 %v3101
        %3139 = vmatprep.subr.bf16.mxu0 0
        %3140 = vmatpush1.bf16.msra.mxu0 %v3102
        %3141 = vmatprep.subr.bf16.mxu0 0
        %3142 = vmatpush1.bf16.msra.mxu0 %v3103
        %3143 = vmatprep.subr.bf16.mxu0 0
        %3144 = vmatpush1.bf16.msra.mxu0 %v3104
        %3145 = vmatprep.subr.bf16.mxu0 0
        %3146 = vmatpush1.bf16.msra.mxu0 0
        %3147 = vmatprep.subr.bf16.mxu0 0
        %3148 = vmatpush1.bf16.msra.mxu0 0
        %3149 = vmatprep.subr.bf16.mxu0 0
        %3150 = vmatpush1.bf16.msra.mxu0 0
        %3151 = vmatprep.subr.bf16.mxu0 0
        %3152 = vmatpush1.bf16.msra.mxu0 0
        %3153 = vmatprep.subr.bf16.mxu0 0
        %3154 = vmatpush1.bf16.msra.mxu0 0
        %3155 = vmatprep.subr.bf16.mxu0 0
        %3156 = vmatpush1.bf16.msra.mxu0 0
        %3157 = vmatprep.subr.bf16.mxu0 0
        %3158 = vmatpush1.bf16.msra.mxu0 0
        %3159 = vmatprep.subr.bf16.mxu0 0
        %3160 = vmatpush1.bf16.msra.mxu0 0
        %3161 = vmatprep.mubr.bf16.mxu0 0
        %3162 = vmatmul.mubr.bf16.gmra.mrb[0].mxu0 %v3081
        %v3163 = vpop.f32.mrb[0].mxu0
        %v3164 = vadd.f32 0.0, %v3163
        %v3165 = vpop.f32.mrb[0].mxu0
        %v3166 = vpop.f32.mrb[0].mxu0
        %v3167 = vadd.f32 0.0, %v3166
        %v3168 = vpop.f32.mrb[0].mxu0
        %3169 = vmatprep.mubr.bf16.mxu0 0
        %3170 = vmatmul.mubr.bf16.gmra.mrb[0].mxu0 %v3082
        %v3171 = vpop.f32.mrb[0].mxu0
        %v3172 = vadd.f32 0.0, %v3171
        %v3173 = vpop.f32.mrb[0].mxu0
        %v3174 = vpop.f32.mrb[0].mxu0
        %v3175 = vadd.f32 0.0, %v3174
        %v3176 = vpop.f32.mrb[0].mxu0
        %3177 = vmatprep.mubr.bf16.mxu0 0
        %3178 = vmatmul.mubr.bf16.gmra.mrb[0].mxu0 %v3083
        %v3179 = vpop.f32.mrb[0].mxu0
        %v3180 = vadd.f32 0.0, %v3179
        %v3181 = vpop.f32.mrb[0].mxu0
        %v3182 = vpop.f32.mrb[0].mxu0
        %v3183 = vadd.f32 0.0, %v3182
        %v3184 = vpop.f32.mrb[0].mxu0
        %3185 = vmatprep.mubr.bf16.mxu0 0
        %3186 = vmatmul.mubr.bf16.gmra.mrb[0].mxu0 %v3084
        %v3187 = vpop.f32.mrb[0].mxu0
        %v3188 = vadd.f32 0.0, %v3187
        %v3189 = vpop.f32.mrb[0].mxu0
        %v3190 = vpop.f32.mrb[0].mxu0
        %v3191 = vadd.f32 0.0, %v3190
        %v3192 = vpop.f32.mrb[0].mxu0
        %3193 = vdwg.mxu0
        %3194 = vmatprep.subr.bf16.mxu0 0
        %3195 = vmatpush1.bf16.msra.mxu0 %v3105
        %3196 = vmatprep.subr.bf16.mxu0 0
        %3197 = vmatpush1.bf16.msra.mxu0 %v3106
        %3198 = vmatprep.subr.bf16.mxu0 0
        %3199 = vmatpush1.bf16.msra.mxu0 %v3107
        %3200 = vmatprep.subr.bf16.mxu0 0
        %3201 = vmatpush1.bf16.msra.mxu0 %v3108
        %3202 = vmatprep.subr.bf16.mxu0 0
        %3203 = vmatpush1.bf16.msra.mxu0 %v3109
        %3204 = vmatprep.subr.bf16.mxu0 0
        %3205 = vmatpush1.bf16.msra.mxu0 %v3110
        %3206 = vmatprep.subr.bf16.mxu0 0
        %3207 = vmatpush1.bf16.msra.mxu0 %v3111
        %3208 = vmatprep.subr.bf16.mxu0 0
        %3209 = vmatpush1.bf16.msra.mxu0 %v3112
        %3210 = vmatprep.subr.bf16.mxu0 0
        %3211 = vmatpush1.bf16.msra.mxu0 0
        %3212 = vmatprep.subr.bf16.mxu0 0
        %3213 = vmatpush1.bf16.msra.mxu0 0
        %3214 = vmatprep.subr.bf16.mxu0 0
        %3215 = vmatpush1.bf16.msra.mxu0 0
        %3216 = vmatprep.subr.bf16.mxu0 0
        %3217 = vmatpush1.bf16.msra.mxu0 0
        %3218 = vmatprep.subr.bf16.mxu0 0
        %3219 = vmatpush1.bf16.msra.mxu0 0
        %3220 = vmatprep.subr.bf16.mxu0 0
        %3221 = vmatpush1.bf16.msra.mxu0 0
        %3222 = vmatprep.subr.bf16.mxu0 0
        %3223 = vmatpush1.bf16.msra.mxu0 0
        %3224 = vmatprep.subr.bf16.mxu0 0
        %3225 = vmatpush1.bf16.msra.mxu0 0
        %3226 = vmatprep.mubr.bf16.mxu0 0
        %3227 = vmatmul.mubr.bf16.gmra.mrb[0].mxu0 %v3085
        %v3228 = vpop.f32.mrb[0].mxu0
        %v3229 = vadd.f32 0.0, %v3228
        %v3230 = vpop.f32.mrb[0].mxu0
        %v3231 = vpop.f32.mrb[0].mxu0
        %v3232 = vadd.f32 0.0, %v3231
        %v3233 = vpop.f32.mrb[0].mxu0
        %3234 = vmatprep.mubr.bf16.mxu0 0
        %3235 = vmatmul.mubr.bf16.gmra.mrb[0].mxu0 %v3086
        %v3236 = vpop.f32.mrb[0].mxu0
        %v3237 = vadd.f32 0.0, %v3236
        %v3238 = vpop.f32.mrb[0].mxu0
        %v3239 = vpop.f32.mrb[0].mxu0
        %v3240 = vadd.f32 0.0, %v3239
        %v3241 = vpop.f32.mrb[0].mxu0
        %3242 = vmatprep.mubr.bf16.mxu0 0
        %3243 = vmatmul.mubr.bf16.gmra.mrb[0].mxu0 %v3087
        %v3244 = vpop.f32.mrb[0].mxu0
        %v3245 = vadd.f32 0.0, %v3244
        %v3246 = vpop.f32.mrb[0].mxu0
        %v3247 = vpop.f32.mrb[0].mxu0
        %v3248 = vadd.f32 0.0, %v3247
        %v3249 = vpop.f32.mrb[0].mxu0
        %3250 = vmatprep.mubr.bf16.mxu0 0
        %3251 = vmatmul.mubr.bf16.gmra.mrb[0].mxu0 %v3088
        %v3252 = vpop.f32.mrb[0].mxu0
        %v3253 = vadd.f32 0.0, %v3252
        %v3254 = vpop.f32.mrb[0].mxu0
        %v3255 = vpop.f32.mrb[0].mxu0
        %v3256 = vadd.f32 0.0, %v3255
        %v3257 = vpop.f32.mrb[0].mxu0
        %3258 = vdwg.mxu0
        %3259 = vmatprep.subr.bf16.mxu0 0
        %3260 = vmatpush1.bf16.msra.mxu0 %v3113
        %3261 = vmatprep.subr.bf16.mxu0 0
        %3262 = vmatpush1.bf16.msra.mxu0 %v3114
        %3263 = vmatprep.subr.bf16.mxu0 0
        %3264 = vmatpush1.bf16.msra.mxu0 %v3115
        %3265 = vmatprep.subr.bf16.mxu0 0
        %3266 = vmatpush1.bf16.msra.mxu0 %v3116
        %3267 = vmatprep.subr.bf16.mxu0 0
        %3268 = vmatpush1.bf16.msra.mxu0 %v3117
        %3269 = vmatprep.subr.bf16.mxu0 0
        %3270 = vmatpush1.bf16.msra.mxu0 %v3118
        %3271 = vmatprep.subr.bf16.mxu0 0
        %3272 = vmatpush1.bf16.msra.mxu0 %v3119
        %3273 = vmatprep.subr.bf16.mxu0 0
        %3274 = vmatpush1.bf16.msra.mxu0 %v3120
        %3275 = vmatprep.subr.bf16.mxu0 0
        %3276 = vmatpush1.bf16.msra.mxu0 0
        %3277 = vmatprep.subr.bf16.mxu0 0
        %3278 = vmatpush1.bf16.msra.mxu0 0
        %3279 = vmatprep.subr.bf16.mxu0 0
        %3280 = vmatpush1.bf16.msra.mxu0 0
        %3281 = vmatprep.subr.bf16.mxu0 0
        %3282 = vmatpush1.bf16.msra.mxu0 0
        %3283 = vmatprep.subr.bf16.mxu0 0
        %3284 = vmatpush1.bf16.msra.mxu0 0
        %3285 = vmatprep.subr.bf16.mxu0 0
        %3286 = vmatpush1.bf16.msra.mxu0 0
        %3287 = vmatprep.subr.bf16.mxu0 0
        %3288 = vmatpush1.bf16.msra.mxu0 0
        %3289 = vmatprep.subr.bf16.mxu0 0
        %3290 = vmatpush1.bf16.msra.mxu0 0
        %3291 = vmatprep.mubr.bf16.mxu0 0
        %3292 = vmatmul.mubr.bf16.gmra.mrb[0].mxu0 %v3089
        %v3293 = vpop.f32.mrb[0].mxu0
        %v3294 = vadd.f32 0.0, %v3293
        %v3295 = vpop.f32.mrb[0].mxu0
        %v3296 = vpop.f32.mrb[0].mxu0
        %v3297 = vadd.f32 0.0, %v3296
        %v3298 = vpop.f32.mrb[0].mxu0
        %3299 = vmatprep.mubr.bf16.mxu0 0
        %3300 = vmatmul.mubr.bf16.gmra.mrb[0].mxu0 %v3090
        %v3301 = vpop.f32.mrb[0].mxu0
        %v3302 = vadd.f32 0.0, %v3301
        %v3303 = vpop.f32.mrb[0].mxu0
        %v3304 = vpop.f32.mrb[0].mxu0
        %v3305 = vadd.f32 0.0, %v3304
        %v3306 = vpop.f32.mrb[0].mxu0
        %3307 = vmatprep.mubr.bf16.mxu0 0
        %3308 = vmatmul.mubr.bf16.gmra.mrb[0].mxu0 %v3091
        %v3309 = vpop.f32.mrb[0].mxu0
        %v3310 = vadd.f32 0.0, %v3309
        %v3311 = vpop.f32.mrb[0].mxu0
        %v3312 = vpop.f32.mrb[0].mxu0
        %v3313 = vadd.f32 0.0, %v3312
        %v3314 = vpop.f32.mrb[0].mxu0
        %3315 = vmatprep.mubr.bf16.mxu0 0
        %3316 = vmatmul.mubr.bf16.gmra.mrb[0].mxu0 %v3092
        %v3317 = vpop.f32.mrb[0].mxu0
        %v3318 = vadd.f32 0.0, %v3317
        %v3319 = vpop.f32.mrb[0].mxu0
        %v3320 = vpop.f32.mrb[0].mxu0
        %v3321 = vadd.f32 0.0, %v3320
        %v3322 = vpop.f32.mrb[0].mxu0
        %3323 = vdwg.mxu0
        %3324 = vmatprep.subr.bf16.mxu0 0
        %3325 = vmatpush1.bf16.msra.mxu0 %v3121
        %3326 = vmatprep.subr.bf16.mxu0 0
        %3327 = vmatpush1.bf16.msra.mxu0 %v3122
        %3328 = vmatprep.subr.bf16.mxu0 0
        %3329 = vmatpush1.bf16.msra.mxu0 %v3123
        %3330 = vmatprep.subr.bf16.mxu0 0
        %3331 = vmatpush1.bf16.msra.mxu0 %v3124
        %3332 = vmatprep.subr.bf16.mxu0 0
        %3333 = vmatpush1.bf16.msra.mxu0 %v3125
        %3334 = vmatprep.subr.bf16.mxu0 0
        %3335 = vmatpush1.bf16.msra.mxu0 %v3126
        %3336 = vmatprep.subr.bf16.mxu0 0
        %3337 = vmatpush1.bf16.msra.mxu0 %v3127
        %3338 = vmatprep.subr.bf16.mxu0 0
        %3339 = vmatpush1.bf16.msra.mxu0 %v3128
        %3340 = vmatprep.subr.bf16.mxu0 0
        %3341 = vmatpush1.bf16.msra.mxu0 0
        %3342 = vmatprep.subr.bf16.mxu0 0
        %3343 = vmatpush1.bf16.msra.mxu0 0
        %3344 = vmatprep.subr.bf16.mxu0 0
        %3345 = vmatpush1.bf16.msra.mxu0 0
        %3346 = vmatprep.subr.bf16.mxu0 0
        %3347 = vmatpush1.bf16.msra.mxu0 0
        %3348 = vmatprep.subr.bf16.mxu0 0
        %3349 = vmatpush1.bf16.msra.mxu0 0
        %3350 = vmatprep.subr.bf16.mxu0 0
        %3351 = vmatpush1.bf16.msra.mxu0 0
        %3352 = vmatprep.subr.bf16.mxu0 0
        %3353 = vmatpush1.bf16.msra.mxu0 0
        %3354 = vmatprep.subr.bf16.mxu0 0
        %3355 = vmatpush1.bf16.msra.mxu0 0
        %3356 = vmatprep.mubr.bf16.mxu0 0
        %3357 = vmatmul.mubr.bf16.gmra.mrb[0].mxu0 %v3093
        %v3358 = vpop.f32.mrb[0].mxu0
        %v3359 = vadd.f32 0.0, %v3358
        %v3360 = vpop.f32.mrb[0].mxu0
        %v3361 = vpop.f32.mrb[0].mxu0
        %v3362 = vadd.f32 0.0, %v3361
        %v3363 = vpop.f32.mrb[0].mxu0
        %3364 = vmatprep.mubr.bf16.mxu0 0
        %3365 = vmatmul.mubr.bf16.gmra.mrb[0].mxu0 %v3094
        %v3366 = vpop.f32.mrb[0].mxu0
        %v3367 = vadd.f32 0.0, %v3366
        %v3368 = vpop.f32.mrb[0].mxu0
        %v3369 = vpop.f32.mrb[0].mxu0
        %v3370 = vadd.f32 0.0, %v3369
        %v3371 = vpop.f32.mrb[0].mxu0
        %3372 = vmatprep.mubr.bf16.mxu0 0
        %3373 = vmatmul.mubr.bf16.gmra.mrb[0].mxu0 %v3095
        %v3374 = vpop.f32.mrb[0].mxu0
        %v3375 = vadd.f32 0.0, %v3374
        %v3376 = vpop.f32.mrb[0].mxu0
        %v3377 = vpop.f32.mrb[0].mxu0
        %v3378 = vadd.f32 0.0, %v3377
        %v3379 = vpop.f32.mrb[0].mxu0
        %3380 = vmatprep.mubr.bf16.mxu0 0
        %3381 = vmatmul.mubr.bf16.gmra.mrb[0].mxu0 %v3096
        %v3382 = vpop.f32.mrb[0].mxu0
        %v3383 = vadd.f32 0.0, %v3382
        %v3384 = vpop.f32.mrb[0].mxu0
        %v3385 = vpop.f32.mrb[0].mxu0
        %v3386 = vadd.f32 0.0, %v3385
        %v3387 = vpop.f32.mrb[0].mxu0
        %3388 = vdwg.mxu0
        %v3389 = vpack.c.bf16 %v3167, %v3164
        %v3390 = vpack.c.bf16 %v3175, %v3172
        %v3391 = vpack.c.bf16 %v3183, %v3180
        %v3392 = vpack.c.bf16 %v3191, %v3188
        %v3393 = vpack.c.bf16 %v3232, %v3229
        %v3394 = vpack.c.bf16 %v3240, %v3237
        %v3395 = vpack.c.bf16 %v3248, %v3245
        %v3396 = vpack.c.bf16 %v3256, %v3253
        %v3397 = vpack.c.bf16 %v3297, %v3294
        %v3398 = vpack.c.bf16 %v3305, %v3302
        %v3399 = vpack.c.bf16 %v3313, %v3310
        %v3400 = vpack.c.bf16 %v3321, %v3318
        %v3401 = vpack.c.bf16 %v3362, %v3359
        %v3402 = vpack.c.bf16 %v3370, %v3367
        %v3403 = vpack.c.bf16 %v3378, %v3375
        %v3404 = vpack.c.bf16 %v3386, %v3383
        %3405 = vst.msk [vmem:[#allocation7] sm:$0xff] %vm2173, %v3389
        %3406 = vst.msk [vmem:[#allocation7 + $0x8] sm:$0xff] %vm2173, %v3390
        %3407 = vst.msk [vmem:[#allocation7 + $0x10] sm:$0xff] %vm2173, %v3391
        %3408 = vst.msk [vmem:[#allocation7 + $0x18] sm:$0xff] %vm2173, %v3392
        %3413 = vrot.lane.b32.xlu0 %v3393, 32
        %v3414 = vpop.permute.xlu0 %3413
        %3415 = vrot.lane.b32.xlu0 %v3394, 32
        %v3416 = vpop.permute.xlu0 %3415
        %3417 = vrot.lane.b32.xlu0 %v3395, 32
        %v3418 = vpop.permute.xlu0 %3417
        %3419 = vrot.lane.b32.xlu0 %v3396, 32
        %v3420 = vpop.permute.xlu0 %3419
        %vm3425 = vcmask 523520
        %3426 = vst.msk [vmem:[#allocation7] sm:$0xff] %vm3425, %v3414
        %3427 = vst.msk [vmem:[#allocation7 + $0x8] sm:$0xff] %vm3425, %v3416
        %3428 = vst.msk [vmem:[#allocation7 + $0x10] sm:$0xff] %vm3425, %v3418
        %3429 = vst.msk [vmem:[#allocation7 + $0x18] sm:$0xff] %vm3425, %v3420
        %3434 = vrot.lane.b32.xlu0 %v3397, 64
        %v3435 = vpop.permute.xlu0 %3434
        %3436 = vrot.lane.b32.xlu0 %v3398, 64
        %v3437 = vpop.permute.xlu0 %3436
        %3438 = vrot.lane.b32.xlu0 %v3399, 64
        %v3439 = vpop.permute.xlu0 %3438
        %3440 = vrot.lane.b32.xlu0 %v3400, 64
        %v3441 = vpop.permute.xlu0 %3440
        %vm3446 = vcmask 785920
        %3447 = vst.msk [vmem:[#allocation7] sm:$0xff] %vm3446, %v3435
        %3448 = vst.msk [vmem:[#allocation7 + $0x8] sm:$0xff] %vm3446, %v3437
        %3449 = vst.msk [vmem:[#allocation7 + $0x10] sm:$0xff] %vm3446, %v3439
        %3450 = vst.msk [vmem:[#allocation7 + $0x18] sm:$0xff] %vm3446, %v3441
        %3455 = vrot.lane.b32.xlu0 %v3401, 96
        %v3456 = vpop.permute.xlu0 %3455
        %3457 = vrot.lane.b32.xlu0 %v3402, 96
        %v3458 = vpop.permute.xlu0 %3457
        %3459 = vrot.lane.b32.xlu0 %v3403, 96
        %v3460 = vpop.permute.xlu0 %3459
        %3461 = vrot.lane.b32.xlu0 %v3404, 96
        %v3462 = vpop.permute.xlu0 %3461
        %vm3467 = vcmask 1048320
        %3468 = vst.msk [vmem:[#allocation7] sm:$0xff] %vm3467, %v3456
        %3469 = vst.msk [vmem:[#allocation7 + $0x8] sm:$0xff] %vm3467, %v3458
        %3470 = vst.msk [vmem:[#allocation7 + $0x10] sm:$0xff] %vm3467, %v3460
        %3471 = vst.msk [vmem:[#allocation7 + $0x18] sm:$0xff] %vm3467, %v3462
        %v3472 = vld [vmem:[#allocation7] sm:$0xff]
        %v3473 = vld [vmem:[#allocation7 + $0x8] sm:$0xff]
        %v3474 = vld [vmem:[#allocation7 + $0x10] sm:$0xff]
        %v3475 = vld [vmem:[#allocation7 + $0x18] sm:$0xff]
        %v3476 = vld [vmem:[#allocation19] sm:$0xf]
        %v3477 = vld [vmem:[#allocation19 + $0x4] sm:$0xf]
        %v3478 = vld [vmem:[#allocation19 + $0x8] sm:$0xf]
        %v3479 = vld [vmem:[#allocation19 + $0xc] sm:$0xf]
        %v3480 = vld [vmem:[#allocation19 + $0x10] sm:$0xf]
        %v3481 = vld [vmem:[#allocation19 + $0x14] sm:$0xf]
        %v3482 = vld [vmem:[#allocation19 + $0x18] sm:$0xf]
        %v3483 = vld [vmem:[#allocation19 + $0x1c] sm:$0xf]
        %v3484 = vld [vmem:[#allocation19 + $0x20] sm:$0xf]
        %v3485 = vld [vmem:[#allocation19 + $0x24] sm:$0xf]
        %v3486 = vld [vmem:[#allocation19 + $0x28] sm:$0xf]
        %v3487 = vld [vmem:[#allocation19 + $0x2c] sm:$0xf]
        %v3488 = vld [vmem:[#allocation19 + $0x30] sm:$0xf]
        %v3489 = vld [vmem:[#allocation19 + $0x34] sm:$0xf]
        %v3490 = vld [vmem:[#allocation19 + $0x38] sm:$0xf]
        %v3491 = vld [vmem:[#allocation19 + $0x3c] sm:$0xf]
        %v3492 = vld [vmem:[%s9] sm:$0x1]
        %v3494 = vlaneseq
        %v3495 = vshrl.u32 %v3494, 7
        %v3496 = vsub.s32 0, %v3495
        %v3497 = vrot.slane %v3492, %v3496
        %v3515 = vunpack.c.l.b16 %v3476
        %v3516 = vunpack.c.l.b16 %v3477
        %v3517 = vunpack.c.l.b16 %v3478
        %v3518 = vunpack.c.l.b16 %v3479
        %v3519 = vunpack.c.l.b16 %v3480
        %v3520 = vunpack.c.l.b16 %v3481
        %v3521 = vunpack.c.l.b16 %v3482
        %v3522 = vunpack.c.l.b16 %v3483
        %v3523 = vunpack.c.l.b16 %v3484
        %v3524 = vunpack.c.l.b16 %v3485
        %v3525 = vunpack.c.l.b16 %v3486
        %v3526 = vunpack.c.l.b16 %v3487
        %v3527 = vunpack.c.l.b16 %v3488
        %v3528 = vunpack.c.l.b16 %v3489
        %v3529 = vunpack.c.l.b16 %v3490
        %v3530 = vunpack.c.l.b16 %v3491
        %v3531 = vpack.c.b16 %v3516, %v3515
        %v3532 = vpack.c.b16 %v3518, %v3517
        %v3533 = vpack.c.b16 %v3520, %v3519
        %v3534 = vpack.c.b16 %v3522, %v3521
        %v3535 = vpack.c.b16 %v3524, %v3523
        %v3536 = vpack.c.b16 %v3526, %v3525
        %v3537 = vpack.c.b16 %v3528, %v3527
        %v3538 = vpack.c.b16 %v3530, %v3529
        %3547 = vmatprep.subr.bf16.mxu0 0
        %3548 = vmatpush1.bf16.msra.mxu0 %v3531
        %3549 = vmatprep.subr.bf16.mxu0 0
        %3550 = vmatpush1.bf16.msra.mxu0 %v3532
        %3551 = vmatprep.subr.bf16.mxu0 0
        %3552 = vmatpush1.bf16.msra.mxu0 %v3533
        %3553 = vmatprep.subr.bf16.mxu0 0
        %3554 = vmatpush1.bf16.msra.mxu0 %v3534
        %3555 = vmatprep.subr.bf16.mxu0 0
        %3556 = vmatpush1.bf16.msra.mxu0 %v3535
        %3557 = vmatprep.subr.bf16.mxu0 0
        %3558 = vmatpush1.bf16.msra.mxu0 %v3536
        %3559 = vmatprep.subr.bf16.mxu0 0
        %3560 = vmatpush1.bf16.msra.mxu0 %v3537
        %3561 = vmatprep.subr.bf16.mxu0 0
        %3562 = vmatpush1.bf16.msra.mxu0 %v3538
        %3563 = vmatprep.subr.bf16.mxu0 0
        %3564 = vmatpush1.bf16.msra.mxu0 0
        %3565 = vmatprep.subr.bf16.mxu0 0
        %3566 = vmatpush1.bf16.msra.mxu0 0
        %3567 = vmatprep.subr.bf16.mxu0 0
        %3568 = vmatpush1.bf16.msra.mxu0 0
        %3569 = vmatprep.subr.bf16.mxu0 0
        %3570 = vmatpush1.bf16.msra.mxu0 0
        %3571 = vmatprep.subr.bf16.mxu0 0
        %3572 = vmatpush1.bf16.msra.mxu0 0
        %3573 = vmatprep.subr.bf16.mxu0 0
        %3574 = vmatpush1.bf16.msra.mxu0 0
        %3575 = vmatprep.subr.bf16.mxu0 0
        %3576 = vmatpush1.bf16.msra.mxu0 0
        %3577 = vmatprep.subr.bf16.mxu0 0
        %3578 = vmatpush1.bf16.msra.mxu0 0
        %3579 = vmatprep.mubr.bf16.mxu0 0
        %3580 = vmatmul.mubr.bf16.gmra.mrb[0].mxu0 %v3472
        %v3581 = vpop.f32.mrb[0].mxu0
        %v3582 = vadd.f32 %v3497, %v3581
        %v3583 = vpop.f32.mrb[0].mxu0
        %v3584 = vpop.f32.mrb[0].mxu0
        %v3585 = vadd.f32 %v3497, %v3584
        %v3586 = vpop.f32.mrb[0].mxu0
        %3587 = vmatprep.mubr.bf16.mxu0 0
        %3588 = vmatmul.mubr.bf16.gmra.mrb[0].mxu0 %v3473
        %v3589 = vpop.f32.mrb[0].mxu0
        %v3590 = vadd.f32 %v3497, %v3589
        %v3591 = vpop.f32.mrb[0].mxu0
        %v3592 = vpop.f32.mrb[0].mxu0
        %v3593 = vadd.f32 %v3497, %v3592
        %v3594 = vpop.f32.mrb[0].mxu0
        %3595 = vmatprep.mubr.bf16.mxu0 0
        %3596 = vmatmul.mubr.bf16.gmra.mrb[0].mxu0 %v3474
        %v3597 = vpop.f32.mrb[0].mxu0
        %v3598 = vadd.f32 %v3497, %v3597
        %v3599 = vpop.f32.mrb[0].mxu0
        %v3600 = vpop.f32.mrb[0].mxu0
        %v3601 = vadd.f32 %v3497, %v3600
        %v3602 = vpop.f32.mrb[0].mxu0
        %3603 = vmatprep.mubr.bf16.mxu0 0
        %3604 = vmatmul.mubr.bf16.gmra.mrb[0].mxu0 %v3475
        %v3605 = vpop.f32.mrb[0].mxu0
        %v3606 = vadd.f32 %v3497, %v3605
        %v3607 = vpop.f32.mrb[0].mxu0
        %v3608 = vpop.f32.mrb[0].mxu0
        %v3609 = vadd.f32 %v3497, %v3608
        %v3610 = vpop.f32.mrb[0].mxu0
        %3611 = vdwg.mxu0
        %v3612 = vadd.f32 %v1993, %v3582
        %v3613 = vadd.f32 %v1994, %v3585
        %v3614 = vadd.f32 %v1995, %v3590
        %v3615 = vadd.f32 %v1996, %v3593
        %v3616 = vadd.f32 %v1997, %v3598
        %v3617 = vadd.f32 %v1998, %v3601
        %v3618 = vadd.f32 %v1999, %v3606
        %v3619 = vadd.f32 %v2000, %v3609
        %v3620 = vpack.c.bf16 %v3613, %v3612
        %v3621 = vpack.c.bf16 %v3615, %v3614
        %v3622 = vpack.c.bf16 %v3617, %v3616
        %v3623 = vpack.c.bf16 %v3619, %v3618
        %v3624 = vld [vmem:[#allocation20] sm:$0xf]
        %v3625 = vld [vmem:[#allocation20 + $0x4] sm:$0xf]
        %v3626 = vld [vmem:[#allocation20 + $0x8] sm:$0xf]
        %v3627 = vld [vmem:[#allocation20 + $0xc] sm:$0xf]
        %v3628 = vld [vmem:[#allocation20 + $0x10] sm:$0xf]
        %v3629 = vld [vmem:[#allocation20 + $0x14] sm:$0xf]
        %v3630 = vld [vmem:[#allocation20 + $0x18] sm:$0xf]
        %v3631 = vld [vmem:[#allocation20 + $0x1c] sm:$0xf]
        %v3632 = vld [vmem:[#allocation20 + $0x20] sm:$0xf]
        %v3633 = vld [vmem:[#allocation20 + $0x24] sm:$0xf]
        %v3634 = vld [vmem:[#allocation20 + $0x28] sm:$0xf]
        %v3635 = vld [vmem:[#allocation20 + $0x2c] sm:$0xf]
        %v3636 = vld [vmem:[#allocation20 + $0x30] sm:$0xf]
        %v3637 = vld [vmem:[#allocation20 + $0x34] sm:$0xf]
        %v3638 = vld [vmem:[#allocation20 + $0x38] sm:$0xf]
        %v3639 = vld [vmem:[#allocation20 + $0x3c] sm:$0xf]
        %v3640 = vld [vmem:[%s11] sm:$0x1]
        %v3642 = vlaneseq
        %v3643 = vshrl.u32 %v3642, 7
        %v3644 = vsub.s32 0, %v3643
        %v3645 = vrot.slane %v3640, %v3644
        %v3663 = vunpack.c.l.b16 %v3624
        %v3664 = vunpack.c.l.b16 %v3625
        %v3665 = vunpack.c.l.b16 %v3626
        %v3666 = vunpack.c.l.b16 %v3627
        %v3667 = vunpack.c.l.b16 %v3628
        %v3668 = vunpack.c.l.b16 %v3629
        %v3669 = vunpack.c.l.b16 %v3630
        %v3670 = vunpack.c.l.b16 %v3631
        %v3671 = vunpack.c.l.b16 %v3632
        %v3672 = vunpack.c.l.b16 %v3633
        %v3673 = vunpack.c.l.b16 %v3634
        %v3674 = vunpack.c.l.b16 %v3635
        %v3675 = vunpack.c.l.b16 %v3636
        %v3676 = vunpack.c.l.b16 %v3637
        %v3677 = vunpack.c.l.b16 %v3638
        %v3678 = vunpack.c.l.b16 %v3639
        %v3679 = vpack.c.b16 %v3664, %v3663
        %v3680 = vpack.c.b16 %v3666, %v3665
        %v3681 = vpack.c.b16 %v3668, %v3667
        %v3682 = vpack.c.b16 %v3670, %v3669
        %v3683 = vpack.c.b16 %v3672, %v3671
        %v3684 = vpack.c.b16 %v3674, %v3673
        %v3685 = vpack.c.b16 %v3676, %v3675
        %v3686 = vpack.c.b16 %v3678, %v3677
        %3695 = vmatprep.subr.bf16.mxu0 0
        %3696 = vmatpush1.bf16.msra.mxu0 %v3679
        %3697 = vmatprep.subr.bf16.mxu0 0
        %3698 = vmatpush1.bf16.msra.mxu0 %v3680
        %3699 = vmatprep.subr.bf16.mxu0 0
        %3700 = vmatpush1.bf16.msra.mxu0 %v3681
        %3701 = vmatprep.subr.bf16.mxu0 0
        %3702 = vmatpush1.bf16.msra.mxu0 %v3682
        %3703 = vmatprep.subr.bf16.mxu0 0
        %3704 = vmatpush1.bf16.msra.mxu0 %v3683
        %3705 = vmatprep.subr.bf16.mxu0 0
        %3706 = vmatpush1.bf16.msra.mxu0 %v3684
        %3707 = vmatprep.subr.bf16.mxu0 0
        %3708 = vmatpush1.bf16.msra.mxu0 %v3685
        %3709 = vmatprep.subr.bf16.mxu0 0
        %3710 = vmatpush1.bf16.msra.mxu0 %v3686
        %3711 = vmatprep.subr.bf16.mxu0 0
        %3712 = vmatpush1.bf16.msra.mxu0 0
        %3713 = vmatprep.subr.bf16.mxu0 0
        %3714 = vmatpush1.bf16.msra.mxu0 0
        %3715 = vmatprep.subr.bf16.mxu0 0
        %3716 = vmatpush1.bf16.msra.mxu0 0
        %3717 = vmatprep.subr.bf16.mxu0 0
        %3718 = vmatpush1.bf16.msra.mxu0 0
        %3719 = vmatprep.subr.bf16.mxu0 0
        %3720 = vmatpush1.bf16.msra.mxu0 0
        %3721 = vmatprep.subr.bf16.mxu0 0
        %3722 = vmatpush1.bf16.msra.mxu0 0
        %3723 = vmatprep.subr.bf16.mxu0 0
        %3724 = vmatpush1.bf16.msra.mxu0 0
        %3725 = vmatprep.subr.bf16.mxu0 0
        %3726 = vmatpush1.bf16.msra.mxu0 0
        %3727 = vmatprep.mubr.bf16.mxu0 0
        %3728 = vmatmul.mubr.bf16.gmra.mrb[0].mxu0 %v3620
        %v3729 = vpop.f32.mrb[0].mxu0
        %v3730 = vadd.f32 %v3645, %v3729
        %v3731 = vpop.f32.mrb[0].mxu0
        %v3732 = vpop.f32.mrb[0].mxu0
        %v3733 = vadd.f32 %v3645, %v3732
        %v3734 = vpop.f32.mrb[0].mxu0
        %3735 = vmatprep.mubr.bf16.mxu0 0
        %3736 = vmatmul.mubr.bf16.gmra.mrb[0].mxu0 %v3621
        %v3737 = vpop.f32.mrb[0].mxu0
        %v3738 = vadd.f32 %v3645, %v3737
        %v3739 = vpop.f32.mrb[0].mxu0
        %v3740 = vpop.f32.mrb[0].mxu0
        %v3741 = vadd.f32 %v3645, %v3740
        %v3742 = vpop.f32.mrb[0].mxu0
        %3743 = vmatprep.mubr.bf16.mxu0 0
        %3744 = vmatmul.mubr.bf16.gmra.mrb[0].mxu0 %v3622
        %v3745 = vpop.f32.mrb[0].mxu0
        %v3746 = vadd.f32 %v3645, %v3745
        %v3747 = vpop.f32.mrb[0].mxu0
        %v3748 = vpop.f32.mrb[0].mxu0
        %v3749 = vadd.f32 %v3645, %v3748
        %v3750 = vpop.f32.mrb[0].mxu0
        %3751 = vmatprep.mubr.bf16.mxu0 0
        %3752 = vmatmul.mubr.bf16.gmra.mrb[0].mxu0 %v3623
        %v3753 = vpop.f32.mrb[0].mxu0
        %v3754 = vadd.f32 %v3645, %v3753
        %v3755 = vpop.f32.mrb[0].mxu0
        %v3756 = vpop.f32.mrb[0].mxu0
        %v3757 = vadd.f32 %v3645, %v3756
        %v3758 = vpop.f32.mrb[0].mxu0
        %3759 = vdwg.mxu0
        %v3760 = vmul.f32 %v3730, 0.17677669
        %v3761 = vmul.f32 %v3733, 0.17677669
        %v3762 = vmul.f32 %v3738, 0.17677669
        %v3763 = vmul.f32 %v3741, 0.17677669
        %v3764 = vmul.f32 %v3746, 0.17677669
        %v3765 = vmul.f32 %v3749, 0.17677669
        %v3766 = vmul.f32 %v3754, 0.17677669
        %v3767 = vmul.f32 %v3757, 0.17677669
        %v3768 = vpack.c.bf16 %v3761, %v3760
        %v3769 = vpack.c.bf16 %v3763, %v3762
        %v3770 = vpack.c.bf16 %v3765, %v3764
        %v3771 = vpack.c.bf16 %v3767, %v3766
        %3772 = vst.msk [vmem:[#allocation6] sm:$0xff] %vm2173, %v3768
        %3773 = vst.msk [vmem:[#allocation6 + $0x8] sm:$0xff] %vm2173, %v3769
        %3774 = vst.msk [vmem:[#allocation6 + $0x10] sm:$0xff] %vm2173, %v3770
        %3775 = vst.msk [vmem:[#allocation6 + $0x18] sm:$0xff] %vm2173, %v3771
        %3780 = vrot.lane.b32.xlu0 %v3768, 96
        %v3781 = vpop.permute.xlu0 %3780
        %3782 = vrot.lane.b32.xlu0 %v3769, 96
        %v3783 = vpop.permute.xlu0 %3782
        %3784 = vrot.lane.b32.xlu0 %v3770, 96
        %v3785 = vpop.permute.xlu0 %3784
        %3786 = vrot.lane.b32.xlu0 %v3771, 96
        %v3787 = vpop.permute.xlu0 %3786
        %3792 = vst.msk [vmem:[%s2194] sm:$0xff] %vm2173, %v3781
        %3793 = vst.msk [vmem:[%s2194 + $0x8] sm:$0xff] %vm2173, %v3783
        %3794 = vst.msk [vmem:[%s2194 + $0x10] sm:$0xff] %vm2173, %v3785
        %3795 = vst.msk [vmem:[%s2194 + $0x18] sm:$0xff] %vm2173, %v3787
        %3796 = vrot.lane.b32.xlu0 %v3768, 64
        %v3797 = vpop.permute.xlu0 %3796
        %3798 = vrot.lane.b32.xlu0 %v3769, 64
        %v3799 = vpop.permute.xlu0 %3798
        %3800 = vrot.lane.b32.xlu0 %v3770, 64
        %v3801 = vpop.permute.xlu0 %3800
        %3802 = vrot.lane.b32.xlu0 %v3771, 64
        %v3803 = vpop.permute.xlu0 %3802
        %3808 = vst.msk [vmem:[%s2211] sm:$0xff] %vm2173, %v3797
        %3809 = vst.msk [vmem:[%s2211 + $0x8] sm:$0xff] %vm2173, %v3799
        %3810 = vst.msk [vmem:[%s2211 + $0x10] sm:$0xff] %vm2173, %v3801
        %3811 = vst.msk [vmem:[%s2211 + $0x18] sm:$0xff] %vm2173, %v3803
        %3812 = vrot.lane.b32.xlu0 %v3768, 32
        %v3813 = vpop.permute.xlu0 %3812
        %3814 = vrot.lane.b32.xlu0 %v3769, 32
        %v3815 = vpop.permute.xlu0 %3814
        %3816 = vrot.lane.b32.xlu0 %v3770, 32
        %v3817 = vpop.permute.xlu0 %3816
        %3818 = vrot.lane.b32.xlu0 %v3771, 32
        %v3819 = vpop.permute.xlu0 %3818
        %3824 = vst.msk [vmem:[%s2228] sm:$0xff] %vm2173, %v3813
        %3825 = vst.msk [vmem:[%s2228 + $0x8] sm:$0xff] %vm2173, %v3815
        %3826 = vst.msk [vmem:[%s2228 + $0x10] sm:$0xff] %vm2173, %v3817
        %3827 = vst.msk [vmem:[%s2228 + $0x18] sm:$0xff] %vm2173, %v3819
        %v3828 = vld [vmem:[#allocation6] sm:$0xff]
        %v3829 = vld [vmem:[#allocation6 + $0x8] sm:$0xff]
        %v3830 = vld [vmem:[#allocation6 + $0x10] sm:$0xff]
        %v3831 = vld [vmem:[#allocation6 + $0x18] sm:$0xff]
        %v3832 = vld [vmem:[#allocation6 + $0x20] sm:$0xff]
        %v3833 = vld [vmem:[#allocation6 + $0x28] sm:$0xff]
        %v3834 = vld [vmem:[#allocation6 + $0x30] sm:$0xff]
        %v3835 = vld [vmem:[#allocation6 + $0x38] sm:$0xff]
        %v3836 = vld [vmem:[#allocation6 + $0x40] sm:$0xff]
        %v3837 = vld [vmem:[#allocation6 + $0x48] sm:$0xff]
        %v3838 = vld [vmem:[#allocation6 + $0x50] sm:$0xff]
        %v3839 = vld [vmem:[#allocation6 + $0x58] sm:$0xff]
        %v3840 = vld [vmem:[#allocation6 + $0x60] sm:$0xff]
        %v3841 = vld [vmem:[#allocation6 + $0x68] sm:$0xff]
        %v3842 = vld [vmem:[#allocation6 + $0x70] sm:$0xff]
        %v3843 = vld [vmem:[#allocation6 + $0x78] sm:$0xff]
        %v3844 = vld [vmem:[#allocation4] sm:$0xff]
        %v3845 = vld [vmem:[#allocation4 + $0x8] sm:$0xff]
        %v3846 = vld [vmem:[#allocation4 + $0x10] sm:$0xff]
        %v3847 = vld [vmem:[#allocation4 + $0x18] sm:$0xff]
        %v3848 = vld [vmem:[#allocation4 + $0x20] sm:$0xff]
        %v3849 = vld [vmem:[#allocation4 + $0x28] sm:$0xff]
        %v3850 = vld [vmem:[#allocation4 + $0x30] sm:$0xff]
        %v3851 = vld [vmem:[#allocation4 + $0x38] sm:$0xff]
        %v3852 = vld [vmem:[#allocation4 + $0x40] sm:$0xff]
        %v3853 = vld [vmem:[#allocation4 + $0x48] sm:$0xff]
        %v3854 = vld [vmem:[#allocation4 + $0x50] sm:$0xff]
        %v3855 = vld [vmem:[#allocation4 + $0x58] sm:$0xff]
        %v3856 = vld [vmem:[#allocation4 + $0x60] sm:$0xff]
        %v3857 = vld [vmem:[#allocation4 + $0x68] sm:$0xff]
        %v3858 = vld [vmem:[#allocation4 + $0x70] sm:$0xff]
        %v3859 = vld [vmem:[#allocation4 + $0x78] sm:$0xff]
        %v3860 = vld [vmem:[#allocation4 + $0x80] sm:$0xff]
        %v3861 = vld [vmem:[#allocation4 + $0x88] sm:$0xff]
        %v3862 = vld [vmem:[#allocation4 + $0x90] sm:$0xff]
        %v3863 = vld [vmem:[#allocation4 + $0x98] sm:$0xff]
        %v3864 = vld [vmem:[#allocation4 + $0xa0] sm:$0xff]
        %v3865 = vld [vmem:[#allocation4 + $0xa8] sm:$0xff]
        %v3866 = vld [vmem:[#allocation4 + $0xb0] sm:$0xff]
        %v3867 = vld [vmem:[#allocation4 + $0xb8] sm:$0xff]
        %v3868 = vld [vmem:[#allocation4 + $0xc0] sm:$0xff]
        %v3869 = vld [vmem:[#allocation4 + $0xc8] sm:$0xff]
        %v3870 = vld [vmem:[#allocation4 + $0xd0] sm:$0xff]
        %v3871 = vld [vmem:[#allocation4 + $0xd8] sm:$0xff]
        %v3872 = vld [vmem:[#allocation4 + $0xe0] sm:$0xff]
        %v3873 = vld [vmem:[#allocation4 + $0xe8] sm:$0xff]
        %v3874 = vld [vmem:[#allocation4 + $0xf0] sm:$0xff]
        %v3875 = vld [vmem:[#allocation4 + $0xf8] sm:$0xff]
        %v3877 = vsel %vm2173, %v3828, 0
        %v3880 = vsel %vm2173, %v3829, 0
        %v3883 = vsel %vm2173, %v3830, 0
        %v3886 = vsel %vm2173, %v3831, 0
        %v3889 = vsel %vm2173, %v3844, 0
        %v3892 = vsel %vm2173, %v3845, 0
        %v3895 = vsel %vm2173, %v3846, 0
        %v3898 = vsel %vm2173, %v3847, 0
        %v3901 = vsel %vm2173, %v3848, 0
        %v3904 = vsel %vm2173, %v3849, 0
        %v3907 = vsel %vm2173, %v3850, 0
        %v3910 = vsel %vm2173, %v3851, 0
        %3912 = vmatprep.subr.bf16.mxu0 0
        %3913 = vmatpush1.bf16.xpose.msra.mxu0 %v3889
        %3914 = vmatprep.subr.bf16.mxu0 0
        %3915 = vmatpush1.bf16.xpose.msra.mxu0 %v3892
        %3916 = vmatprep.subr.bf16.mxu0 0
        %3917 = vmatpush1.bf16.xpose.msra.mxu0 %v3895
        %3918 = vmatprep.subr.bf16.mxu0 0
        %3919 = vmatpush1.bf16.xpose.msra.mxu0 %v3898
        %3920 = vmatprep.subr.bf16.mxu0 0
        %3921 = vmatpush1.bf16.xpose.msra.mxu0 %v3901
        %3922 = vmatprep.subr.bf16.mxu0 0
        %3923 = vmatpush1.bf16.xpose.msra.mxu0 %v3904
        %3924 = vmatprep.subr.bf16.mxu0 0
        %3925 = vmatpush1.bf16.xpose.msra.mxu0 %v3907
        %3926 = vmatprep.subr.bf16.mxu0 0
        %3927 = vmatpush1.bf16.xpose.msra.mxu0 %v3910
        %3928 = vmatprep.subr.bf16.mxu0 0
        %3929 = vmatpush1.bf16.xpose.msra.mxu0 0
        %3930 = vmatprep.subr.bf16.mxu0 0
        %3931 = vmatpush1.bf16.xpose.msra.mxu0 0
        %3932 = vmatprep.subr.bf16.mxu0 0
        %3933 = vmatpush1.bf16.xpose.msra.mxu0 0
        %3934 = vmatprep.subr.bf16.mxu0 0
        %3935 = vmatpush1.bf16.xpose.msra.mxu0 0
        %3936 = vmatprep.subr.bf16.mxu0 0
        %3937 = vmatpush1.bf16.xpose.msra.mxu0 0
        %3938 = vmatprep.subr.bf16.mxu0 0
        %3939 = vmatpush1.bf16.xpose.msra.mxu0 0
        %3940 = vmatprep.subr.bf16.mxu0 0
        %3941 = vmatpush1.bf16.xpose.msra.mxu0 0
        %3942 = vmatprep.subr.bf16.mxu0 0
        %3943 = vmatpush1.bf16.xpose.msra.mxu0 0
        %3944 = vmatprep.mubr.bf16.mxu0 0
        %3945 = vmatmul.mubr.bf16.gmra.mrb[0].mxu0 %v3877
        %v3946 = vpop.f32.mrb[0].mxu0
        %v3947 = vadd.f32 0.0, %v3946
        %v3948 = vpop.f32.mrb[0].mxu0
        %v3949 = vpop.f32.mrb[0].mxu0
        %v3950 = vadd.f32 0.0, %v3949
        %v3951 = vpop.f32.mrb[0].mxu0
        %3952 = vmatprep.mubr.bf16.mxu0 0
        %3953 = vmatmul.mubr.bf16.gmra.mrb[0].mxu0 %v3880
        %v3954 = vpop.f32.mrb[0].mxu0
        %v3955 = vadd.f32 0.0, %v3954
        %v3956 = vpop.f32.mrb[0].mxu0
        %v3957 = vpop.f32.mrb[0].mxu0
        %v3958 = vadd.f32 0.0, %v3957
        %v3959 = vpop.f32.mrb[0].mxu0
        %3960 = vmatprep.mubr.bf16.mxu0 0
        %3961 = vmatmul.mubr.bf16.gmra.mrb[0].mxu0 %v3883
        %v3962 = vpop.f32.mrb[0].mxu0
        %v3963 = vadd.f32 0.0, %v3962
        %v3964 = vpop.f32.mrb[0].mxu0
        %v3965 = vpop.f32.mrb[0].mxu0
        %v3966 = vadd.f32 0.0, %v3965
        %v3967 = vpop.f32.mrb[0].mxu0
        %3968 = vmatprep.mubr.bf16.mxu0 0
        %3969 = vmatmul.mubr.bf16.gmra.mrb[0].mxu0 %v3886
        %v3970 = vpop.f32.mrb[0].mxu0
        %v3971 = vadd.f32 0.0, %v3970
        %v3972 = vpop.f32.mrb[0].mxu0
        %v3973 = vpop.f32.mrb[0].mxu0
        %v3974 = vadd.f32 0.0, %v3973
        %v3975 = vpop.f32.mrb[0].mxu0
        %3976 = vdwg.mxu0
        %v3978 = vsel %vm2173, %v3832, 0
        %v3981 = vsel %vm2173, %v3833, 0
        %v3984 = vsel %vm2173, %v3834, 0
        %v3987 = vsel %vm2173, %v3835, 0
        %v3990 = vsel %vm2173, %v3852, 0
        %v3993 = vsel %vm2173, %v3853, 0
        %v3996 = vsel %vm2173, %v3854, 0
        %v3999 = vsel %vm2173, %v3855, 0
        %v4002 = vsel %vm2173, %v3856, 0
        %v4005 = vsel %vm2173, %v3857, 0
        %v4008 = vsel %vm2173, %v3858, 0
        %v4011 = vsel %vm2173, %v3859, 0
        %4013 = vmatprep.subr.bf16.mxu0 0
        %4014 = vmatpush1.bf16.xpose.msra.mxu0 %v3990
        %4015 = vmatprep.subr.bf16.mxu0 0
        %4016 = vmatpush1.bf16.xpose.msra.mxu0 %v3993
        %4017 = vmatprep.subr.bf16.mxu0 0
        %4018 = vmatpush1.bf16.xpose.msra.mxu0 %v3996
        %4019 = vmatprep.subr.bf16.mxu0 0
        %4020 = vmatpush1.bf16.xpose.msra.mxu0 %v3999
        %4021 = vmatprep.subr.bf16.mxu0 0
        %4022 = vmatpush1.bf16.xpose.msra.mxu0 %v4002
        %4023 = vmatprep.subr.bf16.mxu0 0
        %4024 = vmatpush1.bf16.xpose.msra.mxu0 %v4005
        %4025 = vmatprep.subr.bf16.mxu0 0
        %4026 = vmatpush1.bf16.xpose.msra.mxu0 %v4008
        %4027 = vmatprep.subr.bf16.mxu0 0
        %4028 = vmatpush1.bf16.xpose.msra.mxu0 %v4011
        %4029 = vmatprep.subr.bf16.mxu0 0
        %4030 = vmatpush1.bf16.xpose.msra.mxu0 0
        %4031 = vmatprep.subr.bf16.mxu0 0
        %4032 = vmatpush1.bf16.xpose.msra.mxu0 0
        %4033 = vmatprep.subr.bf16.mxu0 0
        %4034 = vmatpush1.bf16.xpose.msra.mxu0 0
        %4035 = vmatprep.subr.bf16.mxu0 0
        %4036 = vmatpush1.bf16.xpose.msra.mxu0 0
        %4037 = vmatprep.subr.bf16.mxu0 0
        %4038 = vmatpush1.bf16.xpose.msra.mxu0 0
        %4039 = vmatprep.subr.bf16.mxu0 0
        %4040 = vmatpush1.bf16.xpose.msra.mxu0 0
        %4041 = vmatprep.subr.bf16.mxu0 0
        %4042 = vmatpush1.bf16.xpose.msra.mxu0 0
        %4043 = vmatprep.subr.bf16.mxu0 0
        %4044 = vmatpush1.bf16.xpose.msra.mxu0 0
        %4045 = vmatprep.mubr.bf16.mxu0 0
        %4046 = vmatmul.mubr.bf16.gmra.mrb[0].mxu0 %v3978
        %v4047 = vpop.f32.mrb[0].mxu0
        %v4048 = vadd.f32 0.0, %v4047
        %v4049 = vpop.f32.mrb[0].mxu0
        %v4050 = vpop.f32.mrb[0].mxu0
        %v4051 = vadd.f32 0.0, %v4050
        %v4052 = vpop.f32.mrb[0].mxu0
        %4053 = vmatprep.mubr.bf16.mxu0 0
        %4054 = vmatmul.mubr.bf16.gmra.mrb[0].mxu0 %v3981
        %v4055 = vpop.f32.mrb[0].mxu0
        %v4056 = vadd.f32 0.0, %v4055
        %v4057 = vpop.f32.mrb[0].mxu0
        %v4058 = vpop.f32.mrb[0].mxu0
        %v4059 = vadd.f32 0.0, %v4058
        %v4060 = vpop.f32.mrb[0].mxu0
        %4061 = vmatprep.mubr.bf16.mxu0 0
        %4062 = vmatmul.mubr.bf16.gmra.mrb[0].mxu0 %v3984
        %v4063 = vpop.f32.mrb[0].mxu0
        %v4064 = vadd.f32 0.0, %v4063
        %v4065 = vpop.f32.mrb[0].mxu0
        %v4066 = vpop.f32.mrb[0].mxu0
        %v4067 = vadd.f32 0.0, %v4066
        %v4068 = vpop.f32.mrb[0].mxu0
        %4069 = vmatprep.mubr.bf16.mxu0 0
        %4070 = vmatmul.mubr.bf16.gmra.mrb[0].mxu0 %v3987
        %v4071 = vpop.f32.mrb[0].mxu0
        %v4072 = vadd.f32 0.0, %v4071
        %v4073 = vpop.f32.mrb[0].mxu0
        %v4074 = vpop.f32.mrb[0].mxu0
        %v4075 = vadd.f32 0.0, %v4074
        %v4076 = vpop.f32.mrb[0].mxu0
        %4077 = vdwg.mxu0
        %v4079 = vsel %vm2173, %v3836, 0
        %v4082 = vsel %vm2173, %v3837, 0
        %v4085 = vsel %vm2173, %v3838, 0
        %v4088 = vsel %vm2173, %v3839, 0
        %v4091 = vsel %vm2173, %v3860, 0
        %v4094 = vsel %vm2173, %v3861, 0
        %v4097 = vsel %vm2173, %v3862, 0
        %v4100 = vsel %vm2173, %v3863, 0
        %v4103 = vsel %vm2173, %v3864, 0
        %v4106 = vsel %vm2173, %v3865, 0
        %v4109 = vsel %vm2173, %v3866, 0
        %v4112 = vsel %vm2173, %v3867, 0
        %4114 = vmatprep.subr.bf16.mxu0 0
        %4115 = vmatpush1.bf16.xpose.msra.mxu0 %v4091
        %4116 = vmatprep.subr.bf16.mxu0 0
        %4117 = vmatpush1.bf16.xpose.msra.mxu0 %v4094
        %4118 = vmatprep.subr.bf16.mxu0 0
        %4119 = vmatpush1.bf16.xpose.msra.mxu0 %v4097
        %4120 = vmatprep.subr.bf16.mxu0 0
        %4121 = vmatpush1.bf16.xpose.msra.mxu0 %v4100
        %4122 = vmatprep.subr.bf16.mxu0 0
        %4123 = vmatpush1.bf16.xpose.msra.mxu0 %v4103
        %4124 = vmatprep.subr.bf16.mxu0 0
        %4125 = vmatpush1.bf16.xpose.msra.mxu0 %v4106
        %4126 = vmatprep.subr.bf16.mxu0 0
        %4127 = vmatpush1.bf16.xpose.msra.mxu0 %v4109
        %4128 = vmatprep.subr.bf16.mxu0 0
        %4129 = vmatpush1.bf16.xpose.msra.mxu0 %v4112
        %4130 = vmatprep.subr.bf16.mxu0 0
        %4131 = vmatpush1.bf16.xpose.msra.mxu0 0
        %4132 = vmatprep.subr.bf16.mxu0 0
        %4133 = vmatpush1.bf16.xpose.msra.mxu0 0
        %4134 = vmatprep.subr.bf16.mxu0 0
        %4135 = vmatpush1.bf16.xpose.msra.mxu0 0
        %4136 = vmatprep.subr.bf16.mxu0 0
        %4137 = vmatpush1.bf16.xpose.msra.mxu0 0
        %4138 = vmatprep.subr.bf16.mxu0 0
        %4139 = vmatpush1.bf16.xpose.msra.mxu0 0
        %4140 = vmatprep.subr.bf16.mxu0 0
        %4141 = vmatpush1.bf16.xpose.msra.mxu0 0
        %4142 = vmatprep.subr.bf16.mxu0 0
        %4143 = vmatpush1.bf16.xpose.msra.mxu0 0
        %4144 = vmatprep.subr.bf16.mxu0 0
        %4145 = vmatpush1.bf16.xpose.msra.mxu0 0
        %4146 = vmatprep.mubr.bf16.mxu0 0
        %4147 = vmatmul.mubr.bf16.gmra.mrb[0].mxu0 %v4079
        %v4148 = vpop.f32.mrb[0].mxu0
        %v4149 = vadd.f32 0.0, %v4148
        %v4150 = vpop.f32.mrb[0].mxu0
        %v4151 = vpop.f32.mrb[0].mxu0
        %v4152 = vadd.f32 0.0, %v4151
        %v4153 = vpop.f32.mrb[0].mxu0
        %4154 = vmatprep.mubr.bf16.mxu0 0
        %4155 = vmatmul.mubr.bf16.gmra.mrb[0].mxu0 %v4082
        %v4156 = vpop.f32.mrb[0].mxu0
        %v4157 = vadd.f32 0.0, %v4156
        %v4158 = vpop.f32.mrb[0].mxu0
        %v4159 = vpop.f32.mrb[0].mxu0
        %v4160 = vadd.f32 0.0, %v4159
        %v4161 = vpop.f32.mrb[0].mxu0
        %4162 = vmatprep.mubr.bf16.mxu0 0
        %4163 = vmatmul.mubr.bf16.gmra.mrb[0].mxu0 %v4085
        %v4164 = vpop.f32.mrb[0].mxu0
        %v4165 = vadd.f32 0.0, %v4164
        %v4166 = vpop.f32.mrb[0].mxu0
        %v4167 = vpop.f32.mrb[0].mxu0
        %v4168 = vadd.f32 0.0, %v4167
        %v4169 = vpop.f32.mrb[0].mxu0
        %4170 = vmatprep.mubr.bf16.mxu0 0
        %4171 = vmatmul.mubr.bf16.gmra.mrb[0].mxu0 %v4088
        %v4172 = vpop.f32.mrb[0].mxu0
        %v4173 = vadd.f32 0.0, %v4172
        %v4174 = vpop.f32.mrb[0].mxu0
        %v4175 = vpop.f32.mrb[0].mxu0
        %v4176 = vadd.f32 0.0, %v4175
        %v4177 = vpop.f32.mrb[0].mxu0
        %4178 = vdwg.mxu0
        %v4180 = vsel %vm2173, %v3840, 0
        %v4183 = vsel %vm2173, %v3841, 0
        %v4186 = vsel %vm2173, %v3842, 0
        %v4189 = vsel %vm2173, %v3843, 0
        %v4192 = vsel %vm2173, %v3868, 0
        %v4195 = vsel %vm2173, %v3869, 0
        %v4198 = vsel %vm2173, %v3870, 0
        %v4201 = vsel %vm2173, %v3871, 0
        %v4204 = vsel %vm2173, %v3872, 0
        %v4207 = vsel %vm2173, %v3873, 0
        %v4210 = vsel %vm2173, %v3874, 0
        %v4213 = vsel %vm2173, %v3875, 0
        %4215 = vmatprep.subr.bf16.mxu0 0
        %4216 = vmatpush1.bf16.xpose.msra.mxu0 %v4192
        %4217 = vmatprep.subr.bf16.mxu0 0
        %4218 = vmatpush1.bf16.xpose.msra.mxu0 %v4195
        %4219 = vmatprep.subr.bf16.mxu0 0
        %4220 = vmatpush1.bf16.xpose.msra.mxu0 %v4198
        %4221 = vmatprep.subr.bf16.mxu0 0
        %4222 = vmatpush1.bf16.xpose.msra.mxu0 %v4201
        %4223 = vmatprep.subr.bf16.mxu0 0
        %4224 = vmatpush1.bf16.xpose.msra.mxu0 %v4204
        %4225 = vmatprep.subr.bf16.mxu0 0
        %4226 = vmatpush1.bf16.xpose.msra.mxu0 %v4207
        %4227 = vmatprep.subr.bf16.mxu0 0
        %4228 = vmatpush1.bf16.xpose.msra.mxu0 %v4210
        %4229 = vmatprep.subr.bf16.mxu0 0
        %4230 = vmatpush1.bf16.xpose.msra.mxu0 %v4213
        %4231 = vmatprep.subr.bf16.mxu0 0
        %4232 = vmatpush1.bf16.xpose.msra.mxu0 0
        %4233 = vmatprep.subr.bf16.mxu0 0
        %4234 = vmatpush1.bf16.xpose.msra.mxu0 0
        %4235 = vmatprep.subr.bf16.mxu0 0
        %4236 = vmatpush1.bf16.xpose.msra.mxu0 0
        %4237 = vmatprep.subr.bf16.mxu0 0
        %4238 = vmatpush1.bf16.xpose.msra.mxu0 0
        %4239 = vmatprep.subr.bf16.mxu0 0
        %4240 = vmatpush1.bf16.xpose.msra.mxu0 0
        %4241 = vmatprep.subr.bf16.mxu0 0
        %4242 = vmatpush1.bf16.xpose.msra.mxu0 0
        %4243 = vmatprep.subr.bf16.mxu0 0
        %4244 = vmatpush1.bf16.xpose.msra.mxu0 0
        %4245 = vmatprep.subr.bf16.mxu0 0
        %4246 = vmatpush1.bf16.xpose.msra.mxu0 0
        %4247 = vmatprep.mubr.bf16.mxu0 0
        %4248 = vmatmul.mubr.bf16.gmra.mrb[0].mxu0 %v4180
        %v4249 = vpop.f32.mrb[0].mxu0
        %v4250 = vadd.f32 0.0, %v4249
        %v4251 = vpop.f32.mrb[0].mxu0
        %v4252 = vpop.f32.mrb[0].mxu0
        %v4253 = vadd.f32 0.0, %v4252
        %v4254 = vpop.f32.mrb[0].mxu0
        %4255 = vmatprep.mubr.bf16.mxu0 0
        %4256 = vmatmul.mubr.bf16.gmra.mrb[0].mxu0 %v4183
        %v4257 = vpop.f32.mrb[0].mxu0
        %v4258 = vadd.f32 0.0, %v4257
        %v4259 = vpop.f32.mrb[0].mxu0
        %v4260 = vpop.f32.mrb[0].mxu0
        %v4261 = vadd.f32 0.0, %v4260
        %v4262 = vpop.f32.mrb[0].mxu0
        %4263 = vmatprep.mubr.bf16.mxu0 0
        %4264 = vmatmul.mubr.bf16.gmra.mrb[0].mxu0 %v4186
        %v4265 = vpop.f32.mrb[0].mxu0
        %v4266 = vadd.f32 0.0, %v4265
        %v4267 = vpop.f32.mrb[0].mxu0
        %v4268 = vpop.f32.mrb[0].mxu0
        %v4269 = vadd.f32 0.0, %v4268
        %v4270 = vpop.f32.mrb[0].mxu0
        %4271 = vmatprep.mubr.bf16.mxu0 0
        %4272 = vmatmul.mubr.bf16.gmra.mrb[0].mxu0 %v4189
        %v4273 = vpop.f32.mrb[0].mxu0
        %v4274 = vadd.f32 0.0, %v4273
        %v4275 = vpop.f32.mrb[0].mxu0
        %v4276 = vpop.f32.mrb[0].mxu0
        %v4277 = vadd.f32 0.0, %v4276
        %v4278 = vpop.f32.mrb[0].mxu0
        %4279 = vdwg.mxu0
        %vm4280 = vnez %v1991
        %vm4281 = vnez %v1992
        %v4282 = vsel %vm4280, 16843009, 0
        %v4283 = vsel %vm4281, 16843009, 0
        %v4284 = vunpack.c.0.s8 %v4282
        %v4285 = vunpack.c.1.s8 %v4282
        %v4286 = vunpack.c.2.s8 %v4282
        %v4287 = vunpack.c.3.s8 %v4282
        %v4288 = vunpack.c.0.s8 %v4283
        %v4289 = vunpack.c.1.s8 %v4283
        %v4290 = vunpack.c.2.s8 %v4283
        %v4291 = vunpack.c.3.s8 %v4283
        %v4292 = vpack.c.b16 %v4284, %v4284
        %v4293 = vpack.c.b8 %v4292, %v4292
        %v4294 = vpack.c.b16 %v4285, %v4285
        %v4295 = vpack.c.b8 %v4294, %v4294
        %v4296 = vpack.c.b16 %v4286, %v4286
        %v4297 = vpack.c.b8 %v4296, %v4296
        %v4298 = vpack.c.b16 %v4287, %v4287
        %v4299 = vpack.c.b8 %v4298, %v4298
        %v4300 = vpack.c.b16 %v4288, %v4288
        %v4301 = vpack.c.b8 %v4300, %v4300
        %v4302 = vpack.c.b16 %v4289, %v4289
        %v4303 = vpack.c.b8 %v4302, %v4302
        %v4304 = vpack.c.b16 %v4290, %v4290
        %v4305 = vpack.c.b8 %v4304, %v4304
        %v4306 = vpack.c.b16 %v4291, %v4291
        %v4307 = vpack.c.b8 %v4306, %v4306
        %vm4308 = vnez %v4293
        %vm4309 = vnez %v4295
        %vm4310 = vnez %v4297
        %vm4311 = vnez %v4299
        %vm4312 = vnez %v4301
        %vm4313 = vnez %v4303
        %vm4314 = vnez %v4305
        %vm4315 = vnez %v4307
        %v4316 = vsel %vm4308, 16843009, 0
        %v4317 = vsel %vm4309, 16843009, 0
        %v4318 = vsel %vm4310, 16843009, 0
        %v4319 = vsel %vm4311, 16843009, 0
        %v4320 = vsel %vm4312, 16843009, 0
        %v4321 = vsel %vm4313, 16843009, 0
        %v4322 = vsel %vm4314, 16843009, 0
        %v4323 = vsel %vm4315, 16843009, 0
        %v4324 = vunpack.c.0.s8 %v4316
        %v4325 = vunpack.c.0.s8 %v4317
        %v4326 = vunpack.c.0.s8 %v4318
        %v4327 = vunpack.c.0.s8 %v4319
        %v4328 = vunpack.c.0.s8 %v4320
        %v4329 = vunpack.c.0.s8 %v4321
        %v4330 = vunpack.c.0.s8 %v4322
        %v4331 = vunpack.c.0.s8 %v4323
        %vm4332 = vcmp.ne.s32.totalorder %v4324, 0
        %vm4333 = vcmp.ne.s32.totalorder %v4325, 0
        %vm4334 = vcmp.ne.s32.totalorder %v4326, 0
        %vm4335 = vcmp.ne.s32.totalorder %v4327, 0
        %vm4336 = vcmp.ne.s32.totalorder %v4328, 0
        %vm4337 = vcmp.ne.s32.totalorder %v4329, 0
        %vm4338 = vcmp.ne.s32.totalorder %v4330, 0
        %vm4339 = vcmp.ne.s32.totalorder %v4331, 0
        %v4340 = vsel %vm4332, 1, 0
        %v4341 = vsel %vm4333, 1, 0
        %v4342 = vsel %vm4334, 1, 0
        %v4343 = vsel %vm4335, 1, 0
        %v4344 = vsel %vm4336, 1, 0
        %v4345 = vsel %vm4337, 1, 0
        %v4346 = vsel %vm4338, 1, 0
        %v4347 = vsel %vm4339, 1, 0
        %vm4348 = vcmp.eq.s32.totalorder %v4340, 1
        %vm4349 = vcmp.eq.s32.totalorder %v4341, 1
        %vm4350 = vcmp.eq.s32.totalorder %v4342, 1
        %vm4351 = vcmp.eq.s32.totalorder %v4343, 1
        %vm4352 = vcmp.eq.s32.totalorder %v4344, 1
        %vm4353 = vcmp.eq.s32.totalorder %v4345, 1
        %vm4354 = vcmp.eq.s32.totalorder %v4346, 1
        %vm4355 = vcmp.eq.s32.totalorder %v4347, 1
        %v4356 = vsel %vm4348, %v3947, -1e+09
        %v4357 = vsel %vm4349, %v3950, -1e+09
        %v4358 = vsel %vm4350, %v3955, -1e+09
        %v4359 = vsel %vm4351, %v3958, -1e+09
        %v4360 = vsel %vm4352, %v3963, -1e+09
        %v4361 = vsel %vm4353, %v3966, -1e+09
        %v4362 = vsel %vm4354, %v3971, -1e+09
        %v4363 = vsel %vm4355, %v3974, -1e+09
        %v4364 = vsel %vm4348, %v4048, -1e+09
        %v4365 = vsel %vm4349, %v4051, -1e+09
        %v4366 = vsel %vm4350, %v4056, -1e+09
        %v4367 = vsel %vm4351, %v4059, -1e+09
        %v4368 = vsel %vm4352, %v4064, -1e+09
        %v4369 = vsel %vm4353, %v4067, -1e+09
        %v4370 = vsel %vm4354, %v4072, -1e+09
        %v4371 = vsel %vm4355, %v4075, -1e+09
        %v4372 = vsel %vm4348, %v4149, -1e+09
        %v4373 = vsel %vm4349, %v4152, -1e+09
        %v4374 = vsel %vm4350, %v4157, -1e+09
        %v4375 = vsel %vm4351, %v4160, -1e+09
        %v4376 = vsel %vm4352, %v4165, -1e+09
        %v4377 = vsel %vm4353, %v4168, -1e+09
        %v4378 = vsel %vm4354, %v4173, -1e+09
        %v4379 = vsel %vm4355, %v4176, -1e+09
        %v4380 = vsel %vm4348, %v4250, -1e+09
        %v4381 = vsel %vm4349, %v4253, -1e+09
        %v4382 = vsel %vm4350, %v4258, -1e+09
        %v4383 = vsel %vm4351, %v4261, -1e+09
        %v4384 = vsel %vm4352, %v4266, -1e+09
        %v4385 = vsel %vm4353, %v4269, -1e+09
        %v4386 = vsel %vm4354, %v4274, -1e+09
        %v4387 = vsel %vm4355, %v4277, -1e+09
        %4388 = vmax.xlane.f32.xlu0 %v4356
        %v4389 = vpop.xlane.xlu0 %4388
        %4390 = vmax.xlane.f32.xlu0 %v4357
        %v4391 = vpop.xlane.xlu0 %4390
        %4392 = vmax.xlane.f32.xlu0 %v4358
        %v4393 = vpop.xlane.xlu0 %4392
        %4394 = vmax.xlane.f32.xlu0 %v4359
        %v4395 = vpop.xlane.xlu0 %4394
        %4396 = vmax.xlane.f32.xlu0 %v4360
        %v4397 = vpop.xlane.xlu0 %4396
        %4398 = vmax.xlane.f32.xlu0 %v4361
        %v4399 = vpop.xlane.xlu0 %4398
        %4400 = vmax.xlane.f32.xlu0 %v4362
        %v4401 = vpop.xlane.xlu0 %4400
        %4402 = vmax.xlane.f32.xlu0 %v4363
        %v4403 = vpop.xlane.xlu0 %4402
        %4404 = vmax.xlane.f32.xlu0 %v4364
        %v4405 = vpop.xlane.xlu0 %4404
        %4406 = vmax.xlane.f32.xlu0 %v4365
        %v4407 = vpop.xlane.xlu0 %4406
        %4408 = vmax.xlane.f32.xlu0 %v4366
        %v4409 = vpop.xlane.xlu0 %4408
        %4410 = vmax.xlane.f32.xlu0 %v4367
        %v4411 = vpop.xlane.xlu0 %4410
        %4412 = vmax.xlane.f32.xlu0 %v4368
        %v4413 = vpop.xlane.xlu0 %4412
        %4414 = vmax.xlane.f32.xlu0 %v4369
        %v4415 = vpop.xlane.xlu0 %4414
        %4416 = vmax.xlane.f32.xlu0 %v4370
        %v4417 = vpop.xlane.xlu0 %4416
        %4418 = vmax.xlane.f32.xlu0 %v4371
        %v4419 = vpop.xlane.xlu0 %4418
        %4420 = vmax.xlane.f32.xlu0 %v4372
        %v4421 = vpop.xlane.xlu0 %4420
        %4422 = vmax.xlane.f32.xlu0 %v4373
        %v4423 = vpop.xlane.xlu0 %4422
        %4424 = vmax.xlane.f32.xlu0 %v4374
        %v4425 = vpop.xlane.xlu0 %4424
        %4426 = vmax.xlane.f32.xlu0 %v4375
        %v4427 = vpop.xlane.xlu0 %4426
        %4428 = vmax.xlane.f32.xlu0 %v4376
        %v4429 = vpop.xlane.xlu0 %4428
        %4430 = vmax.xlane.f32.xlu0 %v4377
        %v4431 = vpop.xlane.xlu0 %4430
        %4432 = vmax.xlane.f32.xlu0 %v4378
        %v4433 = vpop.xlane.xlu0 %4432
        %4434 = vmax.xlane.f32.xlu0 %v4379
        %v4435 = vpop.xlane.xlu0 %4434
        %4436 = vmax.xlane.f32.xlu0 %v4380
        %v4437 = vpop.xlane.xlu0 %4436
        %4438 = vmax.xlane.f32.xlu0 %v4381
        %v4439 = vpop.xlane.xlu0 %4438
        %4440 = vmax.xlane.f32.xlu0 %v4382
        %v4441 = vpop.xlane.xlu0 %4440
        %4442 = vmax.xlane.f32.xlu0 %v4383
        %v4443 = vpop.xlane.xlu0 %4442
        %4444 = vmax.xlane.f32.xlu0 %v4384
        %v4445 = vpop.xlane.xlu0 %4444
        %4446 = vmax.xlane.f32.xlu0 %v4385
        %v4447 = vpop.xlane.xlu0 %4446
        %4448 = vmax.xlane.f32.xlu0 %v4386
        %v4449 = vpop.xlane.xlu0 %4448
        %4450 = vmax.xlane.f32.xlu0 %v4387
        %v4451 = vpop.xlane.xlu0 %4450
        %v4452 = vsub.f32 %v4356, %v4389
        %v4453 = vsub.f32 %v4357, %v4391
        %v4454 = vsub.f32 %v4358, %v4393
        %v4455 = vsub.f32 %v4359, %v4395
        %v4456 = vsub.f32 %v4360, %v4397
        %v4457 = vsub.f32 %v4361, %v4399
        %v4458 = vsub.f32 %v4362, %v4401
        %v4459 = vsub.f32 %v4363, %v4403
        %v4460 = vsub.f32 %v4364, %v4405
        %v4461 = vsub.f32 %v4365, %v4407
        %v4462 = vsub.f32 %v4366, %v4409
        %v4463 = vsub.f32 %v4367, %v4411
        %v4464 = vsub.f32 %v4368, %v4413
        %v4465 = vsub.f32 %v4369, %v4415
        %v4466 = vsub.f32 %v4370, %v4417
        %v4467 = vsub.f32 %v4371, %v4419
        %v4468 = vsub.f32 %v4372, %v4421
        %v4469 = vsub.f32 %v4373, %v4423
        %v4470 = vsub.f32 %v4374, %v4425
        %v4471 = vsub.f32 %v4375, %v4427
        %v4472 = vsub.f32 %v4376, %v4429
        %v4473 = vsub.f32 %v4377, %v4431
        %v4474 = vsub.f32 %v4378, %v4433
        %v4475 = vsub.f32 %v4379, %v4435
        %v4476 = vsub.f32 %v4380, %v4437
        %v4477 = vsub.f32 %v4381, %v4439
        %v4478 = vsub.f32 %v4382, %v4441
        %v4479 = vsub.f32 %v4383, %v4443
        %v4480 = vsub.f32 %v4384, %v4445
        %v4481 = vsub.f32 %v4385, %v4447
        %v4482 = vsub.f32 %v4386, %v4449
        %v4483 = vsub.f32 %v4387, %v4451
        %v4484 = vmul.f32 %v4452, 1.442695
        %v4485 = vpow.pop %v4484
        %v4486 = vmul.f32 %v4453, 1.442695
        %v4487 = vpow.pop %v4486
        %v4488 = vmul.f32 %v4454, 1.442695
        %v4489 = vpow.pop %v4488
        %v4490 = vmul.f32 %v4455, 1.442695
        %v4491 = vpow.pop %v4490
        %v4492 = vmul.f32 %v4456, 1.442695
        %v4493 = vpow.pop %v4492
        %v4494 = vmul.f32 %v4457, 1.442695
        %v4495 = vpow.pop %v4494
        %v4496 = vmul.f32 %v4458, 1.442695
        %v4497 = vpow.pop %v4496
        %v4498 = vmul.f32 %v4459, 1.442695
        %v4499 = vpow.pop %v4498
        %v4500 = vmul.f32 %v4460, 1.442695
        %v4501 = vpow.pop %v4500
        %v4502 = vmul.f32 %v4461, 1.442695
        %v4503 = vpow.pop %v4502
        %v4504 = vmul.f32 %v4462, 1.442695
        %v4505 = vpow.pop %v4504
        %v4506 = vmul.f32 %v4463, 1.442695
        %v4507 = vpow.pop %v4506
        %v4508 = vmul.f32 %v4464, 1.442695
        %v4509 = vpow.pop %v4508
        %v4510 = vmul.f32 %v4465, 1.442695
        %v4511 = vpow.pop %v4510
        %v4512 = vmul.f32 %v4466, 1.442695
        %v4513 = vpow.pop %v4512
        %v4514 = vmul.f32 %v4467, 1.442695
        %v4515 = vpow.pop %v4514
        %v4516 = vmul.f32 %v4468, 1.442695
        %v4517 = vpow.pop %v4516
        %v4518 = vmul.f32 %v4469, 1.442695
        %v4519 = vpow.pop %v4518
        %v4520 = vmul.f32 %v4470, 1.442695
        %v4521 = vpow.pop %v4520
        %v4522 = vmul.f32 %v4471, 1.442695
        %v4523 = vpow.pop %v4522
        %v4524 = vmul.f32 %v4472, 1.442695
        %v4525 = vpow.pop %v4524
        %v4526 = vmul.f32 %v4473, 1.442695
        %v4527 = vpow.pop %v4526
        %v4528 = vmul.f32 %v4474, 1.442695
        %v4529 = vpow.pop %v4528
        %v4530 = vmul.f32 %v4475, 1.442695
        %v4531 = vpow.pop %v4530
        %v4532 = vmul.f32 %v4476, 1.442695
        %v4533 = vpow.pop %v4532
        %v4534 = vmul.f32 %v4477, 1.442695
        %v4535 = vpow.pop %v4534
        %v4536 = vmul.f32 %v4478, 1.442695
        %v4537 = vpow.pop %v4536
        %v4538 = vmul.f32 %v4479, 1.442695
        %v4539 = vpow.pop %v4538
        %v4540 = vmul.f32 %v4480, 1.442695
        %v4541 = vpow.pop %v4540
        %v4542 = vmul.f32 %v4481, 1.442695
        %v4543 = vpow.pop %v4542
        %v4544 = vmul.f32 %v4482, 1.442695
        %v4545 = vpow.pop %v4544
        %v4546 = vmul.f32 %v4483, 1.442695
        %v4547 = vpow.pop %v4546
        %4548 = vadd.xlane.f32.xlu0 %v4485
        %v4549 = vpop.xlane.xlu0 %4548
        %4550 = vadd.xlane.f32.xlu0 %v4487
        %v4551 = vpop.xlane.xlu0 %4550
        %4552 = vadd.xlane.f32.xlu0 %v4489
        %v4553 = vpop.xlane.xlu0 %4552
        %4554 = vadd.xlane.f32.xlu0 %v4491
        %v4555 = vpop.xlane.xlu0 %4554
        %4556 = vadd.xlane.f32.xlu0 %v4493
        %v4557 = vpop.xlane.xlu0 %4556
        %4558 = vadd.xlane.f32.xlu0 %v4495
        %v4559 = vpop.xlane.xlu0 %4558
        %4560 = vadd.xlane.f32.xlu0 %v4497
        %v4561 = vpop.xlane.xlu0 %4560
        %4562 = vadd.xlane.f32.xlu0 %v4499
        %v4563 = vpop.xlane.xlu0 %4562
        %4564 = vadd.xlane.f32.xlu0 %v4501
        %v4565 = vpop.xlane.xlu0 %4564
        %4566 = vadd.xlane.f32.xlu0 %v4503
        %v4567 = vpop.xlane.xlu0 %4566
        %4568 = vadd.xlane.f32.xlu0 %v4505
        %v4569 = vpop.xlane.xlu0 %4568
        %4570 = vadd.xlane.f32.xlu0 %v4507
        %v4571 = vpop.xlane.xlu0 %4570
        %4572 = vadd.xlane.f32.xlu0 %v4509
        %v4573 = vpop.xlane.xlu0 %4572
        %4574 = vadd.xlane.f32.xlu0 %v4511
        %v4575 = vpop.xlane.xlu0 %4574
        %4576 = vadd.xlane.f32.xlu0 %v4513
        %v4577 = vpop.xlane.xlu0 %4576
        %4578 = vadd.xlane.f32.xlu0 %v4515
        %v4579 = vpop.xlane.xlu0 %4578
        %4580 = vadd.xlane.f32.xlu0 %v4517
        %v4581 = vpop.xlane.xlu0 %4580
        %4582 = vadd.xlane.f32.xlu0 %v4519
        %v4583 = vpop.xlane.xlu0 %4582
        %4584 = vadd.xlane.f32.xlu0 %v4521
        %v4585 = vpop.xlane.xlu0 %4584
        %4586 = vadd.xlane.f32.xlu0 %v4523
        %v4587 = vpop.xlane.xlu0 %4586
        %4588 = vadd.xlane.f32.xlu0 %v4525
        %v4589 = vpop.xlane.xlu0 %4588
        %4590 = vadd.xlane.f32.xlu0 %v4527
        %v4591 = vpop.xlane.xlu0 %4590
        %4592 = vadd.xlane.f32.xlu0 %v4529
        %v4593 = vpop.xlane.xlu0 %4592
        %4594 = vadd.xlane.f32.xlu0 %v4531
        %v4595 = vpop.xlane.xlu0 %4594
        %4596 = vadd.xlane.f32.xlu0 %v4533
        %v4597 = vpop.xlane.xlu0 %4596
        %4598 = vadd.xlane.f32.xlu0 %v4535
        %v4599 = vpop.xlane.xlu0 %4598
        %4600 = vadd.xlane.f32.xlu0 %v4537
        %v4601 = vpop.xlane.xlu0 %4600
        %4602 = vadd.xlane.f32.xlu0 %v4539
        %v4603 = vpop.xlane.xlu0 %4602
        %4604 = vadd.xlane.f32.xlu0 %v4541
        %v4605 = vpop.xlane.xlu0 %4604
        %4606 = vadd.xlane.f32.xlu0 %v4543
        %v4607 = vpop.xlane.xlu0 %4606
        %4608 = vadd.xlane.f32.xlu0 %v4545
        %v4609 = vpop.xlane.xlu0 %4608
        %4610 = vadd.xlane.f32.xlu0 %v4547
        %v4611 = vpop.xlane.xlu0 %4610
        %v4612 = vrcp.pop %v4549
        %v4613 = vrcp.pop %v4551
        %v4614 = vrcp.pop %v4553
        %v4615 = vrcp.pop %v4555
        %v4616 = vrcp.pop %v4557
        %v4617 = vrcp.pop %v4559
        %v4618 = vrcp.pop %v4561
        %v4619 = vrcp.pop %v4563
        %v4620 = vrcp.pop %v4565
        %v4621 = vrcp.pop %v4567
        %v4622 = vrcp.pop %v4569
        %v4623 = vrcp.pop %v4571
        %v4624 = vrcp.pop %v4573
        %v4625 = vrcp.pop %v4575
        %v4626 = vrcp.pop %v4577
        %v4627 = vrcp.pop %v4579
        %v4628 = vrcp.pop %v4581
        %v4629 = vrcp.pop %v4583
        %v4630 = vrcp.pop %v4585
        %v4631 = vrcp.pop %v4587
        %v4632 = vrcp.pop %v4589
        %v4633 = vrcp.pop %v4591
        %v4634 = vrcp.pop %v4593
        %v4635 = vrcp.pop %v4595
        %v4636 = vrcp.pop %v4597
        %v4637 = vrcp.pop %v4599
        %v4638 = vrcp.pop %v4601
        %v4639 = vrcp.pop %v4603
        %v4640 = vrcp.pop %v4605
        %v4641 = vrcp.pop %v4607
        %v4642 = vrcp.pop %v4609
        %v4643 = vrcp.pop %v4611
        %v4644 = vmul.f32 %v4485, %v4612
        %v4645 = vmul.f32 %v4487, %v4613
        %v4646 = vmul.f32 %v4489, %v4614
        %v4647 = vmul.f32 %v4491, %v4615
        %v4648 = vmul.f32 %v4493, %v4616
        %v4649 = vmul.f32 %v4495, %v4617
        %v4650 = vmul.f32 %v4497, %v4618
        %v4651 = vmul.f32 %v4499, %v4619
        %v4652 = vmul.f32 %v4501, %v4620
        %v4653 = vmul.f32 %v4503, %v4621
        %v4654 = vmul.f32 %v4505, %v4622
        %v4655 = vmul.f32 %v4507, %v4623
        %v4656 = vmul.f32 %v4509, %v4624
        %v4657 = vmul.f32 %v4511, %v4625
        %v4658 = vmul.f32 %v4513, %v4626
        %v4659 = vmul.f32 %v4515, %v4627
        %v4660 = vmul.f32 %v4517, %v4628
        %v4661 = vmul.f32 %v4519, %v4629
        %v4662 = vmul.f32 %v4521, %v4630
        %v4663 = vmul.f32 %v4523, %v4631
        %v4664 = vmul.f32 %v4525, %v4632
        %v4665 = vmul.f32 %v4527, %v4633
        %v4666 = vmul.f32 %v4529, %v4634
        %v4667 = vmul.f32 %v4531, %v4635
        %v4668 = vmul.f32 %v4533, %v4636
        %v4669 = vmul.f32 %v4535, %v4637
        %v4670 = vmul.f32 %v4537, %v4638
        %v4671 = vmul.f32 %v4539, %v4639
        %v4672 = vmul.f32 %v4541, %v4640
        %v4673 = vmul.f32 %v4543, %v4641
        %v4674 = vmul.f32 %v4545, %v4642
        %v4675 = vmul.f32 %v4547, %v4643
        %v4676 = vpack.c.bf16 %v4645, %v4644
        %v4677 = vpack.c.bf16 %v4647, %v4646
        %v4678 = vpack.c.bf16 %v4649, %v4648
        %v4679 = vpack.c.bf16 %v4651, %v4650
        %v4680 = vpack.c.bf16 %v4653, %v4652
        %v4681 = vpack.c.bf16 %v4655, %v4654
        %v4682 = vpack.c.bf16 %v4657, %v4656
        %v4683 = vpack.c.bf16 %v4659, %v4658
        %v4684 = vpack.c.bf16 %v4661, %v4660
        %v4685 = vpack.c.bf16 %v4663, %v4662
        %v4686 = vpack.c.bf16 %v4665, %v4664
        %v4687 = vpack.c.bf16 %v4667, %v4666
        %v4688 = vpack.c.bf16 %v4669, %v4668
        %v4689 = vpack.c.bf16 %v4671, %v4670
        %v4690 = vpack.c.bf16 %v4673, %v4672
        %v4691 = vpack.c.bf16 %v4675, %v4674
        %v4692 = vld [vmem:[#allocation5] sm:$0xff]
        %v4693 = vld [vmem:[#allocation5 + $0x8] sm:$0xff]
        %v4694 = vld [vmem:[#allocation5 + $0x10] sm:$0xff]
        %v4695 = vld [vmem:[#allocation5 + $0x18] sm:$0xff]
        %v4696 = vld [vmem:[#allocation5 + $0x20] sm:$0xff]
        %v4697 = vld [vmem:[#allocation5 + $0x28] sm:$0xff]
        %v4698 = vld [vmem:[#allocation5 + $0x30] sm:$0xff]
        %v4699 = vld [vmem:[#allocation5 + $0x38] sm:$0xff]
        %v4700 = vld [vmem:[#allocation5 + $0x40] sm:$0xff]
        %v4701 = vld [vmem:[#allocation5 + $0x48] sm:$0xff]
        %v4702 = vld [vmem:[#allocation5 + $0x50] sm:$0xff]
        %v4703 = vld [vmem:[#allocation5 + $0x58] sm:$0xff]
        %v4704 = vld [vmem:[#allocation5 + $0x60] sm:$0xff]
        %v4705 = vld [vmem:[#allocation5 + $0x68] sm:$0xff]
        %v4706 = vld [vmem:[#allocation5 + $0x70] sm:$0xff]
        %v4707 = vld [vmem:[#allocation5 + $0x78] sm:$0xff]
        %v4708 = vld [vmem:[#allocation5 + $0x80] sm:$0xff]
        %v4709 = vld [vmem:[#allocation5 + $0x88] sm:$0xff]
        %v4710 = vld [vmem:[#allocation5 + $0x90] sm:$0xff]
        %v4711 = vld [vmem:[#allocation5 + $0x98] sm:$0xff]
        %v4712 = vld [vmem:[#allocation5 + $0xa0] sm:$0xff]
        %v4713 = vld [vmem:[#allocation5 + $0xa8] sm:$0xff]
        %v4714 = vld [vmem:[#allocation5 + $0xb0] sm:$0xff]
        %v4715 = vld [vmem:[#allocation5 + $0xb8] sm:$0xff]
        %v4716 = vld [vmem:[#allocation5 + $0xc0] sm:$0xff]
        %v4717 = vld [vmem:[#allocation5 + $0xc8] sm:$0xff]
        %v4718 = vld [vmem:[#allocation5 + $0xd0] sm:$0xff]
        %v4719 = vld [vmem:[#allocation5 + $0xd8] sm:$0xff]
        %v4720 = vld [vmem:[#allocation5 + $0xe0] sm:$0xff]
        %v4721 = vld [vmem:[#allocation5 + $0xe8] sm:$0xff]
        %v4722 = vld [vmem:[#allocation5 + $0xf0] sm:$0xff]
        %v4723 = vld [vmem:[#allocation5 + $0xf8] sm:$0xff]
        %4724 = vmatprep.subr.bf16.mxu0 0
        %4725 = vmatpush1.bf16.msra.mxu0 %v4692
        %4726 = vmatprep.subr.bf16.mxu0 0
        %4727 = vmatpush1.bf16.msra.mxu0 %v4693
        %4728 = vmatprep.subr.bf16.mxu0 0
        %4729 = vmatpush1.bf16.msra.mxu0 %v4694
        %4730 = vmatprep.subr.bf16.mxu0 0
        %4731 = vmatpush1.bf16.msra.mxu0 %v4695
        %4732 = vmatprep.subr.bf16.mxu0 0
        %4733 = vmatpush1.bf16.msra.mxu0 %v4696
        %4734 = vmatprep.subr.bf16.mxu0 0
        %4735 = vmatpush1.bf16.msra.mxu0 %v4697
        %4736 = vmatprep.subr.bf16.mxu0 0
        %4737 = vmatpush1.bf16.msra.mxu0 %v4698
        %4738 = vmatprep.subr.bf16.mxu0 0
        %4739 = vmatpush1.bf16.msra.mxu0 %v4699
        %4740 = vmatprep.subr.bf16.mxu0 0
        %4741 = vmatpush1.bf16.msra.mxu0 0
        %4742 = vmatprep.subr.bf16.mxu0 0
        %4743 = vmatpush1.bf16.msra.mxu0 0
        %4744 = vmatprep.subr.bf16.mxu0 0
        %4745 = vmatpush1.bf16.msra.mxu0 0
        %4746 = vmatprep.subr.bf16.mxu0 0
        %4747 = vmatpush1.bf16.msra.mxu0 0
        %4748 = vmatprep.subr.bf16.mxu0 0
        %4749 = vmatpush1.bf16.msra.mxu0 0
        %4750 = vmatprep.subr.bf16.mxu0 0
        %4751 = vmatpush1.bf16.msra.mxu0 0
        %4752 = vmatprep.subr.bf16.mxu0 0
        %4753 = vmatpush1.bf16.msra.mxu0 0
        %4754 = vmatprep.subr.bf16.mxu0 0
        %4755 = vmatpush1.bf16.msra.mxu0 0
        %4756 = vmatprep.mubr.bf16.mxu0 0
        %4757 = vmatmul.mubr.bf16.gmra.mrb[0].mxu0 %v4676
        %v4758 = vpop.f32.mrb[0].mxu0
        %v4759 = vadd.f32 0.0, %v4758
        %v4760 = vpop.f32.mrb[0].mxu0
        %v4761 = vpop.f32.mrb[0].mxu0
        %v4762 = vadd.f32 0.0, %v4761
        %v4763 = vpop.f32.mrb[0].mxu0
        %4764 = vmatprep.mubr.bf16.mxu0 0
        %4765 = vmatmul.mubr.bf16.gmra.mrb[0].mxu0 %v4677
        %v4766 = vpop.f32.mrb[0].mxu0
        %v4767 = vadd.f32 0.0, %v4766
        %v4768 = vpop.f32.mrb[0].mxu0
        %v4769 = vpop.f32.mrb[0].mxu0
        %v4770 = vadd.f32 0.0, %v4769
        %v4771 = vpop.f32.mrb[0].mxu0
        %4772 = vmatprep.mubr.bf16.mxu0 0
        %4773 = vmatmul.mubr.bf16.gmra.mrb[0].mxu0 %v4678
        %v4774 = vpop.f32.mrb[0].mxu0
        %v4775 = vadd.f32 0.0, %v4774
        %v4776 = vpop.f32.mrb[0].mxu0
        %v4777 = vpop.f32.mrb[0].mxu0
        %v4778 = vadd.f32 0.0, %v4777
        %v4779 = vpop.f32.mrb[0].mxu0
        %4780 = vmatprep.mubr.bf16.mxu0 0
        %4781 = vmatmul.mubr.bf16.gmra.mrb[0].mxu0 %v4679
        %v4782 = vpop.f32.mrb[0].mxu0
        %v4783 = vadd.f32 0.0, %v4782
        %v4784 = vpop.f32.mrb[0].mxu0
        %v4785 = vpop.f32.mrb[0].mxu0
        %v4786 = vadd.f32 0.0, %v4785
        %v4787 = vpop.f32.mrb[0].mxu0
        %4788 = vdwg.mxu0
        %4789 = vmatprep.subr.bf16.mxu0 0
        %4790 = vmatpush1.bf16.msra.mxu0 %v4700
        %4791 = vmatprep.subr.bf16.mxu0 0
        %4792 = vmatpush1.bf16.msra.mxu0 %v4701
        %4793 = vmatprep.subr.bf16.mxu0 0
        %4794 = vmatpush1.bf16.msra.mxu0 %v4702
        %4795 = vmatprep.subr.bf16.mxu0 0
        %4796 = vmatpush1.bf16.msra.mxu0 %v4703
        %4797 = vmatprep.subr.bf16.mxu0 0
        %4798 = vmatpush1.bf16.msra.mxu0 %v4704
        %4799 = vmatprep.subr.bf16.mxu0 0
        %4800 = vmatpush1.bf16.msra.mxu0 %v4705
        %4801 = vmatprep.subr.bf16.mxu0 0
        %4802 = vmatpush1.bf16.msra.mxu0 %v4706
        %4803 = vmatprep.subr.bf16.mxu0 0
        %4804 = vmatpush1.bf16.msra.mxu0 %v4707
        %4805 = vmatprep.subr.bf16.mxu0 0
        %4806 = vmatpush1.bf16.msra.mxu0 0
        %4807 = vmatprep.subr.bf16.mxu0 0
        %4808 = vmatpush1.bf16.msra.mxu0 0
        %4809 = vmatprep.subr.bf16.mxu0 0
        %4810 = vmatpush1.bf16.msra.mxu0 0
        %4811 = vmatprep.subr.bf16.mxu0 0
        %4812 = vmatpush1.bf16.msra.mxu0 0
        %4813 = vmatprep.subr.bf16.mxu0 0
        %4814 = vmatpush1.bf16.msra.mxu0 0
        %4815 = vmatprep.subr.bf16.mxu0 0
        %4816 = vmatpush1.bf16.msra.mxu0 0
        %4817 = vmatprep.subr.bf16.mxu0 0
        %4818 = vmatpush1.bf16.msra.mxu0 0
        %4819 = vmatprep.subr.bf16.mxu0 0
        %4820 = vmatpush1.bf16.msra.mxu0 0
        %4821 = vmatprep.mubr.bf16.mxu0 0
        %4822 = vmatmul.mubr.bf16.gmra.mrb[0].mxu0 %v4680
        %v4823 = vpop.f32.mrb[0].mxu0
        %v4824 = vadd.f32 0.0, %v4823
        %v4825 = vpop.f32.mrb[0].mxu0
        %v4826 = vpop.f32.mrb[0].mxu0
        %v4827 = vadd.f32 0.0, %v4826
        %v4828 = vpop.f32.mrb[0].mxu0
        %4829 = vmatprep.mubr.bf16.mxu0 0
        %4830 = vmatmul.mubr.bf16.gmra.mrb[0].mxu0 %v4681
        %v4831 = vpop.f32.mrb[0].mxu0
        %v4832 = vadd.f32 0.0, %v4831
        %v4833 = vpop.f32.mrb[0].mxu0
        %v4834 = vpop.f32.mrb[0].mxu0
        %v4835 = vadd.f32 0.0, %v4834
        %v4836 = vpop.f32.mrb[0].mxu0
        %4837 = vmatprep.mubr.bf16.mxu0 0
        %4838 = vmatmul.mubr.bf16.gmra.mrb[0].mxu0 %v4682
        %v4839 = vpop.f32.mrb[0].mxu0
        %v4840 = vadd.f32 0.0, %v4839
        %v4841 = vpop.f32.mrb[0].mxu0
        %v4842 = vpop.f32.mrb[0].mxu0
        %v4843 = vadd.f32 0.0, %v4842
        %v4844 = vpop.f32.mrb[0].mxu0
        %4845 = vmatprep.mubr.bf16.mxu0 0
        %4846 = vmatmul.mubr.bf16.gmra.mrb[0].mxu0 %v4683
        %v4847 = vpop.f32.mrb[0].mxu0
        %v4848 = vadd.f32 0.0, %v4847
        %v4849 = vpop.f32.mrb[0].mxu0
        %v4850 = vpop.f32.mrb[0].mxu0
        %v4851 = vadd.f32 0.0, %v4850
        %v4852 = vpop.f32.mrb[0].mxu0
        %4853 = vdwg.mxu0
        %4854 = vmatprep.subr.bf16.mxu0 0
        %4855 = vmatpush1.bf16.msra.mxu0 %v4708
        %4856 = vmatprep.subr.bf16.mxu0 0
        %4857 = vmatpush1.bf16.msra.mxu0 %v4709
        %4858 = vmatprep.subr.bf16.mxu0 0
        %4859 = vmatpush1.bf16.msra.mxu0 %v4710
        %4860 = vmatprep.subr.bf16.mxu0 0
        %4861 = vmatpush1.bf16.msra.mxu0 %v4711
        %4862 = vmatprep.subr.bf16.mxu0 0
        %4863 = vmatpush1.bf16.msra.mxu0 %v4712
        %4864 = vmatprep.subr.bf16.mxu0 0
        %4865 = vmatpush1.bf16.msra.mxu0 %v4713
        %4866 = vmatprep.subr.bf16.mxu0 0
        %4867 = vmatpush1.bf16.msra.mxu0 %v4714
        %4868 = vmatprep.subr.bf16.mxu0 0
        %4869 = vmatpush1.bf16.msra.mxu0 %v4715
        %4870 = vmatprep.subr.bf16.mxu0 0
        %4871 = vmatpush1.bf16.msra.mxu0 0
        %4872 = vmatprep.subr.bf16.mxu0 0
        %4873 = vmatpush1.bf16.msra.mxu0 0
        %4874 = vmatprep.subr.bf16.mxu0 0
        %4875 = vmatpush1.bf16.msra.mxu0 0
        %4876 = vmatprep.subr.bf16.mxu0 0
        %4877 = vmatpush1.bf16.msra.mxu0 0
        %4878 = vmatprep.subr.bf16.mxu0 0
        %4879 = vmatpush1.bf16.msra.mxu0 0
        %4880 = vmatprep.subr.bf16.mxu0 0
        %4881 = vmatpush1.bf16.msra.mxu0 0
        %4882 = vmatprep.subr.bf16.mxu0 0
        %4883 = vmatpush1.bf16.msra.mxu0 0
        %4884 = vmatprep.subr.bf16.mxu0 0
        %4885 = vmatpush1.bf16.msra.mxu0 0
        %4886 = vmatprep.mubr.bf16.mxu0 0
        %4887 = vmatmul.mubr.bf16.gmra.mrb[0].mxu0 %v4684
        %v4888 = vpop.f32.mrb[0].mxu0
        %v4889 = vadd.f32 0.0, %v4888
        %v4890 = vpop.f32.mrb[0].mxu0
        %v4891 = vpop.f32.mrb[0].mxu0
        %v4892 = vadd.f32 0.0, %v4891
        %v4893 = vpop.f32.mrb[0].mxu0
        %4894 = vmatprep.mubr.bf16.mxu0 0
        %4895 = vmatmul.mubr.bf16.gmra.mrb[0].mxu0 %v4685
        %v4896 = vpop.f32.mrb[0].mxu0
        %v4897 = vadd.f32 0.0, %v4896
        %v4898 = vpop.f32.mrb[0].mxu0
        %v4899 = vpop.f32.mrb[0].mxu0
        %v4900 = vadd.f32 0.0, %v4899
        %v4901 = vpop.f32.mrb[0].mxu0
        %4902 = vmatprep.mubr.bf16.mxu0 0
        %4903 = vmatmul.mubr.bf16.gmra.mrb[0].mxu0 %v4686
        %v4904 = vpop.f32.mrb[0].mxu0
        %v4905 = vadd.f32 0.0, %v4904
        %v4906 = vpop.f32.mrb[0].mxu0
        %v4907 = vpop.f32.mrb[0].mxu0
        %v4908 = vadd.f32 0.0, %v4907
        %v4909 = vpop.f32.mrb[0].mxu0
        %4910 = vmatprep.mubr.bf16.mxu0 0
        %4911 = vmatmul.mubr.bf16.gmra.mrb[0].mxu0 %v4687
        %v4912 = vpop.f32.mrb[0].mxu0
        %v4913 = vadd.f32 0.0, %v4912
        %v4914 = vpop.f32.mrb[0].mxu0
        %v4915 = vpop.f32.mrb[0].mxu0
        %v4916 = vadd.f32 0.0, %v4915
        %v4917 = vpop.f32.mrb[0].mxu0
        %4918 = vdwg.mxu0
        %4919 = vmatprep.subr.bf16.mxu0 0
        %4920 = vmatpush1.bf16.msra.mxu0 %v4716
        %4921 = vmatprep.subr.bf16.mxu0 0
        %4922 = vmatpush1.bf16.msra.mxu0 %v4717
        %4923 = vmatprep.subr.bf16.mxu0 0
        %4924 = vmatpush1.bf16.msra.mxu0 %v4718
        %4925 = vmatprep.subr.bf16.mxu0 0
        %4926 = vmatpush1.bf16.msra.mxu0 %v4719
        %4927 = vmatprep.subr.bf16.mxu0 0
        %4928 = vmatpush1.bf16.msra.mxu0 %v4720
        %4929 = vmatprep.subr.bf16.mxu0 0
        %4930 = vmatpush1.bf16.msra.mxu0 %v4721
        %4931 = vmatprep.subr.bf16.mxu0 0
        %4932 = vmatpush1.bf16.msra.mxu0 %v4722
        %4933 = vmatprep.subr.bf16.mxu0 0
        %4934 = vmatpush1.bf16.msra.mxu0 %v4723
        %4935 = vmatprep.subr.bf16.mxu0 0
        %4936 = vmatpush1.bf16.msra.mxu0 0
        %4937 = vmatprep.subr.bf16.mxu0 0
        %4938 = vmatpush1.bf16.msra.mxu0 0
        %4939 = vmatprep.subr.bf16.mxu0 0
        %4940 = vmatpush1.bf16.msra.mxu0 0
        %4941 = vmatprep.subr.bf16.mxu0 0
        %4942 = vmatpush1.bf16.msra.mxu0 0
        %4943 = vmatprep.subr.bf16.mxu0 0
        %4944 = vmatpush1.bf16.msra.mxu0 0
        %4945 = vmatprep.subr.bf16.mxu0 0
        %4946 = vmatpush1.bf16.msra.mxu0 0
        %4947 = vmatprep.subr.bf16.mxu0 0
        %4948 = vmatpush1.bf16.msra.mxu0 0
        %4949 = vmatprep.subr.bf16.mxu0 0
        %4950 = vmatpush1.bf16.msra.mxu0 0
        %4951 = vmatprep.mubr.bf16.mxu0 0
        %4952 = vmatmul.mubr.bf16.gmra.mrb[0].mxu0 %v4688
        %v4953 = vpop.f32.mrb[0].mxu0
        %v4954 = vadd.f32 0.0, %v4953
        %v4955 = vpop.f32.mrb[0].mxu0
        %v4956 = vpop.f32.mrb[0].mxu0
        %v4957 = vadd.f32 0.0, %v4956
        %v4958 = vpop.f32.mrb[0].mxu0
        %4959 = vmatprep.mubr.bf16.mxu0 0
        %4960 = vmatmul.mubr.bf16.gmra.mrb[0].mxu0 %v4689
        %v4961 = vpop.f32.mrb[0].mxu0
        %v4962 = vadd.f32 0.0, %v4961
        %v4963 = vpop.f32.mrb[0].mxu0
        %v4964 = vpop.f32.mrb[0].mxu0
        %v4965 = vadd.f32 0.0, %v4964
        %v4966 = vpop.f32.mrb[0].mxu0
        %4967 = vmatprep.mubr.bf16.mxu0 0
        %4968 = vmatmul.mubr.bf16.gmra.mrb[0].mxu0 %v4690
        %v4969 = vpop.f32.mrb[0].mxu0
        %v4970 = vadd.f32 0.0, %v4969
        %v4971 = vpop.f32.mrb[0].mxu0
        %v4972 = vpop.f32.mrb[0].mxu0
        %v4973 = vadd.f32 0.0, %v4972
        %v4974 = vpop.f32.mrb[0].mxu0
        %4975 = vmatprep.mubr.bf16.mxu0 0
        %4976 = vmatmul.mubr.bf16.gmra.mrb[0].mxu0 %v4691
        %v4977 = vpop.f32.mrb[0].mxu0
        %v4978 = vadd.f32 0.0, %v4977
        %v4979 = vpop.f32.mrb[0].mxu0
        %v4980 = vpop.f32.mrb[0].mxu0
        %v4981 = vadd.f32 0.0, %v4980
        %v4982 = vpop.f32.mrb[0].mxu0
        %4983 = vdwg.mxu0
        %v4984 = vpack.c.bf16 %v4762, %v4759
        %v4985 = vpack.c.bf16 %v4770, %v4767
        %v4986 = vpack.c.bf16 %v4778, %v4775
        %v4987 = vpack.c.bf16 %v4786, %v4783
        %v4988 = vpack.c.bf16 %v4827, %v4824
        %v4989 = vpack.c.bf16 %v4835, %v4832
        %v4990 = vpack.c.bf16 %v4843, %v4840
        %v4991 = vpack.c.bf16 %v4851, %v4848
        %v4992 = vpack.c.bf16 %v4892, %v4889
        %v4993 = vpack.c.bf16 %v4900, %v4897
        %v4994 = vpack.c.bf16 %v4908, %v4905
        %v4995 = vpack.c.bf16 %v4916, %v4913
        %v4996 = vpack.c.bf16 %v4957, %v4954
        %v4997 = vpack.c.bf16 %v4965, %v4962
        %v4998 = vpack.c.bf16 %v4973, %v4970
        %v4999 = vpack.c.bf16 %v4981, %v4978
        %5000 = vst.msk [vmem:[#allocation7] sm:$0xff] %vm2173, %v4984
        %5001 = vst.msk [vmem:[#allocation7 + $0x8] sm:$0xff] %vm2173, %v4985
        %5002 = vst.msk [vmem:[#allocation7 + $0x10] sm:$0xff] %vm2173, %v4986
        %5003 = vst.msk [vmem:[#allocation7 + $0x18] sm:$0xff] %vm2173, %v4987
        %5008 = vrot.lane.b32.xlu0 %v4988, 32
        %v5009 = vpop.permute.xlu0 %5008
        %5010 = vrot.lane.b32.xlu0 %v4989, 32
        %v5011 = vpop.permute.xlu0 %5010
        %5012 = vrot.lane.b32.xlu0 %v4990, 32
        %v5013 = vpop.permute.xlu0 %5012
        %5014 = vrot.lane.b32.xlu0 %v4991, 32
        %v5015 = vpop.permute.xlu0 %5014
        %5020 = vst.msk [vmem:[#allocation7] sm:$0xff] %vm3425, %v5009
        %5021 = vst.msk [vmem:[#allocation7 + $0x8] sm:$0xff] %vm3425, %v5011
        %5022 = vst.msk [vmem:[#allocation7 + $0x10] sm:$0xff] %vm3425, %v5013
        %5023 = vst.msk [vmem:[#allocation7 + $0x18] sm:$0xff] %vm3425, %v5015
        %5028 = vrot.lane.b32.xlu0 %v4992, 64
        %v5029 = vpop.permute.xlu0 %5028
        %5030 = vrot.lane.b32.xlu0 %v4993, 64
        %v5031 = vpop.permute.xlu0 %5030
        %5032 = vrot.lane.b32.xlu0 %v4994, 64
        %v5033 = vpop.permute.xlu0 %5032
        %5034 = vrot.lane.b32.xlu0 %v4995, 64
        %v5035 = vpop.permute.xlu0 %5034
        %5040 = vst.msk [vmem:[#allocation7] sm:$0xff] %vm3446, %v5029
        %5041 = vst.msk [vmem:[#allocation7 + $0x8] sm:$0xff] %vm3446, %v5031
        %5042 = vst.msk [vmem:[#allocation7 + $0x10] sm:$0xff] %vm3446, %v5033
        %5043 = vst.msk [vmem:[#allocation7 + $0x18] sm:$0xff] %vm3446, %v5035
        %5048 = vrot.lane.b32.xlu0 %v4996, 96
        %v5049 = vpop.permute.xlu0 %5048
        %5050 = vrot.lane.b32.xlu0 %v4997, 96
        %v5051 = vpop.permute.xlu0 %5050
        %5052 = vrot.lane.b32.xlu0 %v4998, 96
        %v5053 = vpop.permute.xlu0 %5052
        %5054 = vrot.lane.b32.xlu0 %v4999, 96
        %v5055 = vpop.permute.xlu0 %5054
        %5060 = vst.msk [vmem:[#allocation7] sm:$0xff] %vm3467, %v5049
        %5061 = vst.msk [vmem:[#allocation7 + $0x8] sm:$0xff] %vm3467, %v5051
        %5062 = vst.msk [vmem:[#allocation7 + $0x10] sm:$0xff] %vm3467, %v5053
        %5063 = vst.msk [vmem:[#allocation7 + $0x18] sm:$0xff] %vm3467, %v5055
        %v5064 = vld [vmem:[#allocation7] sm:$0xff]
        %v5065 = vld [vmem:[#allocation7 + $0x8] sm:$0xff]
        %v5066 = vld [vmem:[#allocation7 + $0x10] sm:$0xff]
        %v5067 = vld [vmem:[#allocation7 + $0x18] sm:$0xff]
        %v5068 = vld [vmem:[#allocation23] sm:$0xf]
        %v5069 = vld [vmem:[#allocation23 + $0x4] sm:$0xf]
        %v5070 = vld [vmem:[#allocation23 + $0x8] sm:$0xf]
        %v5071 = vld [vmem:[#allocation23 + $0xc] sm:$0xf]
        %v5072 = vld [vmem:[#allocation23 + $0x10] sm:$0xf]
        %v5073 = vld [vmem:[#allocation23 + $0x14] sm:$0xf]
        %v5074 = vld [vmem:[#allocation23 + $0x18] sm:$0xf]
        %v5075 = vld [vmem:[#allocation23 + $0x1c] sm:$0xf]
        %v5076 = vld [vmem:[#allocation23 + $0x20] sm:$0xf]
        %v5077 = vld [vmem:[#allocation23 + $0x24] sm:$0xf]
        %v5078 = vld [vmem:[#allocation23 + $0x28] sm:$0xf]
        %v5079 = vld [vmem:[#allocation23 + $0x2c] sm:$0xf]
        %v5080 = vld [vmem:[#allocation23 + $0x30] sm:$0xf]
        %v5081 = vld [vmem:[#allocation23 + $0x34] sm:$0xf]
        %v5082 = vld [vmem:[#allocation23 + $0x38] sm:$0xf]
        %v5083 = vld [vmem:[#allocation23 + $0x3c] sm:$0xf]
        %v5084 = vld [vmem:[%s15] sm:$0x1]
        %v5086 = vlaneseq
        %v5087 = vshrl.u32 %v5086, 7
        %v5088 = vsub.s32 0, %v5087
        %v5089 = vrot.slane %v5084, %v5088
        %v5107 = vunpack.c.l.b16 %v5068
        %v5108 = vunpack.c.l.b16 %v5069
        %v5109 = vunpack.c.l.b16 %v5070
        %v5110 = vunpack.c.l.b16 %v5071
        %v5111 = vunpack.c.l.b16 %v5072
        %v5112 = vunpack.c.l.b16 %v5073
        %v5113 = vunpack.c.l.b16 %v5074
        %v5114 = vunpack.c.l.b16 %v5075
        %v5115 = vunpack.c.l.b16 %v5076
        %v5116 = vunpack.c.l.b16 %v5077
        %v5117 = vunpack.c.l.b16 %v5078
        %v5118 = vunpack.c.l.b16 %v5079
        %v5119 = vunpack.c.l.b16 %v5080
        %v5120 = vunpack.c.l.b16 %v5081
        %v5121 = vunpack.c.l.b16 %v5082
        %v5122 = vunpack.c.l.b16 %v5083
        %v5123 = vpack.c.b16 %v5108, %v5107
        %v5124 = vpack.c.b16 %v5110, %v5109
        %v5125 = vpack.c.b16 %v5112, %v5111
        %v5126 = vpack.c.b16 %v5114, %v5113
        %v5127 = vpack.c.b16 %v5116, %v5115
        %v5128 = vpack.c.b16 %v5118, %v5117
        %v5129 = vpack.c.b16 %v5120, %v5119
        %v5130 = vpack.c.b16 %v5122, %v5121
        %5139 = vmatprep.subr.bf16.mxu0 0
        %5140 = vmatpush1.bf16.msra.mxu0 %v5123
        %5141 = vmatprep.subr.bf16.mxu0 0
        %5142 = vmatpush1.bf16.msra.mxu0 %v5124
        %5143 = vmatprep.subr.bf16.mxu0 0
        %5144 = vmatpush1.bf16.msra.mxu0 %v5125
        %5145 = vmatprep.subr.bf16.mxu0 0
        %5146 = vmatpush1.bf16.msra.mxu0 %v5126
        %5147 = vmatprep.subr.bf16.mxu0 0
        %5148 = vmatpush1.bf16.msra.mxu0 %v5127
        %5149 = vmatprep.subr.bf16.mxu0 0
        %5150 = vmatpush1.bf16.msra.mxu0 %v5128
        %5151 = vmatprep.subr.bf16.mxu0 0
        %5152 = vmatpush1.bf16.msra.mxu0 %v5129
        %5153 = vmatprep.subr.bf16.mxu0 0
        %5154 = vmatpush1.bf16.msra.mxu0 %v5130
        %5155 = vmatprep.subr.bf16.mxu0 0
        %5156 = vmatpush1.bf16.msra.mxu0 0
        %5157 = vmatprep.subr.bf16.mxu0 0
        %5158 = vmatpush1.bf16.msra.mxu0 0
        %5159 = vmatprep.subr.bf16.mxu0 0
        %5160 = vmatpush1.bf16.msra.mxu0 0
        %5161 = vmatprep.subr.bf16.mxu0 0
        %5162 = vmatpush1.bf16.msra.mxu0 0
        %5163 = vmatprep.subr.bf16.mxu0 0
        %5164 = vmatpush1.bf16.msra.mxu0 0
        %5165 = vmatprep.subr.bf16.mxu0 0
        %5166 = vmatpush1.bf16.msra.mxu0 0
        %5167 = vmatprep.subr.bf16.mxu0 0
        %5168 = vmatpush1.bf16.msra.mxu0 0
        %5169 = vmatprep.subr.bf16.mxu0 0
        %5170 = vmatpush1.bf16.msra.mxu0 0
        %5171 = vmatprep.mubr.bf16.mxu0 0
        %5172 = vmatmul.mubr.bf16.gmra.mrb[0].mxu0 %v5064
        %v5173 = vpop.f32.mrb[0].mxu0
        %v5174 = vadd.f32 %v5089, %v5173
        %v5175 = vpop.f32.mrb[0].mxu0
        %v5176 = vpop.f32.mrb[0].mxu0
        %v5177 = vadd.f32 %v5089, %v5176
        %v5178 = vpop.f32.mrb[0].mxu0
        %5179 = vmatprep.mubr.bf16.mxu0 0
        %5180 = vmatmul.mubr.bf16.gmra.mrb[0].mxu0 %v5065
        %v5181 = vpop.f32.mrb[0].mxu0
        %v5182 = vadd.f32 %v5089, %v5181
        %v5183 = vpop.f32.mrb[0].mxu0
        %v5184 = vpop.f32.mrb[0].mxu0
        %v5185 = vadd.f32 %v5089, %v5184
        %v5186 = vpop.f32.mrb[0].mxu0
        %5187 = vmatprep.mubr.bf16.mxu0 0
        %5188 = vmatmul.mubr.bf16.gmra.mrb[0].mxu0 %v5066
        %v5189 = vpop.f32.mrb[0].mxu0
        %v5190 = vadd.f32 %v5089, %v5189
        %v5191 = vpop.f32.mrb[0].mxu0
        %v5192 = vpop.f32.mrb[0].mxu0
        %v5193 = vadd.f32 %v5089, %v5192
        %v5194 = vpop.f32.mrb[0].mxu0
        %5195 = vmatprep.mubr.bf16.mxu0 0
        %5196 = vmatmul.mubr.bf16.gmra.mrb[0].mxu0 %v5067
        %v5197 = vpop.f32.mrb[0].mxu0
        %v5198 = vadd.f32 %v5089, %v5197
        %v5199 = vpop.f32.mrb[0].mxu0
        %v5200 = vpop.f32.mrb[0].mxu0
        %v5201 = vadd.f32 %v5089, %v5200
        %v5202 = vpop.f32.mrb[0].mxu0
        %5203 = vdwg.mxu0
        %v5204 = vadd.f32 %v3612, %v5174
        %v5205 = vadd.f32 %v3613, %v5177
        %v5206 = vadd.f32 %v3614, %v5182
        %v5207 = vadd.f32 %v3615, %v5185
        %v5208 = vadd.f32 %v3616, %v5190
        %v5209 = vadd.f32 %v3617, %v5193
        %v5210 = vadd.f32 %v3618, %v5198
        %v5211 = vadd.f32 %v3619, %v5201
        %v5212 = vpack.c.bf16 %v5205, %v5204
        %v5213 = vpack.c.bf16 %v5207, %v5206
        %v5214 = vpack.c.bf16 %v5209, %v5208
        %v5215 = vpack.c.bf16 %v5211, %v5210
        %v5216 = vld [vmem:[#allocation25] sm:$0xf]
        %v5217 = vld [vmem:[#allocation25 + $0x4] sm:$0xf]
        %v5218 = vld [vmem:[#allocation25 + $0x8] sm:$0xf]
        %v5219 = vld [vmem:[#allocation25 + $0xc] sm:$0xf]
        %v5220 = vld [vmem:[#allocation25 + $0x10] sm:$0xf]
        %v5221 = vld [vmem:[#allocation25 + $0x14] sm:$0xf]
        %v5222 = vld [vmem:[#allocation25 + $0x18] sm:$0xf]
        %v5223 = vld [vmem:[#allocation25 + $0x1c] sm:$0xf]
        %v5224 = vld [vmem:[#allocation25 + $0x20] sm:$0xf]
        %v5225 = vld [vmem:[#allocation25 + $0x24] sm:$0xf]
        %v5226 = vld [vmem:[#allocation25 + $0x28] sm:$0xf]
        %v5227 = vld [vmem:[#allocation25 + $0x2c] sm:$0xf]
        %v5228 = vld [vmem:[#allocation25 + $0x30] sm:$0xf]
        %v5229 = vld [vmem:[#allocation25 + $0x34] sm:$0xf]
        %v5230 = vld [vmem:[#allocation25 + $0x38] sm:$0xf]
        %v5231 = vld [vmem:[#allocation25 + $0x3c] sm:$0xf]
        %v5232 = vld [vmem:[%s17] sm:$0x1]
        %v5234 = vlaneseq
        %v5235 = vshrl.u32 %v5234, 7
        %v5236 = vsub.s32 0, %v5235
        %v5237 = vrot.slane %v5232, %v5236
        %v5255 = vunpack.c.l.b16 %v5216
        %v5256 = vunpack.c.l.b16 %v5217
        %v5257 = vunpack.c.l.b16 %v5218
        %v5258 = vunpack.c.l.b16 %v5219
        %v5259 = vunpack.c.l.b16 %v5220
        %v5260 = vunpack.c.l.b16 %v5221
        %v5261 = vunpack.c.l.b16 %v5222
        %v5262 = vunpack.c.l.b16 %v5223
        %v5263 = vunpack.c.l.b16 %v5224
        %v5264 = vunpack.c.l.b16 %v5225
        %v5265 = vunpack.c.l.b16 %v5226
        %v5266 = vunpack.c.l.b16 %v5227
        %v5267 = vunpack.c.l.b16 %v5228
        %v5268 = vunpack.c.l.b16 %v5229
        %v5269 = vunpack.c.l.b16 %v5230
        %v5270 = vunpack.c.l.b16 %v5231
        %v5271 = vpack.c.b16 %v5256, %v5255
        %v5272 = vpack.c.b16 %v5258, %v5257
        %v5273 = vpack.c.b16 %v5260, %v5259
        %v5274 = vpack.c.b16 %v5262, %v5261
        %v5275 = vpack.c.b16 %v5264, %v5263
        %v5276 = vpack.c.b16 %v5266, %v5265
        %v5277 = vpack.c.b16 %v5268, %v5267
        %v5278 = vpack.c.b16 %v5270, %v5269
        %5287 = vmatprep.subr.bf16.mxu0 0
        %5288 = vmatpush1.bf16.msra.mxu0 %v5271
        %5289 = vmatprep.subr.bf16.mxu0 0
        %5290 = vmatpush1.bf16.msra.mxu0 %v5272
        %5291 = vmatprep.subr.bf16.mxu0 0
        %5292 = vmatpush1.bf16.msra.mxu0 %v5273
        %5293 = vmatprep.subr.bf16.mxu0 0
        %5294 = vmatpush1.bf16.msra.mxu0 %v5274
        %5295 = vmatprep.subr.bf16.mxu0 0
        %5296 = vmatpush1.bf16.msra.mxu0 %v5275
        %5297 = vmatprep.subr.bf16.mxu0 0
        %5298 = vmatpush1.bf16.msra.mxu0 %v5276
        %5299 = vmatprep.subr.bf16.mxu0 0
        %5300 = vmatpush1.bf16.msra.mxu0 %v5277
        %5301 = vmatprep.subr.bf16.mxu0 0
        %5302 = vmatpush1.bf16.msra.mxu0 %v5278
        %5303 = vmatprep.subr.bf16.mxu0 0
        %5304 = vmatpush1.bf16.msra.mxu0 0
        %5305 = vmatprep.subr.bf16.mxu0 0
        %5306 = vmatpush1.bf16.msra.mxu0 0
        %5307 = vmatprep.subr.bf16.mxu0 0
        %5308 = vmatpush1.bf16.msra.mxu0 0
        %5309 = vmatprep.subr.bf16.mxu0 0
        %5310 = vmatpush1.bf16.msra.mxu0 0
        %5311 = vmatprep.subr.bf16.mxu0 0
        %5312 = vmatpush1.bf16.msra.mxu0 0
        %5313 = vmatprep.subr.bf16.mxu0 0
        %5314 = vmatpush1.bf16.msra.mxu0 0
        %5315 = vmatprep.subr.bf16.mxu0 0
        %5316 = vmatpush1.bf16.msra.mxu0 0
        %5317 = vmatprep.subr.bf16.mxu0 0
        %5318 = vmatpush1.bf16.msra.mxu0 0
        %5319 = vmatprep.mubr.bf16.mxu0 0
        %5320 = vmatmul.mubr.bf16.gmra.mrb[0].mxu0 %v5212
        %v5321 = vpop.f32.mrb[0].mxu0
        %v5322 = vadd.f32 %v5237, %v5321
        %v5323 = vpop.f32.mrb[0].mxu0
        %v5324 = vpop.f32.mrb[0].mxu0
        %v5325 = vadd.f32 %v5237, %v5324
        %v5326 = vpop.f32.mrb[0].mxu0
        %5327 = vmatprep.mubr.bf16.mxu0 0
        %5328 = vmatmul.mubr.bf16.gmra.mrb[0].mxu0 %v5213
        %v5329 = vpop.f32.mrb[0].mxu0
        %v5330 = vadd.f32 %v5237, %v5329
        %v5331 = vpop.f32.mrb[0].mxu0
        %v5332 = vpop.f32.mrb[0].mxu0
        %v5333 = vadd.f32 %v5237, %v5332
        %v5334 = vpop.f32.mrb[0].mxu0
        %5335 = vmatprep.mubr.bf16.mxu0 0
        %5336 = vmatmul.mubr.bf16.gmra.mrb[0].mxu0 %v5214
        %v5337 = vpop.f32.mrb[0].mxu0
        %v5338 = vadd.f32 %v5237, %v5337
        %v5339 = vpop.f32.mrb[0].mxu0
        %v5340 = vpop.f32.mrb[0].mxu0
        %v5341 = vadd.f32 %v5237, %v5340
        %v5342 = vpop.f32.mrb[0].mxu0
        %5343 = vmatprep.mubr.bf16.mxu0 0
        %5344 = vmatmul.mubr.bf16.gmra.mrb[0].mxu0 %v5215
        %v5345 = vpop.f32.mrb[0].mxu0
        %v5346 = vadd.f32 %v5237, %v5345
        %v5347 = vpop.f32.mrb[0].mxu0
        %v5348 = vpop.f32.mrb[0].mxu0
        %v5349 = vadd.f32 %v5237, %v5348
        %v5350 = vpop.f32.mrb[0].mxu0
        %5351 = vdwg.mxu0
        %v5352 = vmax.f32 %v5322, 0.0
        %v5353 = vmax.f32 %v5325, 0.0
        %v5354 = vmax.f32 %v5330, 0.0
        %v5355 = vmax.f32 %v5333, 0.0
        %v5356 = vmax.f32 %v5338, 0.0
        %v5357 = vmax.f32 %v5341, 0.0
        %v5358 = vmax.f32 %v5346, 0.0
        %v5359 = vmax.f32 %v5349, 0.0
        %v5360 = vpack.c.bf16 %v5353, %v5352
        %v5361 = vpack.c.bf16 %v5355, %v5354
        %v5362 = vpack.c.bf16 %v5357, %v5356
        %v5363 = vpack.c.bf16 %v5359, %v5358
        %v5364 = vld [vmem:[#allocation26] sm:$0xf]
        %v5365 = vld [vmem:[#allocation26 + $0x4] sm:$0xf]
        %v5366 = vld [vmem:[#allocation26 + $0x8] sm:$0xf]
        %v5367 = vld [vmem:[#allocation26 + $0xc] sm:$0xf]
        %v5368 = vld [vmem:[#allocation26 + $0x10] sm:$0xf]
        %v5369 = vld [vmem:[#allocation26 + $0x14] sm:$0xf]
        %v5370 = vld [vmem:[#allocation26 + $0x18] sm:$0xf]
        %v5371 = vld [vmem:[#allocation26 + $0x1c] sm:$0xf]
        %v5372 = vld [vmem:[#allocation26 + $0x20] sm:$0xf]
        %v5373 = vld [vmem:[#allocation26 + $0x24] sm:$0xf]
        %v5374 = vld [vmem:[#allocation26 + $0x28] sm:$0xf]
        %v5375 = vld [vmem:[#allocation26 + $0x2c] sm:$0xf]
        %v5376 = vld [vmem:[#allocation26 + $0x30] sm:$0xf]
        %v5377 = vld [vmem:[#allocation26 + $0x34] sm:$0xf]
        %v5378 = vld [vmem:[#allocation26 + $0x38] sm:$0xf]
        %v5379 = vld [vmem:[#allocation26 + $0x3c] sm:$0xf]
        %s5380 = scalar_lea.vmem [#allocation25], 64
        %v5381 = vld [vmem:[%s5380] sm:$0xf]
        %v5382 = vld [vmem:[%s5380 + $0x4] sm:$0xf]
        %v5383 = vld [vmem:[%s5380 + $0x8] sm:$0xf]
        %v5384 = vld [vmem:[%s5380 + $0xc] sm:$0xf]
        %v5385 = vld [vmem:[%s5380 + $0x10] sm:$0xf]
        %v5386 = vld [vmem:[%s5380 + $0x14] sm:$0xf]
        %v5387 = vld [vmem:[%s5380 + $0x18] sm:$0xf]
        %v5388 = vld [vmem:[%s5380 + $0x1c] sm:$0xf]
        %v5389 = vld [vmem:[%s5380 + $0x20] sm:$0xf]
        %v5390 = vld [vmem:[%s5380 + $0x24] sm:$0xf]
        %v5391 = vld [vmem:[%s5380 + $0x28] sm:$0xf]
        %v5392 = vld [vmem:[%s5380 + $0x2c] sm:$0xf]
        %v5393 = vld [vmem:[%s5380 + $0x30] sm:$0xf]
        %v5394 = vld [vmem:[%s5380 + $0x34] sm:$0xf]
        %v5395 = vld [vmem:[%s5380 + $0x38] sm:$0xf]
        %v5396 = vld [vmem:[%s5380 + $0x3c] sm:$0xf]
        %s5397 = scalar_lea.vmem %s17, 1
        %v5398 = vld [vmem:[%s5397] sm:$0x1]
        %v5400 = vlaneseq
        %v5401 = vshrl.u32 %v5400, 7
        %v5402 = vsub.s32 0, %v5401
        %v5403 = vrot.slane %v5398, %v5402
        %v5421 = vunpack.c.l.b16 %v5381
        %v5422 = vunpack.c.l.b16 %v5382
        %v5423 = vunpack.c.l.b16 %v5383
        %v5424 = vunpack.c.l.b16 %v5384
        %v5425 = vunpack.c.l.b16 %v5385
        %v5426 = vunpack.c.l.b16 %v5386
        %v5427 = vunpack.c.l.b16 %v5387
        %v5428 = vunpack.c.l.b16 %v5388
        %v5429 = vunpack.c.l.b16 %v5389
        %v5430 = vunpack.c.l.b16 %v5390
        %v5431 = vunpack.c.l.b16 %v5391
        %v5432 = vunpack.c.l.b16 %v5392
        %v5433 = vunpack.c.l.b16 %v5393
        %v5434 = vunpack.c.l.b16 %v5394
        %v5435 = vunpack.c.l.b16 %v5395
        %v5436 = vunpack.c.l.b16 %v5396
        %v5437 = vpack.c.b16 %v5422, %v5421
        %v5438 = vpack.c.b16 %v5424, %v5423
        %v5439 = vpack.c.b16 %v5426, %v5425
        %v5440 = vpack.c.b16 %v5428, %v5427
        %v5441 = vpack.c.b16 %v5430, %v5429
        %v5442 = vpack.c.b16 %v5432, %v5431
        %v5443 = vpack.c.b16 %v5434, %v5433
        %v5444 = vpack.c.b16 %v5436, %v5435
        %5453 = vmatprep.subr.bf16.mxu0 0
        %5454 = vmatpush1.bf16.msra.mxu0 %v5437
        %5455 = vmatprep.subr.bf16.mxu0 0
        %5456 = vmatpush1.bf16.msra.mxu0 %v5438
        %5457 = vmatprep.subr.bf16.mxu0 0
        %5458 = vmatpush1.bf16.msra.mxu0 %v5439
        %5459 = vmatprep.subr.bf16.mxu0 0
        %5460 = vmatpush1.bf16.msra.mxu0 %v5440
        %5461 = vmatprep.subr.bf16.mxu0 0
        %5462 = vmatpush1.bf16.msra.mxu0 %v5441
        %5463 = vmatprep.subr.bf16.mxu0 0
        %5464 = vmatpush1.bf16.msra.mxu0 %v5442
        %5465 = vmatprep.subr.bf16.mxu0 0
        %5466 = vmatpush1.bf16.msra.mxu0 %v5443
        %5467 = vmatprep.subr.bf16.mxu0 0
        %5468 = vmatpush1.bf16.msra.mxu0 %v5444
        %5469 = vmatprep.subr.bf16.mxu0 0
        %5470 = vmatpush1.bf16.msra.mxu0 0
        %5471 = vmatprep.subr.bf16.mxu0 0
        %5472 = vmatpush1.bf16.msra.mxu0 0
        %5473 = vmatprep.subr.bf16.mxu0 0
        %5474 = vmatpush1.bf16.msra.mxu0 0
        %5475 = vmatprep.subr.bf16.mxu0 0
        %5476 = vmatpush1.bf16.msra.mxu0 0
        %5477 = vmatprep.subr.bf16.mxu0 0
        %5478 = vmatpush1.bf16.msra.mxu0 0
        %5479 = vmatprep.subr.bf16.mxu0 0
        %5480 = vmatpush1.bf16.msra.mxu0 0
        %5481 = vmatprep.subr.bf16.mxu0 0
        %5482 = vmatpush1.bf16.msra.mxu0 0
        %5483 = vmatprep.subr.bf16.mxu0 0
        %5484 = vmatpush1.bf16.msra.mxu0 0
        %5485 = vmatprep.mubr.bf16.mxu0 0
        %5486 = vmatmul.mubr.bf16.gmra.mrb[0].mxu0 %v5212
        %v5487 = vpop.f32.mrb[0].mxu0
        %v5488 = vadd.f32 %v5403, %v5487
        %v5489 = vpop.f32.mrb[0].mxu0
        %v5490 = vpop.f32.mrb[0].mxu0
        %v5491 = vadd.f32 %v5403, %v5490
        %v5492 = vpop.f32.mrb[0].mxu0
        %5493 = vmatprep.mubr.bf16.mxu0 0
        %5494 = vmatmul.mubr.bf16.gmra.mrb[0].mxu0 %v5213
        %v5495 = vpop.f32.mrb[0].mxu0
        %v5496 = vadd.f32 %v5403, %v5495
        %v5497 = vpop.f32.mrb[0].mxu0
        %v5498 = vpop.f32.mrb[0].mxu0
        %v5499 = vadd.f32 %v5403, %v5498
        %v5500 = vpop.f32.mrb[0].mxu0
        %5501 = vmatprep.mubr.bf16.mxu0 0
        %5502 = vmatmul.mubr.bf16.gmra.mrb[0].mxu0 %v5214
        %v5503 = vpop.f32.mrb[0].mxu0
        %v5504 = vadd.f32 %v5403, %v5503
        %v5505 = vpop.f32.mrb[0].mxu0
        %v5506 = vpop.f32.mrb[0].mxu0
        %v5507 = vadd.f32 %v5403, %v5506
        %v5508 = vpop.f32.mrb[0].mxu0
        %5509 = vmatprep.mubr.bf16.mxu0 0
        %5510 = vmatmul.mubr.bf16.gmra.mrb[0].mxu0 %v5215
        %v5511 = vpop.f32.mrb[0].mxu0
        %v5512 = vadd.f32 %v5403, %v5511
        %v5513 = vpop.f32.mrb[0].mxu0
        %v5514 = vpop.f32.mrb[0].mxu0
        %v5515 = vadd.f32 %v5403, %v5514
        %v5516 = vpop.f32.mrb[0].mxu0
        %5517 = vdwg.mxu0
        %v5518 = vmax.f32 %v5488, 0.0
        %v5519 = vmax.f32 %v5491, 0.0
        %v5520 = vmax.f32 %v5496, 0.0
        %v5521 = vmax.f32 %v5499, 0.0
        %v5522 = vmax.f32 %v5504, 0.0
        %v5523 = vmax.f32 %v5507, 0.0
        %v5524 = vmax.f32 %v5512, 0.0
        %v5525 = vmax.f32 %v5515, 0.0
        %v5526 = vpack.c.bf16 %v5519, %v5518
        %v5527 = vpack.c.bf16 %v5521, %v5520
        %v5528 = vpack.c.bf16 %v5523, %v5522
        %v5529 = vpack.c.bf16 %v5525, %v5524
        %s5530 = scalar_lea.vmem [#allocation26], 64
        %v5531 = vld [vmem:[%s5530] sm:$0xf]
        %v5532 = vld [vmem:[%s5530 + $0x4] sm:$0xf]
        %v5533 = vld [vmem:[%s5530 + $0x8] sm:$0xf]
        %v5534 = vld [vmem:[%s5530 + $0xc] sm:$0xf]
        %v5535 = vld [vmem:[%s5530 + $0x10] sm:$0xf]
        %v5536 = vld [vmem:[%s5530 + $0x14] sm:$0xf]
        %v5537 = vld [vmem:[%s5530 + $0x18] sm:$0xf]
        %v5538 = vld [vmem:[%s5530 + $0x1c] sm:$0xf]
        %v5539 = vld [vmem:[%s5530 + $0x20] sm:$0xf]
        %v5540 = vld [vmem:[%s5530 + $0x24] sm:$0xf]
        %v5541 = vld [vmem:[%s5530 + $0x28] sm:$0xf]
        %v5542 = vld [vmem:[%s5530 + $0x2c] sm:$0xf]
        %v5543 = vld [vmem:[%s5530 + $0x30] sm:$0xf]
        %v5544 = vld [vmem:[%s5530 + $0x34] sm:$0xf]
        %v5545 = vld [vmem:[%s5530 + $0x38] sm:$0xf]
        %v5546 = vld [vmem:[%s5530 + $0x3c] sm:$0xf]
        %v5563 = vunpack.c.l.b16 %v5531
        %v5564 = vunpack.c.l.b16 %v5532
        %v5565 = vunpack.c.l.b16 %v5533
        %v5566 = vunpack.c.l.b16 %v5534
        %v5567 = vunpack.c.l.b16 %v5535
        %v5568 = vunpack.c.l.b16 %v5536
        %v5569 = vunpack.c.l.b16 %v5537
        %v5570 = vunpack.c.l.b16 %v5538
        %v5571 = vunpack.c.l.b16 %v5539
        %v5572 = vunpack.c.l.b16 %v5540
        %v5573 = vunpack.c.l.b16 %v5541
        %v5574 = vunpack.c.l.b16 %v5542
        %v5575 = vunpack.c.l.b16 %v5543
        %v5576 = vunpack.c.l.b16 %v5544
        %v5577 = vunpack.c.l.b16 %v5545
        %v5578 = vunpack.c.l.b16 %v5546
        %v5579 = vpack.c.b16 %v5564, %v5563
        %v5580 = vpack.c.b16 %v5566, %v5565
        %v5581 = vpack.c.b16 %v5568, %v5567
        %v5582 = vpack.c.b16 %v5570, %v5569
        %v5583 = vpack.c.b16 %v5572, %v5571
        %v5584 = vpack.c.b16 %v5574, %v5573
        %v5585 = vpack.c.b16 %v5576, %v5575
        %v5586 = vpack.c.b16 %v5578, %v5577
        %5595 = vmatprep.subr.bf16.mxu0 0
        %5596 = vmatpush1.bf16.msra.mxu0 %v5579
        %5597 = vmatprep.subr.bf16.mxu0 0
        %5598 = vmatpush1.bf16.msra.mxu0 %v5580
        %5599 = vmatprep.subr.bf16.mxu0 0
        %5600 = vmatpush1.bf16.msra.mxu0 %v5581
        %5601 = vmatprep.subr.bf16.mxu0 0
        %5602 = vmatpush1.bf16.msra.mxu0 %v5582
        %5603 = vmatprep.subr.bf16.mxu0 0
        %5604 = vmatpush1.bf16.msra.mxu0 %v5583
        %5605 = vmatprep.subr.bf16.mxu0 0
        %5606 = vmatpush1.bf16.msra.mxu0 %v5584
        %5607 = vmatprep.subr.bf16.mxu0 0
        %5608 = vmatpush1.bf16.msra.mxu0 %v5585
        %5609 = vmatprep.subr.bf16.mxu0 0
        %5610 = vmatpush1.bf16.msra.mxu0 %v5586
        %5611 = vmatprep.subr.bf16.mxu0 0
        %5612 = vmatpush1.bf16.msra.mxu0 0
        %5613 = vmatprep.subr.bf16.mxu0 0
        %5614 = vmatpush1.bf16.msra.mxu0 0
        %5615 = vmatprep.subr.bf16.mxu0 0
        %5616 = vmatpush1.bf16.msra.mxu0 0
        %5617 = vmatprep.subr.bf16.mxu0 0
        %5618 = vmatpush1.bf16.msra.mxu0 0
        %5619 = vmatprep.subr.bf16.mxu0 0
        %5620 = vmatpush1.bf16.msra.mxu0 0
        %5621 = vmatprep.subr.bf16.mxu0 0
        %5622 = vmatpush1.bf16.msra.mxu0 0
        %5623 = vmatprep.subr.bf16.mxu0 0
        %5624 = vmatpush1.bf16.msra.mxu0 0
        %5625 = vmatprep.subr.bf16.mxu0 0
        %5626 = vmatpush1.bf16.msra.mxu0 0
        %5627 = vmatprep.mubr.bf16.mxu0 0
        %5628 = vmatmul.mubr.bf16.gmra.mrb[0].mxu0 %v5526
        %v5629 = vpop.f32.mrb[0].mxu0
        %v5630 = vadd.f32 0.0, %v5629
        %v5631 = vpop.f32.mrb[0].mxu0
        %v5632 = vpop.f32.mrb[0].mxu0
        %v5633 = vadd.f32 0.0, %v5632
        %v5634 = vpop.f32.mrb[0].mxu0
        %5635 = vmatprep.mubr.bf16.mxu0 0
        %5636 = vmatmul.mubr.bf16.gmra.mrb[0].mxu0 %v5527
        %v5637 = vpop.f32.mrb[0].mxu0
        %v5638 = vadd.f32 0.0, %v5637
        %v5639 = vpop.f32.mrb[0].mxu0
        %v5640 = vpop.f32.mrb[0].mxu0
        %v5641 = vadd.f32 0.0, %v5640
        %v5642 = vpop.f32.mrb[0].mxu0
        %5643 = vmatprep.mubr.bf16.mxu0 0
        %5644 = vmatmul.mubr.bf16.gmra.mrb[0].mxu0 %v5528
        %v5645 = vpop.f32.mrb[0].mxu0
        %v5646 = vadd.f32 0.0, %v5645
        %v5647 = vpop.f32.mrb[0].mxu0
        %v5648 = vpop.f32.mrb[0].mxu0
        %v5649 = vadd.f32 0.0, %v5648
        %v5650 = vpop.f32.mrb[0].mxu0
        %5651 = vmatprep.mubr.bf16.mxu0 0
        %5652 = vmatmul.mubr.bf16.gmra.mrb[0].mxu0 %v5529
        %v5653 = vpop.f32.mrb[0].mxu0
        %v5654 = vadd.f32 0.0, %v5653
        %v5655 = vpop.f32.mrb[0].mxu0
        %v5656 = vpop.f32.mrb[0].mxu0
        %v5657 = vadd.f32 0.0, %v5656
        %v5658 = vpop.f32.mrb[0].mxu0
        %5659 = vdwg.mxu0
        %v5676 = vunpack.c.l.b16 %v5364
        %v5677 = vunpack.c.l.b16 %v5365
        %v5678 = vunpack.c.l.b16 %v5366
        %v5679 = vunpack.c.l.b16 %v5367
        %v5680 = vunpack.c.l.b16 %v5368
        %v5681 = vunpack.c.l.b16 %v5369
        %v5682 = vunpack.c.l.b16 %v5370
        %v5683 = vunpack.c.l.b16 %v5371
        %v5684 = vunpack.c.l.b16 %v5372
        %v5685 = vunpack.c.l.b16 %v5373
        %v5686 = vunpack.c.l.b16 %v5374
        %v5687 = vunpack.c.l.b16 %v5375
        %v5688 = vunpack.c.l.b16 %v5376
        %v5689 = vunpack.c.l.b16 %v5377
        %v5690 = vunpack.c.l.b16 %v5378
        %v5691 = vunpack.c.l.b16 %v5379
        %v5692 = vpack.c.b16 %v5677, %v5676
        %v5693 = vpack.c.b16 %v5679, %v5678
        %v5694 = vpack.c.b16 %v5681, %v5680
        %v5695 = vpack.c.b16 %v5683, %v5682
        %v5696 = vpack.c.b16 %v5685, %v5684
        %v5697 = vpack.c.b16 %v5687, %v5686
        %v5698 = vpack.c.b16 %v5689, %v5688
        %v5699 = vpack.c.b16 %v5691, %v5690
        %5708 = vmatprep.subr.bf16.mxu0 0
        %5709 = vmatpush1.bf16.msra.mxu0 %v5692
        %5710 = vmatprep.subr.bf16.mxu0 0
        %5711 = vmatpush1.bf16.msra.mxu0 %v5693
        %5712 = vmatprep.subr.bf16.mxu0 0
        %5713 = vmatpush1.bf16.msra.mxu0 %v5694
        %5714 = vmatprep.subr.bf16.mxu0 0
        %5715 = vmatpush1.bf16.msra.mxu0 %v5695
        %5716 = vmatprep.subr.bf16.mxu0 0
        %5717 = vmatpush1.bf16.msra.mxu0 %v5696
        %5718 = vmatprep.subr.bf16.mxu0 0
        %5719 = vmatpush1.bf16.msra.mxu0 %v5697
        %5720 = vmatprep.subr.bf16.mxu0 0
        %5721 = vmatpush1.bf16.msra.mxu0 %v5698
        %5722 = vmatprep.subr.bf16.mxu0 0
        %5723 = vmatpush1.bf16.msra.mxu0 %v5699
        %5724 = vmatprep.subr.bf16.mxu0 0
        %5725 = vmatpush1.bf16.msra.mxu0 0
        %5726 = vmatprep.subr.bf16.mxu0 0
        %5727 = vmatpush1.bf16.msra.mxu0 0
        %5728 = vmatprep.subr.bf16.mxu0 0
        %5729 = vmatpush1.bf16.msra.mxu0 0
        %5730 = vmatprep.subr.bf16.mxu0 0
        %5731 = vmatpush1.bf16.msra.mxu0 0
        %5732 = vmatprep.subr.bf16.mxu0 0
        %5733 = vmatpush1.bf16.msra.mxu0 0
        %5734 = vmatprep.subr.bf16.mxu0 0
        %5735 = vmatpush1.bf16.msra.mxu0 0
        %5736 = vmatprep.subr.bf16.mxu0 0
        %5737 = vmatpush1.bf16.msra.mxu0 0
        %5738 = vmatprep.subr.bf16.mxu0 0
        %5739 = vmatpush1.bf16.msra.mxu0 0
        %5740 = vmatprep.mubr.bf16.mxu0 0
        %5741 = vmatmul.mubr.bf16.gmra.mrb[0].mxu0 %v5360
        %v5742 = vpop.f32.mrb[0].mxu0
        %v5743 = vadd.f32 %v5630, %v5742
        %v5744 = vpop.f32.mrb[0].mxu0
        %v5745 = vpop.f32.mrb[0].mxu0
        %v5746 = vadd.f32 %v5633, %v5745
        %v5747 = vpop.f32.mrb[0].mxu0
        %5748 = vmatprep.mubr.bf16.mxu0 0
        %5749 = vmatmul.mubr.bf16.gmra.mrb[0].mxu0 %v5361
        %v5750 = vpop.f32.mrb[0].mxu0
        %v5751 = vadd.f32 %v5638, %v5750
        %v5752 = vpop.f32.mrb[0].mxu0
        %v5753 = vpop.f32.mrb[0].mxu0
        %v5754 = vadd.f32 %v5641, %v5753
        %v5755 = vpop.f32.mrb[0].mxu0
        %5756 = vmatprep.mubr.bf16.mxu0 0
        %5757 = vmatmul.mubr.bf16.gmra.mrb[0].mxu0 %v5362
        %v5758 = vpop.f32.mrb[0].mxu0
        %v5759 = vadd.f32 %v5646, %v5758
        %v5760 = vpop.f32.mrb[0].mxu0
        %v5761 = vpop.f32.mrb[0].mxu0
        %v5762 = vadd.f32 %v5649, %v5761
        %v5763 = vpop.f32.mrb[0].mxu0
        %5764 = vmatprep.mubr.bf16.mxu0 0
        %5765 = vmatmul.mubr.bf16.gmra.mrb[0].mxu0 %v5363
        %v5766 = vpop.f32.mrb[0].mxu0
        %v5767 = vadd.f32 %v5654, %v5766
        %v5768 = vpop.f32.mrb[0].mxu0
        %v5769 = vpop.f32.mrb[0].mxu0
        %v5770 = vadd.f32 %v5657, %v5769
        %v5771 = vpop.f32.mrb[0].mxu0
        %5772 = vdwg.mxu0
        %v5773 = vadd.f32 %v5204, %v5743
        %v5774 = vadd.f32 %v5205, %v5746
        %v5775 = vadd.f32 %v5206, %v5751
        %v5776 = vadd.f32 %v5207, %v5754
        %v5777 = vadd.f32 %v5208, %v5759
        %v5778 = vadd.f32 %v5209, %v5762
        %v5779 = vadd.f32 %v5210, %v5767
        %v5780 = vadd.f32 %v5211, %v5770
        %v5781 = vld [vmem:[%s19] sm:$0x1]
        %v5783 = vlaneseq
        %v5784 = vshrl.u32 %v5783, 7
        %v5785 = vsub.s32 0, %v5784
        %v5786 = vrot.slane %v5781, %v5785
        %v5788 = vadd.f32 %v5773, %v5786
        %v5789 = vadd.f32 %v5774, %v5786
        %v5790 = vadd.f32 %v5775, %v5786
        %v5791 = vadd.f32 %v5776, %v5786
        %v5792 = vadd.f32 %v5777, %v5786
        %v5793 = vadd.f32 %v5778, %v5786
        %v5794 = vadd.f32 %v5779, %v5786
        %v5795 = vadd.f32 %v5780, %v5786
        %v5796 = vpack.c.bf16 %v5789, %v5788
        %v5797 = vpack.c.bf16 %v5791, %v5790
        %v5798 = vpack.c.bf16 %v5793, %v5792
        %v5799 = vpack.c.bf16 %v5795, %v5794
        %v5804 = vunpack.c.l.b16 %v5796
        %v5805 = vunpack.c.h.b16 %v5796
        %v5806 = vunpack.c.l.b16 %v5797
        %v5807 = vunpack.c.h.b16 %v5797
        %v5808 = vunpack.c.l.b16 %v5798
        %v5809 = vunpack.c.h.b16 %v5798
        %v5810 = vunpack.c.l.b16 %v5799
        %v5811 = vunpack.c.h.b16 %v5799
        %v5812 = vpack.c.b16 %v5804, %v5804
        %v5813 = vpack.c.b16 %v5805, %v5805
        %v5814 = vpack.c.b16 %v5806, %v5806
        %v5815 = vpack.c.b16 %v5807, %v5807
        %v5816 = vpack.c.b16 %v5808, %v5808
        %v5817 = vpack.c.b16 %v5809, %v5809
        %v5818 = vpack.c.b16 %v5810, %v5810
        %v5819 = vpack.c.b16 %v5811, %v5811
        %5828 = vst [vmem:[%s902] sm:$0xf] %v5812
        %5829 = vst [vmem:[%s902 + $0x4] sm:$0xf] %v5813
        %5830 = vst [vmem:[%s902 + $0x8] sm:$0xf] %v5814
        %5831 = vst [vmem:[%s902 + $0xc] sm:$0xf] %v5815
        %5832 = vst [vmem:[%s902 + $0x10] sm:$0xf] %v5816
        %5833 = vst [vmem:[%s902 + $0x14] sm:$0xf] %v5817
        %5834 = vst [vmem:[%s902 + $0x18] sm:$0xf] %v5818
        %5835 = vst [vmem:[%s902 + $0x1c] sm:$0xf] %v5819
        %s5836 = sand.u32 %s513, 1
        %s5837 = scalar_lea.sflag [#allocation10], %s5836
        %s5838 = sand.u32 %s513, 1
        %s5839 = smul.addr %s5838, 32
        %s5840 = scalar_lea.vmem [#allocation28], %s5839
        // Predicated region
        $region153: #{tpu_custom_call.1} parent=99 // pred_check
          %p5841 = pneg %p523
        $region154: #{tpu_custom_call.1} parent=99 // pred_check_branch
          %5843 = sbr.rel (%p5841) target = $region156
        $region155: #{tpu_custom_call.1} parent=99 // pred_region
          %s5844 = smul.u32 8, %s52
          %s5846 = ssub.s32 512, 512
          %5847 = vsyncadd %s5837, %s5846
          %s5848 = smul.addr %s51, 16
          %s5849 = sadd.s32 %s5844, %s5848
          %s5850 = smul.addr %s5849, 64
          %s5851 = scalar_lea.hbm %s20, %s5850
          %s5852 = sshll.u32 %s5840, 4
          %s5853 = int_to_ptr.vmem [resolvable:$true] %s5852
          %5858 = dma.vmem_to_hbm [thread:$0]  %s5853, 512, %s5851, %s5837, 64, 64, 4
        $region156: #{tpu_custom_call.1} parent=99 // pred_fallthru
          _
      $region100: #{tpu_custom_call.1} parent=5 // pred_fallthru
        _
      %p5859 = scmp.le.s32.totalorder 2, %s42
      // Predicated region
      $region157: #{tpu_custom_call.1} parent=5 // pred_check
        %p5860 = pneg %p5859
      $region158: #{tpu_custom_call.1} parent=5 // pred_check_branch
        %5862 = sbr.rel (%p5860) target = $region160
      $region159: #{tpu_custom_call.1} parent=5 // pred_region
        %s5863 = ssub.s32 %s42, 2
        // Predicated region
        $region161: #{tpu_custom_call.1} parent=159 // pred_check
          %p5864 = pneg %p529
        $region162: #{tpu_custom_call.1} parent=159 // pred_check_branch
          %5866 = sbr.rel (%p5864) target = $region164
        $region163: #{tpu_custom_call.1} parent=159 // pred_region
          %s5867 = sand.u32 %s514, 1
          %s5868 = scalar_lea.sflag [#allocation10], %s5867
          %s5869 = sand.u32 %s514, 1
          %s5870 = smul.addr %s5869, 32
          %s5871 = scalar_lea.vmem [#allocation28], %s5870
          %5872 = dma.done %s5868, 512
        $region164: #{tpu_custom_call.1} parent=159 // pred_fallthru
          _
      $region160: #{tpu_custom_call.1} parent=5 // pred_fallthru
        _
    $region6: #{tpu_custom_call.1} parent=1 // loop_footer
      %s46 = sadd.s32 1, %s42
    $region7: #{tpu_custom_call.1} parent=1 // loop_footer_branch
      %41 = sbr.rel target = $region3
    $region8: #{tpu_custom_call.1} parent=1 // loop_exit
      _
    %5873 = vsyncpa [#allocation9], 1
    %s5874 = scalar_lea.sflag [#allocation9], 1
    %5875 = vsyncpa %s5874, 1
    %5876 = vsyncpa [#allocation12], 1
    %s5877 = scalar_lea.sflag [#allocation12], 1
    %5878 = vsyncpa %s5877, 1
    %5879 = vsyncpa [#allocation15], 1
    %s5880 = scalar_lea.sflag [#allocation15], 1
    %5881 = vsyncpa %s5880, 1
    %5882 = vsyncpa [#allocation18], 1
    %5883 = vsyncpa [#allocation21], 1
    %5884 = vsyncpa [#allocation24], 1
    %5885 = vsyncpa [#allocation27], 1
    %5886 = vsyncpa [#allocation10], 1
    %s5887 = scalar_lea.sflag [#allocation10], 1
    %5888 = vsyncpa %s5887, 1

</llo_original>
